<compile_context>
chip_gen: v7x
topology: tpu7x:2x2x1
jax: 0.10.0
libtpu: 0.0.40
codegen_flags: <defaults>
</compile_context>

<pallas_src>
import functools

import jax
import jax.numpy as jnp
from jax.experimental import pallas as pl
from jax.experimental.pallas import tpu as pltpu


def _round_up(x, m):
    return ((x + m - 1) // m) * m


def _pick_tk(Kp, target=3072):
    """Largest multiple-of-128 tile <= target that divides Kp (Kp % 128 == 0)."""
    assert Kp % 128 == 0, Kp
    tk = min(Kp, max(128, (target // 128) * 128))
    while Kp % tk != 0:
        tk -= 128
    return max(tk, 128)


# ----------------------------------------------------------------------------
# Fused kernel: stream int8 w1 over the K grid axis; layers 2-4 in epilogue.
# ----------------------------------------------------------------------------
def _fused_mlp_kernel(
    x_ref, w1_ref, s1_ref, b1_ref, w2_ref, b2_ref, w3_ref, b3_ref,
    w4_ref, b4_ref, o_ref, h1_acc, *, tk,
):
    k = pl.program_id(0)

    @pl.when(k == 0)
    def _():
        h1_acc[...] = jnp.zeros_like(h1_acc)

    # Layer-1 partial product for this K tile.
    # x is VMEM-resident f32: slice this K-tile and cast to bf16 in-kernel.
    start = pl.multiple_of(k * tk, 128)
    x_tile = x_ref[:, pl.ds(start, tk)].astype(jnp.bfloat16)
    # int8 weight tile -> bf16 (exact: |q| <= 127); per-channel scale is
    # applied once in the epilogue.
    w_tile = w1_ref[...].astype(jnp.bfloat16)
    h1_acc[...] += jnp.dot(x_tile, w_tile, preferred_element_type=jnp.float32)

    @pl.when(k == pl.num_programs(0) - 1)
    def _():
        wdt = w2_ref.dtype
        # Layer 1: fold dequant scale + bias, ReLU (padded cols stay 0).
        h1 = jnp.maximum(h1_acc[...] * s1_ref[...] + b1_ref[...], 0.0)
        # Layer 2
        h2 = jnp.dot(h1.astype(wdt), w2_ref[...],
                     preferred_element_type=jnp.float32) + b2_ref[...]
        h2 = jnp.maximum(h2, 0.0)
        # Layer 3
        h3 = jnp.dot(h2.astype(wdt), w3_ref[...],
                     preferred_element_type=jnp.float32) + b3_ref[...]
        h3 = jnp.maximum(h3, 0.0)
        # Layer 4 + sigmoid (padded output cols become 0.5, sliced off later).
        h4 = jnp.dot(h3.astype(wdt), w4_ref[...],
                     preferred_element_type=jnp.float32) + b4_ref[...]
        o_ref[...] = jax.nn.sigmoid(h4).astype(o_ref.dtype)


def _physical_vmem_bytes():
    try:
        info = pltpu.get_tpu_info()
        return int(getattr(info, "vmem_capacity_bytes", 64 << 20))
    except Exception:
        return 64 << 20  # conservative fallback (v7x-sized)


def _vmem_limit_bytes(Mp, Kp, tk, D1, D2, D3, D4):
    x_res = 2 * Mp * Kp * 4                                   # resident x (f32, dbl-buf)
    w1_stream = 2 * tk * D1 * 1                               # int8 w1 tiles (dbl-buf)
    resident_w = 2 * (D1 * D2 + D2 * D3 + D3 * D4) * 2        # bf16 w2/w3/w4
    resident_sb = 2 * (2 * D1 + D2 + D3 + D4) * 4             # scale + biases (f32)
    out = 2 * Mp * D4 * 4
    acc = Mp * D1 * 4
    total = x_res + w1_stream + resident_w + resident_sb + out + acc + (8 << 20)
    cap = int(0.75 * _physical_vmem_bytes())
    return int(min(total, cap))


# ----------------------------------------------------------------------------
# Parameter preparation (done ONCE at model setup, not per forward).
# ----------------------------------------------------------------------------
def _init_linear(key, in_f, out_f, dtype=jnp.float32):
    """Deterministic init mimicking torch.nn.Linear (uniform +/- 1/sqrt(in_f)).

    Returns weight as [in_f, out_f] (transposed vs torch) and bias [out_f]."""
    kw, kb = jax.random.split(key)
    bound = 1.0 / (in_f ** 0.5)
    w = jax.random.uniform(kw, (in_f, out_f), dtype, minval=-bound, maxval=bound)
    b = jax.random.uniform(kb, (out_f,), dtype, minval=-bound, maxval=bound)
    return w, b


def prepare_params(params, weight_dtype=jnp.bfloat16):
    """Pad K/N to multiples of 128; quantize w1 to int8 (per-output-channel
    scales); cast w2/w3/w4 to bf16.  Done once at setup."""
    (w1, b1), *rest = params

    # --- Layer 1: symmetric per-output-channel int8 quantization ------------
    K, N = w1.shape
    Kp, Np = _round_up(K, 128), _round_up(N, 128)
    w1_f = jnp.zeros((Kp, Np), jnp.float32).at[:K, :N].set(w1.astype(jnp.float32))
    absmax = jnp.max(jnp.abs(w1_f), axis=0, keepdims=True)          # (1, Np)
    s1 = jnp.where(absmax > 0.0, absmax / 127.0, 1.0).astype(jnp.float32)
    w1_q = jnp.clip(jnp.round(w1_f / s1), -127.0, 127.0).astype(jnp.int8)
    b1_p = jnp.zeros((1, Np), jnp.float32).at[0, :N].set(b1.astype(jnp.float32))
    prepped = [(w1_q, s1, b1_p)]

    # --- Layers 2-4: bf16 weights, f32 biases --------------------------------
    for w, b in rest:
        K, N = w.shape
        Kp, Np = _round_up(K, 128), _round_up(N, 128)
        w_p = jnp.zeros((Kp, Np), weight_dtype).at[:K, :N].set(
            w.astype(weight_dtype))
        b_p = jnp.zeros((1, Np), jnp.float32).at[0, :N].set(
            b.astype(jnp.float32))
        prepped.append((w_p, b_p))
    return tuple(prepped)


# ----------------------------------------------------------------------------
# Forward pass.
# ----------------------------------------------------------------------------
@functools.partial(jax.jit, static_argnames=("tk",))
def net_forward(x, prepared_params, *, tk=3072):
    """x: [B, 6144] float32 -> [B, 1] float32."""
    (w1q, s1, b1), (w2, b2), (w3, b3), (w4, b4) = prepared_params
    B, D = x.shape
    Kp, D1 = w1q.shape        # 6144, 1024
    _, D2 = w2.shape          # 512
    _, D3 = w3.shape          # 128
    _, D4 = w4.shape          # 128
    assert D <= Kp, (D, Kp)

    tk = _pick_tk(Kp, tk)
    nk = Kp // tk

    # Pad batch to a multiple of 8 (sublane) and features to Kp; keep f32
    # (the bf16 cast happens per-tile inside the kernel, on idle VPU slots).
    Mp = max(_round_up(B, 8), 8)
    x_p = x.astype(jnp.float32)
    if (Mp, Kp) != (B, D):
        x_p = jnp.zeros((Mp, Kp), jnp.float32).at[:B, :D].set(x_p)

    cost = pl.CostEstimate(
        flops=2 * Mp * (Kp * D1 + D1 * D2 + D2 * D3 + D3 * D4),
        transcendentals=Mp * D4,
        bytes_accessed=(Kp * D1                                  # int8 w1
                        + 2 * (D1 * D2 + D2 * D3 + D3 * D4)      # bf16 w2-4
                        + 4 * (Mp * Kp + Mp * D4)                # x + out
                        + 4 * (2 * D1 + D2 + D3 + D4)),          # scale+biases
    )

    out = pl.pallas_call(
        functools.partial(_fused_mlp_kernel, tk=tk),
        out_shape=jax.ShapeDtypeStruct((Mp, D4), jnp.float32),
        grid_spec=pltpu.PrefetchScalarGridSpec(
            num_scalar_prefetch=0,
            grid=(nk,),
            in_specs=[
                pl.BlockSpec((Mp, Kp), lambda k: (0, 0)),   # x     (resident, f32)
                pl.BlockSpec((tk, D1), lambda k: (k, 0)),   # w1    (streamed, int8)
                pl.BlockSpec((1, D1), lambda k: (0, 0)),    # s1    (resident)
                pl.BlockSpec((1, D1), lambda k: (0, 0)),    # b1
                pl.BlockSpec((D1, D2), lambda k: (0, 0)),   # w2    (resident)
                pl.BlockSpec((1, D2), lambda k: (0, 0)),    # b2
                pl.BlockSpec((D2, D3), lambda k: (0, 0)),   # w3
                pl.BlockSpec((1, D3), lambda k: (0, 0)),    # b3
                pl.BlockSpec((D3, D4), lambda k: (0, 0)),   # w4
                pl.BlockSpec((1, D4), lambda k: (0, 0)),    # b4
            ],
            out_specs=pl.BlockSpec((Mp, D4), lambda k: (0, 0)),
            scratch_shapes=[pltpu.VMEM((Mp, D1), jnp.float32)],  # layer-1 acc
        ),
        compiler_params=pltpu.CompilerParams(
            dimension_semantics=("arbitrary",),  # K is a reduction axis
            vmem_limit_bytes=_vmem_limit_bytes(Mp, Kp, tk, D1, D2, D3, D4),
        ),
        cost_estimate=cost,
    )(x_p, w1q, s1, b1, w2, b2, w3, b3, w4, b4)

    return out[:B, :1]


# ----------------------------------------------------------------------------
# Pure-JAX references.
# ----------------------------------------------------------------------------
def net_forward_ref(x, params):
    """Full-f32 reference matching the torch forward exactly."""
    (w1, b1), (w2, b2), (w3, b3), (w4, b4) = params
    h = jnp.maximum(x @ w1 + b1, 0.0)
    h = jnp.maximum(h @ w2 + b2, 0.0)
    h = jnp.maximum(h @ w3 + b3, 0.0)
    return jax.nn.sigmoid(h @ w4 + b4)


def net_forward_ref_matched(x, prepared_params):
    """Reference matching the kernel's numerics: int8 w1 (dequant via
    per-channel scale), bf16 activations/weights, f32 accumulation."""
    (w1q, s1, b1), (w2, b2), (w3, b3), (w4, b4) = prepared_params
    B, D = x.shape
    Kp = w1q.shape[0]
    xp = jnp.zeros((B, Kp), jnp.float32).at[:, :D].set(x)
    h = jnp.dot(xp.astype(jnp.bfloat16), w1q.astype(jnp.bfloat16),
                preferred_element_type=jnp.float32)
    h = jnp.maximum(h * s1 + b1, 0.0)
    for w, b, act in ((w2, b2, True), (w3, b3, True), (w4, b4, False)):
        h = jnp.dot(h.astype(w.dtype), w,
                    preferred_element_type=jnp.float32) + b
        if act:
            h = jnp.maximum(h, 0.0)
    return jax.nn.sigmoid(h)[:, :1]


if __name__ == "__main__":
    key = jax.random.PRNGKey(0)
    k_x, k1, k2, k3, k4 = jax.random.split(key, 5)

    B = 8
    x = jax.random.normal(k_x, (B, 6144), jnp.float32)

    params = (
        _init_linear(k1, 6144, 1000),
        _init_linear(k2, 1000, 500),
        _init_linear(k3, 500, 100),
        _init_linear(k4, 100, 1),
    )
    # Padding / int8-quantization / bf16 cast hoisted out of the forward.
    prepared = jax.block_until_ready(prepare_params(params))

    out = jax.block_until_ready(net_forward(x, prepared))
    ref_match = jax.block_until_ready(net_forward_ref_matched(x, prepared))
    ref_f32 = jax.block_until_ready(net_forward_ref(x, params))

    assert out.shape == (B, 1), out.shape
    # Tight check vs a numerics-matched (int8 w1 / bf16 / f32-accum) reference.
    assert jnp.allclose(out, ref_match, atol=2e-3, rtol=2e-3), (
        float(jnp.max(jnp.abs(out - ref_match))))
    # Loose check vs the full-f32 torch-equivalent reference (int8 w1 + bf16
    # weights introduce ~1e-3..1e-2-level deviation by design).
    assert jnp.allclose(out, ref_f32, atol=5e-2, rtol=5e-2), (
        float(jnp.max(jnp.abs(out - ref_f32))))
    print("KERNEL_OK")
</pallas_src>

<mosaic_0001>
module attributes {stable_mosaic.version = 11 : i64} {
  func.func @_fused_mlp_kernel(%arg0: i32, %arg1: memref<8x6144xf32, #tpu.memory_space<vmem>>, %arg2: memref<3072x1024xi8, #tpu.memory_space<vmem>>, %arg3: memref<1x1024xf32, #tpu.memory_space<vmem>>, %arg4: memref<1x1024xf32, #tpu.memory_space<vmem>>, %arg5: memref<1024x512xbf16, #tpu.memory_space<vmem>>, %arg6: memref<1x512xf32, #tpu.memory_space<vmem>>, %arg7: memref<512x128xbf16, #tpu.memory_space<vmem>>, %arg8: memref<1x128xf32, #tpu.memory_space<vmem>>, %arg9: memref<128x128xbf16, #tpu.memory_space<vmem>>, %arg10: memref<1x128xf32, #tpu.memory_space<vmem>>, %arg11: memref<8x128xf32, #tpu.memory_space<vmem>>, %arg12: memref<8x1024xf32, #tpu.memory_space<vmem>>) attributes {dimension_semantics = [#tpu.dimension_semantics<arbitrary>], iteration_bounds = array<i64: 2>, scalar_prefetch = 0 : i64, scratch_operands = 1 : i64, tpu.core_type = #tpu.core_type<tc>, window_params = [{pipeline_mode = #tpu.pipeline_mode<synchronous>, transform_indices = @transform_0, window_bounds = array<i64: 8, 6144>}, {transform_indices = @transform_1, window_bounds = array<i64: 3072, 1024>}, {pipeline_mode = #tpu.pipeline_mode<synchronous>, transform_indices = @transform_2, window_bounds = array<i64: 1, 1024>}, {pipeline_mode = #tpu.pipeline_mode<synchronous>, transform_indices = @transform_3, window_bounds = array<i64: 1, 1024>}, {pipeline_mode = #tpu.pipeline_mode<synchronous>, transform_indices = @transform_4, window_bounds = array<i64: 1024, 512>}, {pipeline_mode = #tpu.pipeline_mode<synchronous>, transform_indices = @transform_5, window_bounds = array<i64: 1, 512>}, {pipeline_mode = #tpu.pipeline_mode<synchronous>, transform_indices = @transform_6, window_bounds = array<i64: 512, 128>}, {pipeline_mode = #tpu.pipeline_mode<synchronous>, transform_indices = @transform_7, window_bounds = array<i64: 1, 128>}, {pipeline_mode = #tpu.pipeline_mode<synchronous>, transform_indices = @transform_8, window_bounds = array<i64: 128, 128>}, {pipeline_mode = #tpu.pipeline_mode<synchronous>, transform_indices = @transform_9, window_bounds = array<i64: 1, 128>}, {pipeline_mode = #tpu.pipeline_mode<synchronous>, transform_indices = @transform_10, window_bounds = array<i64: 8, 128>}]} {
    %c0_i32 = arith.constant 0 : i32
    %0 = arith.cmpi eq, %arg0, %c0_i32 : i32
    %1 = arith.extui %0 : i1 to i32
    %c0_i32_0 = arith.constant 0 : i32
    %2 = arith.cmpi ne, %1, %c0_i32_0 : i32
    scf.if %2 {
      %cst_8 = arith.constant 0.000000e+00 : f32
      %17 = vector.broadcast %cst_8 : f32 to vector<8x1024xf32>
      %c0_9 = arith.constant 0 : index
      %c0_10 = arith.constant 0 : index
      %18 = vector.load %arg12[%c0_9, %c0_10] : memref<8x1024xf32, #tpu.memory_space<vmem>>, vector<8x1024xf32>
      tpu.vector_store %arg12[%c0_9, %c0_10], %17 {strides = array<i32>} : memref<8x1024xf32, #tpu.memory_space<vmem>>, vector<8x1024xf32>,
    } else {
    }
    %c3072_i32 = arith.constant 3072 : i32
    %3 = arith.muli %arg0, %c3072_i32 : i32
    %4 = tpu.assume_multiple %3, 128 : i32
    %c0 = arith.constant 0 : index
    %5 = arith.index_cast %4 : i32 to index
    %6 = vector.load %arg1[%c0, %5] : memref<8x6144xf32, #tpu.memory_space<vmem>>, vector<8x3072xf32>
    %7 = arith.truncf %6 : vector<8x3072xf32> to vector<8x3072xbf16>
    %c0_1 = arith.constant 0 : index
    %c0_2 = arith.constant 0 : index
    %8 = vector.load %arg2[%c0_1, %c0_2] : memref<3072x1024xi8, #tpu.memory_space<vmem>>, vector<3072x1024xi8>
    %9 = arith.sitofp %8 : vector<3072x1024xi8> to vector<3072x1024xbf16>
    %c0_3 = arith.constant 0 : index
    %c0_4 = arith.constant 0 : index
    %10 = vector.load %arg12[%c0_3, %c0_4] : memref<8x1024xf32, #tpu.memory_space<vmem>>, vector<8x1024xf32>
    %cst = arith.constant dense<0.000000e+00> : vector<8x1024xf32>
    %11 = tpu.matmul %7, %9, %cst {dimension_numbers = #tpu.dot_dimension_numbers<[1], [0], [0], [1], [0, 0, 1, 1], [], []>} : vector<8x3072xbf16>, vector<3072x1024xbf16>, vector<8x1024xf32> -> vector<8x1024xf32>
    %12 = arith.addf %10, %11 : vector<8x1024xf32>
    %c0_5 = arith.constant 0 : index
    %c0_6 = arith.constant 0 : index
    %13 = vector.load %arg12[%c0_5, %c0_6] : memref<8x1024xf32, #tpu.memory_space<vmem>>, vector<8x1024xf32>
    tpu.vector_store %arg12[%c0_5, %c0_6], %12 {strides = array<i32>} : memref<8x1024xf32, #tpu.memory_space<vmem>>, vector<8x1024xf32>,
    %c1_i32 = arith.constant 1 : i32
    %14 = arith.cmpi eq, %arg0, %c1_i32 : i32
    %15 = arith.extui %14 : i1 to i32
    %c0_i32_7 = arith.constant 0 : i32
    %16 = arith.cmpi ne, %15, %c0_i32_7 : i32
    scf.if %16 {
      %c0_8 = arith.constant 0 : index
      %c0_9 = arith.constant 0 : index
      %17 = vector.load %arg12[%c0_8, %c0_9] : memref<8x1024xf32, #tpu.memory_space<vmem>>, vector<8x1024xf32>
      %c0_10 = arith.constant 0 : index
      %c0_11 = arith.constant 0 : index
      %18 = vector.load %arg3[%c0_10, %c0_11] : memref<1x1024xf32, #tpu.memory_space<vmem>>, vector<1x1024xf32>
      %19 = vector.broadcast %18 : vector<1x1024xf32> to vector<8x1024xf32>
      %20 = arith.mulf %17, %19 : vector<8x1024xf32>
      %c0_12 = arith.constant 0 : index
      %c0_13 = arith.constant 0 : index
      %21 = vector.load %arg4[%c0_12, %c0_13] : memref<1x1024xf32, #tpu.memory_space<vmem>>, vector<1x1024xf32>
      %22 = vector.broadcast %21 : vector<1x1024xf32> to vector<8x1024xf32>
      %23 = arith.addf %20, %22 : vector<8x1024xf32>
      %cst_14 = arith.constant 0.000000e+00 : f32
      %24 = vector.broadcast %cst_14 : f32 to vector<8x1024xf32>
      %25 = arith.maximumf %23, %24 : vector<8x1024xf32>
      %26 = arith.truncf %25 : vector<8x1024xf32> to vector<8x1024xbf16>
      %c0_15 = arith.constant 0 : index
      %c0_16 = arith.constant 0 : index
      %27 = vector.load %arg5[%c0_15, %c0_16] : memref<1024x512xbf16, #tpu.memory_space<vmem>>, vector<1024x512xbf16>
      %cst_17 = arith.constant dense<0.000000e+00> : vector<8x512xf32>
      %28 = tpu.matmul %26, %27, %cst_17 {dimension_numbers = #tpu.dot_dimension_numbers<[1], [0], [0], [1], [0, 0, 1, 1], [], []>} : vector<8x1024xbf16>, vector<1024x512xbf16>, vector<8x512xf32> -> vector<8x512xf32>
      %c0_18 = arith.constant 0 : index
      %c0_19 = arith.constant 0 : index
      %29 = vector.load %arg6[%c0_18, %c0_19] : memref<1x512xf32, #tpu.memory_space<vmem>>, vector<1x512xf32>
      %30 = vector.broadcast %29 : vector<1x512xf32> to vector<8x512xf32>
      %31 = arith.addf %28, %30 : vector<8x512xf32>
      %cst_20 = arith.constant 0.000000e+00 : f32
      %32 = vector.broadcast %cst_20 : f32 to vector<8x512xf32>
      %33 = arith.maximumf %31, %32 : vector<8x512xf32>
      %34 = arith.truncf %33 : vector<8x512xf32> to vector<8x512xbf16>
      %c0_21 = arith.constant 0 : index
      %c0_22 = arith.constant 0 : index
      %35 = vector.load %arg7[%c0_21, %c0_22] : memref<512x128xbf16, #tpu.memory_space<vmem>>, vector<512x128xbf16>
      %cst_23 = arith.constant dense<0.000000e+00> : vector<8x128xf32>
      %36 = tpu.matmul %34, %35, %cst_23 {dimension_numbers = #tpu.dot_dimension_numbers<[1], [0], [0], [1], [0, 0, 1, 1], [], []>} : vector<8x512xbf16>, vector<512x128xbf16>, vector<8x128xf32> -> vector<8x128xf32>
      %c0_24 = arith.constant 0 : index
      %c0_25 = arith.constant 0 : index
      %37 = vector.load %arg8[%c0_24, %c0_25] : memref<1x128xf32, #tpu.memory_space<vmem>>, vector<1x128xf32>
      %38 = vector.broadcast %37 : vector<1x128xf32> to vector<8x128xf32>
      %39 = arith.addf %36, %38 : vector<8x128xf32>
      %cst_26 = arith.constant 0.000000e+00 : f32
      %40 = vector.broadcast %cst_26 : f32 to vector<8x128xf32>
      %41 = arith.maximumf %39, %40 : vector<8x128xf32>
      %42 = arith.truncf %41 : vector<8x128xf32> to vector<8x128xbf16>
      %c0_27 = arith.constant 0 : index
      %c0_28 = arith.constant 0 : index
      %43 = vector.load %arg9[%c0_27, %c0_28] : memref<128x128xbf16, #tpu.memory_space<vmem>>, vector<128x128xbf16>
      %cst_29 = arith.constant dense<0.000000e+00> : vector<8x128xf32>
      %44 = tpu.matmul %42, %43, %cst_29 {dimension_numbers = #tpu.dot_dimension_numbers<[1], [0], [0], [1], [0, 0, 1, 1], [], []>} : vector<8x128xbf16>, vector<128x128xbf16>, vector<8x128xf32> -> vector<8x128xf32>
      %c0_30 = arith.constant 0 : index
      %c0_31 = arith.constant 0 : index
      %45 = vector.load %arg10[%c0_30, %c0_31] : memref<1x128xf32, #tpu.memory_space<vmem>>, vector<1x128xf32>
      %46 = vector.broadcast %45 : vector<1x128xf32> to vector<8x128xf32>
      %47 = arith.addf %44, %46 : vector<8x128xf32>
      %48 = arith.negf %47 : vector<8x128xf32>
      %49 = math.exp %48 : vector<8x128xf32>
      %cst_32 = arith.constant 1.000000e+00 : f32
      %50 = vector.broadcast %cst_32 : f32 to vector<8x128xf32>
      %51 = arith.addf %50, %49 : vector<8x128xf32>
      %52 = arith.divf %50, %51 : vector<8x128xf32>
      %c0_33 = arith.constant 0 : index
      %c0_34 = arith.constant 0 : index
      %53 = vector.load %arg11[%c0_33, %c0_34] : memref<8x128xf32, #tpu.memory_space<vmem>>, vector<8x128xf32>
      tpu.vector_store %arg11[%c0_33, %c0_34], %52 {strides = array<i32>} : memref<8x128xf32, #tpu.memory_space<vmem>>, vector<8x128xf32>,
    } else {
    }
    return
  }
  func.func @transform_0(%arg0: i32) -> (i32, i32) {
    %c0_i32 = arith.constant 0 : i32
    %c0_i32_0 = arith.constant 0 : i32
    %c0_i32_1 = arith.constant 0 : i32
    return %c0_i32, %c0_i32_0 : i32, i32
  }
  func.func @transform_1(%arg0: i32) -> (i32, i32) {
    %c0_i32 = arith.constant 0 : i32
    %c0_i32_0 = arith.constant 0 : i32
    return %arg0, %c0_i32 : i32, i32
  }
  func.func @transform_2(%arg0: i32) -> (i32, i32) {
    %c0_i32 = arith.constant 0 : i32
    %c0_i32_0 = arith.constant 0 : i32
    %c0_i32_1 = arith.constant 0 : i32
    return %c0_i32, %c0_i32_0 : i32, i32
  }
  func.func @transform_3(%arg0: i32) -> (i32, i32) {
    %c0_i32 = arith.constant 0 : i32
    %c0_i32_0 = arith.constant 0 : i32
    %c0_i32_1 = arith.constant 0 : i32
    return %c0_i32, %c0_i32_0 : i32, i32
  }
  func.func @transform_4(%arg0: i32) -> (i32, i32) {
    %c0_i32 = arith.constant 0 : i32
    %c0_i32_0 = arith.constant 0 : i32
    %c0_i32_1 = arith.constant 0 : i32
    return %c0_i32, %c0_i32_0 : i32, i32
  }
  func.func @transform_5(%arg0: i32) -> (i32, i32) {
    %c0_i32 = arith.constant 0 : i32
    %c0_i32_0 = arith.constant 0 : i32
    %c0_i32_1 = arith.constant 0 : i32
    return %c0_i32, %c0_i32_0 : i32, i32
  }
  func.func @transform_6(%arg0: i32) -> (i32, i32) {
    %c0_i32 = arith.constant 0 : i32
    %c0_i32_0 = arith.constant 0 : i32
    %c0_i32_1 = arith.constant 0 : i32
    return %c0_i32, %c0_i32_0 : i32, i32
  }
  func.func @transform_7(%arg0: i32) -> (i32, i32) {
    %c0_i32 = arith.constant 0 : i32
    %c0_i32_0 = arith.constant 0 : i32
    %c0_i32_1 = arith.constant 0 : i32
    return %c0_i32, %c0_i32_0 : i32, i32
  }
  func.func @transform_8(%arg0: i32) -> (i32, i32) {
    %c0_i32 = arith.constant 0 : i32
    %c0_i32_0 = arith.constant 0 : i32
    %c0_i32_1 = arith.constant 0 : i32
    return %c0_i32, %c0_i32_0 : i32, i32
  }
  func.func @transform_9(%arg0: i32) -> (i32, i32) {
    %c0_i32 = arith.constant 0 : i32
    %c0_i32_0 = arith.constant 0 : i32
    %c0_i32_1 = arith.constant 0 : i32
    return %c0_i32, %c0_i32_0 : i32, i32
  }
  func.func @transform_10(%arg0: i32) -> (i32, i32) {
    %c0_i32 = arith.constant 0 : i32
    %c0_i32_0 = arith.constant 0 : i32
    %c0_i32_1 = arith.constant 0 : i32
    return %c0_i32, %c0_i32_0 : i32, i32
  }
}

</mosaic_0001>

<llo_original>
// kernel: net_forward.1
$region0: #{net_forward.1}
  #allocation0 [shape = 'u32[]', space=smem, size = 0x4, offset = 0x4, fixed_abs, tag = 'smem constant byte address 0x4 - core index']
  #allocation1 [shape = 'u32[144,128]{1,0:T(1,128)}', space=vmem, size = 0x12000, scoped, tag = 'internal scratch']
  #allocation2 [shape = 'f32[8,1024]{1,0:T(8,128)}', space=vmem, size = 0x8000, scoped, tag = 'scratch operand']
  %s0 = inlined_call_operand.hbm [shape: f32[8,6144], index: 0, kind: input, shape index: {}]
  %s1 = inlined_call_operand.hbm [shape: s8[6144,1024], index: 1, kind: input, shape index: {}]
  %s2 = inlined_call_operand.hbm [shape: f32[1,1024], index: 2, kind: input, shape index: {}]
  %s3 = inlined_call_operand.hbm [shape: f32[1,1024], index: 3, kind: input, shape index: {}]
  %s4 = inlined_call_operand.hbm [shape: bf16[1024,512], index: 4, kind: input, shape index: {}]
  %s5 = inlined_call_operand.hbm [shape: f32[1,512], index: 5, kind: input, shape index: {}]
  %s6 = inlined_call_operand.hbm [shape: bf16[512,128], index: 6, kind: input, shape index: {}]
  %s7 = inlined_call_operand.hbm [shape: f32[1,128], index: 7, kind: input, shape index: {}]
  %s8 = inlined_call_operand.hbm [shape: bf16[128,128], index: 8, kind: input, shape index: {}]
  %s9 = inlined_call_operand.hbm [shape: f32[1,128], index: 9, kind: input, shape index: {}]
  %s10 = inlined_call_operand.vmem [shape: f32[8,128], index: 10, kind: output, shape index: {}]
  %s11 = sld [smem:[#allocation0]]
  $region121: #{net_forward.1} parent=0
    _
  %s13 = ssub.s32 1, %s11
  %s14 = scalar_select 0, %s13, %s11
  $region1: #{net_forward.1} parent=0
    #allocation3 [shape = 'u8[196608]{0}', space=vmem, size = 0x30000, scoped, tag = 'input window, operand 0, single buffered']
    #allocation4 [shape = 's32[2]{0}', space=sflag, size = 0x8, scoped, tag = 'scoped memory for net_forward.1']
    #allocation5 [shape = 'u8[6291456]{0}', space=vmem, size = 0x600000, scoped, tag = 'input window, operand 1']
    #allocation6 [shape = 's32[2]{0}', space=sflag, size = 0x8, scoped, tag = 'scoped memory for net_forward.1']
    #allocation7 [shape = 'u8[4096]{0}', space=vmem, size = 0x1000, scoped, tag = 'input window, operand 2, single buffered']
    #allocation8 [shape = 'u8[4096]{0}', space=vmem, size = 0x1000, scoped, tag = 'input window, operand 3, single buffered']
    #allocation9 [shape = 's32[1]{0}', space=sflag, size = 0x4, scoped, tag = 'scoped memory for net_forward.1']
    #allocation10 [shape = 'u8[1048576]{0}', space=vmem, size = 0x100000, scoped, tag = 'input window, operand 4, single buffered']
    #allocation11 [shape = 'u8[2048]{0}', space=vmem, size = 0x800, scoped, tag = 'input window, operand 5, single buffered']
    #allocation12 [shape = 's32[1]{0}', space=sflag, size = 0x4, scoped, tag = 'scoped memory for net_forward.1']
    #allocation13 [shape = 'u8[131072]{0}', space=vmem, size = 0x20000, scoped, tag = 'input window, operand 6, single buffered']
    #allocation14 [shape = 'u8[512]{0}', space=vmem, size = 0x400, scoped, tag = 'input window, operand 7, single buffered']
    #allocation15 [shape = 's32[1]{0}', space=sflag, size = 0x4, scoped, tag = 'scoped memory for net_forward.1']
    #allocation16 [shape = 'u8[32768]{0}', space=vmem, size = 0x8000, scoped, tag = 'input window, operand 8, single buffered']
    #allocation17 [shape = 'u8[512]{0}', space=vmem, size = 0x400, scoped, tag = 'input window, operand 9, single buffered']
    #allocation18 [shape = 's32[1]{0}', space=sflag, size = 0x4, scoped, tag = 'scoped memory for net_forward.1']
    %15 = vsyncpa [#allocation4], 0
    %16 = vsyncpa [#allocation6], 0
    %s17 = scalar_lea.sflag [#allocation6], 1
    %18 = vsyncpa %s17, 0
    %19 = vsyncpa [#allocation9], 0
    %20 = vsyncpa [#allocation12], 0
    %21 = vsyncpa [#allocation15], 0
    %22 = vsyncpa [#allocation18], 0
    loop: start=0, step=1, limit=4
    $region2: #{net_forward.1} parent=1 // loop_pre_header
      _
    $region3: #{net_forward.1} parent=1 // loop_header
      %s24 = sphi 0, %s28
      %p25 = scmp.ge.s32.totalorder %s24, 4
      %s32 = sphi 0, %s32
      %s34 = sphi 0, %s32
      %s35 = sphi 0, %s34
      %s49 = sphi 0, %s35
      %s55 = sphi 0, %s57
      %s58 = sphi 0, %s55
      %s59 = sphi 0, %s58
      %s75 = sphi 0, %s59
      %s79 = sphi 0, %s79
      %s81 = sphi 0, %s79
      %s82 = sphi 0, %s81
      %s96 = sphi 0, %s82
      %s100 = sphi 0, %s100
      %s102 = sphi 0, %s100
      %s103 = sphi 0, %s102
      %s117 = sphi 0, %s103
      %s121 = sphi 0, %s121
      %s123 = sphi 0, %s121
      %s124 = sphi 0, %s123
      %s138 = sphi 0, %s124
      %s142 = sphi 0, %s142
      %s144 = sphi 0, %s142
      %s145 = sphi 0, %s144
      %s159 = sphi 0, %s145
      %s163 = sphi 0, %s163
      %s165 = sphi 0, %s163
      %s166 = sphi 0, %s165
      %s180 = sphi 0, %s166
      %s184 = sphi 0, %s184
      %s186 = sphi 0, %s184
      %s187 = sphi 0, %s186
      %s201 = sphi 0, %s187
      %s205 = sphi 0, %s205
      %s207 = sphi 0, %s205
      %s208 = sphi 0, %s207
      %s222 = sphi 0, %s208
      %s226 = sphi 0, %s226
      %s228 = sphi 0, %s226
      %s229 = sphi 0, %s228
      %s243 = sphi 0, %s229
      %s247 = sphi 0, %s247
      %s249 = sphi 0, %s247
      %s250 = sphi 0, %s249
      %s264 = sphi 0, %s250
    $region4: #{net_forward.1} parent=1 // loop_header_branch
      %27 = sbr.rel (%p25) target = $region8
    $region5: #{net_forward.1} parent=1 // loop_body
      %s29 = ssub.s32 %s24, 1
      %s30 = ssub.s32 %s24, 2
      %s31 = sadd.s32 %s24, 1
      %s33 = sadd.s32 %s32, 1
      %p36 = scmp.eq.s32.totalorder %s24, 1
      %p37 = scmp.ne.s32.totalorder %s32, %s34
      %p38 = scmp.eq.s32.totalorder %s24, 0
      %p39 = por %p37, %p38
      %p40 = scmp.ne.s32.totalorder %s32, %s34
      %p41 = scmp.eq.s32.totalorder %s29, 1
      %p42 = por %p40, %p41
      %p43 = scmp.ne.s32.totalorder %s34, %s35
      %p44 = scmp.eq.s32.totalorder %s29, 0
      %p45 = por %p43, %p44
      %p46 = scmp.ne.s32.totalorder %s34, %s35
      %p47 = scmp.eq.s32.totalorder %s30, 1
      %p48 = por %p46, %p47
      %p50 = scmp.ne.s32.totalorder %s35, %s49
      %p51 = scmp.eq.s32.totalorder %s30, 0
      %p52 = por %p50, %p51
      %s53 = ssub.s32 %s24, %s31
      %p54 = scmp.eq.s32.totalorder %s53, 0
      %s56 = sadd.s32 %s55, 1
      %s57 = scalar_select %p54, %s55, %s56
      %p60 = pneg %p54
      %p61 = scmp.eq.s32.totalorder %s24, 1
      %p62 = por %p60, %p61
      %p63 = scmp.ne.s32.totalorder %s55, %s58
      %p64 = scmp.eq.s32.totalorder %s24, 0
      %p65 = por %p63, %p64
      %p66 = scmp.ne.s32.totalorder %s55, %s58
      %p67 = scmp.eq.s32.totalorder %s29, 1
      %p68 = por %p66, %p67
      %p69 = scmp.ne.s32.totalorder %s58, %s59
      %p70 = scmp.eq.s32.totalorder %s29, 0
      %p71 = por %p69, %p70
      %p72 = scmp.ne.s32.totalorder %s58, %s59
      %p73 = scmp.eq.s32.totalorder %s30, 1
      %p74 = por %p72, %p73
      %p76 = scmp.ne.s32.totalorder %s59, %s75
      %p77 = scmp.eq.s32.totalorder %s30, 0
      %p78 = por %p76, %p77
      %s80 = sadd.s32 %s79, 1
      %p83 = scmp.eq.s32.totalorder %s24, 1
      %p84 = scmp.ne.s32.totalorder %s79, %s81
      %p85 = scmp.eq.s32.totalorder %s24, 0
      %p86 = por %p84, %p85
      %p87 = scmp.ne.s32.totalorder %s79, %s81
      %p88 = scmp.eq.s32.totalorder %s29, 1
      %p89 = por %p87, %p88
      %p90 = scmp.ne.s32.totalorder %s81, %s82
      %p91 = scmp.eq.s32.totalorder %s29, 0
      %p92 = por %p90, %p91
      %p93 = scmp.ne.s32.totalorder %s81, %s82
      %p94 = scmp.eq.s32.totalorder %s30, 1
      %p95 = por %p93, %p94
      %p97 = scmp.ne.s32.totalorder %s82, %s96
      %p98 = scmp.eq.s32.totalorder %s30, 0
      %p99 = por %p97, %p98
      %s101 = sadd.s32 %s100, 1
      %p104 = scmp.eq.s32.totalorder %s24, 1
      %p105 = scmp.ne.s32.totalorder %s100, %s102
      %p106 = scmp.eq.s32.totalorder %s24, 0
      %p107 = por %p105, %p106
      %p108 = scmp.ne.s32.totalorder %s100, %s102
      %p109 = scmp.eq.s32.totalorder %s29, 1
      %p110 = por %p108, %p109
      %p111 = scmp.ne.s32.totalorder %s102, %s103
      %p112 = scmp.eq.s32.totalorder %s29, 0
      %p113 = por %p111, %p112
      %p114 = scmp.ne.s32.totalorder %s102, %s103
      %p115 = scmp.eq.s32.totalorder %s30, 1
      %p116 = por %p114, %p115
      %p118 = scmp.ne.s32.totalorder %s103, %s117
      %p119 = scmp.eq.s32.totalorder %s30, 0
      %p120 = por %p118, %p119
      %s122 = sadd.s32 %s121, 1
      %p125 = scmp.eq.s32.totalorder %s24, 1
      %p126 = scmp.ne.s32.totalorder %s121, %s123
      %p127 = scmp.eq.s32.totalorder %s24, 0
      %p128 = por %p126, %p127
      %p129 = scmp.ne.s32.totalorder %s121, %s123
      %p130 = scmp.eq.s32.totalorder %s29, 1
      %p131 = por %p129, %p130
      %p132 = scmp.ne.s32.totalorder %s123, %s124
      %p133 = scmp.eq.s32.totalorder %s29, 0
      %p134 = por %p132, %p133
      %p135 = scmp.ne.s32.totalorder %s123, %s124
      %p136 = scmp.eq.s32.totalorder %s30, 1
      %p137 = por %p135, %p136
      %p139 = scmp.ne.s32.totalorder %s124, %s138
      %p140 = scmp.eq.s32.totalorder %s30, 0
      %p141 = por %p139, %p140
      %s143 = sadd.s32 %s142, 1
      %p146 = scmp.eq.s32.totalorder %s24, 1
      %p147 = scmp.ne.s32.totalorder %s142, %s144
      %p148 = scmp.eq.s32.totalorder %s24, 0
      %p149 = por %p147, %p148
      %p150 = scmp.ne.s32.totalorder %s142, %s144
      %p151 = scmp.eq.s32.totalorder %s29, 1
      %p152 = por %p150, %p151
      %p153 = scmp.ne.s32.totalorder %s144, %s145
      %p154 = scmp.eq.s32.totalorder %s29, 0
      %p155 = por %p153, %p154
      %p156 = scmp.ne.s32.totalorder %s144, %s145
      %p157 = scmp.eq.s32.totalorder %s30, 1
      %p158 = por %p156, %p157
      %p160 = scmp.ne.s32.totalorder %s145, %s159
      %p161 = scmp.eq.s32.totalorder %s30, 0
      %p162 = por %p160, %p161
      %s164 = sadd.s32 %s163, 1
      %p167 = scmp.eq.s32.totalorder %s24, 1
      %p168 = scmp.ne.s32.totalorder %s163, %s165
      %p169 = scmp.eq.s32.totalorder %s24, 0
      %p170 = por %p168, %p169
      %p171 = scmp.ne.s32.totalorder %s163, %s165
      %p172 = scmp.eq.s32.totalorder %s29, 1
      %p173 = por %p171, %p172
      %p174 = scmp.ne.s32.totalorder %s165, %s166
      %p175 = scmp.eq.s32.totalorder %s29, 0
      %p176 = por %p174, %p175
      %p177 = scmp.ne.s32.totalorder %s165, %s166
      %p178 = scmp.eq.s32.totalorder %s30, 1
      %p179 = por %p177, %p178
      %p181 = scmp.ne.s32.totalorder %s166, %s180
      %p182 = scmp.eq.s32.totalorder %s30, 0
      %p183 = por %p181, %p182
      %s185 = sadd.s32 %s184, 1
      %p188 = scmp.eq.s32.totalorder %s24, 1
      %p189 = scmp.ne.s32.totalorder %s184, %s186
      %p190 = scmp.eq.s32.totalorder %s24, 0
      %p191 = por %p189, %p190
      %p192 = scmp.ne.s32.totalorder %s184, %s186
      %p193 = scmp.eq.s32.totalorder %s29, 1
      %p194 = por %p192, %p193
      %p195 = scmp.ne.s32.totalorder %s186, %s187
      %p196 = scmp.eq.s32.totalorder %s29, 0
      %p197 = por %p195, %p196
      %p198 = scmp.ne.s32.totalorder %s186, %s187
      %p199 = scmp.eq.s32.totalorder %s30, 1
      %p200 = por %p198, %p199
      %p202 = scmp.ne.s32.totalorder %s187, %s201
      %p203 = scmp.eq.s32.totalorder %s30, 0
      %p204 = por %p202, %p203
      %s206 = sadd.s32 %s205, 1
      %p209 = scmp.eq.s32.totalorder %s24, 1
      %p210 = scmp.ne.s32.totalorder %s205, %s207
      %p211 = scmp.eq.s32.totalorder %s24, 0
      %p212 = por %p210, %p211
      %p213 = scmp.ne.s32.totalorder %s205, %s207
      %p214 = scmp.eq.s32.totalorder %s29, 1
      %p215 = por %p213, %p214
      %p216 = scmp.ne.s32.totalorder %s207, %s208
      %p217 = scmp.eq.s32.totalorder %s29, 0
      %p218 = por %p216, %p217
      %p219 = scmp.ne.s32.totalorder %s207, %s208
      %p220 = scmp.eq.s32.totalorder %s30, 1
      %p221 = por %p219, %p220
      %p223 = scmp.ne.s32.totalorder %s208, %s222
      %p224 = scmp.eq.s32.totalorder %s30, 0
      %p225 = por %p223, %p224
      %s227 = sadd.s32 %s226, 1
      %p230 = scmp.eq.s32.totalorder %s24, 1
      %p231 = scmp.ne.s32.totalorder %s226, %s228
      %p232 = scmp.eq.s32.totalorder %s24, 0
      %p233 = por %p231, %p232
      %p234 = scmp.ne.s32.totalorder %s226, %s228
      %p235 = scmp.eq.s32.totalorder %s29, 1
      %p236 = por %p234, %p235
      %p237 = scmp.ne.s32.totalorder %s228, %s229
      %p238 = scmp.eq.s32.totalorder %s29, 0
      %p239 = por %p237, %p238
      %p240 = scmp.ne.s32.totalorder %s228, %s229
      %p241 = scmp.eq.s32.totalorder %s30, 1
      %p242 = por %p240, %p241
      %p244 = scmp.ne.s32.totalorder %s229, %s243
      %p245 = scmp.eq.s32.totalorder %s30, 0
      %p246 = por %p244, %p245
      %s248 = sadd.s32 %s247, 1
      %p251 = scmp.eq.s32.totalorder %s24, 1
      %p252 = scmp.ne.s32.totalorder %s247, %s249
      %p253 = scmp.eq.s32.totalorder %s24, 0
      %p254 = por %p252, %p253
      %p255 = scmp.ne.s32.totalorder %s247, %s249
      %p256 = scmp.eq.s32.totalorder %s29, 1
      %p257 = por %p255, %p256
      %p258 = scmp.ne.s32.totalorder %s249, %s250
      %p259 = scmp.eq.s32.totalorder %s29, 0
      %p260 = por %p258, %p259
      %p261 = scmp.ne.s32.totalorder %s249, %s250
      %p262 = scmp.eq.s32.totalorder %s30, 1
      %p263 = por %p261, %p262
      %p265 = scmp.ne.s32.totalorder %s250, %s264
      %p266 = scmp.eq.s32.totalorder %s30, 0
      %p267 = por %p265, %p266
      %p268 = scmp.le.s32.totalorder 1, %s24
      %p269 = scmp.lt.s32.totalorder %s24, 3
      %p270 = pnand %p268, %p269
      %p271 = pneg %p270
      // Predicated region
      $region9: #{net_forward.1} parent=5 // pred_check
        _
      $region10: #{net_forward.1} parent=5 // pred_check_branch
        %273 = sbr.rel (%p270) target = $region12
      $region11: #{net_forward.1} parent=5 // pred_region
        %s274 = ssub.s32 %s24, 1
        // Predicated region
        $region13: #{net_forward.1} parent=11 // pred_check
          %p275 = pneg %p45
        $region14: #{net_forward.1} parent=11 // pred_check_branch
          %277 = sbr.rel (%p275) target = $region16
        $region15: #{net_forward.1} parent=11 // pred_region
          %s279 = ssub.s32 6144, 6144
          %280 = vsyncadd [#allocation4], %s279
          %s282 = sshll.u32 [#allocation3], 4
          %s283 = int_to_ptr.vmem [resolvable:$true] %s282
          %285 = dma.hbm_to_vmem [thread:$0]  %s0, 6144, %s283, [#allocation4]
        $region16: #{net_forward.1} parent=11 // pred_fallthru
          _
        // Predicated region
        $region17: #{net_forward.1} parent=11 // pred_check
          %p286 = pneg %p92
        $region18: #{net_forward.1} parent=11 // pred_check_branch
          %288 = sbr.rel (%p286) target = $region20
        $region19: #{net_forward.1} parent=11 // pred_region
          %s290 = ssub.s32 128, 128
          %291 = vsyncadd [#allocation6], %s290
          %s293 = sshll.u32 [#allocation7], 4
          %s294 = int_to_ptr.vmem [resolvable:$true] %s293
          %296 = dma.hbm_to_vmem [thread:$0]  %s2, 128, %s294, [#allocation6]
        $region20: #{net_forward.1} parent=11 // pred_fallthru
          _
        // Predicated region
        $region21: #{net_forward.1} parent=11 // pred_check
          %p297 = pneg %p113
        $region22: #{net_forward.1} parent=11 // pred_check_branch
          %299 = sbr.rel (%p297) target = $region24
        $region23: #{net_forward.1} parent=11 // pred_region
          %s301 = ssub.s32 128, 128
          %302 = vsyncadd [#allocation9], %s301
          %s304 = sshll.u32 [#allocation8], 4
          %s305 = int_to_ptr.vmem [resolvable:$true] %s304
          %307 = dma.hbm_to_vmem [thread:$0]  %s3, 128, %s305, [#allocation9]
        $region24: #{net_forward.1} parent=11 // pred_fallthru
          _
        // Predicated region
        $region25: #{net_forward.1} parent=11 // pred_check
          %p308 = pneg %p134
        $region26: #{net_forward.1} parent=11 // pred_check_branch
          %310 = sbr.rel (%p308) target = $region28
        $region27: #{net_forward.1} parent=11 // pred_region
          %s312 = ssub.s32 32768, 32768
          %313 = vsyncadd [#allocation9], %s312
          %s314 = sshll.u32 [#allocation10], 4
          %s315 = int_to_ptr.vmem [resolvable:$true] %s314
          %320 = dma.hbm_to_vmem [thread:$0]  %s4, 32768, %s315, [#allocation9], 256, 256, 16
        $region28: #{net_forward.1} parent=11 // pred_fallthru
          _
        // Predicated region
        $region29: #{net_forward.1} parent=11 // pred_check
          %p321 = pneg %p155
        $region30: #{net_forward.1} parent=11 // pred_check_branch
          %323 = sbr.rel (%p321) target = $region32
        $region31: #{net_forward.1} parent=11 // pred_region
          %s325 = ssub.s32 64, 64
          %326 = vsyncadd [#allocation12], %s325
          %s328 = sshll.u32 [#allocation11], 4
          %s329 = int_to_ptr.vmem [resolvable:$true] %s328
          %331 = dma.hbm_to_vmem [thread:$0]  %s5, 64, %s329, [#allocation12]
        $region32: #{net_forward.1} parent=11 // pred_fallthru
          _
        // Predicated region
        $region33: #{net_forward.1} parent=11 // pred_check
          %p332 = pneg %p176
        $region34: #{net_forward.1} parent=11 // pred_check_branch
          %334 = sbr.rel (%p332) target = $region36
        $region35: #{net_forward.1} parent=11 // pred_region
          %s336 = ssub.s32 4096, 4096
          %337 = vsyncadd [#allocation12], %s336
          %s338 = sshll.u32 [#allocation13], 4
          %s339 = int_to_ptr.vmem [resolvable:$true] %s338
          %344 = dma.hbm_to_vmem [thread:$0]  %s6, 4096, %s339, [#allocation12], 64, 64, 4
        $region36: #{net_forward.1} parent=11 // pred_fallthru
          _
        // Predicated region
        $region37: #{net_forward.1} parent=11 // pred_check
          %p345 = pneg %p197
        $region38: #{net_forward.1} parent=11 // pred_check_branch
          %347 = sbr.rel (%p345) target = $region40
        $region39: #{net_forward.1} parent=11 // pred_region
          %s349 = ssub.s32 16, 16
          %350 = vsyncadd [#allocation15], %s349
          %s352 = sshll.u32 [#allocation14], 4
          %s353 = int_to_ptr.vmem [resolvable:$true] %s352
          %355 = dma.hbm_to_vmem [thread:$0]  %s7, 16, %s353, [#allocation15]
        $region40: #{net_forward.1} parent=11 // pred_fallthru
          _
        // Predicated region
        $region41: #{net_forward.1} parent=11 // pred_check
          %p356 = pneg %p218
        $region42: #{net_forward.1} parent=11 // pred_check_branch
          %358 = sbr.rel (%p356) target = $region44
        $region43: #{net_forward.1} parent=11 // pred_region
          %s360 = ssub.s32 1024, 1024
          %361 = vsyncadd [#allocation15], %s360
          %s362 = sshll.u32 [#allocation16], 4
          %s363 = int_to_ptr.vmem [resolvable:$true] %s362
          %368 = dma.hbm_to_vmem [thread:$0]  %s8, 1024, %s363, [#allocation15], 64, 64, 4
        $region44: #{net_forward.1} parent=11 // pred_fallthru
          _
        // Predicated region
        $region45: #{net_forward.1} parent=11 // pred_check
          %p369 = pneg %p239
        $region46: #{net_forward.1} parent=11 // pred_check_branch
          %371 = sbr.rel (%p369) target = $region48
        $region47: #{net_forward.1} parent=11 // pred_region
          %s373 = ssub.s32 16, 16
          %374 = vsyncadd [#allocation18], %s373
          %s376 = sshll.u32 [#allocation17], 4
          %s377 = int_to_ptr.vmem [resolvable:$true] %s376
          %379 = dma.hbm_to_vmem [thread:$0]  %s9, 16, %s377, [#allocation18]
        $region48: #{net_forward.1} parent=11 // pred_fallthru
          _
      $region12: #{net_forward.1} parent=5 // pred_fallthru
        _
      %p380 = scmp.lt.s32.totalorder %s24, 2
      // Predicated region
      $region49: #{net_forward.1} parent=5 // pred_check
        %p381 = pneg %p380
      $region50: #{net_forward.1} parent=5 // pred_check_branch
        %383 = sbr.rel (%p381) target = $region52
      $region51: #{net_forward.1} parent=5 // pred_region
        // Predicated region
        $region53: #{net_forward.1} parent=51 // pred_check
          %p384 = pneg %p65
        $region54: #{net_forward.1} parent=51 // pred_check_branch
          %386 = sbr.rel (%p384) target = $region56
        $region55: #{net_forward.1} parent=51 // pred_region
          %s387 = sand.u32 %s24, 1
          %s388 = scalar_lea.sflag [#allocation6], %s387
          %s389 = sand.u32 %s55, 1
          %s390 = smul.addr %s389, 6144
          %s391 = scalar_lea.vmem [#allocation5], %s390
          %s392 = smul.u32 96, %s24
          %s394 = ssub.s32 98304, 98304
          %395 = vsyncadd %s388, %s394
          %s396 = smul.addr %s392, 8
          %s397 = smul.addr %s396, 128
          %s398 = scalar_lea.hbm %s1, %s397
          %s399 = sshll.u32 %s391, 4
          %s400 = int_to_ptr.vmem [resolvable:$true] %s399
          %405 = dma.hbm_to_vmem [thread:$0]  %s398, 98304, %s400, %s388, 1024, 1024, 64
        $region56: #{net_forward.1} parent=51 // pred_fallthru
          _
      $region52: #{net_forward.1} parent=5 // pred_fallthru
        _
      %p406 = scmp.le.s32.totalorder 1, %s24
      %p407 = scmp.lt.s32.totalorder %s24, 3
      %p408 = pnand %p406, %p407
      %p409 = pneg %p408
      // Predicated region
      $region57: #{net_forward.1} parent=5 // pred_check
        _
      $region58: #{net_forward.1} parent=5 // pred_check_branch
        %411 = sbr.rel (%p408) target = $region60
      $region59: #{net_forward.1} parent=5 // pred_region
        %s412 = ssub.s32 %s24, 1
        // Predicated region
        $region61: #{net_forward.1} parent=59 // pred_check
          %p413 = pneg %p45
        $region62: #{net_forward.1} parent=59 // pred_check_branch
          %415 = sbr.rel (%p413) target = $region64
        $region63: #{net_forward.1} parent=59 // pred_region
          %416 = dma.done [#allocation4], 6144
        $region64: #{net_forward.1} parent=59 // pred_fallthru
          _
        %s417 = sand.u32 %s29, 1
        %s418 = scalar_lea.sflag [#allocation6], %s417
        %s419 = sand.u32 %s58, 1
        %s420 = smul.addr %s419, 6144
        %s421 = scalar_lea.vmem [#allocation5], %s420
        // Predicated region
        $region65: #{net_forward.1} parent=59 // pred_check
          %p422 = pneg %p71
        $region66: #{net_forward.1} parent=59 // pred_check_branch
          %424 = sbr.rel (%p422) target = $region68
        $region67: #{net_forward.1} parent=59 // pred_region
          %425 = dma.done %s418, 98304
        $region68: #{net_forward.1} parent=59 // pred_fallthru
          _
        // Predicated region
        $region69: #{net_forward.1} parent=59 // pred_check
          %p426 = pneg %p92
        $region70: #{net_forward.1} parent=59 // pred_check_branch
          %428 = sbr.rel (%p426) target = $region72
        $region71: #{net_forward.1} parent=59 // pred_region
          %429 = dma.done [#allocation6], 128
        $region72: #{net_forward.1} parent=59 // pred_fallthru
          _
        // Predicated region
        $region73: #{net_forward.1} parent=59 // pred_check
          %p430 = pneg %p113
        $region74: #{net_forward.1} parent=59 // pred_check_branch
          %432 = sbr.rel (%p430) target = $region76
        $region75: #{net_forward.1} parent=59 // pred_region
          %433 = dma.done [#allocation9], 128
        $region76: #{net_forward.1} parent=59 // pred_fallthru
          _
        // Predicated region
        $region77: #{net_forward.1} parent=59 // pred_check
          %p434 = pneg %p134
        $region78: #{net_forward.1} parent=59 // pred_check_branch
          %436 = sbr.rel (%p434) target = $region80
        $region79: #{net_forward.1} parent=59 // pred_region
          %437 = dma.done [#allocation9], 32768
        $region80: #{net_forward.1} parent=59 // pred_fallthru
          _
        // Predicated region
        $region81: #{net_forward.1} parent=59 // pred_check
          %p438 = pneg %p155
        $region82: #{net_forward.1} parent=59 // pred_check_branch
          %440 = sbr.rel (%p438) target = $region84
        $region83: #{net_forward.1} parent=59 // pred_region
          %441 = dma.done [#allocation12], 64
        $region84: #{net_forward.1} parent=59 // pred_fallthru
          _
        // Predicated region
        $region85: #{net_forward.1} parent=59 // pred_check
          %p442 = pneg %p176
        $region86: #{net_forward.1} parent=59 // pred_check_branch
          %444 = sbr.rel (%p442) target = $region88
        $region87: #{net_forward.1} parent=59 // pred_region
          %445 = dma.done [#allocation12], 4096
        $region88: #{net_forward.1} parent=59 // pred_fallthru
          _
        // Predicated region
        $region89: #{net_forward.1} parent=59 // pred_check
          %p446 = pneg %p197
        $region90: #{net_forward.1} parent=59 // pred_check_branch
          %448 = sbr.rel (%p446) target = $region92
        $region91: #{net_forward.1} parent=59 // pred_region
          %449 = dma.done [#allocation15], 16
        $region92: #{net_forward.1} parent=59 // pred_fallthru
          _
        // Predicated region
        $region93: #{net_forward.1} parent=59 // pred_check
          %p450 = pneg %p218
        $region94: #{net_forward.1} parent=59 // pred_check_branch
          %452 = sbr.rel (%p450) target = $region96
        $region95: #{net_forward.1} parent=59 // pred_region
          %453 = dma.done [#allocation15], 1024
        $region96: #{net_forward.1} parent=59 // pred_fallthru
          _
        // Predicated region
        $region97: #{net_forward.1} parent=59 // pred_check
          %p454 = pneg %p239
        $region98: #{net_forward.1} parent=59 // pred_check_branch
          %456 = sbr.rel (%p454) target = $region100
        $region99: #{net_forward.1} parent=59 // pred_region
          %457 = dma.done [#allocation18], 16
        $region100: #{net_forward.1} parent=59 // pred_fallthru
          _
        %p458 = pneg %p45
        %p459 = pneg %p42
        %s460 = sand.u32 %s29, 1
        %s461 = scalar_lea.sflag [#allocation6], %s460
        %s462 = sand.u32 %s58, 1
        %s463 = smul.addr %s462, 6144
        %s464 = scalar_lea.vmem [#allocation5], %s463
        %p465 = pneg %p71
        %p466 = pneg %p68
        %p467 = pneg %p92
        %p468 = pneg %p89
        %p469 = pneg %p113
        %p470 = pneg %p110
        %p471 = pneg %p134
        %p472 = pneg %p131
        %p473 = pneg %p155
        %p474 = pneg %p152
        %p475 = pneg %p176
        %p476 = pneg %p173
        %p477 = pneg %p197
        %p478 = pneg %p194
        %p479 = pneg %p218
        %p480 = pneg %p215
        %p481 = pneg %p239
        %p482 = pneg %p236
        %p483 = pneg %p260
        %p484 = pneg %p257
        %s485 = smul.u32 96, %s29
        %p487 = scmp.eq.s32.totalorder %s29, 0
        // Predicated region
        $region101: #{net_forward.1} parent=59 // pred_check
          %p488 = pneg %p487
        $region102: #{net_forward.1} parent=59 // pred_check_branch
          %490 = sbr.rel (%p488) target = $region104
        $region103: #{net_forward.1} parent=59 // pred_region
          %491 = vst [vmem:[#allocation2] sm:$0xff] 0.0
          %492 = vst [vmem:[#allocation2 + $0x8] sm:$0xff] 0.0
          %493 = vst [vmem:[#allocation2 + $0x10] sm:$0xff] 0.0
          %494 = vst [vmem:[#allocation2 + $0x18] sm:$0xff] 0.0
          %495 = vst [vmem:[#allocation2 + $0x20] sm:$0xff] 0.0
          %496 = vst [vmem:[#allocation2 + $0x28] sm:$0xff] 0.0
          %497 = vst [vmem:[#allocation2 + $0x30] sm:$0xff] 0.0
          %498 = vst [vmem:[#allocation2 + $0x38] sm:$0xff] 0.0
        $region104: #{net_forward.1} parent=59 // pred_fallthru
          _
        %s499 = smul.u32 %s29, 3072
        %s500 = sshra.s32 %s499, 7
        %s501 = sand.u32 %s499, 127
        %s502 = smul.addr %s500, 8
        %s503 = scalar_lea.vmem [#allocation3], %s502
        %v504 = vld [vmem:[%s503] sm:$0xff]
        %v505 = vld [vmem:[%s503 + $0x8] sm:$0xff]
        %v506 = vld [vmem:[%s503 + $0x10] sm:$0xff]
        %v507 = vld [vmem:[%s503 + $0x18] sm:$0xff]
        %v508 = vld [vmem:[%s503 + $0x20] sm:$0xff]
        %v509 = vld [vmem:[%s503 + $0x28] sm:$0xff]
        %v510 = vld [vmem:[%s503 + $0x30] sm:$0xff]
        %v511 = vld [vmem:[%s503 + $0x38] sm:$0xff]
        %v512 = vld [vmem:[%s503 + $0x40] sm:$0xff]
        %v513 = vld [vmem:[%s503 + $0x48] sm:$0xff]
        %v514 = vld [vmem:[%s503 + $0x50] sm:$0xff]
        %v515 = vld [vmem:[%s503 + $0x58] sm:$0xff]
        %v516 = vld [vmem:[%s503 + $0x60] sm:$0xff]
        %v517 = vld [vmem:[%s503 + $0x68] sm:$0xff]
        %v518 = vld [vmem:[%s503 + $0x70] sm:$0xff]
        %v519 = vld [vmem:[%s503 + $0x78] sm:$0xff]
        %v520 = vld [vmem:[%s503 + $0x80] sm:$0xff]
        %v521 = vld [vmem:[%s503 + $0x88] sm:$0xff]
        %v522 = vld [vmem:[%s503 + $0x90] sm:$0xff]
        %v523 = vld [vmem:[%s503 + $0x98] sm:$0xff]
        %v524 = vld [vmem:[%s503 + $0xa0] sm:$0xff]
        %v525 = vld [vmem:[%s503 + $0xa8] sm:$0xff]
        %v526 = vld [vmem:[%s503 + $0xb0] sm:$0xff]
        %v527 = vld [vmem:[%s503 + $0xb8] sm:$0xff]
        %v528 = vpack.c.bf16 %v504, %v504
        %v529 = vpack.c.bf16 %v505, %v505
        %v530 = vpack.c.bf16 %v506, %v506
        %v531 = vpack.c.bf16 %v507, %v507
        %v532 = vpack.c.bf16 %v508, %v508
        %v533 = vpack.c.bf16 %v509, %v509
        %v534 = vpack.c.bf16 %v510, %v510
        %v535 = vpack.c.bf16 %v511, %v511
        %v536 = vpack.c.bf16 %v512, %v512
        %v537 = vpack.c.bf16 %v513, %v513
        %v538 = vpack.c.bf16 %v514, %v514
        %v539 = vpack.c.bf16 %v515, %v515
        %v540 = vpack.c.bf16 %v516, %v516
        %v541 = vpack.c.bf16 %v517, %v517
        %v542 = vpack.c.bf16 %v518, %v518
        %v543 = vpack.c.bf16 %v519, %v519
        %v544 = vpack.c.bf16 %v520, %v520
        %v545 = vpack.c.bf16 %v521, %v521
        %v546 = vpack.c.bf16 %v522, %v522
        %v547 = vpack.c.bf16 %v523, %v523
        %v548 = vpack.c.bf16 %v524, %v524
        %v549 = vpack.c.bf16 %v525, %v525
        %v550 = vpack.c.bf16 %v526, %v526
        %v551 = vpack.c.bf16 %v527, %v527
        %v552 = vld [vmem:[%s421] sm:$0xff]
        %v553 = vld [vmem:[%s421 + $0x8] sm:$0xff]
        %v554 = vld [vmem:[%s421 + $0x10] sm:$0xff]
        %v555 = vld [vmem:[%s421 + $0x18] sm:$0xff]
        %v556 = vld [vmem:[%s421 + $0x20] sm:$0xff]
        %v557 = vld [vmem:[%s421 + $0x28] sm:$0xff]
        %v558 = vld [vmem:[%s421 + $0x30] sm:$0xff]
        %v559 = vld [vmem:[%s421 + $0x38] sm:$0xff]
        %v560 = vld [vmem:[%s421 + $0x40] sm:$0xff]
        %v561 = vld [vmem:[%s421 + $0x48] sm:$0xff]
        %v562 = vld [vmem:[%s421 + $0x50] sm:$0xff]
        %v563 = vld [vmem:[%s421 + $0x58] sm:$0xff]
        %v564 = vld [vmem:[%s421 + $0x60] sm:$0xff]
        %v565 = vld [vmem:[%s421 + $0x68] sm:$0xff]
        %v566 = vld [vmem:[%s421 + $0x70] sm:$0xff]
        %v567 = vld [vmem:[%s421 + $0x78] sm:$0xff]
        %v568 = vld [vmem:[%s421 + $0x80] sm:$0xff]
        %v569 = vld [vmem:[%s421 + $0x88] sm:$0xff]
        %v570 = vld [vmem:[%s421 + $0x90] sm:$0xff]
        %v571 = vld [vmem:[%s421 + $0x98] sm:$0xff]
        %v572 = vld [vmem:[%s421 + $0xa0] sm:$0xff]
        %v573 = vld [vmem:[%s421 + $0xa8] sm:$0xff]
        %v574 = vld [vmem:[%s421 + $0xb0] sm:$0xff]
        %v575 = vld [vmem:[%s421 + $0xb8] sm:$0xff]
        %v576 = vld [vmem:[%s421 + $0xc0] sm:$0xff]
        %v577 = vld [vmem:[%s421 + $0xc8] sm:$0xff]
        %v578 = vld [vmem:[%s421 + $0xd0] sm:$0xff]
        %v579 = vld [vmem:[%s421 + $0xd8] sm:$0xff]
        %v580 = vld [vmem:[%s421 + $0xe0] sm:$0xff]
        %v581 = vld [vmem:[%s421 + $0xe8] sm:$0xff]
        %v582 = vld [vmem:[%s421 + $0xf0] sm:$0xff]
        %v583 = vld [vmem:[%s421 + $0xf8] sm:$0xff]
        %v584 = vld [vmem:[%s421 + $0x100] sm:$0xff]
        %v585 = vld [vmem:[%s421 + $0x108] sm:$0xff]
        %v586 = vld [vmem:[%s421 + $0x110] sm:$0xff]
        %v587 = vld [vmem:[%s421 + $0x118] sm:$0xff]
        %v588 = vld [vmem:[%s421 + $0x120] sm:$0xff]
        %v589 = vld [vmem:[%s421 + $0x128] sm:$0xff]
        %v590 = vld [vmem:[%s421 + $0x130] sm:$0xff]
        %v591 = vld [vmem:[%s421 + $0x138] sm:$0xff]
        %v592 = vld [vmem:[%s421 + $0x140] sm:$0xff]
        %v593 = vld [vmem:[%s421 + $0x148] sm:$0xff]
        %v594 = vld [vmem:[%s421 + $0x150] sm:$0xff]
        %v595 = vld [vmem:[%s421 + $0x158] sm:$0xff]
        %v596 = vld [vmem:[%s421 + $0x160] sm:$0xff]
        %v597 = vld [vmem:[%s421 + $0x168] sm:$0xff]
        %v598 = vld [vmem:[%s421 + $0x170] sm:$0xff]
        %v599 = vld [vmem:[%s421 + $0x178] sm:$0xff]
        %v600 = vld [vmem:[%s421 + $0x180] sm:$0xff]
        %v601 = vld [vmem:[%s421 + $0x188] sm:$0xff]
        %v602 = vld [vmem:[%s421 + $0x190] sm:$0xff]
        %v603 = vld [vmem:[%s421 + $0x198] sm:$0xff]
        %v604 = vld [vmem:[%s421 + $0x1a0] sm:$0xff]
        %v605 = vld [vmem:[%s421 + $0x1a8] sm:$0xff]
        %v606 = vld [vmem:[%s421 + $0x1b0] sm:$0xff]
        %v607 = vld [vmem:[%s421 + $0x1b8] sm:$0xff]
        %v608 = vld [vmem:[%s421 + $0x1c0] sm:$0xff]
        %v609 = vld [vmem:[%s421 + $0x1c8] sm:$0xff]
        %v610 = vld [vmem:[%s421 + $0x1d0] sm:$0xff]
        %v611 = vld [vmem:[%s421 + $0x1d8] sm:$0xff]
        %v612 = vld [vmem:[%s421 + $0x1e0] sm:$0xff]
        %v613 = vld [vmem:[%s421 + $0x1e8] sm:$0xff]
        %v614 = vld [vmem:[%s421 + $0x1f0] sm:$0xff]
        %v615 = vld [vmem:[%s421 + $0x1f8] sm:$0xff]
        %v616 = vld [vmem:[%s421 + $0x200] sm:$0xff]
        %v617 = vld [vmem:[%s421 + $0x208] sm:$0xff]
        %v618 = vld [vmem:[%s421 + $0x210] sm:$0xff]
        %v619 = vld [vmem:[%s421 + $0x218] sm:$0xff]
        %v620 = vld [vmem:[%s421 + $0x220] sm:$0xff]
        %v621 = vld [vmem:[%s421 + $0x228] sm:$0xff]
        %v622 = vld [vmem:[%s421 + $0x230] sm:$0xff]
        %v623 = vld [vmem:[%s421 + $0x238] sm:$0xff]
        %v624 = vld [vmem:[%s421 + $0x240] sm:$0xff]
        %v625 = vld [vmem:[%s421 + $0x248] sm:$0xff]
        %v626 = vld [vmem:[%s421 + $0x250] sm:$0xff]
        %v627 = vld [vmem:[%s421 + $0x258] sm:$0xff]
        %v628 = vld [vmem:[%s421 + $0x260] sm:$0xff]
        %v629 = vld [vmem:[%s421 + $0x268] sm:$0xff]
        %v630 = vld [vmem:[%s421 + $0x270] sm:$0xff]
        %v631 = vld [vmem:[%s421 + $0x278] sm:$0xff]
        %v632 = vld [vmem:[%s421 + $0x280] sm:$0xff]
        %v633 = vld [vmem:[%s421 + $0x288] sm:$0xff]
        %v634 = vld [vmem:[%s421 + $0x290] sm:$0xff]
        %v635 = vld [vmem:[%s421 + $0x298] sm:$0xff]
        %v636 = vld [vmem:[%s421 + $0x2a0] sm:$0xff]
        %v637 = vld [vmem:[%s421 + $0x2a8] sm:$0xff]
        %v638 = vld [vmem:[%s421 + $0x2b0] sm:$0xff]
        %v639 = vld [vmem:[%s421 + $0x2b8] sm:$0xff]
        %v640 = vld [vmem:[%s421 + $0x2c0] sm:$0xff]
        %v641 = vld [vmem:[%s421 + $0x2c8] sm:$0xff]
        %v642 = vld [vmem:[%s421 + $0x2d0] sm:$0xff]
        %v643 = vld [vmem:[%s421 + $0x2d8] sm:$0xff]
        %v644 = vld [vmem:[%s421 + $0x2e0] sm:$0xff]
        %v645 = vld [vmem:[%s421 + $0x2e8] sm:$0xff]
        %v646 = vld [vmem:[%s421 + $0x2f0] sm:$0xff]
        %v647 = vld [vmem:[%s421 + $0x2f8] sm:$0xff]
        %v648 = vld [vmem:[%s421 + $0x300] sm:$0xff]
        %v649 = vld [vmem:[%s421 + $0x308] sm:$0xff]
        %v650 = vld [vmem:[%s421 + $0x310] sm:$0xff]
        %v651 = vld [vmem:[%s421 + $0x318] sm:$0xff]
        %v652 = vld [vmem:[%s421 + $0x320] sm:$0xff]
        %v653 = vld [vmem:[%s421 + $0x328] sm:$0xff]
        %v654 = vld [vmem:[%s421 + $0x330] sm:$0xff]
        %v655 = vld [vmem:[%s421 + $0x338] sm:$0xff]
        %v656 = vld [vmem:[%s421 + $0x340] sm:$0xff]
        %v657 = vld [vmem:[%s421 + $0x348] sm:$0xff]
        %v658 = vld [vmem:[%s421 + $0x350] sm:$0xff]
        %v659 = vld [vmem:[%s421 + $0x358] sm:$0xff]
        %v660 = vld [vmem:[%s421 + $0x360] sm:$0xff]
        %v661 = vld [vmem:[%s421 + $0x368] sm:$0xff]
        %v662 = vld [vmem:[%s421 + $0x370] sm:$0xff]
        %v663 = vld [vmem:[%s421 + $0x378] sm:$0xff]
        %v664 = vld [vmem:[%s421 + $0x380] sm:$0xff]
        %v665 = vld [vmem:[%s421 + $0x388] sm:$0xff]
        %v666 = vld [vmem:[%s421 + $0x390] sm:$0xff]
        %v667 = vld [vmem:[%s421 + $0x398] sm:$0xff]
        %v668 = vld [vmem:[%s421 + $0x3a0] sm:$0xff]
        %v669 = vld [vmem:[%s421 + $0x3a8] sm:$0xff]
        %v670 = vld [vmem:[%s421 + $0x3b0] sm:$0xff]
        %v671 = vld [vmem:[%s421 + $0x3b8] sm:$0xff]
        %v672 = vld [vmem:[%s421 + $0x3c0] sm:$0xff]
        %v673 = vld [vmem:[%s421 + $0x3c8] sm:$0xff]
        %v674 = vld [vmem:[%s421 + $0x3d0] sm:$0xff]
        %v675 = vld [vmem:[%s421 + $0x3d8] sm:$0xff]
        %v676 = vld [vmem:[%s421 + $0x3e0] sm:$0xff]
        %v677 = vld [vmem:[%s421 + $0x3e8] sm:$0xff]
        %v678 = vld [vmem:[%s421 + $0x3f0] sm:$0xff]
        %v679 = vld [vmem:[%s421 + $0x3f8] sm:$0xff]
        %v680 = vld [vmem:[%s421 + $0x400] sm:$0xff]
        %v681 = vld [vmem:[%s421 + $0x408] sm:$0xff]
        %v682 = vld [vmem:[%s421 + $0x410] sm:$0xff]
        %v683 = vld [vmem:[%s421 + $0x418] sm:$0xff]
        %v684 = vld [vmem:[%s421 + $0x420] sm:$0xff]
        %v685 = vld [vmem:[%s421 + $0x428] sm:$0xff]
        %v686 = vld [vmem:[%s421 + $0x430] sm:$0xff]
        %v687 = vld [vmem:[%s421 + $0x438] sm:$0xff]
        %v688 = vld [vmem:[%s421 + $0x440] sm:$0xff]
        %v689 = vld [vmem:[%s421 + $0x448] sm:$0xff]
        %v690 = vld [vmem:[%s421 + $0x450] sm:$0xff]
        %v691 = vld [vmem:[%s421 + $0x458] sm:$0xff]
        %v692 = vld [vmem:[%s421 + $0x460] sm:$0xff]
        %v693 = vld [vmem:[%s421 + $0x468] sm:$0xff]
        %v694 = vld [vmem:[%s421 + $0x470] sm:$0xff]
        %v695 = vld [vmem:[%s421 + $0x478] sm:$0xff]
        %v696 = vld [vmem:[%s421 + $0x480] sm:$0xff]
        %v697 = vld [vmem:[%s421 + $0x488] sm:$0xff]
        %v698 = vld [vmem:[%s421 + $0x490] sm:$0xff]
        %v699 = vld [vmem:[%s421 + $0x498] sm:$0xff]
        %v700 = vld [vmem:[%s421 + $0x4a0] sm:$0xff]
        %v701 = vld [vmem:[%s421 + $0x4a8] sm:$0xff]
        %v702 = vld [vmem:[%s421 + $0x4b0] sm:$0xff]
        %v703 = vld [vmem:[%s421 + $0x4b8] sm:$0xff]
        %v704 = vld [vmem:[%s421 + $0x4c0] sm:$0xff]
        %v705 = vld [vmem:[%s421 + $0x4c8] sm:$0xff]
        %v706 = vld [vmem:[%s421 + $0x4d0] sm:$0xff]
        %v707 = vld [vmem:[%s421 + $0x4d8] sm:$0xff]
        %v708 = vld [vmem:[%s421 + $0x4e0] sm:$0xff]
        %v709 = vld [vmem:[%s421 + $0x4e8] sm:$0xff]
        %v710 = vld [vmem:[%s421 + $0x4f0] sm:$0xff]
        %v711 = vld [vmem:[%s421 + $0x4f8] sm:$0xff]
        %v712 = vld [vmem:[%s421 + $0x500] sm:$0xff]
        %v713 = vld [vmem:[%s421 + $0x508] sm:$0xff]
        %v714 = vld [vmem:[%s421 + $0x510] sm:$0xff]
        %v715 = vld [vmem:[%s421 + $0x518] sm:$0xff]
        %v716 = vld [vmem:[%s421 + $0x520] sm:$0xff]
        %v717 = vld [vmem:[%s421 + $0x528] sm:$0xff]
        %v718 = vld [vmem:[%s421 + $0x530] sm:$0xff]
        %v719 = vld [vmem:[%s421 + $0x538] sm:$0xff]
        %v720 = vld [vmem:[%s421 + $0x540] sm:$0xff]
        %v721 = vld [vmem:[%s421 + $0x548] sm:$0xff]
        %v722 = vld [vmem:[%s421 + $0x550] sm:$0xff]
        %v723 = vld [vmem:[%s421 + $0x558] sm:$0xff]
        %v724 = vld [vmem:[%s421 + $0x560] sm:$0xff]
        %v725 = vld [vmem:[%s421 + $0x568] sm:$0xff]
        %v726 = vld [vmem:[%s421 + $0x570] sm:$0xff]
        %v727 = vld [vmem:[%s421 + $0x578] sm:$0xff]
        %v728 = vld [vmem:[%s421 + $0x580] sm:$0xff]
        %v729 = vld [vmem:[%s421 + $0x588] sm:$0xff]
        %v730 = vld [vmem:[%s421 + $0x590] sm:$0xff]
        %v731 = vld [vmem:[%s421 + $0x598] sm:$0xff]
        %v732 = vld [vmem:[%s421 + $0x5a0] sm:$0xff]
        %v733 = vld [vmem:[%s421 + $0x5a8] sm:$0xff]
        %v734 = vld [vmem:[%s421 + $0x5b0] sm:$0xff]
        %v735 = vld [vmem:[%s421 + $0x5b8] sm:$0xff]
        %v736 = vld [vmem:[%s421 + $0x5c0] sm:$0xff]
        %v737 = vld [vmem:[%s421 + $0x5c8] sm:$0xff]
        %v738 = vld [vmem:[%s421 + $0x5d0] sm:$0xff]
        %v739 = vld [vmem:[%s421 + $0x5d8] sm:$0xff]
        %v740 = vld [vmem:[%s421 + $0x5e0] sm:$0xff]
        %v741 = vld [vmem:[%s421 + $0x5e8] sm:$0xff]
        %v742 = vld [vmem:[%s421 + $0x5f0] sm:$0xff]
        %v743 = vld [vmem:[%s421 + $0x5f8] sm:$0xff]
        %v744 = vld [vmem:[%s421 + $0x600] sm:$0xff]
        %v745 = vld [vmem:[%s421 + $0x608] sm:$0xff]
        %v746 = vld [vmem:[%s421 + $0x610] sm:$0xff]
        %v747 = vld [vmem:[%s421 + $0x618] sm:$0xff]
        %v748 = vld [vmem:[%s421 + $0x620] sm:$0xff]
        %v749 = vld [vmem:[%s421 + $0x628] sm:$0xff]
        %v750 = vld [vmem:[%s421 + $0x630] sm:$0xff]
        %v751 = vld [vmem:[%s421 + $0x638] sm:$0xff]
        %v752 = vld [vmem:[%s421 + $0x640] sm:$0xff]
        %v753 = vld [vmem:[%s421 + $0x648] sm:$0xff]
        %v754 = vld [vmem:[%s421 + $0x650] sm:$0xff]
        %v755 = vld [vmem:[%s421 + $0x658] sm:$0xff]
        %v756 = vld [vmem:[%s421 + $0x660] sm:$0xff]
        %v757 = vld [vmem:[%s421 + $0x668] sm:$0xff]
        %v758 = vld [vmem:[%s421 + $0x670] sm:$0xff]
        %v759 = vld [vmem:[%s421 + $0x678] sm:$0xff]
        %v760 = vld [vmem:[%s421 + $0x680] sm:$0xff]
        %v761 = vld [vmem:[%s421 + $0x688] sm:$0xff]
        %v762 = vld [vmem:[%s421 + $0x690] sm:$0xff]
        %v763 = vld [vmem:[%s421 + $0x698] sm:$0xff]
        %v764 = vld [vmem:[%s421 + $0x6a0] sm:$0xff]
        %v765 = vld [vmem:[%s421 + $0x6a8] sm:$0xff]
        %v766 = vld [vmem:[%s421 + $0x6b0] sm:$0xff]
        %v767 = vld [vmem:[%s421 + $0x6b8] sm:$0xff]
        %v768 = vld [vmem:[%s421 + $0x6c0] sm:$0xff]
        %v769 = vld [vmem:[%s421 + $0x6c8] sm:$0xff]
        %v770 = vld [vmem:[%s421 + $0x6d0] sm:$0xff]
        %v771 = vld [vmem:[%s421 + $0x6d8] sm:$0xff]
        %v772 = vld [vmem:[%s421 + $0x6e0] sm:$0xff]
        %v773 = vld [vmem:[%s421 + $0x6e8] sm:$0xff]
        %v774 = vld [vmem:[%s421 + $0x6f0] sm:$0xff]
        %v775 = vld [vmem:[%s421 + $0x6f8] sm:$0xff]
        %v776 = vld [vmem:[%s421 + $0x700] sm:$0xff]
        %v777 = vld [vmem:[%s421 + $0x708] sm:$0xff]
        %v778 = vld [vmem:[%s421 + $0x710] sm:$0xff]
        %v779 = vld [vmem:[%s421 + $0x718] sm:$0xff]
        %v780 = vld [vmem:[%s421 + $0x720] sm:$0xff]
        %v781 = vld [vmem:[%s421 + $0x728] sm:$0xff]
        %v782 = vld [vmem:[%s421 + $0x730] sm:$0xff]
        %v783 = vld [vmem:[%s421 + $0x738] sm:$0xff]
        %v784 = vld [vmem:[%s421 + $0x740] sm:$0xff]
        %v785 = vld [vmem:[%s421 + $0x748] sm:$0xff]
        %v786 = vld [vmem:[%s421 + $0x750] sm:$0xff]
        %v787 = vld [vmem:[%s421 + $0x758] sm:$0xff]
        %v788 = vld [vmem:[%s421 + $0x760] sm:$0xff]
        %v789 = vld [vmem:[%s421 + $0x768] sm:$0xff]
        %v790 = vld [vmem:[%s421 + $0x770] sm:$0xff]
        %v791 = vld [vmem:[%s421 + $0x778] sm:$0xff]
        %v792 = vld [vmem:[%s421 + $0x780] sm:$0xff]
        %v793 = vld [vmem:[%s421 + $0x788] sm:$0xff]
        %v794 = vld [vmem:[%s421 + $0x790] sm:$0xff]
        %v795 = vld [vmem:[%s421 + $0x798] sm:$0xff]
        %v796 = vld [vmem:[%s421 + $0x7a0] sm:$0xff]
        %v797 = vld [vmem:[%s421 + $0x7a8] sm:$0xff]
        %v798 = vld [vmem:[%s421 + $0x7b0] sm:$0xff]
        %v799 = vld [vmem:[%s421 + $0x7b8] sm:$0xff]
        %v800 = vld [vmem:[%s421 + $0x7c0] sm:$0xff]
        %v801 = vld [vmem:[%s421 + $0x7c8] sm:$0xff]
        %v802 = vld [vmem:[%s421 + $0x7d0] sm:$0xff]
        %v803 = vld [vmem:[%s421 + $0x7d8] sm:$0xff]
        %v804 = vld [vmem:[%s421 + $0x7e0] sm:$0xff]
        %v805 = vld [vmem:[%s421 + $0x7e8] sm:$0xff]
        %v806 = vld [vmem:[%s421 + $0x7f0] sm:$0xff]
        %v807 = vld [vmem:[%s421 + $0x7f8] sm:$0xff]
        %v808 = vld [vmem:[%s421 + $0x800] sm:$0xff]
        %v809 = vld [vmem:[%s421 + $0x808] sm:$0xff]
        %v810 = vld [vmem:[%s421 + $0x810] sm:$0xff]
        %v811 = vld [vmem:[%s421 + $0x818] sm:$0xff]
        %v812 = vld [vmem:[%s421 + $0x820] sm:$0xff]
        %v813 = vld [vmem:[%s421 + $0x828] sm:$0xff]
        %v814 = vld [vmem:[%s421 + $0x830] sm:$0xff]
        %v815 = vld [vmem:[%s421 + $0x838] sm:$0xff]
        %v816 = vld [vmem:[%s421 + $0x840] sm:$0xff]
        %v817 = vld [vmem:[%s421 + $0x848] sm:$0xff]
        %v818 = vld [vmem:[%s421 + $0x850] sm:$0xff]
        %v819 = vld [vmem:[%s421 + $0x858] sm:$0xff]
        %v820 = vld [vmem:[%s421 + $0x860] sm:$0xff]
        %v821 = vld [vmem:[%s421 + $0x868] sm:$0xff]
        %v822 = vld [vmem:[%s421 + $0x870] sm:$0xff]
        %v823 = vld [vmem:[%s421 + $0x878] sm:$0xff]
        %v824 = vld [vmem:[%s421 + $0x880] sm:$0xff]
        %v825 = vld [vmem:[%s421 + $0x888] sm:$0xff]
        %v826 = vld [vmem:[%s421 + $0x890] sm:$0xff]
        %v827 = vld [vmem:[%s421 + $0x898] sm:$0xff]
        %v828 = vld [vmem:[%s421 + $0x8a0] sm:$0xff]
        %v829 = vld [vmem:[%s421 + $0x8a8] sm:$0xff]
        %v830 = vld [vmem:[%s421 + $0x8b0] sm:$0xff]
        %v831 = vld [vmem:[%s421 + $0x8b8] sm:$0xff]
        %v832 = vld [vmem:[%s421 + $0x8c0] sm:$0xff]
        %v833 = vld [vmem:[%s421 + $0x8c8] sm:$0xff]
        %v834 = vld [vmem:[%s421 + $0x8d0] sm:$0xff]
        %v835 = vld [vmem:[%s421 + $0x8d8] sm:$0xff]
        %v836 = vld [vmem:[%s421 + $0x8e0] sm:$0xff]
        %v837 = vld [vmem:[%s421 + $0x8e8] sm:$0xff]
        %v838 = vld [vmem:[%s421 + $0x8f0] sm:$0xff]
        %v839 = vld [vmem:[%s421 + $0x8f8] sm:$0xff]
        %v840 = vld [vmem:[%s421 + $0x900] sm:$0xff]
        %v841 = vld [vmem:[%s421 + $0x908] sm:$0xff]
        %v842 = vld [vmem:[%s421 + $0x910] sm:$0xff]
        %v843 = vld [vmem:[%s421 + $0x918] sm:$0xff]
        %v844 = vld [vmem:[%s421 + $0x920] sm:$0xff]
        %v845 = vld [vmem:[%s421 + $0x928] sm:$0xff]
        %v846 = vld [vmem:[%s421 + $0x930] sm:$0xff]
        %v847 = vld [vmem:[%s421 + $0x938] sm:$0xff]
        %v848 = vld [vmem:[%s421 + $0x940] sm:$0xff]
        %v849 = vld [vmem:[%s421 + $0x948] sm:$0xff]
        %v850 = vld [vmem:[%s421 + $0x950] sm:$0xff]
        %v851 = vld [vmem:[%s421 + $0x958] sm:$0xff]
        %v852 = vld [vmem:[%s421 + $0x960] sm:$0xff]
        %v853 = vld [vmem:[%s421 + $0x968] sm:$0xff]
        %v854 = vld [vmem:[%s421 + $0x970] sm:$0xff]
        %v855 = vld [vmem:[%s421 + $0x978] sm:$0xff]
        %v856 = vld [vmem:[%s421 + $0x980] sm:$0xff]
        %v857 = vld [vmem:[%s421 + $0x988] sm:$0xff]
        %v858 = vld [vmem:[%s421 + $0x990] sm:$0xff]
        %v859 = vld [vmem:[%s421 + $0x998] sm:$0xff]
        %v860 = vld [vmem:[%s421 + $0x9a0] sm:$0xff]
        %v861 = vld [vmem:[%s421 + $0x9a8] sm:$0xff]
        %v862 = vld [vmem:[%s421 + $0x9b0] sm:$0xff]
        %v863 = vld [vmem:[%s421 + $0x9b8] sm:$0xff]
        %v864 = vld [vmem:[%s421 + $0x9c0] sm:$0xff]
        %v865 = vld [vmem:[%s421 + $0x9c8] sm:$0xff]
        %v866 = vld [vmem:[%s421 + $0x9d0] sm:$0xff]
        %v867 = vld [vmem:[%s421 + $0x9d8] sm:$0xff]
        %v868 = vld [vmem:[%s421 + $0x9e0] sm:$0xff]
        %v869 = vld [vmem:[%s421 + $0x9e8] sm:$0xff]
        %v870 = vld [vmem:[%s421 + $0x9f0] sm:$0xff]
        %v871 = vld [vmem:[%s421 + $0x9f8] sm:$0xff]
        %v872 = vld [vmem:[%s421 + $0xa00] sm:$0xff]
        %v873 = vld [vmem:[%s421 + $0xa08] sm:$0xff]
        %v874 = vld [vmem:[%s421 + $0xa10] sm:$0xff]
        %v875 = vld [vmem:[%s421 + $0xa18] sm:$0xff]
        %v876 = vld [vmem:[%s421 + $0xa20] sm:$0xff]
        %v877 = vld [vmem:[%s421 + $0xa28] sm:$0xff]
        %v878 = vld [vmem:[%s421 + $0xa30] sm:$0xff]
        %v879 = vld [vmem:[%s421 + $0xa38] sm:$0xff]
        %v880 = vld [vmem:[%s421 + $0xa40] sm:$0xff]
        %v881 = vld [vmem:[%s421 + $0xa48] sm:$0xff]
        %v882 = vld [vmem:[%s421 + $0xa50] sm:$0xff]
        %v883 = vld [vmem:[%s421 + $0xa58] sm:$0xff]
        %v884 = vld [vmem:[%s421 + $0xa60] sm:$0xff]
        %v885 = vld [vmem:[%s421 + $0xa68] sm:$0xff]
        %v886 = vld [vmem:[%s421 + $0xa70] sm:$0xff]
        %v887 = vld [vmem:[%s421 + $0xa78] sm:$0xff]
        %v888 = vld [vmem:[%s421 + $0xa80] sm:$0xff]
        %v889 = vld [vmem:[%s421 + $0xa88] sm:$0xff]
        %v890 = vld [vmem:[%s421 + $0xa90] sm:$0xff]
        %v891 = vld [vmem:[%s421 + $0xa98] sm:$0xff]
        %v892 = vld [vmem:[%s421 + $0xaa0] sm:$0xff]
        %v893 = vld [vmem:[%s421 + $0xaa8] sm:$0xff]
        %v894 = vld [vmem:[%s421 + $0xab0] sm:$0xff]
        %v895 = vld [vmem:[%s421 + $0xab8] sm:$0xff]
        %v896 = vld [vmem:[%s421 + $0xac0] sm:$0xff]
        %v897 = vld [vmem:[%s421 + $0xac8] sm:$0xff]
        %v898 = vld [vmem:[%s421 + $0xad0] sm:$0xff]
        %v899 = vld [vmem:[%s421 + $0xad8] sm:$0xff]
        %v900 = vld [vmem:[%s421 + $0xae0] sm:$0xff]
        %v901 = vld [vmem:[%s421 + $0xae8] sm:$0xff]
        %v902 = vld [vmem:[%s421 + $0xaf0] sm:$0xff]
        %v903 = vld [vmem:[%s421 + $0xaf8] sm:$0xff]
        %v904 = vld [vmem:[%s421 + $0xb00] sm:$0xff]
        %v905 = vld [vmem:[%s421 + $0xb08] sm:$0xff]
        %v906 = vld [vmem:[%s421 + $0xb10] sm:$0xff]
        %v907 = vld [vmem:[%s421 + $0xb18] sm:$0xff]
        %v908 = vld [vmem:[%s421 + $0xb20] sm:$0xff]
        %v909 = vld [vmem:[%s421 + $0xb28] sm:$0xff]
        %v910 = vld [vmem:[%s421 + $0xb30] sm:$0xff]
        %v911 = vld [vmem:[%s421 + $0xb38] sm:$0xff]
        %v912 = vld [vmem:[%s421 + $0xb40] sm:$0xff]
        %v913 = vld [vmem:[%s421 + $0xb48] sm:$0xff]
        %v914 = vld [vmem:[%s421 + $0xb50] sm:$0xff]
        %v915 = vld [vmem:[%s421 + $0xb58] sm:$0xff]
        %v916 = vld [vmem:[%s421 + $0xb60] sm:$0xff]
        %v917 = vld [vmem:[%s421 + $0xb68] sm:$0xff]
        %v918 = vld [vmem:[%s421 + $0xb70] sm:$0xff]
        %v919 = vld [vmem:[%s421 + $0xb78] sm:$0xff]
        %v920 = vld [vmem:[%s421 + $0xb80] sm:$0xff]
        %v921 = vld [vmem:[%s421 + $0xb88] sm:$0xff]
        %v922 = vld [vmem:[%s421 + $0xb90] sm:$0xff]
        %v923 = vld [vmem:[%s421 + $0xb98] sm:$0xff]
        %v924 = vld [vmem:[%s421 + $0xba0] sm:$0xff]
        %v925 = vld [vmem:[%s421 + $0xba8] sm:$0xff]
        %v926 = vld [vmem:[%s421 + $0xbb0] sm:$0xff]
        %v927 = vld [vmem:[%s421 + $0xbb8] sm:$0xff]
        %v928 = vld [vmem:[%s421 + $0xbc0] sm:$0xff]
        %v929 = vld [vmem:[%s421 + $0xbc8] sm:$0xff]
        %v930 = vld [vmem:[%s421 + $0xbd0] sm:$0xff]
        %v931 = vld [vmem:[%s421 + $0xbd8] sm:$0xff]
        %v932 = vld [vmem:[%s421 + $0xbe0] sm:$0xff]
        %v933 = vld [vmem:[%s421 + $0xbe8] sm:$0xff]
        %v934 = vld [vmem:[%s421 + $0xbf0] sm:$0xff]
        %v935 = vld [vmem:[%s421 + $0xbf8] sm:$0xff]
        %v936 = vld [vmem:[%s421 + $0xc00] sm:$0xff]
        %v937 = vld [vmem:[%s421 + $0xc08] sm:$0xff]
        %v938 = vld [vmem:[%s421 + $0xc10] sm:$0xff]
        %v939 = vld [vmem:[%s421 + $0xc18] sm:$0xff]
        %v940 = vld [vmem:[%s421 + $0xc20] sm:$0xff]
        %v941 = vld [vmem:[%s421 + $0xc28] sm:$0xff]
        %v942 = vld [vmem:[%s421 + $0xc30] sm:$0xff]
        %v943 = vld [vmem:[%s421 + $0xc38] sm:$0xff]
        %v944 = vld [vmem:[%s421 + $0xc40] sm:$0xff]
        %v945 = vld [vmem:[%s421 + $0xc48] sm:$0xff]
        %v946 = vld [vmem:[%s421 + $0xc50] sm:$0xff]
        %v947 = vld [vmem:[%s421 + $0xc58] sm:$0xff]
        %v948 = vld [vmem:[%s421 + $0xc60] sm:$0xff]
        %v949 = vld [vmem:[%s421 + $0xc68] sm:$0xff]
        %v950 = vld [vmem:[%s421 + $0xc70] sm:$0xff]
        %v951 = vld [vmem:[%s421 + $0xc78] sm:$0xff]
        %v952 = vld [vmem:[%s421 + $0xc80] sm:$0xff]
        %v953 = vld [vmem:[%s421 + $0xc88] sm:$0xff]
        %v954 = vld [vmem:[%s421 + $0xc90] sm:$0xff]
        %v955 = vld [vmem:[%s421 + $0xc98] sm:$0xff]
        %v956 = vld [vmem:[%s421 + $0xca0] sm:$0xff]
        %v957 = vld [vmem:[%s421 + $0xca8] sm:$0xff]
        %v958 = vld [vmem:[%s421 + $0xcb0] sm:$0xff]
        %v959 = vld [vmem:[%s421 + $0xcb8] sm:$0xff]
        %v960 = vld [vmem:[%s421 + $0xcc0] sm:$0xff]
        %v961 = vld [vmem:[%s421 + $0xcc8] sm:$0xff]
        %v962 = vld [vmem:[%s421 + $0xcd0] sm:$0xff]
        %v963 = vld [vmem:[%s421 + $0xcd8] sm:$0xff]
        %v964 = vld [vmem:[%s421 + $0xce0] sm:$0xff]
        %v965 = vld [vmem:[%s421 + $0xce8] sm:$0xff]
        %v966 = vld [vmem:[%s421 + $0xcf0] sm:$0xff]
        %v967 = vld [vmem:[%s421 + $0xcf8] sm:$0xff]
        %v968 = vld [vmem:[%s421 + $0xd00] sm:$0xff]
        %v969 = vld [vmem:[%s421 + $0xd08] sm:$0xff]
        %v970 = vld [vmem:[%s421 + $0xd10] sm:$0xff]
        %v971 = vld [vmem:[%s421 + $0xd18] sm:$0xff]
        %v972 = vld [vmem:[%s421 + $0xd20] sm:$0xff]
        %v973 = vld [vmem:[%s421 + $0xd28] sm:$0xff]
        %v974 = vld [vmem:[%s421 + $0xd30] sm:$0xff]
        %v975 = vld [vmem:[%s421 + $0xd38] sm:$0xff]
        %v976 = vld [vmem:[%s421 + $0xd40] sm:$0xff]
        %v977 = vld [vmem:[%s421 + $0xd48] sm:$0xff]
        %v978 = vld [vmem:[%s421 + $0xd50] sm:$0xff]
        %v979 = vld [vmem:[%s421 + $0xd58] sm:$0xff]
        %v980 = vld [vmem:[%s421 + $0xd60] sm:$0xff]
        %v981 = vld [vmem:[%s421 + $0xd68] sm:$0xff]
        %v982 = vld [vmem:[%s421 + $0xd70] sm:$0xff]
        %v983 = vld [vmem:[%s421 + $0xd78] sm:$0xff]
        %v984 = vld [vmem:[%s421 + $0xd80] sm:$0xff]
        %v985 = vld [vmem:[%s421 + $0xd88] sm:$0xff]
        %v986 = vld [vmem:[%s421 + $0xd90] sm:$0xff]
        %v987 = vld [vmem:[%s421 + $0xd98] sm:$0xff]
        %v988 = vld [vmem:[%s421 + $0xda0] sm:$0xff]
        %v989 = vld [vmem:[%s421 + $0xda8] sm:$0xff]
        %v990 = vld [vmem:[%s421 + $0xdb0] sm:$0xff]
        %v991 = vld [vmem:[%s421 + $0xdb8] sm:$0xff]
        %v992 = vld [vmem:[%s421 + $0xdc0] sm:$0xff]
        %v993 = vld [vmem:[%s421 + $0xdc8] sm:$0xff]
        %v994 = vld [vmem:[%s421 + $0xdd0] sm:$0xff]
        %v995 = vld [vmem:[%s421 + $0xdd8] sm:$0xff]
        %v996 = vld [vmem:[%s421 + $0xde0] sm:$0xff]
        %v997 = vld [vmem:[%s421 + $0xde8] sm:$0xff]
        %v998 = vld [vmem:[%s421 + $0xdf0] sm:$0xff]
        %v999 = vld [vmem:[%s421 + $0xdf8] sm:$0xff]
        %v1000 = vld [vmem:[%s421 + $0xe00] sm:$0xff]
        %v1001 = vld [vmem:[%s421 + $0xe08] sm:$0xff]
        %v1002 = vld [vmem:[%s421 + $0xe10] sm:$0xff]
        %v1003 = vld [vmem:[%s421 + $0xe18] sm:$0xff]
        %v1004 = vld [vmem:[%s421 + $0xe20] sm:$0xff]
        %v1005 = vld [vmem:[%s421 + $0xe28] sm:$0xff]
        %v1006 = vld [vmem:[%s421 + $0xe30] sm:$0xff]
        %v1007 = vld [vmem:[%s421 + $0xe38] sm:$0xff]
        %v1008 = vld [vmem:[%s421 + $0xe40] sm:$0xff]
        %v1009 = vld [vmem:[%s421 + $0xe48] sm:$0xff]
        %v1010 = vld [vmem:[%s421 + $0xe50] sm:$0xff]
        %v1011 = vld [vmem:[%s421 + $0xe58] sm:$0xff]
        %v1012 = vld [vmem:[%s421 + $0xe60] sm:$0xff]
        %v1013 = vld [vmem:[%s421 + $0xe68] sm:$0xff]
        %v1014 = vld [vmem:[%s421 + $0xe70] sm:$0xff]
        %v1015 = vld [vmem:[%s421 + $0xe78] sm:$0xff]
        %v1016 = vld [vmem:[%s421 + $0xe80] sm:$0xff]
        %v1017 = vld [vmem:[%s421 + $0xe88] sm:$0xff]
        %v1018 = vld [vmem:[%s421 + $0xe90] sm:$0xff]
        %v1019 = vld [vmem:[%s421 + $0xe98] sm:$0xff]
        %v1020 = vld [vmem:[%s421 + $0xea0] sm:$0xff]
        %v1021 = vld [vmem:[%s421 + $0xea8] sm:$0xff]
        %v1022 = vld [vmem:[%s421 + $0xeb0] sm:$0xff]
        %v1023 = vld [vmem:[%s421 + $0xeb8] sm:$0xff]
        %v1024 = vld [vmem:[%s421 + $0xec0] sm:$0xff]
        %v1025 = vld [vmem:[%s421 + $0xec8] sm:$0xff]
        %v1026 = vld [vmem:[%s421 + $0xed0] sm:$0xff]
        %v1027 = vld [vmem:[%s421 + $0xed8] sm:$0xff]
        %v1028 = vld [vmem:[%s421 + $0xee0] sm:$0xff]
        %v1029 = vld [vmem:[%s421 + $0xee8] sm:$0xff]
        %v1030 = vld [vmem:[%s421 + $0xef0] sm:$0xff]
        %v1031 = vld [vmem:[%s421 + $0xef8] sm:$0xff]
        %v1032 = vld [vmem:[%s421 + $0xf00] sm:$0xff]
        %v1033 = vld [vmem:[%s421 + $0xf08] sm:$0xff]
        %v1034 = vld [vmem:[%s421 + $0xf10] sm:$0xff]
        %v1035 = vld [vmem:[%s421 + $0xf18] sm:$0xff]
        %v1036 = vld [vmem:[%s421 + $0xf20] sm:$0xff]
        %v1037 = vld [vmem:[%s421 + $0xf28] sm:$0xff]
        %v1038 = vld [vmem:[%s421 + $0xf30] sm:$0xff]
        %v1039 = vld [vmem:[%s421 + $0xf38] sm:$0xff]
        %v1040 = vld [vmem:[%s421 + $0xf40] sm:$0xff]
        %v1041 = vld [vmem:[%s421 + $0xf48] sm:$0xff]
        %v1042 = vld [vmem:[%s421 + $0xf50] sm:$0xff]
        %v1043 = vld [vmem:[%s421 + $0xf58] sm:$0xff]
        %v1044 = vld [vmem:[%s421 + $0xf60] sm:$0xff]
        %v1045 = vld [vmem:[%s421 + $0xf68] sm:$0xff]
        %v1046 = vld [vmem:[%s421 + $0xf70] sm:$0xff]
        %v1047 = vld [vmem:[%s421 + $0xf78] sm:$0xff]
        %v1048 = vld [vmem:[%s421 + $0xf80] sm:$0xff]
        %v1049 = vld [vmem:[%s421 + $0xf88] sm:$0xff]
        %v1050 = vld [vmem:[%s421 + $0xf90] sm:$0xff]
        %v1051 = vld [vmem:[%s421 + $0xf98] sm:$0xff]
        %v1052 = vld [vmem:[%s421 + $0xfa0] sm:$0xff]
        %v1053 = vld [vmem:[%s421 + $0xfa8] sm:$0xff]
        %v1054 = vld [vmem:[%s421 + $0xfb0] sm:$0xff]
        %v1055 = vld [vmem:[%s421 + $0xfb8] sm:$0xff]
        %v1056 = vld [vmem:[%s421 + $0xfc0] sm:$0xff]
        %v1057 = vld [vmem:[%s421 + $0xfc8] sm:$0xff]
        %v1058 = vld [vmem:[%s421 + $0xfd0] sm:$0xff]
        %v1059 = vld [vmem:[%s421 + $0xfd8] sm:$0xff]
        %v1060 = vld [vmem:[%s421 + $0xfe0] sm:$0xff]
        %v1061 = vld [vmem:[%s421 + $0xfe8] sm:$0xff]
        %v1062 = vld [vmem:[%s421 + $0xff0] sm:$0xff]
        %v1063 = vld [vmem:[%s421 + $0xff8] sm:$0xff]
        %v1064 = vld [vmem:[%s421 + $0x1000] sm:$0xff]
        %v1065 = vld [vmem:[%s421 + $0x1008] sm:$0xff]
        %v1066 = vld [vmem:[%s421 + $0x1010] sm:$0xff]
        %v1067 = vld [vmem:[%s421 + $0x1018] sm:$0xff]
        %v1068 = vld [vmem:[%s421 + $0x1020] sm:$0xff]
        %v1069 = vld [vmem:[%s421 + $0x1028] sm:$0xff]
        %v1070 = vld [vmem:[%s421 + $0x1030] sm:$0xff]
        %v1071 = vld [vmem:[%s421 + $0x1038] sm:$0xff]
        %v1072 = vld [vmem:[%s421 + $0x1040] sm:$0xff]
        %v1073 = vld [vmem:[%s421 + $0x1048] sm:$0xff]
        %v1074 = vld [vmem:[%s421 + $0x1050] sm:$0xff]
        %v1075 = vld [vmem:[%s421 + $0x1058] sm:$0xff]
        %v1076 = vld [vmem:[%s421 + $0x1060] sm:$0xff]
        %v1077 = vld [vmem:[%s421 + $0x1068] sm:$0xff]
        %v1078 = vld [vmem:[%s421 + $0x1070] sm:$0xff]
        %v1079 = vld [vmem:[%s421 + $0x1078] sm:$0xff]
        %v1080 = vld [vmem:[%s421 + $0x1080] sm:$0xff]
        %v1081 = vld [vmem:[%s421 + $0x1088] sm:$0xff]
        %v1082 = vld [vmem:[%s421 + $0x1090] sm:$0xff]
        %v1083 = vld [vmem:[%s421 + $0x1098] sm:$0xff]
        %v1084 = vld [vmem:[%s421 + $0x10a0] sm:$0xff]
        %v1085 = vld [vmem:[%s421 + $0x10a8] sm:$0xff]
        %v1086 = vld [vmem:[%s421 + $0x10b0] sm:$0xff]
        %v1087 = vld [vmem:[%s421 + $0x10b8] sm:$0xff]
        %v1088 = vld [vmem:[%s421 + $0x10c0] sm:$0xff]
        %v1089 = vld [vmem:[%s421 + $0x10c8] sm:$0xff]
        %v1090 = vld [vmem:[%s421 + $0x10d0] sm:$0xff]
        %v1091 = vld [vmem:[%s421 + $0x10d8] sm:$0xff]
        %v1092 = vld [vmem:[%s421 + $0x10e0] sm:$0xff]
        %v1093 = vld [vmem:[%s421 + $0x10e8] sm:$0xff]
        %v1094 = vld [vmem:[%s421 + $0x10f0] sm:$0xff]
        %v1095 = vld [vmem:[%s421 + $0x10f8] sm:$0xff]
        %v1096 = vld [vmem:[%s421 + $0x1100] sm:$0xff]
        %v1097 = vld [vmem:[%s421 + $0x1108] sm:$0xff]
        %v1098 = vld [vmem:[%s421 + $0x1110] sm:$0xff]
        %v1099 = vld [vmem:[%s421 + $0x1118] sm:$0xff]
        %v1100 = vld [vmem:[%s421 + $0x1120] sm:$0xff]
        %v1101 = vld [vmem:[%s421 + $0x1128] sm:$0xff]
        %v1102 = vld [vmem:[%s421 + $0x1130] sm:$0xff]
        %v1103 = vld [vmem:[%s421 + $0x1138] sm:$0xff]
        %v1104 = vld [vmem:[%s421 + $0x1140] sm:$0xff]
        %v1105 = vld [vmem:[%s421 + $0x1148] sm:$0xff]
        %v1106 = vld [vmem:[%s421 + $0x1150] sm:$0xff]
        %v1107 = vld [vmem:[%s421 + $0x1158] sm:$0xff]
        %v1108 = vld [vmem:[%s421 + $0x1160] sm:$0xff]
        %v1109 = vld [vmem:[%s421 + $0x1168] sm:$0xff]
        %v1110 = vld [vmem:[%s421 + $0x1170] sm:$0xff]
        %v1111 = vld [vmem:[%s421 + $0x1178] sm:$0xff]
        %v1112 = vld [vmem:[%s421 + $0x1180] sm:$0xff]
        %v1113 = vld [vmem:[%s421 + $0x1188] sm:$0xff]
        %v1114 = vld [vmem:[%s421 + $0x1190] sm:$0xff]
        %v1115 = vld [vmem:[%s421 + $0x1198] sm:$0xff]
        %v1116 = vld [vmem:[%s421 + $0x11a0] sm:$0xff]
        %v1117 = vld [vmem:[%s421 + $0x11a8] sm:$0xff]
        %v1118 = vld [vmem:[%s421 + $0x11b0] sm:$0xff]
        %v1119 = vld [vmem:[%s421 + $0x11b8] sm:$0xff]
        %v1120 = vld [vmem:[%s421 + $0x11c0] sm:$0xff]
        %v1121 = vld [vmem:[%s421 + $0x11c8] sm:$0xff]
        %v1122 = vld [vmem:[%s421 + $0x11d0] sm:$0xff]
        %v1123 = vld [vmem:[%s421 + $0x11d8] sm:$0xff]
        %v1124 = vld [vmem:[%s421 + $0x11e0] sm:$0xff]
        %v1125 = vld [vmem:[%s421 + $0x11e8] sm:$0xff]
        %v1126 = vld [vmem:[%s421 + $0x11f0] sm:$0xff]
        %v1127 = vld [vmem:[%s421 + $0x11f8] sm:$0xff]
        %v1128 = vld [vmem:[%s421 + $0x1200] sm:$0xff]
        %v1129 = vld [vmem:[%s421 + $0x1208] sm:$0xff]
        %v1130 = vld [vmem:[%s421 + $0x1210] sm:$0xff]
        %v1131 = vld [vmem:[%s421 + $0x1218] sm:$0xff]
        %v1132 = vld [vmem:[%s421 + $0x1220] sm:$0xff]
        %v1133 = vld [vmem:[%s421 + $0x1228] sm:$0xff]
        %v1134 = vld [vmem:[%s421 + $0x1230] sm:$0xff]
        %v1135 = vld [vmem:[%s421 + $0x1238] sm:$0xff]
        %v1136 = vld [vmem:[%s421 + $0x1240] sm:$0xff]
        %v1137 = vld [vmem:[%s421 + $0x1248] sm:$0xff]
        %v1138 = vld [vmem:[%s421 + $0x1250] sm:$0xff]
        %v1139 = vld [vmem:[%s421 + $0x1258] sm:$0xff]
        %v1140 = vld [vmem:[%s421 + $0x1260] sm:$0xff]
        %v1141 = vld [vmem:[%s421 + $0x1268] sm:$0xff]
        %v1142 = vld [vmem:[%s421 + $0x1270] sm:$0xff]
        %v1143 = vld [vmem:[%s421 + $0x1278] sm:$0xff]
        %v1144 = vld [vmem:[%s421 + $0x1280] sm:$0xff]
        %v1145 = vld [vmem:[%s421 + $0x1288] sm:$0xff]
        %v1146 = vld [vmem:[%s421 + $0x1290] sm:$0xff]
        %v1147 = vld [vmem:[%s421 + $0x1298] sm:$0xff]
        %v1148 = vld [vmem:[%s421 + $0x12a0] sm:$0xff]
        %v1149 = vld [vmem:[%s421 + $0x12a8] sm:$0xff]
        %v1150 = vld [vmem:[%s421 + $0x12b0] sm:$0xff]
        %v1151 = vld [vmem:[%s421 + $0x12b8] sm:$0xff]
        %v1152 = vld [vmem:[%s421 + $0x12c0] sm:$0xff]
        %v1153 = vld [vmem:[%s421 + $0x12c8] sm:$0xff]
        %v1154 = vld [vmem:[%s421 + $0x12d0] sm:$0xff]
        %v1155 = vld [vmem:[%s421 + $0x12d8] sm:$0xff]
        %v1156 = vld [vmem:[%s421 + $0x12e0] sm:$0xff]
        %v1157 = vld [vmem:[%s421 + $0x12e8] sm:$0xff]
        %v1158 = vld [vmem:[%s421 + $0x12f0] sm:$0xff]
        %v1159 = vld [vmem:[%s421 + $0x12f8] sm:$0xff]
        %v1160 = vld [vmem:[%s421 + $0x1300] sm:$0xff]
        %v1161 = vld [vmem:[%s421 + $0x1308] sm:$0xff]
        %v1162 = vld [vmem:[%s421 + $0x1310] sm:$0xff]
        %v1163 = vld [vmem:[%s421 + $0x1318] sm:$0xff]
        %v1164 = vld [vmem:[%s421 + $0x1320] sm:$0xff]
        %v1165 = vld [vmem:[%s421 + $0x1328] sm:$0xff]
        %v1166 = vld [vmem:[%s421 + $0x1330] sm:$0xff]
        %v1167 = vld [vmem:[%s421 + $0x1338] sm:$0xff]
        %v1168 = vld [vmem:[%s421 + $0x1340] sm:$0xff]
        %v1169 = vld [vmem:[%s421 + $0x1348] sm:$0xff]
        %v1170 = vld [vmem:[%s421 + $0x1350] sm:$0xff]
        %v1171 = vld [vmem:[%s421 + $0x1358] sm:$0xff]
        %v1172 = vld [vmem:[%s421 + $0x1360] sm:$0xff]
        %v1173 = vld [vmem:[%s421 + $0x1368] sm:$0xff]
        %v1174 = vld [vmem:[%s421 + $0x1370] sm:$0xff]
        %v1175 = vld [vmem:[%s421 + $0x1378] sm:$0xff]
        %v1176 = vld [vmem:[%s421 + $0x1380] sm:$0xff]
        %v1177 = vld [vmem:[%s421 + $0x1388] sm:$0xff]
        %v1178 = vld [vmem:[%s421 + $0x1390] sm:$0xff]
        %v1179 = vld [vmem:[%s421 + $0x1398] sm:$0xff]
        %v1180 = vld [vmem:[%s421 + $0x13a0] sm:$0xff]
        %v1181 = vld [vmem:[%s421 + $0x13a8] sm:$0xff]
        %v1182 = vld [vmem:[%s421 + $0x13b0] sm:$0xff]
        %v1183 = vld [vmem:[%s421 + $0x13b8] sm:$0xff]
        %v1184 = vld [vmem:[%s421 + $0x13c0] sm:$0xff]
        %v1185 = vld [vmem:[%s421 + $0x13c8] sm:$0xff]
        %v1186 = vld [vmem:[%s421 + $0x13d0] sm:$0xff]
        %v1187 = vld [vmem:[%s421 + $0x13d8] sm:$0xff]
        %v1188 = vld [vmem:[%s421 + $0x13e0] sm:$0xff]
        %v1189 = vld [vmem:[%s421 + $0x13e8] sm:$0xff]
        %v1190 = vld [vmem:[%s421 + $0x13f0] sm:$0xff]
        %v1191 = vld [vmem:[%s421 + $0x13f8] sm:$0xff]
        %v1192 = vld [vmem:[%s421 + $0x1400] sm:$0xff]
        %v1193 = vld [vmem:[%s421 + $0x1408] sm:$0xff]
        %v1194 = vld [vmem:[%s421 + $0x1410] sm:$0xff]
        %v1195 = vld [vmem:[%s421 + $0x1418] sm:$0xff]
        %v1196 = vld [vmem:[%s421 + $0x1420] sm:$0xff]
        %v1197 = vld [vmem:[%s421 + $0x1428] sm:$0xff]
        %v1198 = vld [vmem:[%s421 + $0x1430] sm:$0xff]
        %v1199 = vld [vmem:[%s421 + $0x1438] sm:$0xff]
        %v1200 = vld [vmem:[%s421 + $0x1440] sm:$0xff]
        %v1201 = vld [vmem:[%s421 + $0x1448] sm:$0xff]
        %v1202 = vld [vmem:[%s421 + $0x1450] sm:$0xff]
        %v1203 = vld [vmem:[%s421 + $0x1458] sm:$0xff]
        %v1204 = vld [vmem:[%s421 + $0x1460] sm:$0xff]
        %v1205 = vld [vmem:[%s421 + $0x1468] sm:$0xff]
        %v1206 = vld [vmem:[%s421 + $0x1470] sm:$0xff]
        %v1207 = vld [vmem:[%s421 + $0x1478] sm:$0xff]
        %v1208 = vld [vmem:[%s421 + $0x1480] sm:$0xff]
        %v1209 = vld [vmem:[%s421 + $0x1488] sm:$0xff]
        %v1210 = vld [vmem:[%s421 + $0x1490] sm:$0xff]
        %v1211 = vld [vmem:[%s421 + $0x1498] sm:$0xff]
        %v1212 = vld [vmem:[%s421 + $0x14a0] sm:$0xff]
        %v1213 = vld [vmem:[%s421 + $0x14a8] sm:$0xff]
        %v1214 = vld [vmem:[%s421 + $0x14b0] sm:$0xff]
        %v1215 = vld [vmem:[%s421 + $0x14b8] sm:$0xff]
        %v1216 = vld [vmem:[%s421 + $0x14c0] sm:$0xff]
        %v1217 = vld [vmem:[%s421 + $0x14c8] sm:$0xff]
        %v1218 = vld [vmem:[%s421 + $0x14d0] sm:$0xff]
        %v1219 = vld [vmem:[%s421 + $0x14d8] sm:$0xff]
        %v1220 = vld [vmem:[%s421 + $0x14e0] sm:$0xff]
        %v1221 = vld [vmem:[%s421 + $0x14e8] sm:$0xff]
        %v1222 = vld [vmem:[%s421 + $0x14f0] sm:$0xff]
        %v1223 = vld [vmem:[%s421 + $0x14f8] sm:$0xff]
        %v1224 = vld [vmem:[%s421 + $0x1500] sm:$0xff]
        %v1225 = vld [vmem:[%s421 + $0x1508] sm:$0xff]
        %v1226 = vld [vmem:[%s421 + $0x1510] sm:$0xff]
        %v1227 = vld [vmem:[%s421 + $0x1518] sm:$0xff]
        %v1228 = vld [vmem:[%s421 + $0x1520] sm:$0xff]
        %v1229 = vld [vmem:[%s421 + $0x1528] sm:$0xff]
        %v1230 = vld [vmem:[%s421 + $0x1530] sm:$0xff]
        %v1231 = vld [vmem:[%s421 + $0x1538] sm:$0xff]
        %v1232 = vld [vmem:[%s421 + $0x1540] sm:$0xff]
        %v1233 = vld [vmem:[%s421 + $0x1548] sm:$0xff]
        %v1234 = vld [vmem:[%s421 + $0x1550] sm:$0xff]
        %v1235 = vld [vmem:[%s421 + $0x1558] sm:$0xff]
        %v1236 = vld [vmem:[%s421 + $0x1560] sm:$0xff]
        %v1237 = vld [vmem:[%s421 + $0x1568] sm:$0xff]
        %v1238 = vld [vmem:[%s421 + $0x1570] sm:$0xff]
        %v1239 = vld [vmem:[%s421 + $0x1578] sm:$0xff]
        %v1240 = vld [vmem:[%s421 + $0x1580] sm:$0xff]
        %v1241 = vld [vmem:[%s421 + $0x1588] sm:$0xff]
        %v1242 = vld [vmem:[%s421 + $0x1590] sm:$0xff]
        %v1243 = vld [vmem:[%s421 + $0x1598] sm:$0xff]
        %v1244 = vld [vmem:[%s421 + $0x15a0] sm:$0xff]
        %v1245 = vld [vmem:[%s421 + $0x15a8] sm:$0xff]
        %v1246 = vld [vmem:[%s421 + $0x15b0] sm:$0xff]
        %v1247 = vld [vmem:[%s421 + $0x15b8] sm:$0xff]
        %v1248 = vld [vmem:[%s421 + $0x15c0] sm:$0xff]
        %v1249 = vld [vmem:[%s421 + $0x15c8] sm:$0xff]
        %v1250 = vld [vmem:[%s421 + $0x15d0] sm:$0xff]
        %v1251 = vld [vmem:[%s421 + $0x15d8] sm:$0xff]
        %v1252 = vld [vmem:[%s421 + $0x15e0] sm:$0xff]
        %v1253 = vld [vmem:[%s421 + $0x15e8] sm:$0xff]
        %v1254 = vld [vmem:[%s421 + $0x15f0] sm:$0xff]
        %v1255 = vld [vmem:[%s421 + $0x15f8] sm:$0xff]
        %v1256 = vld [vmem:[%s421 + $0x1600] sm:$0xff]
        %v1257 = vld [vmem:[%s421 + $0x1608] sm:$0xff]
        %v1258 = vld [vmem:[%s421 + $0x1610] sm:$0xff]
        %v1259 = vld [vmem:[%s421 + $0x1618] sm:$0xff]
        %v1260 = vld [vmem:[%s421 + $0x1620] sm:$0xff]
        %v1261 = vld [vmem:[%s421 + $0x1628] sm:$0xff]
        %v1262 = vld [vmem:[%s421 + $0x1630] sm:$0xff]
        %v1263 = vld [vmem:[%s421 + $0x1638] sm:$0xff]
        %v1264 = vld [vmem:[%s421 + $0x1640] sm:$0xff]
        %v1265 = vld [vmem:[%s421 + $0x1648] sm:$0xff]
        %v1266 = vld [vmem:[%s421 + $0x1650] sm:$0xff]
        %v1267 = vld [vmem:[%s421 + $0x1658] sm:$0xff]
        %v1268 = vld [vmem:[%s421 + $0x1660] sm:$0xff]
        %v1269 = vld [vmem:[%s421 + $0x1668] sm:$0xff]
        %v1270 = vld [vmem:[%s421 + $0x1670] sm:$0xff]
        %v1271 = vld [vmem:[%s421 + $0x1678] sm:$0xff]
        %v1272 = vld [vmem:[%s421 + $0x1680] sm:$0xff]
        %v1273 = vld [vmem:[%s421 + $0x1688] sm:$0xff]
        %v1274 = vld [vmem:[%s421 + $0x1690] sm:$0xff]
        %v1275 = vld [vmem:[%s421 + $0x1698] sm:$0xff]
        %v1276 = vld [vmem:[%s421 + $0x16a0] sm:$0xff]
        %v1277 = vld [vmem:[%s421 + $0x16a8] sm:$0xff]
        %v1278 = vld [vmem:[%s421 + $0x16b0] sm:$0xff]
        %v1279 = vld [vmem:[%s421 + $0x16b8] sm:$0xff]
        %v1280 = vld [vmem:[%s421 + $0x16c0] sm:$0xff]
        %v1281 = vld [vmem:[%s421 + $0x16c8] sm:$0xff]
        %v1282 = vld [vmem:[%s421 + $0x16d0] sm:$0xff]
        %v1283 = vld [vmem:[%s421 + $0x16d8] sm:$0xff]
        %v1284 = vld [vmem:[%s421 + $0x16e0] sm:$0xff]
        %v1285 = vld [vmem:[%s421 + $0x16e8] sm:$0xff]
        %v1286 = vld [vmem:[%s421 + $0x16f0] sm:$0xff]
        %v1287 = vld [vmem:[%s421 + $0x16f8] sm:$0xff]
        %v1288 = vld [vmem:[%s421 + $0x1700] sm:$0xff]
        %v1289 = vld [vmem:[%s421 + $0x1708] sm:$0xff]
        %v1290 = vld [vmem:[%s421 + $0x1710] sm:$0xff]
        %v1291 = vld [vmem:[%s421 + $0x1718] sm:$0xff]
        %v1292 = vld [vmem:[%s421 + $0x1720] sm:$0xff]
        %v1293 = vld [vmem:[%s421 + $0x1728] sm:$0xff]
        %v1294 = vld [vmem:[%s421 + $0x1730] sm:$0xff]
        %v1295 = vld [vmem:[%s421 + $0x1738] sm:$0xff]
        %v1296 = vld [vmem:[%s421 + $0x1740] sm:$0xff]
        %v1297 = vld [vmem:[%s421 + $0x1748] sm:$0xff]
        %v1298 = vld [vmem:[%s421 + $0x1750] sm:$0xff]
        %v1299 = vld [vmem:[%s421 + $0x1758] sm:$0xff]
        %v1300 = vld [vmem:[%s421 + $0x1760] sm:$0xff]
        %v1301 = vld [vmem:[%s421 + $0x1768] sm:$0xff]
        %v1302 = vld [vmem:[%s421 + $0x1770] sm:$0xff]
        %v1303 = vld [vmem:[%s421 + $0x1778] sm:$0xff]
        %v1304 = vld [vmem:[%s421 + $0x1780] sm:$0xff]
        %v1305 = vld [vmem:[%s421 + $0x1788] sm:$0xff]
        %v1306 = vld [vmem:[%s421 + $0x1790] sm:$0xff]
        %v1307 = vld [vmem:[%s421 + $0x1798] sm:$0xff]
        %v1308 = vld [vmem:[%s421 + $0x17a0] sm:$0xff]
        %v1309 = vld [vmem:[%s421 + $0x17a8] sm:$0xff]
        %v1310 = vld [vmem:[%s421 + $0x17b0] sm:$0xff]
        %v1311 = vld [vmem:[%s421 + $0x17b8] sm:$0xff]
        %v1312 = vld [vmem:[%s421 + $0x17c0] sm:$0xff]
        %v1313 = vld [vmem:[%s421 + $0x17c8] sm:$0xff]
        %v1314 = vld [vmem:[%s421 + $0x17d0] sm:$0xff]
        %v1315 = vld [vmem:[%s421 + $0x17d8] sm:$0xff]
        %v1316 = vld [vmem:[%s421 + $0x17e0] sm:$0xff]
        %v1317 = vld [vmem:[%s421 + $0x17e8] sm:$0xff]
        %v1318 = vld [vmem:[%s421 + $0x17f0] sm:$0xff]
        %v1319 = vld [vmem:[%s421 + $0x17f8] sm:$0xff]
        %v1320 = vunpack.c.l.s8.bf16 %v552
        %v1321 = vunpack.c.l.s8.bf16 %v553
        %v1322 = vunpack.c.l.s8.bf16 %v554
        %v1323 = vunpack.c.l.s8.bf16 %v555
        %v1324 = vunpack.c.l.s8.bf16 %v556
        %v1325 = vunpack.c.l.s8.bf16 %v557
        %v1326 = vunpack.c.l.s8.bf16 %v558
        %v1327 = vunpack.c.l.s8.bf16 %v559
        %v1328 = vunpack.c.h.s8.bf16 %v552
        %v1329 = vunpack.c.h.s8.bf16 %v553
        %v1330 = vunpack.c.h.s8.bf16 %v554
        %v1331 = vunpack.c.h.s8.bf16 %v555
        %v1332 = vunpack.c.h.s8.bf16 %v556
        %v1333 = vunpack.c.h.s8.bf16 %v557
        %v1334 = vunpack.c.h.s8.bf16 %v558
        %v1335 = vunpack.c.h.s8.bf16 %v559
        %v1336 = vunpack.c.l.s8.bf16 %v560
        %v1337 = vunpack.c.l.s8.bf16 %v561
        %v1338 = vunpack.c.l.s8.bf16 %v562
        %v1339 = vunpack.c.l.s8.bf16 %v563
        %v1340 = vunpack.c.l.s8.bf16 %v564
        %v1341 = vunpack.c.l.s8.bf16 %v565
        %v1342 = vunpack.c.l.s8.bf16 %v566
        %v1343 = vunpack.c.l.s8.bf16 %v567
        %v1344 = vunpack.c.h.s8.bf16 %v560
        %v1345 = vunpack.c.h.s8.bf16 %v561
        %v1346 = vunpack.c.h.s8.bf16 %v562
        %v1347 = vunpack.c.h.s8.bf16 %v563
        %v1348 = vunpack.c.h.s8.bf16 %v564
        %v1349 = vunpack.c.h.s8.bf16 %v565
        %v1350 = vunpack.c.h.s8.bf16 %v566
        %v1351 = vunpack.c.h.s8.bf16 %v567
        %v1352 = vunpack.c.l.s8.bf16 %v568
        %v1353 = vunpack.c.l.s8.bf16 %v569
        %v1354 = vunpack.c.l.s8.bf16 %v570
        %v1355 = vunpack.c.l.s8.bf16 %v571
        %v1356 = vunpack.c.l.s8.bf16 %v572
        %v1357 = vunpack.c.l.s8.bf16 %v573
        %v1358 = vunpack.c.l.s8.bf16 %v574
        %v1359 = vunpack.c.l.s8.bf16 %v575
        %v1360 = vunpack.c.h.s8.bf16 %v568
        %v1361 = vunpack.c.h.s8.bf16 %v569
        %v1362 = vunpack.c.h.s8.bf16 %v570
        %v1363 = vunpack.c.h.s8.bf16 %v571
        %v1364 = vunpack.c.h.s8.bf16 %v572
        %v1365 = vunpack.c.h.s8.bf16 %v573
        %v1366 = vunpack.c.h.s8.bf16 %v574
        %v1367 = vunpack.c.h.s8.bf16 %v575
        %v1368 = vunpack.c.l.s8.bf16 %v576
        %v1369 = vunpack.c.l.s8.bf16 %v577
        %v1370 = vunpack.c.l.s8.bf16 %v578
        %v1371 = vunpack.c.l.s8.bf16 %v579
        %v1372 = vunpack.c.l.s8.bf16 %v580
        %v1373 = vunpack.c.l.s8.bf16 %v581
        %v1374 = vunpack.c.l.s8.bf16 %v582
        %v1375 = vunpack.c.l.s8.bf16 %v583
        %v1376 = vunpack.c.h.s8.bf16 %v576
        %v1377 = vunpack.c.h.s8.bf16 %v577
        %v1378 = vunpack.c.h.s8.bf16 %v578
        %v1379 = vunpack.c.h.s8.bf16 %v579
        %v1380 = vunpack.c.h.s8.bf16 %v580
        %v1381 = vunpack.c.h.s8.bf16 %v581
        %v1382 = vunpack.c.h.s8.bf16 %v582
        %v1383 = vunpack.c.h.s8.bf16 %v583
        %v1384 = vunpack.c.l.s8.bf16 %v584
        %v1385 = vunpack.c.l.s8.bf16 %v585
        %v1386 = vunpack.c.l.s8.bf16 %v586
        %v1387 = vunpack.c.l.s8.bf16 %v587
        %v1388 = vunpack.c.l.s8.bf16 %v588
        %v1389 = vunpack.c.l.s8.bf16 %v589
        %v1390 = vunpack.c.l.s8.bf16 %v590
        %v1391 = vunpack.c.l.s8.bf16 %v591
        %v1392 = vunpack.c.h.s8.bf16 %v584
        %v1393 = vunpack.c.h.s8.bf16 %v585
        %v1394 = vunpack.c.h.s8.bf16 %v586
        %v1395 = vunpack.c.h.s8.bf16 %v587
        %v1396 = vunpack.c.h.s8.bf16 %v588
        %v1397 = vunpack.c.h.s8.bf16 %v589
        %v1398 = vunpack.c.h.s8.bf16 %v590
        %v1399 = vunpack.c.h.s8.bf16 %v591
        %v1400 = vunpack.c.l.s8.bf16 %v592
        %v1401 = vunpack.c.l.s8.bf16 %v593
        %v1402 = vunpack.c.l.s8.bf16 %v594
        %v1403 = vunpack.c.l.s8.bf16 %v595
        %v1404 = vunpack.c.l.s8.bf16 %v596
        %v1405 = vunpack.c.l.s8.bf16 %v597
        %v1406 = vunpack.c.l.s8.bf16 %v598
        %v1407 = vunpack.c.l.s8.bf16 %v599
        %v1408 = vunpack.c.h.s8.bf16 %v592
        %v1409 = vunpack.c.h.s8.bf16 %v593
        %v1410 = vunpack.c.h.s8.bf16 %v594
        %v1411 = vunpack.c.h.s8.bf16 %v595
        %v1412 = vunpack.c.h.s8.bf16 %v596
        %v1413 = vunpack.c.h.s8.bf16 %v597
        %v1414 = vunpack.c.h.s8.bf16 %v598
        %v1415 = vunpack.c.h.s8.bf16 %v599
        %v1416 = vunpack.c.l.s8.bf16 %v600
        %v1417 = vunpack.c.l.s8.bf16 %v601
        %v1418 = vunpack.c.l.s8.bf16 %v602
        %v1419 = vunpack.c.l.s8.bf16 %v603
        %v1420 = vunpack.c.l.s8.bf16 %v604
        %v1421 = vunpack.c.l.s8.bf16 %v605
        %v1422 = vunpack.c.l.s8.bf16 %v606
        %v1423 = vunpack.c.l.s8.bf16 %v607
        %v1424 = vunpack.c.h.s8.bf16 %v600
        %v1425 = vunpack.c.h.s8.bf16 %v601
        %v1426 = vunpack.c.h.s8.bf16 %v602
        %v1427 = vunpack.c.h.s8.bf16 %v603
        %v1428 = vunpack.c.h.s8.bf16 %v604
        %v1429 = vunpack.c.h.s8.bf16 %v605
        %v1430 = vunpack.c.h.s8.bf16 %v606
        %v1431 = vunpack.c.h.s8.bf16 %v607
        %v1432 = vunpack.c.l.s8.bf16 %v608
        %v1433 = vunpack.c.l.s8.bf16 %v609
        %v1434 = vunpack.c.l.s8.bf16 %v610
        %v1435 = vunpack.c.l.s8.bf16 %v611
        %v1436 = vunpack.c.l.s8.bf16 %v612
        %v1437 = vunpack.c.l.s8.bf16 %v613
        %v1438 = vunpack.c.l.s8.bf16 %v614
        %v1439 = vunpack.c.l.s8.bf16 %v615
        %v1440 = vunpack.c.h.s8.bf16 %v608
        %v1441 = vunpack.c.h.s8.bf16 %v609
        %v1442 = vunpack.c.h.s8.bf16 %v610
        %v1443 = vunpack.c.h.s8.bf16 %v611
        %v1444 = vunpack.c.h.s8.bf16 %v612
        %v1445 = vunpack.c.h.s8.bf16 %v613
        %v1446 = vunpack.c.h.s8.bf16 %v614
        %v1447 = vunpack.c.h.s8.bf16 %v615
        %v1448 = vunpack.c.l.s8.bf16 %v616
        %v1449 = vunpack.c.l.s8.bf16 %v617
        %v1450 = vunpack.c.l.s8.bf16 %v618
        %v1451 = vunpack.c.l.s8.bf16 %v619
        %v1452 = vunpack.c.l.s8.bf16 %v620
        %v1453 = vunpack.c.l.s8.bf16 %v621
        %v1454 = vunpack.c.l.s8.bf16 %v622
        %v1455 = vunpack.c.l.s8.bf16 %v623
        %v1456 = vunpack.c.h.s8.bf16 %v616
        %v1457 = vunpack.c.h.s8.bf16 %v617
        %v1458 = vunpack.c.h.s8.bf16 %v618
        %v1459 = vunpack.c.h.s8.bf16 %v619
        %v1460 = vunpack.c.h.s8.bf16 %v620
        %v1461 = vunpack.c.h.s8.bf16 %v621
        %v1462 = vunpack.c.h.s8.bf16 %v622
        %v1463 = vunpack.c.h.s8.bf16 %v623
        %v1464 = vunpack.c.l.s8.bf16 %v624
        %v1465 = vunpack.c.l.s8.bf16 %v625
        %v1466 = vunpack.c.l.s8.bf16 %v626
        %v1467 = vunpack.c.l.s8.bf16 %v627
        %v1468 = vunpack.c.l.s8.bf16 %v628
        %v1469 = vunpack.c.l.s8.bf16 %v629
        %v1470 = vunpack.c.l.s8.bf16 %v630
        %v1471 = vunpack.c.l.s8.bf16 %v631
        %v1472 = vunpack.c.h.s8.bf16 %v624
        %v1473 = vunpack.c.h.s8.bf16 %v625
        %v1474 = vunpack.c.h.s8.bf16 %v626
        %v1475 = vunpack.c.h.s8.bf16 %v627
        %v1476 = vunpack.c.h.s8.bf16 %v628
        %v1477 = vunpack.c.h.s8.bf16 %v629
        %v1478 = vunpack.c.h.s8.bf16 %v630
        %v1479 = vunpack.c.h.s8.bf16 %v631
        %v1480 = vunpack.c.l.s8.bf16 %v632
        %v1481 = vunpack.c.l.s8.bf16 %v633
        %v1482 = vunpack.c.l.s8.bf16 %v634
        %v1483 = vunpack.c.l.s8.bf16 %v635
        %v1484 = vunpack.c.l.s8.bf16 %v636
        %v1485 = vunpack.c.l.s8.bf16 %v637
        %v1486 = vunpack.c.l.s8.bf16 %v638
        %v1487 = vunpack.c.l.s8.bf16 %v639
        %v1488 = vunpack.c.h.s8.bf16 %v632
        %v1489 = vunpack.c.h.s8.bf16 %v633
        %v1490 = vunpack.c.h.s8.bf16 %v634
        %v1491 = vunpack.c.h.s8.bf16 %v635
        %v1492 = vunpack.c.h.s8.bf16 %v636
        %v1493 = vunpack.c.h.s8.bf16 %v637
        %v1494 = vunpack.c.h.s8.bf16 %v638
        %v1495 = vunpack.c.h.s8.bf16 %v639
        %v1496 = vunpack.c.l.s8.bf16 %v640
        %v1497 = vunpack.c.l.s8.bf16 %v641
        %v1498 = vunpack.c.l.s8.bf16 %v642
        %v1499 = vunpack.c.l.s8.bf16 %v643
        %v1500 = vunpack.c.l.s8.bf16 %v644
        %v1501 = vunpack.c.l.s8.bf16 %v645
        %v1502 = vunpack.c.l.s8.bf16 %v646
        %v1503 = vunpack.c.l.s8.bf16 %v647
        %v1504 = vunpack.c.h.s8.bf16 %v640
        %v1505 = vunpack.c.h.s8.bf16 %v641
        %v1506 = vunpack.c.h.s8.bf16 %v642
        %v1507 = vunpack.c.h.s8.bf16 %v643
        %v1508 = vunpack.c.h.s8.bf16 %v644
        %v1509 = vunpack.c.h.s8.bf16 %v645
        %v1510 = vunpack.c.h.s8.bf16 %v646
        %v1511 = vunpack.c.h.s8.bf16 %v647
        %v1512 = vunpack.c.l.s8.bf16 %v648
        %v1513 = vunpack.c.l.s8.bf16 %v649
        %v1514 = vunpack.c.l.s8.bf16 %v650
        %v1515 = vunpack.c.l.s8.bf16 %v651
        %v1516 = vunpack.c.l.s8.bf16 %v652
        %v1517 = vunpack.c.l.s8.bf16 %v653
        %v1518 = vunpack.c.l.s8.bf16 %v654
        %v1519 = vunpack.c.l.s8.bf16 %v655
        %v1520 = vunpack.c.h.s8.bf16 %v648
        %v1521 = vunpack.c.h.s8.bf16 %v649
        %v1522 = vunpack.c.h.s8.bf16 %v650
        %v1523 = vunpack.c.h.s8.bf16 %v651
        %v1524 = vunpack.c.h.s8.bf16 %v652
        %v1525 = vunpack.c.h.s8.bf16 %v653
        %v1526 = vunpack.c.h.s8.bf16 %v654
        %v1527 = vunpack.c.h.s8.bf16 %v655
        %v1528 = vunpack.c.l.s8.bf16 %v656
        %v1529 = vunpack.c.l.s8.bf16 %v657
        %v1530 = vunpack.c.l.s8.bf16 %v658
        %v1531 = vunpack.c.l.s8.bf16 %v659
        %v1532 = vunpack.c.l.s8.bf16 %v660
        %v1533 = vunpack.c.l.s8.bf16 %v661
        %v1534 = vunpack.c.l.s8.bf16 %v662
        %v1535 = vunpack.c.l.s8.bf16 %v663
        %v1536 = vunpack.c.h.s8.bf16 %v656
        %v1537 = vunpack.c.h.s8.bf16 %v657
        %v1538 = vunpack.c.h.s8.bf16 %v658
        %v1539 = vunpack.c.h.s8.bf16 %v659
        %v1540 = vunpack.c.h.s8.bf16 %v660
        %v1541 = vunpack.c.h.s8.bf16 %v661
        %v1542 = vunpack.c.h.s8.bf16 %v662
        %v1543 = vunpack.c.h.s8.bf16 %v663
        %v1544 = vunpack.c.l.s8.bf16 %v664
        %v1545 = vunpack.c.l.s8.bf16 %v665
        %v1546 = vunpack.c.l.s8.bf16 %v666
        %v1547 = vunpack.c.l.s8.bf16 %v667
        %v1548 = vunpack.c.l.s8.bf16 %v668
        %v1549 = vunpack.c.l.s8.bf16 %v669
        %v1550 = vunpack.c.l.s8.bf16 %v670
        %v1551 = vunpack.c.l.s8.bf16 %v671
        %v1552 = vunpack.c.h.s8.bf16 %v664
        %v1553 = vunpack.c.h.s8.bf16 %v665
        %v1554 = vunpack.c.h.s8.bf16 %v666
        %v1555 = vunpack.c.h.s8.bf16 %v667
        %v1556 = vunpack.c.h.s8.bf16 %v668
        %v1557 = vunpack.c.h.s8.bf16 %v669
        %v1558 = vunpack.c.h.s8.bf16 %v670
        %v1559 = vunpack.c.h.s8.bf16 %v671
        %v1560 = vunpack.c.l.s8.bf16 %v672
        %v1561 = vunpack.c.l.s8.bf16 %v673
        %v1562 = vunpack.c.l.s8.bf16 %v674
        %v1563 = vunpack.c.l.s8.bf16 %v675
        %v1564 = vunpack.c.l.s8.bf16 %v676
        %v1565 = vunpack.c.l.s8.bf16 %v677
        %v1566 = vunpack.c.l.s8.bf16 %v678
        %v1567 = vunpack.c.l.s8.bf16 %v679
        %v1568 = vunpack.c.h.s8.bf16 %v672
        %v1569 = vunpack.c.h.s8.bf16 %v673
        %v1570 = vunpack.c.h.s8.bf16 %v674
        %v1571 = vunpack.c.h.s8.bf16 %v675
        %v1572 = vunpack.c.h.s8.bf16 %v676
        %v1573 = vunpack.c.h.s8.bf16 %v677
        %v1574 = vunpack.c.h.s8.bf16 %v678
        %v1575 = vunpack.c.h.s8.bf16 %v679
        %v1576 = vunpack.c.l.s8.bf16 %v680
        %v1577 = vunpack.c.l.s8.bf16 %v681
        %v1578 = vunpack.c.l.s8.bf16 %v682
        %v1579 = vunpack.c.l.s8.bf16 %v683
        %v1580 = vunpack.c.l.s8.bf16 %v684
        %v1581 = vunpack.c.l.s8.bf16 %v685
        %v1582 = vunpack.c.l.s8.bf16 %v686
        %v1583 = vunpack.c.l.s8.bf16 %v687
        %v1584 = vunpack.c.h.s8.bf16 %v680
        %v1585 = vunpack.c.h.s8.bf16 %v681
        %v1586 = vunpack.c.h.s8.bf16 %v682
        %v1587 = vunpack.c.h.s8.bf16 %v683
        %v1588 = vunpack.c.h.s8.bf16 %v684
        %v1589 = vunpack.c.h.s8.bf16 %v685
        %v1590 = vunpack.c.h.s8.bf16 %v686
        %v1591 = vunpack.c.h.s8.bf16 %v687
        %v1592 = vunpack.c.l.s8.bf16 %v688
        %v1593 = vunpack.c.l.s8.bf16 %v689
        %v1594 = vunpack.c.l.s8.bf16 %v690
        %v1595 = vunpack.c.l.s8.bf16 %v691
        %v1596 = vunpack.c.l.s8.bf16 %v692
        %v1597 = vunpack.c.l.s8.bf16 %v693
        %v1598 = vunpack.c.l.s8.bf16 %v694
        %v1599 = vunpack.c.l.s8.bf16 %v695
        %v1600 = vunpack.c.h.s8.bf16 %v688
        %v1601 = vunpack.c.h.s8.bf16 %v689
        %v1602 = vunpack.c.h.s8.bf16 %v690
        %v1603 = vunpack.c.h.s8.bf16 %v691
        %v1604 = vunpack.c.h.s8.bf16 %v692
        %v1605 = vunpack.c.h.s8.bf16 %v693
        %v1606 = vunpack.c.h.s8.bf16 %v694
        %v1607 = vunpack.c.h.s8.bf16 %v695
        %v1608 = vunpack.c.l.s8.bf16 %v696
        %v1609 = vunpack.c.l.s8.bf16 %v697
        %v1610 = vunpack.c.l.s8.bf16 %v698
        %v1611 = vunpack.c.l.s8.bf16 %v699
        %v1612 = vunpack.c.l.s8.bf16 %v700
        %v1613 = vunpack.c.l.s8.bf16 %v701
        %v1614 = vunpack.c.l.s8.bf16 %v702
        %v1615 = vunpack.c.l.s8.bf16 %v703
        %v1616 = vunpack.c.h.s8.bf16 %v696
        %v1617 = vunpack.c.h.s8.bf16 %v697
        %v1618 = vunpack.c.h.s8.bf16 %v698
        %v1619 = vunpack.c.h.s8.bf16 %v699
        %v1620 = vunpack.c.h.s8.bf16 %v700
        %v1621 = vunpack.c.h.s8.bf16 %v701
        %v1622 = vunpack.c.h.s8.bf16 %v702
        %v1623 = vunpack.c.h.s8.bf16 %v703
        %v1624 = vunpack.c.l.s8.bf16 %v704
        %v1625 = vunpack.c.l.s8.bf16 %v705
        %v1626 = vunpack.c.l.s8.bf16 %v706
        %v1627 = vunpack.c.l.s8.bf16 %v707
        %v1628 = vunpack.c.l.s8.bf16 %v708
        %v1629 = vunpack.c.l.s8.bf16 %v709
        %v1630 = vunpack.c.l.s8.bf16 %v710
        %v1631 = vunpack.c.l.s8.bf16 %v711
        %v1632 = vunpack.c.h.s8.bf16 %v704
        %v1633 = vunpack.c.h.s8.bf16 %v705
        %v1634 = vunpack.c.h.s8.bf16 %v706
        %v1635 = vunpack.c.h.s8.bf16 %v707
        %v1636 = vunpack.c.h.s8.bf16 %v708
        %v1637 = vunpack.c.h.s8.bf16 %v709
        %v1638 = vunpack.c.h.s8.bf16 %v710
        %v1639 = vunpack.c.h.s8.bf16 %v711
        %v1640 = vunpack.c.l.s8.bf16 %v712
        %v1641 = vunpack.c.l.s8.bf16 %v713
        %v1642 = vunpack.c.l.s8.bf16 %v714
        %v1643 = vunpack.c.l.s8.bf16 %v715
        %v1644 = vunpack.c.l.s8.bf16 %v716
        %v1645 = vunpack.c.l.s8.bf16 %v717
        %v1646 = vunpack.c.l.s8.bf16 %v718
        %v1647 = vunpack.c.l.s8.bf16 %v719
        %v1648 = vunpack.c.h.s8.bf16 %v712
        %v1649 = vunpack.c.h.s8.bf16 %v713
        %v1650 = vunpack.c.h.s8.bf16 %v714
        %v1651 = vunpack.c.h.s8.bf16 %v715
        %v1652 = vunpack.c.h.s8.bf16 %v716
        %v1653 = vunpack.c.h.s8.bf16 %v717
        %v1654 = vunpack.c.h.s8.bf16 %v718
        %v1655 = vunpack.c.h.s8.bf16 %v719
        %v1656 = vunpack.c.l.s8.bf16 %v720
        %v1657 = vunpack.c.l.s8.bf16 %v721
        %v1658 = vunpack.c.l.s8.bf16 %v722
        %v1659 = vunpack.c.l.s8.bf16 %v723
        %v1660 = vunpack.c.l.s8.bf16 %v724
        %v1661 = vunpack.c.l.s8.bf16 %v725
        %v1662 = vunpack.c.l.s8.bf16 %v726
        %v1663 = vunpack.c.l.s8.bf16 %v727
        %v1664 = vunpack.c.h.s8.bf16 %v720
        %v1665 = vunpack.c.h.s8.bf16 %v721
        %v1666 = vunpack.c.h.s8.bf16 %v722
        %v1667 = vunpack.c.h.s8.bf16 %v723
        %v1668 = vunpack.c.h.s8.bf16 %v724
        %v1669 = vunpack.c.h.s8.bf16 %v725
        %v1670 = vunpack.c.h.s8.bf16 %v726
        %v1671 = vunpack.c.h.s8.bf16 %v727
        %v1672 = vunpack.c.l.s8.bf16 %v728
        %v1673 = vunpack.c.l.s8.bf16 %v729
        %v1674 = vunpack.c.l.s8.bf16 %v730
        %v1675 = vunpack.c.l.s8.bf16 %v731
        %v1676 = vunpack.c.l.s8.bf16 %v732
        %v1677 = vunpack.c.l.s8.bf16 %v733
        %v1678 = vunpack.c.l.s8.bf16 %v734
        %v1679 = vunpack.c.l.s8.bf16 %v735
        %v1680 = vunpack.c.h.s8.bf16 %v728
        %v1681 = vunpack.c.h.s8.bf16 %v729
        %v1682 = vunpack.c.h.s8.bf16 %v730
        %v1683 = vunpack.c.h.s8.bf16 %v731
        %v1684 = vunpack.c.h.s8.bf16 %v732
        %v1685 = vunpack.c.h.s8.bf16 %v733
        %v1686 = vunpack.c.h.s8.bf16 %v734
        %v1687 = vunpack.c.h.s8.bf16 %v735
        %v1688 = vunpack.c.l.s8.bf16 %v736
        %v1689 = vunpack.c.l.s8.bf16 %v737
        %v1690 = vunpack.c.l.s8.bf16 %v738
        %v1691 = vunpack.c.l.s8.bf16 %v739
        %v1692 = vunpack.c.l.s8.bf16 %v740
        %v1693 = vunpack.c.l.s8.bf16 %v741
        %v1694 = vunpack.c.l.s8.bf16 %v742
        %v1695 = vunpack.c.l.s8.bf16 %v743
        %v1696 = vunpack.c.h.s8.bf16 %v736
        %v1697 = vunpack.c.h.s8.bf16 %v737
        %v1698 = vunpack.c.h.s8.bf16 %v738
        %v1699 = vunpack.c.h.s8.bf16 %v739
        %v1700 = vunpack.c.h.s8.bf16 %v740
        %v1701 = vunpack.c.h.s8.bf16 %v741
        %v1702 = vunpack.c.h.s8.bf16 %v742
        %v1703 = vunpack.c.h.s8.bf16 %v743
        %v1704 = vunpack.c.l.s8.bf16 %v744
        %v1705 = vunpack.c.l.s8.bf16 %v745
        %v1706 = vunpack.c.l.s8.bf16 %v746
        %v1707 = vunpack.c.l.s8.bf16 %v747
        %v1708 = vunpack.c.l.s8.bf16 %v748
        %v1709 = vunpack.c.l.s8.bf16 %v749
        %v1710 = vunpack.c.l.s8.bf16 %v750
        %v1711 = vunpack.c.l.s8.bf16 %v751
        %v1712 = vunpack.c.h.s8.bf16 %v744
        %v1713 = vunpack.c.h.s8.bf16 %v745
        %v1714 = vunpack.c.h.s8.bf16 %v746
        %v1715 = vunpack.c.h.s8.bf16 %v747
        %v1716 = vunpack.c.h.s8.bf16 %v748
        %v1717 = vunpack.c.h.s8.bf16 %v749
        %v1718 = vunpack.c.h.s8.bf16 %v750
        %v1719 = vunpack.c.h.s8.bf16 %v751
        %v1720 = vunpack.c.l.s8.bf16 %v752
        %v1721 = vunpack.c.l.s8.bf16 %v753
        %v1722 = vunpack.c.l.s8.bf16 %v754
        %v1723 = vunpack.c.l.s8.bf16 %v755
        %v1724 = vunpack.c.l.s8.bf16 %v756
        %v1725 = vunpack.c.l.s8.bf16 %v757
        %v1726 = vunpack.c.l.s8.bf16 %v758
        %v1727 = vunpack.c.l.s8.bf16 %v759
        %v1728 = vunpack.c.h.s8.bf16 %v752
        %v1729 = vunpack.c.h.s8.bf16 %v753
        %v1730 = vunpack.c.h.s8.bf16 %v754
        %v1731 = vunpack.c.h.s8.bf16 %v755
        %v1732 = vunpack.c.h.s8.bf16 %v756
        %v1733 = vunpack.c.h.s8.bf16 %v757
        %v1734 = vunpack.c.h.s8.bf16 %v758
        %v1735 = vunpack.c.h.s8.bf16 %v759
        %v1736 = vunpack.c.l.s8.bf16 %v760
        %v1737 = vunpack.c.l.s8.bf16 %v761
        %v1738 = vunpack.c.l.s8.bf16 %v762
        %v1739 = vunpack.c.l.s8.bf16 %v763
        %v1740 = vunpack.c.l.s8.bf16 %v764
        %v1741 = vunpack.c.l.s8.bf16 %v765
        %v1742 = vunpack.c.l.s8.bf16 %v766
        %v1743 = vunpack.c.l.s8.bf16 %v767
        %v1744 = vunpack.c.h.s8.bf16 %v760
        %v1745 = vunpack.c.h.s8.bf16 %v761
        %v1746 = vunpack.c.h.s8.bf16 %v762
        %v1747 = vunpack.c.h.s8.bf16 %v763
        %v1748 = vunpack.c.h.s8.bf16 %v764
        %v1749 = vunpack.c.h.s8.bf16 %v765
        %v1750 = vunpack.c.h.s8.bf16 %v766
        %v1751 = vunpack.c.h.s8.bf16 %v767
        %v1752 = vunpack.c.l.s8.bf16 %v768
        %v1753 = vunpack.c.l.s8.bf16 %v769
        %v1754 = vunpack.c.l.s8.bf16 %v770
        %v1755 = vunpack.c.l.s8.bf16 %v771
        %v1756 = vunpack.c.l.s8.bf16 %v772
        %v1757 = vunpack.c.l.s8.bf16 %v773
        %v1758 = vunpack.c.l.s8.bf16 %v774
        %v1759 = vunpack.c.l.s8.bf16 %v775
        %v1760 = vunpack.c.h.s8.bf16 %v768
        %v1761 = vunpack.c.h.s8.bf16 %v769
        %v1762 = vunpack.c.h.s8.bf16 %v770
        %v1763 = vunpack.c.h.s8.bf16 %v771
        %v1764 = vunpack.c.h.s8.bf16 %v772
        %v1765 = vunpack.c.h.s8.bf16 %v773
        %v1766 = vunpack.c.h.s8.bf16 %v774
        %v1767 = vunpack.c.h.s8.bf16 %v775
        %v1768 = vunpack.c.l.s8.bf16 %v776
        %v1769 = vunpack.c.l.s8.bf16 %v777
        %v1770 = vunpack.c.l.s8.bf16 %v778
        %v1771 = vunpack.c.l.s8.bf16 %v779
        %v1772 = vunpack.c.l.s8.bf16 %v780
        %v1773 = vunpack.c.l.s8.bf16 %v781
        %v1774 = vunpack.c.l.s8.bf16 %v782
        %v1775 = vunpack.c.l.s8.bf16 %v783
        %v1776 = vunpack.c.h.s8.bf16 %v776
        %v1777 = vunpack.c.h.s8.bf16 %v777
        %v1778 = vunpack.c.h.s8.bf16 %v778
        %v1779 = vunpack.c.h.s8.bf16 %v779
        %v1780 = vunpack.c.h.s8.bf16 %v780
        %v1781 = vunpack.c.h.s8.bf16 %v781
        %v1782 = vunpack.c.h.s8.bf16 %v782
        %v1783 = vunpack.c.h.s8.bf16 %v783
        %v1784 = vunpack.c.l.s8.bf16 %v784
        %v1785 = vunpack.c.l.s8.bf16 %v785
        %v1786 = vunpack.c.l.s8.bf16 %v786
        %v1787 = vunpack.c.l.s8.bf16 %v787
        %v1788 = vunpack.c.l.s8.bf16 %v788
        %v1789 = vunpack.c.l.s8.bf16 %v789
        %v1790 = vunpack.c.l.s8.bf16 %v790
        %v1791 = vunpack.c.l.s8.bf16 %v791
        %v1792 = vunpack.c.h.s8.bf16 %v784
        %v1793 = vunpack.c.h.s8.bf16 %v785
        %v1794 = vunpack.c.h.s8.bf16 %v786
        %v1795 = vunpack.c.h.s8.bf16 %v787
        %v1796 = vunpack.c.h.s8.bf16 %v788
        %v1797 = vunpack.c.h.s8.bf16 %v789
        %v1798 = vunpack.c.h.s8.bf16 %v790
        %v1799 = vunpack.c.h.s8.bf16 %v791
        %v1800 = vunpack.c.l.s8.bf16 %v792
        %v1801 = vunpack.c.l.s8.bf16 %v793
        %v1802 = vunpack.c.l.s8.bf16 %v794
        %v1803 = vunpack.c.l.s8.bf16 %v795
        %v1804 = vunpack.c.l.s8.bf16 %v796
        %v1805 = vunpack.c.l.s8.bf16 %v797
        %v1806 = vunpack.c.l.s8.bf16 %v798
        %v1807 = vunpack.c.l.s8.bf16 %v799
        %v1808 = vunpack.c.h.s8.bf16 %v792
        %v1809 = vunpack.c.h.s8.bf16 %v793
        %v1810 = vunpack.c.h.s8.bf16 %v794
        %v1811 = vunpack.c.h.s8.bf16 %v795
        %v1812 = vunpack.c.h.s8.bf16 %v796
        %v1813 = vunpack.c.h.s8.bf16 %v797
        %v1814 = vunpack.c.h.s8.bf16 %v798
        %v1815 = vunpack.c.h.s8.bf16 %v799
        %v1816 = vunpack.c.l.s8.bf16 %v800
        %v1817 = vunpack.c.l.s8.bf16 %v801
        %v1818 = vunpack.c.l.s8.bf16 %v802
        %v1819 = vunpack.c.l.s8.bf16 %v803
        %v1820 = vunpack.c.l.s8.bf16 %v804
        %v1821 = vunpack.c.l.s8.bf16 %v805
        %v1822 = vunpack.c.l.s8.bf16 %v806
        %v1823 = vunpack.c.l.s8.bf16 %v807
        %v1824 = vunpack.c.h.s8.bf16 %v800
        %v1825 = vunpack.c.h.s8.bf16 %v801
        %v1826 = vunpack.c.h.s8.bf16 %v802
        %v1827 = vunpack.c.h.s8.bf16 %v803
        %v1828 = vunpack.c.h.s8.bf16 %v804
        %v1829 = vunpack.c.h.s8.bf16 %v805
        %v1830 = vunpack.c.h.s8.bf16 %v806
        %v1831 = vunpack.c.h.s8.bf16 %v807
        %v1832 = vunpack.c.l.s8.bf16 %v808
        %v1833 = vunpack.c.l.s8.bf16 %v809
        %v1834 = vunpack.c.l.s8.bf16 %v810
        %v1835 = vunpack.c.l.s8.bf16 %v811
        %v1836 = vunpack.c.l.s8.bf16 %v812
        %v1837 = vunpack.c.l.s8.bf16 %v813
        %v1838 = vunpack.c.l.s8.bf16 %v814
        %v1839 = vunpack.c.l.s8.bf16 %v815
        %v1840 = vunpack.c.h.s8.bf16 %v808
        %v1841 = vunpack.c.h.s8.bf16 %v809
        %v1842 = vunpack.c.h.s8.bf16 %v810
        %v1843 = vunpack.c.h.s8.bf16 %v811
        %v1844 = vunpack.c.h.s8.bf16 %v812
        %v1845 = vunpack.c.h.s8.bf16 %v813
        %v1846 = vunpack.c.h.s8.bf16 %v814
        %v1847 = vunpack.c.h.s8.bf16 %v815
        %v1848 = vunpack.c.l.s8.bf16 %v816
        %v1849 = vunpack.c.l.s8.bf16 %v817
        %v1850 = vunpack.c.l.s8.bf16 %v818
        %v1851 = vunpack.c.l.s8.bf16 %v819
        %v1852 = vunpack.c.l.s8.bf16 %v820
        %v1853 = vunpack.c.l.s8.bf16 %v821
        %v1854 = vunpack.c.l.s8.bf16 %v822
        %v1855 = vunpack.c.l.s8.bf16 %v823
        %v1856 = vunpack.c.h.s8.bf16 %v816
        %v1857 = vunpack.c.h.s8.bf16 %v817
        %v1858 = vunpack.c.h.s8.bf16 %v818
        %v1859 = vunpack.c.h.s8.bf16 %v819
        %v1860 = vunpack.c.h.s8.bf16 %v820
        %v1861 = vunpack.c.h.s8.bf16 %v821
        %v1862 = vunpack.c.h.s8.bf16 %v822
        %v1863 = vunpack.c.h.s8.bf16 %v823
        %v1864 = vunpack.c.l.s8.bf16 %v824
        %v1865 = vunpack.c.l.s8.bf16 %v825
        %v1866 = vunpack.c.l.s8.bf16 %v826
        %v1867 = vunpack.c.l.s8.bf16 %v827
        %v1868 = vunpack.c.l.s8.bf16 %v828
        %v1869 = vunpack.c.l.s8.bf16 %v829
        %v1870 = vunpack.c.l.s8.bf16 %v830
        %v1871 = vunpack.c.l.s8.bf16 %v831
        %v1872 = vunpack.c.h.s8.bf16 %v824
        %v1873 = vunpack.c.h.s8.bf16 %v825
        %v1874 = vunpack.c.h.s8.bf16 %v826
        %v1875 = vunpack.c.h.s8.bf16 %v827
        %v1876 = vunpack.c.h.s8.bf16 %v828
        %v1877 = vunpack.c.h.s8.bf16 %v829
        %v1878 = vunpack.c.h.s8.bf16 %v830
        %v1879 = vunpack.c.h.s8.bf16 %v831
        %v1880 = vunpack.c.l.s8.bf16 %v832
        %v1881 = vunpack.c.l.s8.bf16 %v833
        %v1882 = vunpack.c.l.s8.bf16 %v834
        %v1883 = vunpack.c.l.s8.bf16 %v835
        %v1884 = vunpack.c.l.s8.bf16 %v836
        %v1885 = vunpack.c.l.s8.bf16 %v837
        %v1886 = vunpack.c.l.s8.bf16 %v838
        %v1887 = vunpack.c.l.s8.bf16 %v839
        %v1888 = vunpack.c.h.s8.bf16 %v832
        %v1889 = vunpack.c.h.s8.bf16 %v833
        %v1890 = vunpack.c.h.s8.bf16 %v834
        %v1891 = vunpack.c.h.s8.bf16 %v835
        %v1892 = vunpack.c.h.s8.bf16 %v836
        %v1893 = vunpack.c.h.s8.bf16 %v837
        %v1894 = vunpack.c.h.s8.bf16 %v838
        %v1895 = vunpack.c.h.s8.bf16 %v839
        %v1896 = vunpack.c.l.s8.bf16 %v840
        %v1897 = vunpack.c.l.s8.bf16 %v841
        %v1898 = vunpack.c.l.s8.bf16 %v842
        %v1899 = vunpack.c.l.s8.bf16 %v843
        %v1900 = vunpack.c.l.s8.bf16 %v844
        %v1901 = vunpack.c.l.s8.bf16 %v845
        %v1902 = vunpack.c.l.s8.bf16 %v846
        %v1903 = vunpack.c.l.s8.bf16 %v847
        %v1904 = vunpack.c.h.s8.bf16 %v840
        %v1905 = vunpack.c.h.s8.bf16 %v841
        %v1906 = vunpack.c.h.s8.bf16 %v842
        %v1907 = vunpack.c.h.s8.bf16 %v843
        %v1908 = vunpack.c.h.s8.bf16 %v844
        %v1909 = vunpack.c.h.s8.bf16 %v845
        %v1910 = vunpack.c.h.s8.bf16 %v846
        %v1911 = vunpack.c.h.s8.bf16 %v847
        %v1912 = vunpack.c.l.s8.bf16 %v848
        %v1913 = vunpack.c.l.s8.bf16 %v849
        %v1914 = vunpack.c.l.s8.bf16 %v850
        %v1915 = vunpack.c.l.s8.bf16 %v851
        %v1916 = vunpack.c.l.s8.bf16 %v852
        %v1917 = vunpack.c.l.s8.bf16 %v853
        %v1918 = vunpack.c.l.s8.bf16 %v854
        %v1919 = vunpack.c.l.s8.bf16 %v855
        %v1920 = vunpack.c.h.s8.bf16 %v848
        %v1921 = vunpack.c.h.s8.bf16 %v849
        %v1922 = vunpack.c.h.s8.bf16 %v850
        %v1923 = vunpack.c.h.s8.bf16 %v851
        %v1924 = vunpack.c.h.s8.bf16 %v852
        %v1925 = vunpack.c.h.s8.bf16 %v853
        %v1926 = vunpack.c.h.s8.bf16 %v854
        %v1927 = vunpack.c.h.s8.bf16 %v855
        %v1928 = vunpack.c.l.s8.bf16 %v856
        %v1929 = vunpack.c.l.s8.bf16 %v857
        %v1930 = vunpack.c.l.s8.bf16 %v858
        %v1931 = vunpack.c.l.s8.bf16 %v859
        %v1932 = vunpack.c.l.s8.bf16 %v860
        %v1933 = vunpack.c.l.s8.bf16 %v861
        %v1934 = vunpack.c.l.s8.bf16 %v862
        %v1935 = vunpack.c.l.s8.bf16 %v863
        %v1936 = vunpack.c.h.s8.bf16 %v856
        %v1937 = vunpack.c.h.s8.bf16 %v857
        %v1938 = vunpack.c.h.s8.bf16 %v858
        %v1939 = vunpack.c.h.s8.bf16 %v859
        %v1940 = vunpack.c.h.s8.bf16 %v860
        %v1941 = vunpack.c.h.s8.bf16 %v861
        %v1942 = vunpack.c.h.s8.bf16 %v862
        %v1943 = vunpack.c.h.s8.bf16 %v863
        %v1944 = vunpack.c.l.s8.bf16 %v864
        %v1945 = vunpack.c.l.s8.bf16 %v865
        %v1946 = vunpack.c.l.s8.bf16 %v866
        %v1947 = vunpack.c.l.s8.bf16 %v867
        %v1948 = vunpack.c.l.s8.bf16 %v868
        %v1949 = vunpack.c.l.s8.bf16 %v869
        %v1950 = vunpack.c.l.s8.bf16 %v870
        %v1951 = vunpack.c.l.s8.bf16 %v871
        %v1952 = vunpack.c.h.s8.bf16 %v864
        %v1953 = vunpack.c.h.s8.bf16 %v865
        %v1954 = vunpack.c.h.s8.bf16 %v866
        %v1955 = vunpack.c.h.s8.bf16 %v867
        %v1956 = vunpack.c.h.s8.bf16 %v868
        %v1957 = vunpack.c.h.s8.bf16 %v869
        %v1958 = vunpack.c.h.s8.bf16 %v870
        %v1959 = vunpack.c.h.s8.bf16 %v871
        %v1960 = vunpack.c.l.s8.bf16 %v872
        %v1961 = vunpack.c.l.s8.bf16 %v873
        %v1962 = vunpack.c.l.s8.bf16 %v874
        %v1963 = vunpack.c.l.s8.bf16 %v875
        %v1964 = vunpack.c.l.s8.bf16 %v876
        %v1965 = vunpack.c.l.s8.bf16 %v877
        %v1966 = vunpack.c.l.s8.bf16 %v878
        %v1967 = vunpack.c.l.s8.bf16 %v879
        %v1968 = vunpack.c.h.s8.bf16 %v872
        %v1969 = vunpack.c.h.s8.bf16 %v873
        %v1970 = vunpack.c.h.s8.bf16 %v874
        %v1971 = vunpack.c.h.s8.bf16 %v875
        %v1972 = vunpack.c.h.s8.bf16 %v876
        %v1973 = vunpack.c.h.s8.bf16 %v877
        %v1974 = vunpack.c.h.s8.bf16 %v878
        %v1975 = vunpack.c.h.s8.bf16 %v879
        %v1976 = vunpack.c.l.s8.bf16 %v880
        %v1977 = vunpack.c.l.s8.bf16 %v881
        %v1978 = vunpack.c.l.s8.bf16 %v882
        %v1979 = vunpack.c.l.s8.bf16 %v883
        %v1980 = vunpack.c.l.s8.bf16 %v884
        %v1981 = vunpack.c.l.s8.bf16 %v885
        %v1982 = vunpack.c.l.s8.bf16 %v886
        %v1983 = vunpack.c.l.s8.bf16 %v887
        %v1984 = vunpack.c.h.s8.bf16 %v880
        %v1985 = vunpack.c.h.s8.bf16 %v881
        %v1986 = vunpack.c.h.s8.bf16 %v882
        %v1987 = vunpack.c.h.s8.bf16 %v883
        %v1988 = vunpack.c.h.s8.bf16 %v884
        %v1989 = vunpack.c.h.s8.bf16 %v885
        %v1990 = vunpack.c.h.s8.bf16 %v886
        %v1991 = vunpack.c.h.s8.bf16 %v887
        %v1992 = vunpack.c.l.s8.bf16 %v888
        %v1993 = vunpack.c.l.s8.bf16 %v889
        %v1994 = vunpack.c.l.s8.bf16 %v890
        %v1995 = vunpack.c.l.s8.bf16 %v891
        %v1996 = vunpack.c.l.s8.bf16 %v892
        %v1997 = vunpack.c.l.s8.bf16 %v893
        %v1998 = vunpack.c.l.s8.bf16 %v894
        %v1999 = vunpack.c.l.s8.bf16 %v895
        %v2000 = vunpack.c.h.s8.bf16 %v888
        %v2001 = vunpack.c.h.s8.bf16 %v889
        %v2002 = vunpack.c.h.s8.bf16 %v890
        %v2003 = vunpack.c.h.s8.bf16 %v891
        %v2004 = vunpack.c.h.s8.bf16 %v892
        %v2005 = vunpack.c.h.s8.bf16 %v893
        %v2006 = vunpack.c.h.s8.bf16 %v894
        %v2007 = vunpack.c.h.s8.bf16 %v895
        %v2008 = vunpack.c.l.s8.bf16 %v896
        %v2009 = vunpack.c.l.s8.bf16 %v897
        %v2010 = vunpack.c.l.s8.bf16 %v898
        %v2011 = vunpack.c.l.s8.bf16 %v899
        %v2012 = vunpack.c.l.s8.bf16 %v900
        %v2013 = vunpack.c.l.s8.bf16 %v901
        %v2014 = vunpack.c.l.s8.bf16 %v902
        %v2015 = vunpack.c.l.s8.bf16 %v903
        %v2016 = vunpack.c.h.s8.bf16 %v896
        %v2017 = vunpack.c.h.s8.bf16 %v897
        %v2018 = vunpack.c.h.s8.bf16 %v898
        %v2019 = vunpack.c.h.s8.bf16 %v899
        %v2020 = vunpack.c.h.s8.bf16 %v900
        %v2021 = vunpack.c.h.s8.bf16 %v901
        %v2022 = vunpack.c.h.s8.bf16 %v902
        %v2023 = vunpack.c.h.s8.bf16 %v903
        %v2024 = vunpack.c.l.s8.bf16 %v904
        %v2025 = vunpack.c.l.s8.bf16 %v905
        %v2026 = vunpack.c.l.s8.bf16 %v906
        %v2027 = vunpack.c.l.s8.bf16 %v907
        %v2028 = vunpack.c.l.s8.bf16 %v908
        %v2029 = vunpack.c.l.s8.bf16 %v909
        %v2030 = vunpack.c.l.s8.bf16 %v910
        %v2031 = vunpack.c.l.s8.bf16 %v911
        %v2032 = vunpack.c.h.s8.bf16 %v904
        %v2033 = vunpack.c.h.s8.bf16 %v905
        %v2034 = vunpack.c.h.s8.bf16 %v906
        %v2035 = vunpack.c.h.s8.bf16 %v907
        %v2036 = vunpack.c.h.s8.bf16 %v908
        %v2037 = vunpack.c.h.s8.bf16 %v909
        %v2038 = vunpack.c.h.s8.bf16 %v910
        %v2039 = vunpack.c.h.s8.bf16 %v911
        %v2040 = vunpack.c.l.s8.bf16 %v912
        %v2041 = vunpack.c.l.s8.bf16 %v913
        %v2042 = vunpack.c.l.s8.bf16 %v914
        %v2043 = vunpack.c.l.s8.bf16 %v915
        %v2044 = vunpack.c.l.s8.bf16 %v916
        %v2045 = vunpack.c.l.s8.bf16 %v917
        %v2046 = vunpack.c.l.s8.bf16 %v918
        %v2047 = vunpack.c.l.s8.bf16 %v919
        %v2048 = vunpack.c.h.s8.bf16 %v912
        %v2049 = vunpack.c.h.s8.bf16 %v913
        %v2050 = vunpack.c.h.s8.bf16 %v914
        %v2051 = vunpack.c.h.s8.bf16 %v915
        %v2052 = vunpack.c.h.s8.bf16 %v916
        %v2053 = vunpack.c.h.s8.bf16 %v917
        %v2054 = vunpack.c.h.s8.bf16 %v918
        %v2055 = vunpack.c.h.s8.bf16 %v919
        %v2056 = vunpack.c.l.s8.bf16 %v920
        %v2057 = vunpack.c.l.s8.bf16 %v921
        %v2058 = vunpack.c.l.s8.bf16 %v922
        %v2059 = vunpack.c.l.s8.bf16 %v923
        %v2060 = vunpack.c.l.s8.bf16 %v924
        %v2061 = vunpack.c.l.s8.bf16 %v925
        %v2062 = vunpack.c.l.s8.bf16 %v926
        %v2063 = vunpack.c.l.s8.bf16 %v927
        %v2064 = vunpack.c.h.s8.bf16 %v920
        %v2065 = vunpack.c.h.s8.bf16 %v921
        %v2066 = vunpack.c.h.s8.bf16 %v922
        %v2067 = vunpack.c.h.s8.bf16 %v923
        %v2068 = vunpack.c.h.s8.bf16 %v924
        %v2069 = vunpack.c.h.s8.bf16 %v925
        %v2070 = vunpack.c.h.s8.bf16 %v926
        %v2071 = vunpack.c.h.s8.bf16 %v927
        %v2072 = vunpack.c.l.s8.bf16 %v928
        %v2073 = vunpack.c.l.s8.bf16 %v929
        %v2074 = vunpack.c.l.s8.bf16 %v930
        %v2075 = vunpack.c.l.s8.bf16 %v931
        %v2076 = vunpack.c.l.s8.bf16 %v932
        %v2077 = vunpack.c.l.s8.bf16 %v933
        %v2078 = vunpack.c.l.s8.bf16 %v934
        %v2079 = vunpack.c.l.s8.bf16 %v935
        %v2080 = vunpack.c.h.s8.bf16 %v928
        %v2081 = vunpack.c.h.s8.bf16 %v929
        %v2082 = vunpack.c.h.s8.bf16 %v930
        %v2083 = vunpack.c.h.s8.bf16 %v931
        %v2084 = vunpack.c.h.s8.bf16 %v932
        %v2085 = vunpack.c.h.s8.bf16 %v933
        %v2086 = vunpack.c.h.s8.bf16 %v934
        %v2087 = vunpack.c.h.s8.bf16 %v935
        %v2088 = vunpack.c.l.s8.bf16 %v936
        %v2089 = vunpack.c.l.s8.bf16 %v937
        %v2090 = vunpack.c.l.s8.bf16 %v938
        %v2091 = vunpack.c.l.s8.bf16 %v939
        %v2092 = vunpack.c.l.s8.bf16 %v940
        %v2093 = vunpack.c.l.s8.bf16 %v941
        %v2094 = vunpack.c.l.s8.bf16 %v942
        %v2095 = vunpack.c.l.s8.bf16 %v943
        %v2096 = vunpack.c.h.s8.bf16 %v936
        %v2097 = vunpack.c.h.s8.bf16 %v937
        %v2098 = vunpack.c.h.s8.bf16 %v938
        %v2099 = vunpack.c.h.s8.bf16 %v939
        %v2100 = vunpack.c.h.s8.bf16 %v940
        %v2101 = vunpack.c.h.s8.bf16 %v941
        %v2102 = vunpack.c.h.s8.bf16 %v942
        %v2103 = vunpack.c.h.s8.bf16 %v943
        %v2104 = vunpack.c.l.s8.bf16 %v944
        %v2105 = vunpack.c.l.s8.bf16 %v945
        %v2106 = vunpack.c.l.s8.bf16 %v946
        %v2107 = vunpack.c.l.s8.bf16 %v947
        %v2108 = vunpack.c.l.s8.bf16 %v948
        %v2109 = vunpack.c.l.s8.bf16 %v949
        %v2110 = vunpack.c.l.s8.bf16 %v950
        %v2111 = vunpack.c.l.s8.bf16 %v951
        %v2112 = vunpack.c.h.s8.bf16 %v944
        %v2113 = vunpack.c.h.s8.bf16 %v945
        %v2114 = vunpack.c.h.s8.bf16 %v946
        %v2115 = vunpack.c.h.s8.bf16 %v947
        %v2116 = vunpack.c.h.s8.bf16 %v948
        %v2117 = vunpack.c.h.s8.bf16 %v949
        %v2118 = vunpack.c.h.s8.bf16 %v950
        %v2119 = vunpack.c.h.s8.bf16 %v951
        %v2120 = vunpack.c.l.s8.bf16 %v952
        %v2121 = vunpack.c.l.s8.bf16 %v953
        %v2122 = vunpack.c.l.s8.bf16 %v954
        %v2123 = vunpack.c.l.s8.bf16 %v955
        %v2124 = vunpack.c.l.s8.bf16 %v956
        %v2125 = vunpack.c.l.s8.bf16 %v957
        %v2126 = vunpack.c.l.s8.bf16 %v958
        %v2127 = vunpack.c.l.s8.bf16 %v959
        %v2128 = vunpack.c.h.s8.bf16 %v952
        %v2129 = vunpack.c.h.s8.bf16 %v953
        %v2130 = vunpack.c.h.s8.bf16 %v954
        %v2131 = vunpack.c.h.s8.bf16 %v955
        %v2132 = vunpack.c.h.s8.bf16 %v956
        %v2133 = vunpack.c.h.s8.bf16 %v957
        %v2134 = vunpack.c.h.s8.bf16 %v958
        %v2135 = vunpack.c.h.s8.bf16 %v959
        %v2136 = vunpack.c.l.s8.bf16 %v960
        %v2137 = vunpack.c.l.s8.bf16 %v961
        %v2138 = vunpack.c.l.s8.bf16 %v962
        %v2139 = vunpack.c.l.s8.bf16 %v963
        %v2140 = vunpack.c.l.s8.bf16 %v964
        %v2141 = vunpack.c.l.s8.bf16 %v965
        %v2142 = vunpack.c.l.s8.bf16 %v966
        %v2143 = vunpack.c.l.s8.bf16 %v967
        %v2144 = vunpack.c.h.s8.bf16 %v960
        %v2145 = vunpack.c.h.s8.bf16 %v961
        %v2146 = vunpack.c.h.s8.bf16 %v962
        %v2147 = vunpack.c.h.s8.bf16 %v963
        %v2148 = vunpack.c.h.s8.bf16 %v964
        %v2149 = vunpack.c.h.s8.bf16 %v965
        %v2150 = vunpack.c.h.s8.bf16 %v966
        %v2151 = vunpack.c.h.s8.bf16 %v967
        %v2152 = vunpack.c.l.s8.bf16 %v968
        %v2153 = vunpack.c.l.s8.bf16 %v969
        %v2154 = vunpack.c.l.s8.bf16 %v970
        %v2155 = vunpack.c.l.s8.bf16 %v971
        %v2156 = vunpack.c.l.s8.bf16 %v972
        %v2157 = vunpack.c.l.s8.bf16 %v973
        %v2158 = vunpack.c.l.s8.bf16 %v974
        %v2159 = vunpack.c.l.s8.bf16 %v975
        %v2160 = vunpack.c.h.s8.bf16 %v968
        %v2161 = vunpack.c.h.s8.bf16 %v969
        %v2162 = vunpack.c.h.s8.bf16 %v970
        %v2163 = vunpack.c.h.s8.bf16 %v971
        %v2164 = vunpack.c.h.s8.bf16 %v972
        %v2165 = vunpack.c.h.s8.bf16 %v973
        %v2166 = vunpack.c.h.s8.bf16 %v974
        %v2167 = vunpack.c.h.s8.bf16 %v975
        %v2168 = vunpack.c.l.s8.bf16 %v976
        %v2169 = vunpack.c.l.s8.bf16 %v977
        %v2170 = vunpack.c.l.s8.bf16 %v978
        %v2171 = vunpack.c.l.s8.bf16 %v979
        %v2172 = vunpack.c.l.s8.bf16 %v980
        %v2173 = vunpack.c.l.s8.bf16 %v981
        %v2174 = vunpack.c.l.s8.bf16 %v982
        %v2175 = vunpack.c.l.s8.bf16 %v983
        %v2176 = vunpack.c.h.s8.bf16 %v976
        %v2177 = vunpack.c.h.s8.bf16 %v977
        %v2178 = vunpack.c.h.s8.bf16 %v978
        %v2179 = vunpack.c.h.s8.bf16 %v979
        %v2180 = vunpack.c.h.s8.bf16 %v980
        %v2181 = vunpack.c.h.s8.bf16 %v981
        %v2182 = vunpack.c.h.s8.bf16 %v982
        %v2183 = vunpack.c.h.s8.bf16 %v983
        %v2184 = vunpack.c.l.s8.bf16 %v984
        %v2185 = vunpack.c.l.s8.bf16 %v985
        %v2186 = vunpack.c.l.s8.bf16 %v986
        %v2187 = vunpack.c.l.s8.bf16 %v987
        %v2188 = vunpack.c.l.s8.bf16 %v988
        %v2189 = vunpack.c.l.s8.bf16 %v989
        %v2190 = vunpack.c.l.s8.bf16 %v990
        %v2191 = vunpack.c.l.s8.bf16 %v991
        %v2192 = vunpack.c.h.s8.bf16 %v984
        %v2193 = vunpack.c.h.s8.bf16 %v985
        %v2194 = vunpack.c.h.s8.bf16 %v986
        %v2195 = vunpack.c.h.s8.bf16 %v987
        %v2196 = vunpack.c.h.s8.bf16 %v988
        %v2197 = vunpack.c.h.s8.bf16 %v989
        %v2198 = vunpack.c.h.s8.bf16 %v990
        %v2199 = vunpack.c.h.s8.bf16 %v991
        %v2200 = vunpack.c.l.s8.bf16 %v992
        %v2201 = vunpack.c.l.s8.bf16 %v993
        %v2202 = vunpack.c.l.s8.bf16 %v994
        %v2203 = vunpack.c.l.s8.bf16 %v995
        %v2204 = vunpack.c.l.s8.bf16 %v996
        %v2205 = vunpack.c.l.s8.bf16 %v997
        %v2206 = vunpack.c.l.s8.bf16 %v998
        %v2207 = vunpack.c.l.s8.bf16 %v999
        %v2208 = vunpack.c.h.s8.bf16 %v992
        %v2209 = vunpack.c.h.s8.bf16 %v993
        %v2210 = vunpack.c.h.s8.bf16 %v994
        %v2211 = vunpack.c.h.s8.bf16 %v995
        %v2212 = vunpack.c.h.s8.bf16 %v996
        %v2213 = vunpack.c.h.s8.bf16 %v997
        %v2214 = vunpack.c.h.s8.bf16 %v998
        %v2215 = vunpack.c.h.s8.bf16 %v999
        %v2216 = vunpack.c.l.s8.bf16 %v1000
        %v2217 = vunpack.c.l.s8.bf16 %v1001
        %v2218 = vunpack.c.l.s8.bf16 %v1002
        %v2219 = vunpack.c.l.s8.bf16 %v1003
        %v2220 = vunpack.c.l.s8.bf16 %v1004
        %v2221 = vunpack.c.l.s8.bf16 %v1005
        %v2222 = vunpack.c.l.s8.bf16 %v1006
        %v2223 = vunpack.c.l.s8.bf16 %v1007
        %v2224 = vunpack.c.h.s8.bf16 %v1000
        %v2225 = vunpack.c.h.s8.bf16 %v1001
        %v2226 = vunpack.c.h.s8.bf16 %v1002
        %v2227 = vunpack.c.h.s8.bf16 %v1003
        %v2228 = vunpack.c.h.s8.bf16 %v1004
        %v2229 = vunpack.c.h.s8.bf16 %v1005
        %v2230 = vunpack.c.h.s8.bf16 %v1006
        %v2231 = vunpack.c.h.s8.bf16 %v1007
        %v2232 = vunpack.c.l.s8.bf16 %v1008
        %v2233 = vunpack.c.l.s8.bf16 %v1009
        %v2234 = vunpack.c.l.s8.bf16 %v1010
        %v2235 = vunpack.c.l.s8.bf16 %v1011
        %v2236 = vunpack.c.l.s8.bf16 %v1012
        %v2237 = vunpack.c.l.s8.bf16 %v1013
        %v2238 = vunpack.c.l.s8.bf16 %v1014
        %v2239 = vunpack.c.l.s8.bf16 %v1015
        %v2240 = vunpack.c.h.s8.bf16 %v1008
        %v2241 = vunpack.c.h.s8.bf16 %v1009
        %v2242 = vunpack.c.h.s8.bf16 %v1010
        %v2243 = vunpack.c.h.s8.bf16 %v1011
        %v2244 = vunpack.c.h.s8.bf16 %v1012
        %v2245 = vunpack.c.h.s8.bf16 %v1013
        %v2246 = vunpack.c.h.s8.bf16 %v1014
        %v2247 = vunpack.c.h.s8.bf16 %v1015
        %v2248 = vunpack.c.l.s8.bf16 %v1016
        %v2249 = vunpack.c.l.s8.bf16 %v1017
        %v2250 = vunpack.c.l.s8.bf16 %v1018
        %v2251 = vunpack.c.l.s8.bf16 %v1019
        %v2252 = vunpack.c.l.s8.bf16 %v1020
        %v2253 = vunpack.c.l.s8.bf16 %v1021
        %v2254 = vunpack.c.l.s8.bf16 %v1022
        %v2255 = vunpack.c.l.s8.bf16 %v1023
        %v2256 = vunpack.c.h.s8.bf16 %v1016
        %v2257 = vunpack.c.h.s8.bf16 %v1017
        %v2258 = vunpack.c.h.s8.bf16 %v1018
        %v2259 = vunpack.c.h.s8.bf16 %v1019
        %v2260 = vunpack.c.h.s8.bf16 %v1020
        %v2261 = vunpack.c.h.s8.bf16 %v1021
        %v2262 = vunpack.c.h.s8.bf16 %v1022
        %v2263 = vunpack.c.h.s8.bf16 %v1023
        %v2264 = vunpack.c.l.s8.bf16 %v1024
        %v2265 = vunpack.c.l.s8.bf16 %v1025
        %v2266 = vunpack.c.l.s8.bf16 %v1026
        %v2267 = vunpack.c.l.s8.bf16 %v1027
        %v2268 = vunpack.c.l.s8.bf16 %v1028
        %v2269 = vunpack.c.l.s8.bf16 %v1029
        %v2270 = vunpack.c.l.s8.bf16 %v1030
        %v2271 = vunpack.c.l.s8.bf16 %v1031
        %v2272 = vunpack.c.h.s8.bf16 %v1024
        %v2273 = vunpack.c.h.s8.bf16 %v1025
        %v2274 = vunpack.c.h.s8.bf16 %v1026
        %v2275 = vunpack.c.h.s8.bf16 %v1027
        %v2276 = vunpack.c.h.s8.bf16 %v1028
        %v2277 = vunpack.c.h.s8.bf16 %v1029
        %v2278 = vunpack.c.h.s8.bf16 %v1030
        %v2279 = vunpack.c.h.s8.bf16 %v1031
        %v2280 = vunpack.c.l.s8.bf16 %v1032
        %v2281 = vunpack.c.l.s8.bf16 %v1033
        %v2282 = vunpack.c.l.s8.bf16 %v1034
        %v2283 = vunpack.c.l.s8.bf16 %v1035
        %v2284 = vunpack.c.l.s8.bf16 %v1036
        %v2285 = vunpack.c.l.s8.bf16 %v1037
        %v2286 = vunpack.c.l.s8.bf16 %v1038
        %v2287 = vunpack.c.l.s8.bf16 %v1039
        %v2288 = vunpack.c.h.s8.bf16 %v1032
        %v2289 = vunpack.c.h.s8.bf16 %v1033
        %v2290 = vunpack.c.h.s8.bf16 %v1034
        %v2291 = vunpack.c.h.s8.bf16 %v1035
        %v2292 = vunpack.c.h.s8.bf16 %v1036
        %v2293 = vunpack.c.h.s8.bf16 %v1037
        %v2294 = vunpack.c.h.s8.bf16 %v1038
        %v2295 = vunpack.c.h.s8.bf16 %v1039
        %v2296 = vunpack.c.l.s8.bf16 %v1040
        %v2297 = vunpack.c.l.s8.bf16 %v1041
        %v2298 = vunpack.c.l.s8.bf16 %v1042
        %v2299 = vunpack.c.l.s8.bf16 %v1043
        %v2300 = vunpack.c.l.s8.bf16 %v1044
        %v2301 = vunpack.c.l.s8.bf16 %v1045
        %v2302 = vunpack.c.l.s8.bf16 %v1046
        %v2303 = vunpack.c.l.s8.bf16 %v1047
        %v2304 = vunpack.c.h.s8.bf16 %v1040
        %v2305 = vunpack.c.h.s8.bf16 %v1041
        %v2306 = vunpack.c.h.s8.bf16 %v1042
        %v2307 = vunpack.c.h.s8.bf16 %v1043
        %v2308 = vunpack.c.h.s8.bf16 %v1044
        %v2309 = vunpack.c.h.s8.bf16 %v1045
        %v2310 = vunpack.c.h.s8.bf16 %v1046
        %v2311 = vunpack.c.h.s8.bf16 %v1047
        %v2312 = vunpack.c.l.s8.bf16 %v1048
        %v2313 = vunpack.c.l.s8.bf16 %v1049
        %v2314 = vunpack.c.l.s8.bf16 %v1050
        %v2315 = vunpack.c.l.s8.bf16 %v1051
        %v2316 = vunpack.c.l.s8.bf16 %v1052
        %v2317 = vunpack.c.l.s8.bf16 %v1053
        %v2318 = vunpack.c.l.s8.bf16 %v1054
        %v2319 = vunpack.c.l.s8.bf16 %v1055
        %v2320 = vunpack.c.h.s8.bf16 %v1048
        %v2321 = vunpack.c.h.s8.bf16 %v1049
        %v2322 = vunpack.c.h.s8.bf16 %v1050
        %v2323 = vunpack.c.h.s8.bf16 %v1051
        %v2324 = vunpack.c.h.s8.bf16 %v1052
        %v2325 = vunpack.c.h.s8.bf16 %v1053
        %v2326 = vunpack.c.h.s8.bf16 %v1054
        %v2327 = vunpack.c.h.s8.bf16 %v1055
        %v2328 = vunpack.c.l.s8.bf16 %v1056
        %v2329 = vunpack.c.l.s8.bf16 %v1057
        %v2330 = vunpack.c.l.s8.bf16 %v1058
        %v2331 = vunpack.c.l.s8.bf16 %v1059
        %v2332 = vunpack.c.l.s8.bf16 %v1060
        %v2333 = vunpack.c.l.s8.bf16 %v1061
        %v2334 = vunpack.c.l.s8.bf16 %v1062
        %v2335 = vunpack.c.l.s8.bf16 %v1063
        %v2336 = vunpack.c.h.s8.bf16 %v1056
        %v2337 = vunpack.c.h.s8.bf16 %v1057
        %v2338 = vunpack.c.h.s8.bf16 %v1058
        %v2339 = vunpack.c.h.s8.bf16 %v1059
        %v2340 = vunpack.c.h.s8.bf16 %v1060
        %v2341 = vunpack.c.h.s8.bf16 %v1061
        %v2342 = vunpack.c.h.s8.bf16 %v1062
        %v2343 = vunpack.c.h.s8.bf16 %v1063
        %v2344 = vunpack.c.l.s8.bf16 %v1064
        %v2345 = vunpack.c.l.s8.bf16 %v1065
        %v2346 = vunpack.c.l.s8.bf16 %v1066
        %v2347 = vunpack.c.l.s8.bf16 %v1067
        %v2348 = vunpack.c.l.s8.bf16 %v1068
        %v2349 = vunpack.c.l.s8.bf16 %v1069
        %v2350 = vunpack.c.l.s8.bf16 %v1070
        %v2351 = vunpack.c.l.s8.bf16 %v1071
        %v2352 = vunpack.c.h.s8.bf16 %v1064
        %v2353 = vunpack.c.h.s8.bf16 %v1065
        %v2354 = vunpack.c.h.s8.bf16 %v1066
        %v2355 = vunpack.c.h.s8.bf16 %v1067
        %v2356 = vunpack.c.h.s8.bf16 %v1068
        %v2357 = vunpack.c.h.s8.bf16 %v1069
        %v2358 = vunpack.c.h.s8.bf16 %v1070
        %v2359 = vunpack.c.h.s8.bf16 %v1071
        %v2360 = vunpack.c.l.s8.bf16 %v1072
        %v2361 = vunpack.c.l.s8.bf16 %v1073
        %v2362 = vunpack.c.l.s8.bf16 %v1074
        %v2363 = vunpack.c.l.s8.bf16 %v1075
        %v2364 = vunpack.c.l.s8.bf16 %v1076
        %v2365 = vunpack.c.l.s8.bf16 %v1077
        %v2366 = vunpack.c.l.s8.bf16 %v1078
        %v2367 = vunpack.c.l.s8.bf16 %v1079
        %v2368 = vunpack.c.h.s8.bf16 %v1072
        %v2369 = vunpack.c.h.s8.bf16 %v1073
        %v2370 = vunpack.c.h.s8.bf16 %v1074
        %v2371 = vunpack.c.h.s8.bf16 %v1075
        %v2372 = vunpack.c.h.s8.bf16 %v1076
        %v2373 = vunpack.c.h.s8.bf16 %v1077
        %v2374 = vunpack.c.h.s8.bf16 %v1078
        %v2375 = vunpack.c.h.s8.bf16 %v1079
        %v2376 = vunpack.c.l.s8.bf16 %v1080
        %v2377 = vunpack.c.l.s8.bf16 %v1081
        %v2378 = vunpack.c.l.s8.bf16 %v1082
        %v2379 = vunpack.c.l.s8.bf16 %v1083
        %v2380 = vunpack.c.l.s8.bf16 %v1084
        %v2381 = vunpack.c.l.s8.bf16 %v1085
        %v2382 = vunpack.c.l.s8.bf16 %v1086
        %v2383 = vunpack.c.l.s8.bf16 %v1087
        %v2384 = vunpack.c.h.s8.bf16 %v1080
        %v2385 = vunpack.c.h.s8.bf16 %v1081
        %v2386 = vunpack.c.h.s8.bf16 %v1082
        %v2387 = vunpack.c.h.s8.bf16 %v1083
        %v2388 = vunpack.c.h.s8.bf16 %v1084
        %v2389 = vunpack.c.h.s8.bf16 %v1085
        %v2390 = vunpack.c.h.s8.bf16 %v1086
        %v2391 = vunpack.c.h.s8.bf16 %v1087
        %v2392 = vunpack.c.l.s8.bf16 %v1088
        %v2393 = vunpack.c.l.s8.bf16 %v1089
        %v2394 = vunpack.c.l.s8.bf16 %v1090
        %v2395 = vunpack.c.l.s8.bf16 %v1091
        %v2396 = vunpack.c.l.s8.bf16 %v1092
        %v2397 = vunpack.c.l.s8.bf16 %v1093
        %v2398 = vunpack.c.l.s8.bf16 %v1094
        %v2399 = vunpack.c.l.s8.bf16 %v1095
        %v2400 = vunpack.c.h.s8.bf16 %v1088
        %v2401 = vunpack.c.h.s8.bf16 %v1089
        %v2402 = vunpack.c.h.s8.bf16 %v1090
        %v2403 = vunpack.c.h.s8.bf16 %v1091
        %v2404 = vunpack.c.h.s8.bf16 %v1092
        %v2405 = vunpack.c.h.s8.bf16 %v1093
        %v2406 = vunpack.c.h.s8.bf16 %v1094
        %v2407 = vunpack.c.h.s8.bf16 %v1095
        %v2408 = vunpack.c.l.s8.bf16 %v1096
        %v2409 = vunpack.c.l.s8.bf16 %v1097
        %v2410 = vunpack.c.l.s8.bf16 %v1098
        %v2411 = vunpack.c.l.s8.bf16 %v1099
        %v2412 = vunpack.c.l.s8.bf16 %v1100
        %v2413 = vunpack.c.l.s8.bf16 %v1101
        %v2414 = vunpack.c.l.s8.bf16 %v1102
        %v2415 = vunpack.c.l.s8.bf16 %v1103
        %v2416 = vunpack.c.h.s8.bf16 %v1096
        %v2417 = vunpack.c.h.s8.bf16 %v1097
        %v2418 = vunpack.c.h.s8.bf16 %v1098
        %v2419 = vunpack.c.h.s8.bf16 %v1099
        %v2420 = vunpack.c.h.s8.bf16 %v1100
        %v2421 = vunpack.c.h.s8.bf16 %v1101
        %v2422 = vunpack.c.h.s8.bf16 %v1102
        %v2423 = vunpack.c.h.s8.bf16 %v1103
        %v2424 = vunpack.c.l.s8.bf16 %v1104
        %v2425 = vunpack.c.l.s8.bf16 %v1105
        %v2426 = vunpack.c.l.s8.bf16 %v1106
        %v2427 = vunpack.c.l.s8.bf16 %v1107
        %v2428 = vunpack.c.l.s8.bf16 %v1108
        %v2429 = vunpack.c.l.s8.bf16 %v1109
        %v2430 = vunpack.c.l.s8.bf16 %v1110
        %v2431 = vunpack.c.l.s8.bf16 %v1111
        %v2432 = vunpack.c.h.s8.bf16 %v1104
        %v2433 = vunpack.c.h.s8.bf16 %v1105
        %v2434 = vunpack.c.h.s8.bf16 %v1106
        %v2435 = vunpack.c.h.s8.bf16 %v1107
        %v2436 = vunpack.c.h.s8.bf16 %v1108
        %v2437 = vunpack.c.h.s8.bf16 %v1109
        %v2438 = vunpack.c.h.s8.bf16 %v1110
        %v2439 = vunpack.c.h.s8.bf16 %v1111
        %v2440 = vunpack.c.l.s8.bf16 %v1112
        %v2441 = vunpack.c.l.s8.bf16 %v1113
        %v2442 = vunpack.c.l.s8.bf16 %v1114
        %v2443 = vunpack.c.l.s8.bf16 %v1115
        %v2444 = vunpack.c.l.s8.bf16 %v1116
        %v2445 = vunpack.c.l.s8.bf16 %v1117
        %v2446 = vunpack.c.l.s8.bf16 %v1118
        %v2447 = vunpack.c.l.s8.bf16 %v1119
        %v2448 = vunpack.c.h.s8.bf16 %v1112
        %v2449 = vunpack.c.h.s8.bf16 %v1113
        %v2450 = vunpack.c.h.s8.bf16 %v1114
        %v2451 = vunpack.c.h.s8.bf16 %v1115
        %v2452 = vunpack.c.h.s8.bf16 %v1116
        %v2453 = vunpack.c.h.s8.bf16 %v1117
        %v2454 = vunpack.c.h.s8.bf16 %v1118
        %v2455 = vunpack.c.h.s8.bf16 %v1119
        %v2456 = vunpack.c.l.s8.bf16 %v1120
        %v2457 = vunpack.c.l.s8.bf16 %v1121
        %v2458 = vunpack.c.l.s8.bf16 %v1122
        %v2459 = vunpack.c.l.s8.bf16 %v1123
        %v2460 = vunpack.c.l.s8.bf16 %v1124
        %v2461 = vunpack.c.l.s8.bf16 %v1125
        %v2462 = vunpack.c.l.s8.bf16 %v1126
        %v2463 = vunpack.c.l.s8.bf16 %v1127
        %v2464 = vunpack.c.h.s8.bf16 %v1120
        %v2465 = vunpack.c.h.s8.bf16 %v1121
        %v2466 = vunpack.c.h.s8.bf16 %v1122
        %v2467 = vunpack.c.h.s8.bf16 %v1123
        %v2468 = vunpack.c.h.s8.bf16 %v1124
        %v2469 = vunpack.c.h.s8.bf16 %v1125
        %v2470 = vunpack.c.h.s8.bf16 %v1126
        %v2471 = vunpack.c.h.s8.bf16 %v1127
        %v2472 = vunpack.c.l.s8.bf16 %v1128
        %v2473 = vunpack.c.l.s8.bf16 %v1129
        %v2474 = vunpack.c.l.s8.bf16 %v1130
        %v2475 = vunpack.c.l.s8.bf16 %v1131
        %v2476 = vunpack.c.l.s8.bf16 %v1132
        %v2477 = vunpack.c.l.s8.bf16 %v1133
        %v2478 = vunpack.c.l.s8.bf16 %v1134
        %v2479 = vunpack.c.l.s8.bf16 %v1135
        %v2480 = vunpack.c.h.s8.bf16 %v1128
        %v2481 = vunpack.c.h.s8.bf16 %v1129
        %v2482 = vunpack.c.h.s8.bf16 %v1130
        %v2483 = vunpack.c.h.s8.bf16 %v1131
        %v2484 = vunpack.c.h.s8.bf16 %v1132
        %v2485 = vunpack.c.h.s8.bf16 %v1133
        %v2486 = vunpack.c.h.s8.bf16 %v1134
        %v2487 = vunpack.c.h.s8.bf16 %v1135
        %v2488 = vunpack.c.l.s8.bf16 %v1136
        %v2489 = vunpack.c.l.s8.bf16 %v1137
        %v2490 = vunpack.c.l.s8.bf16 %v1138
        %v2491 = vunpack.c.l.s8.bf16 %v1139
        %v2492 = vunpack.c.l.s8.bf16 %v1140
        %v2493 = vunpack.c.l.s8.bf16 %v1141
        %v2494 = vunpack.c.l.s8.bf16 %v1142
        %v2495 = vunpack.c.l.s8.bf16 %v1143
        %v2496 = vunpack.c.h.s8.bf16 %v1136
        %v2497 = vunpack.c.h.s8.bf16 %v1137
        %v2498 = vunpack.c.h.s8.bf16 %v1138
        %v2499 = vunpack.c.h.s8.bf16 %v1139
        %v2500 = vunpack.c.h.s8.bf16 %v1140
        %v2501 = vunpack.c.h.s8.bf16 %v1141
        %v2502 = vunpack.c.h.s8.bf16 %v1142
        %v2503 = vunpack.c.h.s8.bf16 %v1143
        %v2504 = vunpack.c.l.s8.bf16 %v1144
        %v2505 = vunpack.c.l.s8.bf16 %v1145
        %v2506 = vunpack.c.l.s8.bf16 %v1146
        %v2507 = vunpack.c.l.s8.bf16 %v1147
        %v2508 = vunpack.c.l.s8.bf16 %v1148
        %v2509 = vunpack.c.l.s8.bf16 %v1149
        %v2510 = vunpack.c.l.s8.bf16 %v1150
        %v2511 = vunpack.c.l.s8.bf16 %v1151
        %v2512 = vunpack.c.h.s8.bf16 %v1144
        %v2513 = vunpack.c.h.s8.bf16 %v1145
        %v2514 = vunpack.c.h.s8.bf16 %v1146
        %v2515 = vunpack.c.h.s8.bf16 %v1147
        %v2516 = vunpack.c.h.s8.bf16 %v1148
        %v2517 = vunpack.c.h.s8.bf16 %v1149
        %v2518 = vunpack.c.h.s8.bf16 %v1150
        %v2519 = vunpack.c.h.s8.bf16 %v1151
        %v2520 = vunpack.c.l.s8.bf16 %v1152
        %v2521 = vunpack.c.l.s8.bf16 %v1153
        %v2522 = vunpack.c.l.s8.bf16 %v1154
        %v2523 = vunpack.c.l.s8.bf16 %v1155
        %v2524 = vunpack.c.l.s8.bf16 %v1156
        %v2525 = vunpack.c.l.s8.bf16 %v1157
        %v2526 = vunpack.c.l.s8.bf16 %v1158
        %v2527 = vunpack.c.l.s8.bf16 %v1159
        %v2528 = vunpack.c.h.s8.bf16 %v1152
        %v2529 = vunpack.c.h.s8.bf16 %v1153
        %v2530 = vunpack.c.h.s8.bf16 %v1154
        %v2531 = vunpack.c.h.s8.bf16 %v1155
        %v2532 = vunpack.c.h.s8.bf16 %v1156
        %v2533 = vunpack.c.h.s8.bf16 %v1157
        %v2534 = vunpack.c.h.s8.bf16 %v1158
        %v2535 = vunpack.c.h.s8.bf16 %v1159
        %v2536 = vunpack.c.l.s8.bf16 %v1160
        %v2537 = vunpack.c.l.s8.bf16 %v1161
        %v2538 = vunpack.c.l.s8.bf16 %v1162
        %v2539 = vunpack.c.l.s8.bf16 %v1163
        %v2540 = vunpack.c.l.s8.bf16 %v1164
        %v2541 = vunpack.c.l.s8.bf16 %v1165
        %v2542 = vunpack.c.l.s8.bf16 %v1166
        %v2543 = vunpack.c.l.s8.bf16 %v1167
        %v2544 = vunpack.c.h.s8.bf16 %v1160
        %v2545 = vunpack.c.h.s8.bf16 %v1161
        %v2546 = vunpack.c.h.s8.bf16 %v1162
        %v2547 = vunpack.c.h.s8.bf16 %v1163
        %v2548 = vunpack.c.h.s8.bf16 %v1164
        %v2549 = vunpack.c.h.s8.bf16 %v1165
        %v2550 = vunpack.c.h.s8.bf16 %v1166
        %v2551 = vunpack.c.h.s8.bf16 %v1167
        %v2552 = vunpack.c.l.s8.bf16 %v1168
        %v2553 = vunpack.c.l.s8.bf16 %v1169
        %v2554 = vunpack.c.l.s8.bf16 %v1170
        %v2555 = vunpack.c.l.s8.bf16 %v1171
        %v2556 = vunpack.c.l.s8.bf16 %v1172
        %v2557 = vunpack.c.l.s8.bf16 %v1173
        %v2558 = vunpack.c.l.s8.bf16 %v1174
        %v2559 = vunpack.c.l.s8.bf16 %v1175
        %v2560 = vunpack.c.h.s8.bf16 %v1168
        %v2561 = vunpack.c.h.s8.bf16 %v1169
        %v2562 = vunpack.c.h.s8.bf16 %v1170
        %v2563 = vunpack.c.h.s8.bf16 %v1171
        %v2564 = vunpack.c.h.s8.bf16 %v1172
        %v2565 = vunpack.c.h.s8.bf16 %v1173
        %v2566 = vunpack.c.h.s8.bf16 %v1174
        %v2567 = vunpack.c.h.s8.bf16 %v1175
        %v2568 = vunpack.c.l.s8.bf16 %v1176
        %v2569 = vunpack.c.l.s8.bf16 %v1177
        %v2570 = vunpack.c.l.s8.bf16 %v1178
        %v2571 = vunpack.c.l.s8.bf16 %v1179
        %v2572 = vunpack.c.l.s8.bf16 %v1180
        %v2573 = vunpack.c.l.s8.bf16 %v1181
        %v2574 = vunpack.c.l.s8.bf16 %v1182
        %v2575 = vunpack.c.l.s8.bf16 %v1183
        %v2576 = vunpack.c.h.s8.bf16 %v1176
        %v2577 = vunpack.c.h.s8.bf16 %v1177
        %v2578 = vunpack.c.h.s8.bf16 %v1178
        %v2579 = vunpack.c.h.s8.bf16 %v1179
        %v2580 = vunpack.c.h.s8.bf16 %v1180
        %v2581 = vunpack.c.h.s8.bf16 %v1181
        %v2582 = vunpack.c.h.s8.bf16 %v1182
        %v2583 = vunpack.c.h.s8.bf16 %v1183
        %v2584 = vunpack.c.l.s8.bf16 %v1184
        %v2585 = vunpack.c.l.s8.bf16 %v1185
        %v2586 = vunpack.c.l.s8.bf16 %v1186
        %v2587 = vunpack.c.l.s8.bf16 %v1187
        %v2588 = vunpack.c.l.s8.bf16 %v1188
        %v2589 = vunpack.c.l.s8.bf16 %v1189
        %v2590 = vunpack.c.l.s8.bf16 %v1190
        %v2591 = vunpack.c.l.s8.bf16 %v1191
        %v2592 = vunpack.c.h.s8.bf16 %v1184
        %v2593 = vunpack.c.h.s8.bf16 %v1185
        %v2594 = vunpack.c.h.s8.bf16 %v1186
        %v2595 = vunpack.c.h.s8.bf16 %v1187
        %v2596 = vunpack.c.h.s8.bf16 %v1188
        %v2597 = vunpack.c.h.s8.bf16 %v1189
        %v2598 = vunpack.c.h.s8.bf16 %v1190
        %v2599 = vunpack.c.h.s8.bf16 %v1191
        %v2600 = vunpack.c.l.s8.bf16 %v1192
        %v2601 = vunpack.c.l.s8.bf16 %v1193
        %v2602 = vunpack.c.l.s8.bf16 %v1194
        %v2603 = vunpack.c.l.s8.bf16 %v1195
        %v2604 = vunpack.c.l.s8.bf16 %v1196
        %v2605 = vunpack.c.l.s8.bf16 %v1197
        %v2606 = vunpack.c.l.s8.bf16 %v1198
        %v2607 = vunpack.c.l.s8.bf16 %v1199
        %v2608 = vunpack.c.h.s8.bf16 %v1192
        %v2609 = vunpack.c.h.s8.bf16 %v1193
        %v2610 = vunpack.c.h.s8.bf16 %v1194
        %v2611 = vunpack.c.h.s8.bf16 %v1195
        %v2612 = vunpack.c.h.s8.bf16 %v1196
        %v2613 = vunpack.c.h.s8.bf16 %v1197
        %v2614 = vunpack.c.h.s8.bf16 %v1198
        %v2615 = vunpack.c.h.s8.bf16 %v1199
        %v2616 = vunpack.c.l.s8.bf16 %v1200
        %v2617 = vunpack.c.l.s8.bf16 %v1201
        %v2618 = vunpack.c.l.s8.bf16 %v1202
        %v2619 = vunpack.c.l.s8.bf16 %v1203
        %v2620 = vunpack.c.l.s8.bf16 %v1204
        %v2621 = vunpack.c.l.s8.bf16 %v1205
        %v2622 = vunpack.c.l.s8.bf16 %v1206
        %v2623 = vunpack.c.l.s8.bf16 %v1207
        %v2624 = vunpack.c.h.s8.bf16 %v1200
        %v2625 = vunpack.c.h.s8.bf16 %v1201
        %v2626 = vunpack.c.h.s8.bf16 %v1202
        %v2627 = vunpack.c.h.s8.bf16 %v1203
        %v2628 = vunpack.c.h.s8.bf16 %v1204
        %v2629 = vunpack.c.h.s8.bf16 %v1205
        %v2630 = vunpack.c.h.s8.bf16 %v1206
        %v2631 = vunpack.c.h.s8.bf16 %v1207
        %v2632 = vunpack.c.l.s8.bf16 %v1208
        %v2633 = vunpack.c.l.s8.bf16 %v1209
        %v2634 = vunpack.c.l.s8.bf16 %v1210
        %v2635 = vunpack.c.l.s8.bf16 %v1211
        %v2636 = vunpack.c.l.s8.bf16 %v1212
        %v2637 = vunpack.c.l.s8.bf16 %v1213
        %v2638 = vunpack.c.l.s8.bf16 %v1214
        %v2639 = vunpack.c.l.s8.bf16 %v1215
        %v2640 = vunpack.c.h.s8.bf16 %v1208
        %v2641 = vunpack.c.h.s8.bf16 %v1209
        %v2642 = vunpack.c.h.s8.bf16 %v1210
        %v2643 = vunpack.c.h.s8.bf16 %v1211
        %v2644 = vunpack.c.h.s8.bf16 %v1212
        %v2645 = vunpack.c.h.s8.bf16 %v1213
        %v2646 = vunpack.c.h.s8.bf16 %v1214
        %v2647 = vunpack.c.h.s8.bf16 %v1215
        %v2648 = vunpack.c.l.s8.bf16 %v1216
        %v2649 = vunpack.c.l.s8.bf16 %v1217
        %v2650 = vunpack.c.l.s8.bf16 %v1218
        %v2651 = vunpack.c.l.s8.bf16 %v1219
        %v2652 = vunpack.c.l.s8.bf16 %v1220
        %v2653 = vunpack.c.l.s8.bf16 %v1221
        %v2654 = vunpack.c.l.s8.bf16 %v1222
        %v2655 = vunpack.c.l.s8.bf16 %v1223
        %v2656 = vunpack.c.h.s8.bf16 %v1216
        %v2657 = vunpack.c.h.s8.bf16 %v1217
        %v2658 = vunpack.c.h.s8.bf16 %v1218
        %v2659 = vunpack.c.h.s8.bf16 %v1219
        %v2660 = vunpack.c.h.s8.bf16 %v1220
        %v2661 = vunpack.c.h.s8.bf16 %v1221
        %v2662 = vunpack.c.h.s8.bf16 %v1222
        %v2663 = vunpack.c.h.s8.bf16 %v1223
        %v2664 = vunpack.c.l.s8.bf16 %v1224
        %v2665 = vunpack.c.l.s8.bf16 %v1225
        %v2666 = vunpack.c.l.s8.bf16 %v1226
        %v2667 = vunpack.c.l.s8.bf16 %v1227
        %v2668 = vunpack.c.l.s8.bf16 %v1228
        %v2669 = vunpack.c.l.s8.bf16 %v1229
        %v2670 = vunpack.c.l.s8.bf16 %v1230
        %v2671 = vunpack.c.l.s8.bf16 %v1231
        %v2672 = vunpack.c.h.s8.bf16 %v1224
        %v2673 = vunpack.c.h.s8.bf16 %v1225
        %v2674 = vunpack.c.h.s8.bf16 %v1226
        %v2675 = vunpack.c.h.s8.bf16 %v1227
        %v2676 = vunpack.c.h.s8.bf16 %v1228
        %v2677 = vunpack.c.h.s8.bf16 %v1229
        %v2678 = vunpack.c.h.s8.bf16 %v1230
        %v2679 = vunpack.c.h.s8.bf16 %v1231
        %v2680 = vunpack.c.l.s8.bf16 %v1232
        %v2681 = vunpack.c.l.s8.bf16 %v1233
        %v2682 = vunpack.c.l.s8.bf16 %v1234
        %v2683 = vunpack.c.l.s8.bf16 %v1235
        %v2684 = vunpack.c.l.s8.bf16 %v1236
        %v2685 = vunpack.c.l.s8.bf16 %v1237
        %v2686 = vunpack.c.l.s8.bf16 %v1238
        %v2687 = vunpack.c.l.s8.bf16 %v1239
        %v2688 = vunpack.c.h.s8.bf16 %v1232
        %v2689 = vunpack.c.h.s8.bf16 %v1233
        %v2690 = vunpack.c.h.s8.bf16 %v1234
        %v2691 = vunpack.c.h.s8.bf16 %v1235
        %v2692 = vunpack.c.h.s8.bf16 %v1236
        %v2693 = vunpack.c.h.s8.bf16 %v1237
        %v2694 = vunpack.c.h.s8.bf16 %v1238
        %v2695 = vunpack.c.h.s8.bf16 %v1239
        %v2696 = vunpack.c.l.s8.bf16 %v1240
        %v2697 = vunpack.c.l.s8.bf16 %v1241
        %v2698 = vunpack.c.l.s8.bf16 %v1242
        %v2699 = vunpack.c.l.s8.bf16 %v1243
        %v2700 = vunpack.c.l.s8.bf16 %v1244
        %v2701 = vunpack.c.l.s8.bf16 %v1245
        %v2702 = vunpack.c.l.s8.bf16 %v1246
        %v2703 = vunpack.c.l.s8.bf16 %v1247
        %v2704 = vunpack.c.h.s8.bf16 %v1240
        %v2705 = vunpack.c.h.s8.bf16 %v1241
        %v2706 = vunpack.c.h.s8.bf16 %v1242
        %v2707 = vunpack.c.h.s8.bf16 %v1243
        %v2708 = vunpack.c.h.s8.bf16 %v1244
        %v2709 = vunpack.c.h.s8.bf16 %v1245
        %v2710 = vunpack.c.h.s8.bf16 %v1246
        %v2711 = vunpack.c.h.s8.bf16 %v1247
        %v2712 = vunpack.c.l.s8.bf16 %v1248
        %v2713 = vunpack.c.l.s8.bf16 %v1249
        %v2714 = vunpack.c.l.s8.bf16 %v1250
        %v2715 = vunpack.c.l.s8.bf16 %v1251
        %v2716 = vunpack.c.l.s8.bf16 %v1252
        %v2717 = vunpack.c.l.s8.bf16 %v1253
        %v2718 = vunpack.c.l.s8.bf16 %v1254
        %v2719 = vunpack.c.l.s8.bf16 %v1255
        %v2720 = vunpack.c.h.s8.bf16 %v1248
        %v2721 = vunpack.c.h.s8.bf16 %v1249
        %v2722 = vunpack.c.h.s8.bf16 %v1250
        %v2723 = vunpack.c.h.s8.bf16 %v1251
        %v2724 = vunpack.c.h.s8.bf16 %v1252
        %v2725 = vunpack.c.h.s8.bf16 %v1253
        %v2726 = vunpack.c.h.s8.bf16 %v1254
        %v2727 = vunpack.c.h.s8.bf16 %v1255
        %v2728 = vunpack.c.l.s8.bf16 %v1256
        %v2729 = vunpack.c.l.s8.bf16 %v1257
        %v2730 = vunpack.c.l.s8.bf16 %v1258
        %v2731 = vunpack.c.l.s8.bf16 %v1259
        %v2732 = vunpack.c.l.s8.bf16 %v1260
        %v2733 = vunpack.c.l.s8.bf16 %v1261
        %v2734 = vunpack.c.l.s8.bf16 %v1262
        %v2735 = vunpack.c.l.s8.bf16 %v1263
        %v2736 = vunpack.c.h.s8.bf16 %v1256
        %v2737 = vunpack.c.h.s8.bf16 %v1257
        %v2738 = vunpack.c.h.s8.bf16 %v1258
        %v2739 = vunpack.c.h.s8.bf16 %v1259
        %v2740 = vunpack.c.h.s8.bf16 %v1260
        %v2741 = vunpack.c.h.s8.bf16 %v1261
        %v2742 = vunpack.c.h.s8.bf16 %v1262
        %v2743 = vunpack.c.h.s8.bf16 %v1263
        %v2744 = vunpack.c.l.s8.bf16 %v1264
        %v2745 = vunpack.c.l.s8.bf16 %v1265
        %v2746 = vunpack.c.l.s8.bf16 %v1266
        %v2747 = vunpack.c.l.s8.bf16 %v1267
        %v2748 = vunpack.c.l.s8.bf16 %v1268
        %v2749 = vunpack.c.l.s8.bf16 %v1269
        %v2750 = vunpack.c.l.s8.bf16 %v1270
        %v2751 = vunpack.c.l.s8.bf16 %v1271
        %v2752 = vunpack.c.h.s8.bf16 %v1264
        %v2753 = vunpack.c.h.s8.bf16 %v1265
        %v2754 = vunpack.c.h.s8.bf16 %v1266
        %v2755 = vunpack.c.h.s8.bf16 %v1267
        %v2756 = vunpack.c.h.s8.bf16 %v1268
        %v2757 = vunpack.c.h.s8.bf16 %v1269
        %v2758 = vunpack.c.h.s8.bf16 %v1270
        %v2759 = vunpack.c.h.s8.bf16 %v1271
        %v2760 = vunpack.c.l.s8.bf16 %v1272
        %v2761 = vunpack.c.l.s8.bf16 %v1273
        %v2762 = vunpack.c.l.s8.bf16 %v1274
        %v2763 = vunpack.c.l.s8.bf16 %v1275
        %v2764 = vunpack.c.l.s8.bf16 %v1276
        %v2765 = vunpack.c.l.s8.bf16 %v1277
        %v2766 = vunpack.c.l.s8.bf16 %v1278
        %v2767 = vunpack.c.l.s8.bf16 %v1279
        %v2768 = vunpack.c.h.s8.bf16 %v1272
        %v2769 = vunpack.c.h.s8.bf16 %v1273
        %v2770 = vunpack.c.h.s8.bf16 %v1274
        %v2771 = vunpack.c.h.s8.bf16 %v1275
        %v2772 = vunpack.c.h.s8.bf16 %v1276
        %v2773 = vunpack.c.h.s8.bf16 %v1277
        %v2774 = vunpack.c.h.s8.bf16 %v1278
        %v2775 = vunpack.c.h.s8.bf16 %v1279
        %v2776 = vunpack.c.l.s8.bf16 %v1280
        %v2777 = vunpack.c.l.s8.bf16 %v1281
        %v2778 = vunpack.c.l.s8.bf16 %v1282
        %v2779 = vunpack.c.l.s8.bf16 %v1283
        %v2780 = vunpack.c.l.s8.bf16 %v1284
        %v2781 = vunpack.c.l.s8.bf16 %v1285
        %v2782 = vunpack.c.l.s8.bf16 %v1286
        %v2783 = vunpack.c.l.s8.bf16 %v1287
        %v2784 = vunpack.c.h.s8.bf16 %v1280
        %v2785 = vunpack.c.h.s8.bf16 %v1281
        %v2786 = vunpack.c.h.s8.bf16 %v1282
        %v2787 = vunpack.c.h.s8.bf16 %v1283
        %v2788 = vunpack.c.h.s8.bf16 %v1284
        %v2789 = vunpack.c.h.s8.bf16 %v1285
        %v2790 = vunpack.c.h.s8.bf16 %v1286
        %v2791 = vunpack.c.h.s8.bf16 %v1287
        %v2792 = vunpack.c.l.s8.bf16 %v1288
        %v2793 = vunpack.c.l.s8.bf16 %v1289
        %v2794 = vunpack.c.l.s8.bf16 %v1290
        %v2795 = vunpack.c.l.s8.bf16 %v1291
        %v2796 = vunpack.c.l.s8.bf16 %v1292
        %v2797 = vunpack.c.l.s8.bf16 %v1293
        %v2798 = vunpack.c.l.s8.bf16 %v1294
        %v2799 = vunpack.c.l.s8.bf16 %v1295
        %v2800 = vunpack.c.h.s8.bf16 %v1288
        %v2801 = vunpack.c.h.s8.bf16 %v1289
        %v2802 = vunpack.c.h.s8.bf16 %v1290
        %v2803 = vunpack.c.h.s8.bf16 %v1291
        %v2804 = vunpack.c.h.s8.bf16 %v1292
        %v2805 = vunpack.c.h.s8.bf16 %v1293
        %v2806 = vunpack.c.h.s8.bf16 %v1294
        %v2807 = vunpack.c.h.s8.bf16 %v1295
        %v2808 = vunpack.c.l.s8.bf16 %v1296
        %v2809 = vunpack.c.l.s8.bf16 %v1297
        %v2810 = vunpack.c.l.s8.bf16 %v1298
        %v2811 = vunpack.c.l.s8.bf16 %v1299
        %v2812 = vunpack.c.l.s8.bf16 %v1300
        %v2813 = vunpack.c.l.s8.bf16 %v1301
        %v2814 = vunpack.c.l.s8.bf16 %v1302
        %v2815 = vunpack.c.l.s8.bf16 %v1303
        %v2816 = vunpack.c.h.s8.bf16 %v1296
        %v2817 = vunpack.c.h.s8.bf16 %v1297
        %v2818 = vunpack.c.h.s8.bf16 %v1298
        %v2819 = vunpack.c.h.s8.bf16 %v1299
        %v2820 = vunpack.c.h.s8.bf16 %v1300
        %v2821 = vunpack.c.h.s8.bf16 %v1301
        %v2822 = vunpack.c.h.s8.bf16 %v1302
        %v2823 = vunpack.c.h.s8.bf16 %v1303
        %v2824 = vunpack.c.l.s8.bf16 %v1304
        %v2825 = vunpack.c.l.s8.bf16 %v1305
        %v2826 = vunpack.c.l.s8.bf16 %v1306
        %v2827 = vunpack.c.l.s8.bf16 %v1307
        %v2828 = vunpack.c.l.s8.bf16 %v1308
        %v2829 = vunpack.c.l.s8.bf16 %v1309
        %v2830 = vunpack.c.l.s8.bf16 %v1310
        %v2831 = vunpack.c.l.s8.bf16 %v1311
        %v2832 = vunpack.c.h.s8.bf16 %v1304
        %v2833 = vunpack.c.h.s8.bf16 %v1305
        %v2834 = vunpack.c.h.s8.bf16 %v1306
        %v2835 = vunpack.c.h.s8.bf16 %v1307
        %v2836 = vunpack.c.h.s8.bf16 %v1308
        %v2837 = vunpack.c.h.s8.bf16 %v1309
        %v2838 = vunpack.c.h.s8.bf16 %v1310
        %v2839 = vunpack.c.h.s8.bf16 %v1311
        %v2840 = vunpack.c.l.s8.bf16 %v1312
        %v2841 = vunpack.c.l.s8.bf16 %v1313
        %v2842 = vunpack.c.l.s8.bf16 %v1314
        %v2843 = vunpack.c.l.s8.bf16 %v1315
        %v2844 = vunpack.c.l.s8.bf16 %v1316
        %v2845 = vunpack.c.l.s8.bf16 %v1317
        %v2846 = vunpack.c.l.s8.bf16 %v1318
        %v2847 = vunpack.c.l.s8.bf16 %v1319
        %v2848 = vunpack.c.h.s8.bf16 %v1312
        %v2849 = vunpack.c.h.s8.bf16 %v1313
        %v2850 = vunpack.c.h.s8.bf16 %v1314
        %v2851 = vunpack.c.h.s8.bf16 %v1315
        %v2852 = vunpack.c.h.s8.bf16 %v1316
        %v2853 = vunpack.c.h.s8.bf16 %v1317
        %v2854 = vunpack.c.h.s8.bf16 %v1318
        %v2855 = vunpack.c.h.s8.bf16 %v1319
        %v2856 = vld [vmem:[#allocation2] sm:$0xff]
        %v2857 = vld [vmem:[#allocation2 + $0x8] sm:$0xff]
        %v2858 = vld [vmem:[#allocation2 + $0x10] sm:$0xff]
        %v2859 = vld [vmem:[#allocation2 + $0x18] sm:$0xff]
        %v2860 = vld [vmem:[#allocation2 + $0x20] sm:$0xff]
        %v2861 = vld [vmem:[#allocation2 + $0x28] sm:$0xff]
        %v2862 = vld [vmem:[#allocation2 + $0x30] sm:$0xff]
        %v2863 = vld [vmem:[#allocation2 + $0x38] sm:$0xff]
        %2864 = vmatprep.subr.bf16.mxu0 %v1321
        %2865 = vmatpush1.bf16.msra.mxu0 %v1320
        %2866 = vmatprep.subr.bf16.mxu0 %v1329
        %2867 = vmatpush1.bf16.msra.mxu0 %v1328
        %2868 = vmatprep.subr.bf16.mxu0 %v1337
        %2869 = vmatpush1.bf16.msra.mxu0 %v1336
        %2870 = vmatprep.subr.bf16.mxu0 %v1345
        %2871 = vmatpush1.bf16.msra.mxu0 %v1344
        %2872 = vmatprep.subr.bf16.mxu0 %v1353
        %2873 = vmatpush1.bf16.msra.mxu0 %v1352
        %2874 = vmatprep.subr.bf16.mxu0 %v1361
        %2875 = vmatpush1.bf16.msra.mxu0 %v1360
        %2876 = vmatprep.subr.bf16.mxu0 %v1369
        %2877 = vmatpush1.bf16.msra.mxu0 %v1368
        %2878 = vmatprep.subr.bf16.mxu0 %v1377
        %2879 = vmatpush1.bf16.msra.mxu0 %v1376
        %2880 = vmatprep.subr.bf16.mxu0 %v1385
        %2881 = vmatpush1.bf16.msra.mxu0 %v1384
        %2882 = vmatprep.subr.bf16.mxu0 %v1393
        %2883 = vmatpush1.bf16.msra.mxu0 %v1392
        %2884 = vmatprep.subr.bf16.mxu0 %v1401
        %2885 = vmatpush1.bf16.msra.mxu0 %v1400
        %2886 = vmatprep.subr.bf16.mxu0 %v1409
        %2887 = vmatpush1.bf16.msra.mxu0 %v1408
        %2888 = vmatprep.subr.bf16.mxu0 %v1417
        %2889 = vmatpush1.bf16.msra.mxu0 %v1416
        %2890 = vmatprep.subr.bf16.mxu0 %v1425
        %2891 = vmatpush1.bf16.msra.mxu0 %v1424
        %2892 = vmatprep.subr.bf16.mxu0 %v1433
        %2893 = vmatpush1.bf16.msra.mxu0 %v1432
        %2894 = vmatprep.subr.bf16.mxu0 %v1441
        %2895 = vmatpush1.bf16.msra.mxu0 %v1440
        %2896 = vmatprep.mubr.bf16.mxu0 %v529
        %2897 = vmatmul.mubr.bf16.gmra.mrb[0].mxu0 %v528
        %v2898 = vpop.f32.mrb[0].mxu0
        %v2899 = vadd.f32 0.0, %v2898
        %v2900 = vpop.f32.mrb[0].mxu0
        %v2901 = vadd.f32 0.0, %v2900
        %v2902 = vpop.f32.mrb[0].mxu0
        %v2903 = vpop.f32.mrb[0].mxu0
        %2904 = vdwg.mxu0
        %2905 = vmatprep.subr.bf16.mxu0 %v1449
        %2906 = vmatpush1.bf16.msra.mxu0 %v1448
        %2907 = vmatprep.subr.bf16.mxu0 %v1457
        %2908 = vmatpush1.bf16.msra.mxu0 %v1456
        %2909 = vmatprep.subr.bf16.mxu0 %v1465
        %2910 = vmatpush1.bf16.msra.mxu0 %v1464
        %2911 = vmatprep.subr.bf16.mxu0 %v1473
        %2912 = vmatpush1.bf16.msra.mxu0 %v1472
        %2913 = vmatprep.subr.bf16.mxu0 %v1481
        %2914 = vmatpush1.bf16.msra.mxu0 %v1480
        %2915 = vmatprep.subr.bf16.mxu0 %v1489
        %2916 = vmatpush1.bf16.msra.mxu0 %v1488
        %2917 = vmatprep.subr.bf16.mxu0 %v1497
        %2918 = vmatpush1.bf16.msra.mxu0 %v1496
        %2919 = vmatprep.subr.bf16.mxu0 %v1505
        %2920 = vmatpush1.bf16.msra.mxu0 %v1504
        %2921 = vmatprep.subr.bf16.mxu0 %v1513
        %2922 = vmatpush1.bf16.msra.mxu0 %v1512
        %2923 = vmatprep.subr.bf16.mxu0 %v1521
        %2924 = vmatpush1.bf16.msra.mxu0 %v1520
        %2925 = vmatprep.subr.bf16.mxu0 %v1529
        %2926 = vmatpush1.bf16.msra.mxu0 %v1528
        %2927 = vmatprep.subr.bf16.mxu0 %v1537
        %2928 = vmatpush1.bf16.msra.mxu0 %v1536
        %2929 = vmatprep.subr.bf16.mxu0 %v1545
        %2930 = vmatpush1.bf16.msra.mxu0 %v1544
        %2931 = vmatprep.subr.bf16.mxu0 %v1553
        %2932 = vmatpush1.bf16.msra.mxu0 %v1552
        %2933 = vmatprep.subr.bf16.mxu0 %v1561
        %2934 = vmatpush1.bf16.msra.mxu0 %v1560
        %2935 = vmatprep.subr.bf16.mxu0 %v1569
        %2936 = vmatpush1.bf16.msra.mxu0 %v1568
        %2937 = vmatprep.mubr.bf16.mxu0 %v531
        %2938 = vmatmul.mubr.bf16.gmra.mrb[0].mxu0 %v530
        %v2939 = vpop.f32.mrb[0].mxu0
        %v2940 = vadd.f32 %v2899, %v2939
        %v2941 = vpop.f32.mrb[0].mxu0
        %v2942 = vadd.f32 %v2901, %v2941
        %v2943 = vpop.f32.mrb[0].mxu0
        %v2944 = vpop.f32.mrb[0].mxu0
        %2945 = vdwg.mxu0
        %2946 = vmatprep.subr.bf16.mxu0 %v1577
        %2947 = vmatpush1.bf16.msra.mxu0 %v1576
        %2948 = vmatprep.subr.bf16.mxu0 %v1585
        %2949 = vmatpush1.bf16.msra.mxu0 %v1584
        %2950 = vmatprep.subr.bf16.mxu0 %v1593
        %2951 = vmatpush1.bf16.msra.mxu0 %v1592
        %2952 = vmatprep.subr.bf16.mxu0 %v1601
        %2953 = vmatpush1.bf16.msra.mxu0 %v1600
        %2954 = vmatprep.subr.bf16.mxu0 %v1609
        %2955 = vmatpush1.bf16.msra.mxu0 %v1608
        %2956 = vmatprep.subr.bf16.mxu0 %v1617
        %2957 = vmatpush1.bf16.msra.mxu0 %v1616
        %2958 = vmatprep.subr.bf16.mxu0 %v1625
        %2959 = vmatpush1.bf16.msra.mxu0 %v1624
        %2960 = vmatprep.subr.bf16.mxu0 %v1633
        %2961 = vmatpush1.bf16.msra.mxu0 %v1632
        %2962 = vmatprep.subr.bf16.mxu0 %v1641
        %2963 = vmatpush1.bf16.msra.mxu0 %v1640
        %2964 = vmatprep.subr.bf16.mxu0 %v1649
        %2965 = vmatpush1.bf16.msra.mxu0 %v1648
        %2966 = vmatprep.subr.bf16.mxu0 %v1657
        %2967 = vmatpush1.bf16.msra.mxu0 %v1656
        %2968 = vmatprep.subr.bf16.mxu0 %v1665
        %2969 = vmatpush1.bf16.msra.mxu0 %v1664
        %2970 = vmatprep.subr.bf16.mxu0 %v1673
        %2971 = vmatpush1.bf16.msra.mxu0 %v1672
        %2972 = vmatprep.subr.bf16.mxu0 %v1681
        %2973 = vmatpush1.bf16.msra.mxu0 %v1680
        %2974 = vmatprep.subr.bf16.mxu0 %v1689
        %2975 = vmatpush1.bf16.msra.mxu0 %v1688
        %2976 = vmatprep.subr.bf16.mxu0 %v1697
        %2977 = vmatpush1.bf16.msra.mxu0 %v1696
        %2978 = vmatprep.mubr.bf16.mxu0 %v533
        %2979 = vmatmul.mubr.bf16.gmra.mrb[0].mxu0 %v532
        %v2980 = vpop.f32.mrb[0].mxu0
        %v2981 = vadd.f32 %v2940, %v2980
        %v2982 = vpop.f32.mrb[0].mxu0
        %v2983 = vadd.f32 %v2942, %v2982
        %v2984 = vpop.f32.mrb[0].mxu0
        %v2985 = vpop.f32.mrb[0].mxu0
        %2986 = vdwg.mxu0
        %2987 = vmatprep.subr.bf16.mxu0 %v1705
        %2988 = vmatpush1.bf16.msra.mxu0 %v1704
        %2989 = vmatprep.subr.bf16.mxu0 %v1713
        %2990 = vmatpush1.bf16.msra.mxu0 %v1712
        %2991 = vmatprep.subr.bf16.mxu0 %v1721
        %2992 = vmatpush1.bf16.msra.mxu0 %v1720
        %2993 = vmatprep.subr.bf16.mxu0 %v1729
        %2994 = vmatpush1.bf16.msra.mxu0 %v1728
        %2995 = vmatprep.subr.bf16.mxu0 %v1737
        %2996 = vmatpush1.bf16.msra.mxu0 %v1736
        %2997 = vmatprep.subr.bf16.mxu0 %v1745
        %2998 = vmatpush1.bf16.msra.mxu0 %v1744
        %2999 = vmatprep.subr.bf16.mxu0 %v1753
        %3000 = vmatpush1.bf16.msra.mxu0 %v1752
        %3001 = vmatprep.subr.bf16.mxu0 %v1761
        %3002 = vmatpush1.bf16.msra.mxu0 %v1760
        %3003 = vmatprep.subr.bf16.mxu0 %v1769
        %3004 = vmatpush1.bf16.msra.mxu0 %v1768
        %3005 = vmatprep.subr.bf16.mxu0 %v1777
        %3006 = vmatpush1.bf16.msra.mxu0 %v1776
        %3007 = vmatprep.subr.bf16.mxu0 %v1785
        %3008 = vmatpush1.bf16.msra.mxu0 %v1784
        %3009 = vmatprep.subr.bf16.mxu0 %v1793
        %3010 = vmatpush1.bf16.msra.mxu0 %v1792
        %3011 = vmatprep.subr.bf16.mxu0 %v1801
        %3012 = vmatpush1.bf16.msra.mxu0 %v1800
        %3013 = vmatprep.subr.bf16.mxu0 %v1809
        %3014 = vmatpush1.bf16.msra.mxu0 %v1808
        %3015 = vmatprep.subr.bf16.mxu0 %v1817
        %3016 = vmatpush1.bf16.msra.mxu0 %v1816
        %3017 = vmatprep.subr.bf16.mxu0 %v1825
        %3018 = vmatpush1.bf16.msra.mxu0 %v1824
        %3019 = vmatprep.mubr.bf16.mxu0 %v535
        %3020 = vmatmul.mubr.bf16.gmra.mrb[0].mxu0 %v534
        %v3021 = vpop.f32.mrb[0].mxu0
        %v3022 = vadd.f32 %v2981, %v3021
        %v3023 = vpop.f32.mrb[0].mxu0
        %v3024 = vadd.f32 %v2983, %v3023
        %v3025 = vpop.f32.mrb[0].mxu0
        %v3026 = vpop.f32.mrb[0].mxu0
        %3027 = vdwg.mxu0
        %3028 = vmatprep.subr.bf16.mxu0 %v1833
        %3029 = vmatpush1.bf16.msra.mxu0 %v1832
        %3030 = vmatprep.subr.bf16.mxu0 %v1841
        %3031 = vmatpush1.bf16.msra.mxu0 %v1840
        %3032 = vmatprep.subr.bf16.mxu0 %v1849
        %3033 = vmatpush1.bf16.msra.mxu0 %v1848
        %3034 = vmatprep.subr.bf16.mxu0 %v1857
        %3035 = vmatpush1.bf16.msra.mxu0 %v1856
        %3036 = vmatprep.subr.bf16.mxu0 %v1865
        %3037 = vmatpush1.bf16.msra.mxu0 %v1864
        %3038 = vmatprep.subr.bf16.mxu0 %v1873
        %3039 = vmatpush1.bf16.msra.mxu0 %v1872
        %3040 = vmatprep.subr.bf16.mxu0 %v1881
        %3041 = vmatpush1.bf16.msra.mxu0 %v1880
        %3042 = vmatprep.subr.bf16.mxu0 %v1889
        %3043 = vmatpush1.bf16.msra.mxu0 %v1888
        %3044 = vmatprep.subr.bf16.mxu0 %v1897
        %3045 = vmatpush1.bf16.msra.mxu0 %v1896
        %3046 = vmatprep.subr.bf16.mxu0 %v1905
        %3047 = vmatpush1.bf16.msra.mxu0 %v1904
        %3048 = vmatprep.subr.bf16.mxu0 %v1913
        %3049 = vmatpush1.bf16.msra.mxu0 %v1912
        %3050 = vmatprep.subr.bf16.mxu0 %v1921
        %3051 = vmatpush1.bf16.msra.mxu0 %v1920
        %3052 = vmatprep.subr.bf16.mxu0 %v1929
        %3053 = vmatpush1.bf16.msra.mxu0 %v1928
        %3054 = vmatprep.subr.bf16.mxu0 %v1937
        %3055 = vmatpush1.bf16.msra.mxu0 %v1936
        %3056 = vmatprep.subr.bf16.mxu0 %v1945
        %3057 = vmatpush1.bf16.msra.mxu0 %v1944
        %3058 = vmatprep.subr.bf16.mxu0 %v1953
        %3059 = vmatpush1.bf16.msra.mxu0 %v1952
        %3060 = vmatprep.mubr.bf16.mxu0 %v537
        %3061 = vmatmul.mubr.bf16.gmra.mrb[0].mxu0 %v536
        %v3062 = vpop.f32.mrb[0].mxu0
        %v3063 = vadd.f32 %v3022, %v3062
        %v3064 = vpop.f32.mrb[0].mxu0
        %v3065 = vadd.f32 %v3024, %v3064
        %v3066 = vpop.f32.mrb[0].mxu0
        %v3067 = vpop.f32.mrb[0].mxu0
        %3068 = vdwg.mxu0
        %3069 = vmatprep.subr.bf16.mxu0 %v1961
        %3070 = vmatpush1.bf16.msra.mxu0 %v1960
        %3071 = vmatprep.subr.bf16.mxu0 %v1969
        %3072 = vmatpush1.bf16.msra.mxu0 %v1968
        %3073 = vmatprep.subr.bf16.mxu0 %v1977
        %3074 = vmatpush1.bf16.msra.mxu0 %v1976
        %3075 = vmatprep.subr.bf16.mxu0 %v1985
        %3076 = vmatpush1.bf16.msra.mxu0 %v1984
        %3077 = vmatprep.subr.bf16.mxu0 %v1993
        %3078 = vmatpush1.bf16.msra.mxu0 %v1992
        %3079 = vmatprep.subr.bf16.mxu0 %v2001
        %3080 = vmatpush1.bf16.msra.mxu0 %v2000
        %3081 = vmatprep.subr.bf16.mxu0 %v2009
        %3082 = vmatpush1.bf16.msra.mxu0 %v2008
        %3083 = vmatprep.subr.bf16.mxu0 %v2017
        %3084 = vmatpush1.bf16.msra.mxu0 %v2016
        %3085 = vmatprep.subr.bf16.mxu0 %v2025
        %3086 = vmatpush1.bf16.msra.mxu0 %v2024
        %3087 = vmatprep.subr.bf16.mxu0 %v2033
        %3088 = vmatpush1.bf16.msra.mxu0 %v2032
        %3089 = vmatprep.subr.bf16.mxu0 %v2041
        %3090 = vmatpush1.bf16.msra.mxu0 %v2040
        %3091 = vmatprep.subr.bf16.mxu0 %v2049
        %3092 = vmatpush1.bf16.msra.mxu0 %v2048
        %3093 = vmatprep.subr.bf16.mxu0 %v2057
        %3094 = vmatpush1.bf16.msra.mxu0 %v2056
        %3095 = vmatprep.subr.bf16.mxu0 %v2065
        %3096 = vmatpush1.bf16.msra.mxu0 %v2064
        %3097 = vmatprep.subr.bf16.mxu0 %v2073
        %3098 = vmatpush1.bf16.msra.mxu0 %v2072
        %3099 = vmatprep.subr.bf16.mxu0 %v2081
        %3100 = vmatpush1.bf16.msra.mxu0 %v2080
        %3101 = vmatprep.mubr.bf16.mxu0 %v539
        %3102 = vmatmul.mubr.bf16.gmra.mrb[0].mxu0 %v538
        %v3103 = vpop.f32.mrb[0].mxu0
        %v3104 = vadd.f32 %v3063, %v3103
        %v3105 = vpop.f32.mrb[0].mxu0
        %v3106 = vadd.f32 %v3065, %v3105
        %v3107 = vpop.f32.mrb[0].mxu0
        %v3108 = vpop.f32.mrb[0].mxu0
        %3109 = vdwg.mxu0
        %3110 = vmatprep.subr.bf16.mxu0 %v2089
        %3111 = vmatpush1.bf16.msra.mxu0 %v2088
        %3112 = vmatprep.subr.bf16.mxu0 %v2097
        %3113 = vmatpush1.bf16.msra.mxu0 %v2096
        %3114 = vmatprep.subr.bf16.mxu0 %v2105
        %3115 = vmatpush1.bf16.msra.mxu0 %v2104
        %3116 = vmatprep.subr.bf16.mxu0 %v2113
        %3117 = vmatpush1.bf16.msra.mxu0 %v2112
        %3118 = vmatprep.subr.bf16.mxu0 %v2121
        %3119 = vmatpush1.bf16.msra.mxu0 %v2120
        %3120 = vmatprep.subr.bf16.mxu0 %v2129
        %3121 = vmatpush1.bf16.msra.mxu0 %v2128
        %3122 = vmatprep.subr.bf16.mxu0 %v2137
        %3123 = vmatpush1.bf16.msra.mxu0 %v2136
        %3124 = vmatprep.subr.bf16.mxu0 %v2145
        %3125 = vmatpush1.bf16.msra.mxu0 %v2144
        %3126 = vmatprep.subr.bf16.mxu0 %v2153
        %3127 = vmatpush1.bf16.msra.mxu0 %v2152
        %3128 = vmatprep.subr.bf16.mxu0 %v2161
        %3129 = vmatpush1.bf16.msra.mxu0 %v2160
        %3130 = vmatprep.subr.bf16.mxu0 %v2169
        %3131 = vmatpush1.bf16.msra.mxu0 %v2168
        %3132 = vmatprep.subr.bf16.mxu0 %v2177
        %3133 = vmatpush1.bf16.msra.mxu0 %v2176
        %3134 = vmatprep.subr.bf16.mxu0 %v2185
        %3135 = vmatpush1.bf16.msra.mxu0 %v2184
        %3136 = vmatprep.subr.bf16.mxu0 %v2193
        %3137 = vmatpush1.bf16.msra.mxu0 %v2192
        %3138 = vmatprep.subr.bf16.mxu0 %v2201
        %3139 = vmatpush1.bf16.msra.mxu0 %v2200
        %3140 = vmatprep.subr.bf16.mxu0 %v2209
        %3141 = vmatpush1.bf16.msra.mxu0 %v2208
        %3142 = vmatprep.mubr.bf16.mxu0 %v541
        %3143 = vmatmul.mubr.bf16.gmra.mrb[0].mxu0 %v540
        %v3144 = vpop.f32.mrb[0].mxu0
        %v3145 = vadd.f32 %v3104, %v3144
        %v3146 = vpop.f32.mrb[0].mxu0
        %v3147 = vadd.f32 %v3106, %v3146
        %v3148 = vpop.f32.mrb[0].mxu0
        %v3149 = vpop.f32.mrb[0].mxu0
        %3150 = vdwg.mxu0
        %3151 = vmatprep.subr.bf16.mxu0 %v2217
        %3152 = vmatpush1.bf16.msra.mxu0 %v2216
        %3153 = vmatprep.subr.bf16.mxu0 %v2225
        %3154 = vmatpush1.bf16.msra.mxu0 %v2224
        %3155 = vmatprep.subr.bf16.mxu0 %v2233
        %3156 = vmatpush1.bf16.msra.mxu0 %v2232
        %3157 = vmatprep.subr.bf16.mxu0 %v2241
        %3158 = vmatpush1.bf16.msra.mxu0 %v2240
        %3159 = vmatprep.subr.bf16.mxu0 %v2249
        %3160 = vmatpush1.bf16.msra.mxu0 %v2248
        %3161 = vmatprep.subr.bf16.mxu0 %v2257
        %3162 = vmatpush1.bf16.msra.mxu0 %v2256
        %3163 = vmatprep.subr.bf16.mxu0 %v2265
        %3164 = vmatpush1.bf16.msra.mxu0 %v2264
        %3165 = vmatprep.subr.bf16.mxu0 %v2273
        %3166 = vmatpush1.bf16.msra.mxu0 %v2272
        %3167 = vmatprep.subr.bf16.mxu0 %v2281
        %3168 = vmatpush1.bf16.msra.mxu0 %v2280
        %3169 = vmatprep.subr.bf16.mxu0 %v2289
        %3170 = vmatpush1.bf16.msra.mxu0 %v2288
        %3171 = vmatprep.subr.bf16.mxu0 %v2297
        %3172 = vmatpush1.bf16.msra.mxu0 %v2296
        %3173 = vmatprep.subr.bf16.mxu0 %v2305
        %3174 = vmatpush1.bf16.msra.mxu0 %v2304
        %3175 = vmatprep.subr.bf16.mxu0 %v2313
        %3176 = vmatpush1.bf16.msra.mxu0 %v2312
        %3177 = vmatprep.subr.bf16.mxu0 %v2321
        %3178 = vmatpush1.bf16.msra.mxu0 %v2320
        %3179 = vmatprep.subr.bf16.mxu0 %v2329
        %3180 = vmatpush1.bf16.msra.mxu0 %v2328
        %3181 = vmatprep.subr.bf16.mxu0 %v2337
        %3182 = vmatpush1.bf16.msra.mxu0 %v2336
        %3183 = vmatprep.mubr.bf16.mxu0 %v543
        %3184 = vmatmul.mubr.bf16.gmra.mrb[0].mxu0 %v542
        %v3185 = vpop.f32.mrb[0].mxu0
        %v3186 = vadd.f32 %v3145, %v3185
        %v3187 = vpop.f32.mrb[0].mxu0
        %v3188 = vadd.f32 %v3147, %v3187
        %v3189 = vpop.f32.mrb[0].mxu0
        %v3190 = vpop.f32.mrb[0].mxu0
        %3191 = vdwg.mxu0
        %3192 = vmatprep.subr.bf16.mxu0 %v2345
        %3193 = vmatpush1.bf16.msra.mxu0 %v2344
        %3194 = vmatprep.subr.bf16.mxu0 %v2353
        %3195 = vmatpush1.bf16.msra.mxu0 %v2352
        %3196 = vmatprep.subr.bf16.mxu0 %v2361
        %3197 = vmatpush1.bf16.msra.mxu0 %v2360
        %3198 = vmatprep.subr.bf16.mxu0 %v2369
        %3199 = vmatpush1.bf16.msra.mxu0 %v2368
        %3200 = vmatprep.subr.bf16.mxu0 %v2377
        %3201 = vmatpush1.bf16.msra.mxu0 %v2376
        %3202 = vmatprep.subr.bf16.mxu0 %v2385
        %3203 = vmatpush1.bf16.msra.mxu0 %v2384
        %3204 = vmatprep.subr.bf16.mxu0 %v2393
        %3205 = vmatpush1.bf16.msra.mxu0 %v2392
        %3206 = vmatprep.subr.bf16.mxu0 %v2401
        %3207 = vmatpush1.bf16.msra.mxu0 %v2400
        %3208 = vmatprep.subr.bf16.mxu0 %v2409
        %3209 = vmatpush1.bf16.msra.mxu0 %v2408
        %3210 = vmatprep.subr.bf16.mxu0 %v2417
        %3211 = vmatpush1.bf16.msra.mxu0 %v2416
        %3212 = vmatprep.subr.bf16.mxu0 %v2425
        %3213 = vmatpush1.bf16.msra.mxu0 %v2424
        %3214 = vmatprep.subr.bf16.mxu0 %v2433
        %3215 = vmatpush1.bf16.msra.mxu0 %v2432
        %3216 = vmatprep.subr.bf16.mxu0 %v2441
        %3217 = vmatpush1.bf16.msra.mxu0 %v2440
        %3218 = vmatprep.subr.bf16.mxu0 %v2449
        %3219 = vmatpush1.bf16.msra.mxu0 %v2448
        %3220 = vmatprep.subr.bf16.mxu0 %v2457
        %3221 = vmatpush1.bf16.msra.mxu0 %v2456
        %3222 = vmatprep.subr.bf16.mxu0 %v2465
        %3223 = vmatpush1.bf16.msra.mxu0 %v2464
        %3224 = vmatprep.mubr.bf16.mxu0 %v545
        %3225 = vmatmul.mubr.bf16.gmra.mrb[0].mxu0 %v544
        %v3226 = vpop.f32.mrb[0].mxu0
        %v3227 = vadd.f32 %v3186, %v3226
        %v3228 = vpop.f32.mrb[0].mxu0
        %v3229 = vadd.f32 %v3188, %v3228
        %v3230 = vpop.f32.mrb[0].mxu0
        %v3231 = vpop.f32.mrb[0].mxu0
        %3232 = vdwg.mxu0
        %3233 = vmatprep.subr.bf16.mxu0 %v2473
        %3234 = vmatpush1.bf16.msra.mxu0 %v2472
        %3235 = vmatprep.subr.bf16.mxu0 %v2481
        %3236 = vmatpush1.bf16.msra.mxu0 %v2480
        %3237 = vmatprep.subr.bf16.mxu0 %v2489
        %3238 = vmatpush1.bf16.msra.mxu0 %v2488
        %3239 = vmatprep.subr.bf16.mxu0 %v2497
        %3240 = vmatpush1.bf16.msra.mxu0 %v2496
        %3241 = vmatprep.subr.bf16.mxu0 %v2505
        %3242 = vmatpush1.bf16.msra.mxu0 %v2504
        %3243 = vmatprep.subr.bf16.mxu0 %v2513
        %3244 = vmatpush1.bf16.msra.mxu0 %v2512
        %3245 = vmatprep.subr.bf16.mxu0 %v2521
        %3246 = vmatpush1.bf16.msra.mxu0 %v2520
        %3247 = vmatprep.subr.bf16.mxu0 %v2529
        %3248 = vmatpush1.bf16.msra.mxu0 %v2528
        %3249 = vmatprep.subr.bf16.mxu0 %v2537
        %3250 = vmatpush1.bf16.msra.mxu0 %v2536
        %3251 = vmatprep.subr.bf16.mxu0 %v2545
        %3252 = vmatpush1.bf16.msra.mxu0 %v2544
        %3253 = vmatprep.subr.bf16.mxu0 %v2553
        %3254 = vmatpush1.bf16.msra.mxu0 %v2552
        %3255 = vmatprep.subr.bf16.mxu0 %v2561
        %3256 = vmatpush1.bf16.msra.mxu0 %v2560
        %3257 = vmatprep.subr.bf16.mxu0 %v2569
        %3258 = vmatpush1.bf16.msra.mxu0 %v2568
        %3259 = vmatprep.subr.bf16.mxu0 %v2577
        %3260 = vmatpush1.bf16.msra.mxu0 %v2576
        %3261 = vmatprep.subr.bf16.mxu0 %v2585
        %3262 = vmatpush1.bf16.msra.mxu0 %v2584
        %3263 = vmatprep.subr.bf16.mxu0 %v2593
        %3264 = vmatpush1.bf16.msra.mxu0 %v2592
        %3265 = vmatprep.mubr.bf16.mxu0 %v547
        %3266 = vmatmul.mubr.bf16.gmra.mrb[0].mxu0 %v546
        %v3267 = vpop.f32.mrb[0].mxu0
        %v3268 = vadd.f32 %v3227, %v3267
        %v3269 = vpop.f32.mrb[0].mxu0
        %v3270 = vadd.f32 %v3229, %v3269
        %v3271 = vpop.f32.mrb[0].mxu0
        %v3272 = vpop.f32.mrb[0].mxu0
        %3273 = vdwg.mxu0
        %3274 = vmatprep.subr.bf16.mxu0 %v2601
        %3275 = vmatpush1.bf16.msra.mxu0 %v2600
        %3276 = vmatprep.subr.bf16.mxu0 %v2609
        %3277 = vmatpush1.bf16.msra.mxu0 %v2608
        %3278 = vmatprep.subr.bf16.mxu0 %v2617
        %3279 = vmatpush1.bf16.msra.mxu0 %v2616
        %3280 = vmatprep.subr.bf16.mxu0 %v2625
        %3281 = vmatpush1.bf16.msra.mxu0 %v2624
        %3282 = vmatprep.subr.bf16.mxu0 %v2633
        %3283 = vmatpush1.bf16.msra.mxu0 %v2632
        %3284 = vmatprep.subr.bf16.mxu0 %v2641
        %3285 = vmatpush1.bf16.msra.mxu0 %v2640
        %3286 = vmatprep.subr.bf16.mxu0 %v2649
        %3287 = vmatpush1.bf16.msra.mxu0 %v2648
        %3288 = vmatprep.subr.bf16.mxu0 %v2657
        %3289 = vmatpush1.bf16.msra.mxu0 %v2656
        %3290 = vmatprep.subr.bf16.mxu0 %v2665
        %3291 = vmatpush1.bf16.msra.mxu0 %v2664
        %3292 = vmatprep.subr.bf16.mxu0 %v2673
        %3293 = vmatpush1.bf16.msra.mxu0 %v2672
        %3294 = vmatprep.subr.bf16.mxu0 %v2681
        %3295 = vmatpush1.bf16.msra.mxu0 %v2680
        %3296 = vmatprep.subr.bf16.mxu0 %v2689
        %3297 = vmatpush1.bf16.msra.mxu0 %v2688
        %3298 = vmatprep.subr.bf16.mxu0 %v2697
        %3299 = vmatpush1.bf16.msra.mxu0 %v2696
        %3300 = vmatprep.subr.bf16.mxu0 %v2705
        %3301 = vmatpush1.bf16.msra.mxu0 %v2704
        %3302 = vmatprep.subr.bf16.mxu0 %v2713
        %3303 = vmatpush1.bf16.msra.mxu0 %v2712
        %3304 = vmatprep.subr.bf16.mxu0 %v2721
        %3305 = vmatpush1.bf16.msra.mxu0 %v2720
        %3306 = vmatprep.mubr.bf16.mxu0 %v549
        %3307 = vmatmul.mubr.bf16.gmra.mrb[0].mxu0 %v548
        %v3308 = vpop.f32.mrb[0].mxu0
        %v3309 = vadd.f32 %v3268, %v3308
        %v3310 = vpop.f32.mrb[0].mxu0
        %v3311 = vadd.f32 %v3270, %v3310
        %v3312 = vpop.f32.mrb[0].mxu0
        %v3313 = vpop.f32.mrb[0].mxu0
        %3314 = vdwg.mxu0
        %3315 = vmatprep.subr.bf16.mxu0 %v2729
        %3316 = vmatpush1.bf16.msra.mxu0 %v2728
        %3317 = vmatprep.subr.bf16.mxu0 %v2737
        %3318 = vmatpush1.bf16.msra.mxu0 %v2736
        %3319 = vmatprep.subr.bf16.mxu0 %v2745
        %3320 = vmatpush1.bf16.msra.mxu0 %v2744
        %3321 = vmatprep.subr.bf16.mxu0 %v2753
        %3322 = vmatpush1.bf16.msra.mxu0 %v2752
        %3323 = vmatprep.subr.bf16.mxu0 %v2761
        %3324 = vmatpush1.bf16.msra.mxu0 %v2760
        %3325 = vmatprep.subr.bf16.mxu0 %v2769
        %3326 = vmatpush1.bf16.msra.mxu0 %v2768
        %3327 = vmatprep.subr.bf16.mxu0 %v2777
        %3328 = vmatpush1.bf16.msra.mxu0 %v2776
        %3329 = vmatprep.subr.bf16.mxu0 %v2785
        %3330 = vmatpush1.bf16.msra.mxu0 %v2784
        %3331 = vmatprep.subr.bf16.mxu0 %v2793
        %3332 = vmatpush1.bf16.msra.mxu0 %v2792
        %3333 = vmatprep.subr.bf16.mxu0 %v2801
        %3334 = vmatpush1.bf16.msra.mxu0 %v2800
        %3335 = vmatprep.subr.bf16.mxu0 %v2809
        %3336 = vmatpush1.bf16.msra.mxu0 %v2808
        %3337 = vmatprep.subr.bf16.mxu0 %v2817
        %3338 = vmatpush1.bf16.msra.mxu0 %v2816
        %3339 = vmatprep.subr.bf16.mxu0 %v2825
        %3340 = vmatpush1.bf16.msra.mxu0 %v2824
        %3341 = vmatprep.subr.bf16.mxu0 %v2833
        %3342 = vmatpush1.bf16.msra.mxu0 %v2832
        %3343 = vmatprep.subr.bf16.mxu0 %v2841
        %3344 = vmatpush1.bf16.msra.mxu0 %v2840
        %3345 = vmatprep.subr.bf16.mxu0 %v2849
        %3346 = vmatpush1.bf16.msra.mxu0 %v2848
        %3347 = vmatprep.mubr.bf16.mxu0 %v551
        %3348 = vmatmul.mubr.bf16.gmra.mrb[0].mxu0 %v550
        %v3349 = vpop.f32.mrb[0].mxu0
        %v3350 = vadd.f32 %v3309, %v3349
        %v3351 = vpop.f32.mrb[0].mxu0
        %v3352 = vadd.f32 %v3311, %v3351
        %v3353 = vpop.f32.mrb[0].mxu0
        %v3354 = vpop.f32.mrb[0].mxu0
        %3355 = vdwg.mxu0
        %3356 = vmatprep.subr.bf16.mxu0 %v1323
        %3357 = vmatpush1.bf16.msra.mxu0 %v1322
        %3358 = vmatprep.subr.bf16.mxu0 %v1331
        %3359 = vmatpush1.bf16.msra.mxu0 %v1330
        %3360 = vmatprep.subr.bf16.mxu0 %v1339
        %3361 = vmatpush1.bf16.msra.mxu0 %v1338
        %3362 = vmatprep.subr.bf16.mxu0 %v1347
        %3363 = vmatpush1.bf16.msra.mxu0 %v1346
        %3364 = vmatprep.subr.bf16.mxu0 %v1355
        %3365 = vmatpush1.bf16.msra.mxu0 %v1354
        %3366 = vmatprep.subr.bf16.mxu0 %v1363
        %3367 = vmatpush1.bf16.msra.mxu0 %v1362
        %3368 = vmatprep.subr.bf16.mxu0 %v1371
        %3369 = vmatpush1.bf16.msra.mxu0 %v1370
        %3370 = vmatprep.subr.bf16.mxu0 %v1379
        %3371 = vmatpush1.bf16.msra.mxu0 %v1378
        %3372 = vmatprep.subr.bf16.mxu0 %v1387
        %3373 = vmatpush1.bf16.msra.mxu0 %v1386
        %3374 = vmatprep.subr.bf16.mxu0 %v1395
        %3375 = vmatpush1.bf16.msra.mxu0 %v1394
        %3376 = vmatprep.subr.bf16.mxu0 %v1403
        %3377 = vmatpush1.bf16.msra.mxu0 %v1402
        %3378 = vmatprep.subr.bf16.mxu0 %v1411
        %3379 = vmatpush1.bf16.msra.mxu0 %v1410
        %3380 = vmatprep.subr.bf16.mxu0 %v1419
        %3381 = vmatpush1.bf16.msra.mxu0 %v1418
        %3382 = vmatprep.subr.bf16.mxu0 %v1427
        %3383 = vmatpush1.bf16.msra.mxu0 %v1426
        %3384 = vmatprep.subr.bf16.mxu0 %v1435
        %3385 = vmatpush1.bf16.msra.mxu0 %v1434
        %3386 = vmatprep.subr.bf16.mxu0 %v1443
        %3387 = vmatpush1.bf16.msra.mxu0 %v1442
        %3388 = vmatprep.mubr.bf16.mxu0 %v529
        %3389 = vmatmul.mubr.bf16.gmra.mrb[0].mxu0 %v528
        %v3390 = vpop.f32.mrb[0].mxu0
        %v3391 = vadd.f32 0.0, %v3390
        %v3392 = vpop.f32.mrb[0].mxu0
        %v3393 = vadd.f32 0.0, %v3392
        %v3394 = vpop.f32.mrb[0].mxu0
        %v3395 = vpop.f32.mrb[0].mxu0
        %3396 = vdwg.mxu0
        %3397 = vmatprep.subr.bf16.mxu0 %v1451
        %3398 = vmatpush1.bf16.msra.mxu0 %v1450
        %3399 = vmatprep.subr.bf16.mxu0 %v1459
        %3400 = vmatpush1.bf16.msra.mxu0 %v1458
        %3401 = vmatprep.subr.bf16.mxu0 %v1467
        %3402 = vmatpush1.bf16.msra.mxu0 %v1466
        %3403 = vmatprep.subr.bf16.mxu0 %v1475
        %3404 = vmatpush1.bf16.msra.mxu0 %v1474
        %3405 = vmatprep.subr.bf16.mxu0 %v1483
        %3406 = vmatpush1.bf16.msra.mxu0 %v1482
        %3407 = vmatprep.subr.bf16.mxu0 %v1491
        %3408 = vmatpush1.bf16.msra.mxu0 %v1490
        %3409 = vmatprep.subr.bf16.mxu0 %v1499
        %3410 = vmatpush1.bf16.msra.mxu0 %v1498
        %3411 = vmatprep.subr.bf16.mxu0 %v1507
        %3412 = vmatpush1.bf16.msra.mxu0 %v1506
        %3413 = vmatprep.subr.bf16.mxu0 %v1515
        %3414 = vmatpush1.bf16.msra.mxu0 %v1514
        %3415 = vmatprep.subr.bf16.mxu0 %v1523
        %3416 = vmatpush1.bf16.msra.mxu0 %v1522
        %3417 = vmatprep.subr.bf16.mxu0 %v1531
        %3418 = vmatpush1.bf16.msra.mxu0 %v1530
        %3419 = vmatprep.subr.bf16.mxu0 %v1539
        %3420 = vmatpush1.bf16.msra.mxu0 %v1538
        %3421 = vmatprep.subr.bf16.mxu0 %v1547
        %3422 = vmatpush1.bf16.msra.mxu0 %v1546
        %3423 = vmatprep.subr.bf16.mxu0 %v1555
        %3424 = vmatpush1.bf16.msra.mxu0 %v1554
        %3425 = vmatprep.subr.bf16.mxu0 %v1563
        %3426 = vmatpush1.bf16.msra.mxu0 %v1562
        %3427 = vmatprep.subr.bf16.mxu0 %v1571
        %3428 = vmatpush1.bf16.msra.mxu0 %v1570
        %3429 = vmatprep.mubr.bf16.mxu0 %v531
        %3430 = vmatmul.mubr.bf16.gmra.mrb[0].mxu0 %v530
        %v3431 = vpop.f32.mrb[0].mxu0
        %v3432 = vadd.f32 %v3391, %v3431
        %v3433 = vpop.f32.mrb[0].mxu0
        %v3434 = vadd.f32 %v3393, %v3433
        %v3435 = vpop.f32.mrb[0].mxu0
        %v3436 = vpop.f32.mrb[0].mxu0
        %3437 = vdwg.mxu0
        %3438 = vmatprep.subr.bf16.mxu0 %v1579
        %3439 = vmatpush1.bf16.msra.mxu0 %v1578
        %3440 = vmatprep.subr.bf16.mxu0 %v1587
        %3441 = vmatpush1.bf16.msra.mxu0 %v1586
        %3442 = vmatprep.subr.bf16.mxu0 %v1595
        %3443 = vmatpush1.bf16.msra.mxu0 %v1594
        %3444 = vmatprep.subr.bf16.mxu0 %v1603
        %3445 = vmatpush1.bf16.msra.mxu0 %v1602
        %3446 = vmatprep.subr.bf16.mxu0 %v1611
        %3447 = vmatpush1.bf16.msra.mxu0 %v1610
        %3448 = vmatprep.subr.bf16.mxu0 %v1619
        %3449 = vmatpush1.bf16.msra.mxu0 %v1618
        %3450 = vmatprep.subr.bf16.mxu0 %v1627
        %3451 = vmatpush1.bf16.msra.mxu0 %v1626
        %3452 = vmatprep.subr.bf16.mxu0 %v1635
        %3453 = vmatpush1.bf16.msra.mxu0 %v1634
        %3454 = vmatprep.subr.bf16.mxu0 %v1643
        %3455 = vmatpush1.bf16.msra.mxu0 %v1642
        %3456 = vmatprep.subr.bf16.mxu0 %v1651
        %3457 = vmatpush1.bf16.msra.mxu0 %v1650
        %3458 = vmatprep.subr.bf16.mxu0 %v1659
        %3459 = vmatpush1.bf16.msra.mxu0 %v1658
        %3460 = vmatprep.subr.bf16.mxu0 %v1667
        %3461 = vmatpush1.bf16.msra.mxu0 %v1666
        %3462 = vmatprep.subr.bf16.mxu0 %v1675
        %3463 = vmatpush1.bf16.msra.mxu0 %v1674
        %3464 = vmatprep.subr.bf16.mxu0 %v1683
        %3465 = vmatpush1.bf16.msra.mxu0 %v1682
        %3466 = vmatprep.subr.bf16.mxu0 %v1691
        %3467 = vmatpush1.bf16.msra.mxu0 %v1690
        %3468 = vmatprep.subr.bf16.mxu0 %v1699
        %3469 = vmatpush1.bf16.msra.mxu0 %v1698
        %3470 = vmatprep.mubr.bf16.mxu0 %v533
        %3471 = vmatmul.mubr.bf16.gmra.mrb[0].mxu0 %v532
        %v3472 = vpop.f32.mrb[0].mxu0
        %v3473 = vadd.f32 %v3432, %v3472
        %v3474 = vpop.f32.mrb[0].mxu0
        %v3475 = vadd.f32 %v3434, %v3474
        %v3476 = vpop.f32.mrb[0].mxu0
        %v3477 = vpop.f32.mrb[0].mxu0
        %3478 = vdwg.mxu0
        %3479 = vmatprep.subr.bf16.mxu0 %v1707
        %3480 = vmatpush1.bf16.msra.mxu0 %v1706
        %3481 = vmatprep.subr.bf16.mxu0 %v1715
        %3482 = vmatpush1.bf16.msra.mxu0 %v1714
        %3483 = vmatprep.subr.bf16.mxu0 %v1723
        %3484 = vmatpush1.bf16.msra.mxu0 %v1722
        %3485 = vmatprep.subr.bf16.mxu0 %v1731
        %3486 = vmatpush1.bf16.msra.mxu0 %v1730
        %3487 = vmatprep.subr.bf16.mxu0 %v1739
        %3488 = vmatpush1.bf16.msra.mxu0 %v1738
        %3489 = vmatprep.subr.bf16.mxu0 %v1747
        %3490 = vmatpush1.bf16.msra.mxu0 %v1746
        %3491 = vmatprep.subr.bf16.mxu0 %v1755
        %3492 = vmatpush1.bf16.msra.mxu0 %v1754
        %3493 = vmatprep.subr.bf16.mxu0 %v1763
        %3494 = vmatpush1.bf16.msra.mxu0 %v1762
        %3495 = vmatprep.subr.bf16.mxu0 %v1771
        %3496 = vmatpush1.bf16.msra.mxu0 %v1770
        %3497 = vmatprep.subr.bf16.mxu0 %v1779
        %3498 = vmatpush1.bf16.msra.mxu0 %v1778
        %3499 = vmatprep.subr.bf16.mxu0 %v1787
        %3500 = vmatpush1.bf16.msra.mxu0 %v1786
        %3501 = vmatprep.subr.bf16.mxu0 %v1795
        %3502 = vmatpush1.bf16.msra.mxu0 %v1794
        %3503 = vmatprep.subr.bf16.mxu0 %v1803
        %3504 = vmatpush1.bf16.msra.mxu0 %v1802
        %3505 = vmatprep.subr.bf16.mxu0 %v1811
        %3506 = vmatpush1.bf16.msra.mxu0 %v1810
        %3507 = vmatprep.subr.bf16.mxu0 %v1819
        %3508 = vmatpush1.bf16.msra.mxu0 %v1818
        %3509 = vmatprep.subr.bf16.mxu0 %v1827
        %3510 = vmatpush1.bf16.msra.mxu0 %v1826
        %3511 = vmatprep.mubr.bf16.mxu0 %v535
        %3512 = vmatmul.mubr.bf16.gmra.mrb[0].mxu0 %v534
        %v3513 = vpop.f32.mrb[0].mxu0
        %v3514 = vadd.f32 %v3473, %v3513
        %v3515 = vpop.f32.mrb[0].mxu0
        %v3516 = vadd.f32 %v3475, %v3515
        %v3517 = vpop.f32.mrb[0].mxu0
        %v3518 = vpop.f32.mrb[0].mxu0
        %3519 = vdwg.mxu0
        %3520 = vmatprep.subr.bf16.mxu0 %v1835
        %3521 = vmatpush1.bf16.msra.mxu0 %v1834
        %3522 = vmatprep.subr.bf16.mxu0 %v1843
        %3523 = vmatpush1.bf16.msra.mxu0 %v1842
        %3524 = vmatprep.subr.bf16.mxu0 %v1851
        %3525 = vmatpush1.bf16.msra.mxu0 %v1850
        %3526 = vmatprep.subr.bf16.mxu0 %v1859
        %3527 = vmatpush1.bf16.msra.mxu0 %v1858
        %3528 = vmatprep.subr.bf16.mxu0 %v1867
        %3529 = vmatpush1.bf16.msra.mxu0 %v1866
        %3530 = vmatprep.subr.bf16.mxu0 %v1875
        %3531 = vmatpush1.bf16.msra.mxu0 %v1874
        %3532 = vmatprep.subr.bf16.mxu0 %v1883
        %3533 = vmatpush1.bf16.msra.mxu0 %v1882
        %3534 = vmatprep.subr.bf16.mxu0 %v1891
        %3535 = vmatpush1.bf16.msra.mxu0 %v1890
        %3536 = vmatprep.subr.bf16.mxu0 %v1899
        %3537 = vmatpush1.bf16.msra.mxu0 %v1898
        %3538 = vmatprep.subr.bf16.mxu0 %v1907
        %3539 = vmatpush1.bf16.msra.mxu0 %v1906
        %3540 = vmatprep.subr.bf16.mxu0 %v1915
        %3541 = vmatpush1.bf16.msra.mxu0 %v1914
        %3542 = vmatprep.subr.bf16.mxu0 %v1923
        %3543 = vmatpush1.bf16.msra.mxu0 %v1922
        %3544 = vmatprep.subr.bf16.mxu0 %v1931
        %3545 = vmatpush1.bf16.msra.mxu0 %v1930
        %3546 = vmatprep.subr.bf16.mxu0 %v1939
        %3547 = vmatpush1.bf16.msra.mxu0 %v1938
        %3548 = vmatprep.subr.bf16.mxu0 %v1947
        %3549 = vmatpush1.bf16.msra.mxu0 %v1946
        %3550 = vmatprep.subr.bf16.mxu0 %v1955
        %3551 = vmatpush1.bf16.msra.mxu0 %v1954
        %3552 = vmatprep.mubr.bf16.mxu0 %v537
        %3553 = vmatmul.mubr.bf16.gmra.mrb[0].mxu0 %v536
        %v3554 = vpop.f32.mrb[0].mxu0
        %v3555 = vadd.f32 %v3514, %v3554
        %v3556 = vpop.f32.mrb[0].mxu0
        %v3557 = vadd.f32 %v3516, %v3556
        %v3558 = vpop.f32.mrb[0].mxu0
        %v3559 = vpop.f32.mrb[0].mxu0
        %3560 = vdwg.mxu0
        %3561 = vmatprep.subr.bf16.mxu0 %v1963
        %3562 = vmatpush1.bf16.msra.mxu0 %v1962
        %3563 = vmatprep.subr.bf16.mxu0 %v1971
        %3564 = vmatpush1.bf16.msra.mxu0 %v1970
        %3565 = vmatprep.subr.bf16.mxu0 %v1979
        %3566 = vmatpush1.bf16.msra.mxu0 %v1978
        %3567 = vmatprep.subr.bf16.mxu0 %v1987
        %3568 = vmatpush1.bf16.msra.mxu0 %v1986
        %3569 = vmatprep.subr.bf16.mxu0 %v1995
        %3570 = vmatpush1.bf16.msra.mxu0 %v1994
        %3571 = vmatprep.subr.bf16.mxu0 %v2003
        %3572 = vmatpush1.bf16.msra.mxu0 %v2002
        %3573 = vmatprep.subr.bf16.mxu0 %v2011
        %3574 = vmatpush1.bf16.msra.mxu0 %v2010
        %3575 = vmatprep.subr.bf16.mxu0 %v2019
        %3576 = vmatpush1.bf16.msra.mxu0 %v2018
        %3577 = vmatprep.subr.bf16.mxu0 %v2027
        %3578 = vmatpush1.bf16.msra.mxu0 %v2026
        %3579 = vmatprep.subr.bf16.mxu0 %v2035
        %3580 = vmatpush1.bf16.msra.mxu0 %v2034
        %3581 = vmatprep.subr.bf16.mxu0 %v2043
        %3582 = vmatpush1.bf16.msra.mxu0 %v2042
        %3583 = vmatprep.subr.bf16.mxu0 %v2051
        %3584 = vmatpush1.bf16.msra.mxu0 %v2050
        %3585 = vmatprep.subr.bf16.mxu0 %v2059
        %3586 = vmatpush1.bf16.msra.mxu0 %v2058
        %3587 = vmatprep.subr.bf16.mxu0 %v2067
        %3588 = vmatpush1.bf16.msra.mxu0 %v2066
        %3589 = vmatprep.subr.bf16.mxu0 %v2075
        %3590 = vmatpush1.bf16.msra.mxu0 %v2074
        %3591 = vmatprep.subr.bf16.mxu0 %v2083
        %3592 = vmatpush1.bf16.msra.mxu0 %v2082
        %3593 = vmatprep.mubr.bf16.mxu0 %v539
        %3594 = vmatmul.mubr.bf16.gmra.mrb[0].mxu0 %v538
        %v3595 = vpop.f32.mrb[0].mxu0
        %v3596 = vadd.f32 %v3555, %v3595
        %v3597 = vpop.f32.mrb[0].mxu0
        %v3598 = vadd.f32 %v3557, %v3597
        %v3599 = vpop.f32.mrb[0].mxu0
        %v3600 = vpop.f32.mrb[0].mxu0
        %3601 = vdwg.mxu0
        %3602 = vmatprep.subr.bf16.mxu0 %v2091
        %3603 = vmatpush1.bf16.msra.mxu0 %v2090
        %3604 = vmatprep.subr.bf16.mxu0 %v2099
        %3605 = vmatpush1.bf16.msra.mxu0 %v2098
        %3606 = vmatprep.subr.bf16.mxu0 %v2107
        %3607 = vmatpush1.bf16.msra.mxu0 %v2106
        %3608 = vmatprep.subr.bf16.mxu0 %v2115
        %3609 = vmatpush1.bf16.msra.mxu0 %v2114
        %3610 = vmatprep.subr.bf16.mxu0 %v2123
        %3611 = vmatpush1.bf16.msra.mxu0 %v2122
        %3612 = vmatprep.subr.bf16.mxu0 %v2131
        %3613 = vmatpush1.bf16.msra.mxu0 %v2130
        %3614 = vmatprep.subr.bf16.mxu0 %v2139
        %3615 = vmatpush1.bf16.msra.mxu0 %v2138
        %3616 = vmatprep.subr.bf16.mxu0 %v2147
        %3617 = vmatpush1.bf16.msra.mxu0 %v2146
        %3618 = vmatprep.subr.bf16.mxu0 %v2155
        %3619 = vmatpush1.bf16.msra.mxu0 %v2154
        %3620 = vmatprep.subr.bf16.mxu0 %v2163
        %3621 = vmatpush1.bf16.msra.mxu0 %v2162
        %3622 = vmatprep.subr.bf16.mxu0 %v2171
        %3623 = vmatpush1.bf16.msra.mxu0 %v2170
        %3624 = vmatprep.subr.bf16.mxu0 %v2179
        %3625 = vmatpush1.bf16.msra.mxu0 %v2178
        %3626 = vmatprep.subr.bf16.mxu0 %v2187
        %3627 = vmatpush1.bf16.msra.mxu0 %v2186
        %3628 = vmatprep.subr.bf16.mxu0 %v2195
        %3629 = vmatpush1.bf16.msra.mxu0 %v2194
        %3630 = vmatprep.subr.bf16.mxu0 %v2203
        %3631 = vmatpush1.bf16.msra.mxu0 %v2202
        %3632 = vmatprep.subr.bf16.mxu0 %v2211
        %3633 = vmatpush1.bf16.msra.mxu0 %v2210
        %3634 = vmatprep.mubr.bf16.mxu0 %v541
        %3635 = vmatmul.mubr.bf16.gmra.mrb[0].mxu0 %v540
        %v3636 = vpop.f32.mrb[0].mxu0
        %v3637 = vadd.f32 %v3596, %v3636
        %v3638 = vpop.f32.mrb[0].mxu0
        %v3639 = vadd.f32 %v3598, %v3638
        %v3640 = vpop.f32.mrb[0].mxu0
        %v3641 = vpop.f32.mrb[0].mxu0
        %3642 = vdwg.mxu0
        %3643 = vmatprep.subr.bf16.mxu0 %v2219
        %3644 = vmatpush1.bf16.msra.mxu0 %v2218
        %3645 = vmatprep.subr.bf16.mxu0 %v2227
        %3646 = vmatpush1.bf16.msra.mxu0 %v2226
        %3647 = vmatprep.subr.bf16.mxu0 %v2235
        %3648 = vmatpush1.bf16.msra.mxu0 %v2234
        %3649 = vmatprep.subr.bf16.mxu0 %v2243
        %3650 = vmatpush1.bf16.msra.mxu0 %v2242
        %3651 = vmatprep.subr.bf16.mxu0 %v2251
        %3652 = vmatpush1.bf16.msra.mxu0 %v2250
        %3653 = vmatprep.subr.bf16.mxu0 %v2259
        %3654 = vmatpush1.bf16.msra.mxu0 %v2258
        %3655 = vmatprep.subr.bf16.mxu0 %v2267
        %3656 = vmatpush1.bf16.msra.mxu0 %v2266
        %3657 = vmatprep.subr.bf16.mxu0 %v2275
        %3658 = vmatpush1.bf16.msra.mxu0 %v2274
        %3659 = vmatprep.subr.bf16.mxu0 %v2283
        %3660 = vmatpush1.bf16.msra.mxu0 %v2282
        %3661 = vmatprep.subr.bf16.mxu0 %v2291
        %3662 = vmatpush1.bf16.msra.mxu0 %v2290
        %3663 = vmatprep.subr.bf16.mxu0 %v2299
        %3664 = vmatpush1.bf16.msra.mxu0 %v2298
        %3665 = vmatprep.subr.bf16.mxu0 %v2307
        %3666 = vmatpush1.bf16.msra.mxu0 %v2306
        %3667 = vmatprep.subr.bf16.mxu0 %v2315
        %3668 = vmatpush1.bf16.msra.mxu0 %v2314
        %3669 = vmatprep.subr.bf16.mxu0 %v2323
        %3670 = vmatpush1.bf16.msra.mxu0 %v2322
        %3671 = vmatprep.subr.bf16.mxu0 %v2331
        %3672 = vmatpush1.bf16.msra.mxu0 %v2330
        %3673 = vmatprep.subr.bf16.mxu0 %v2339
        %3674 = vmatpush1.bf16.msra.mxu0 %v2338
        %3675 = vmatprep.mubr.bf16.mxu0 %v543
        %3676 = vmatmul.mubr.bf16.gmra.mrb[0].mxu0 %v542
        %v3677 = vpop.f32.mrb[0].mxu0
        %v3678 = vadd.f32 %v3637, %v3677
        %v3679 = vpop.f32.mrb[0].mxu0
        %v3680 = vadd.f32 %v3639, %v3679
        %v3681 = vpop.f32.mrb[0].mxu0
        %v3682 = vpop.f32.mrb[0].mxu0
        %3683 = vdwg.mxu0
        %3684 = vmatprep.subr.bf16.mxu0 %v2347
        %3685 = vmatpush1.bf16.msra.mxu0 %v2346
        %3686 = vmatprep.subr.bf16.mxu0 %v2355
        %3687 = vmatpush1.bf16.msra.mxu0 %v2354
        %3688 = vmatprep.subr.bf16.mxu0 %v2363
        %3689 = vmatpush1.bf16.msra.mxu0 %v2362
        %3690 = vmatprep.subr.bf16.mxu0 %v2371
        %3691 = vmatpush1.bf16.msra.mxu0 %v2370
        %3692 = vmatprep.subr.bf16.mxu0 %v2379
        %3693 = vmatpush1.bf16.msra.mxu0 %v2378
        %3694 = vmatprep.subr.bf16.mxu0 %v2387
        %3695 = vmatpush1.bf16.msra.mxu0 %v2386
        %3696 = vmatprep.subr.bf16.mxu0 %v2395
        %3697 = vmatpush1.bf16.msra.mxu0 %v2394
        %3698 = vmatprep.subr.bf16.mxu0 %v2403
        %3699 = vmatpush1.bf16.msra.mxu0 %v2402
        %3700 = vmatprep.subr.bf16.mxu0 %v2411
        %3701 = vmatpush1.bf16.msra.mxu0 %v2410
        %3702 = vmatprep.subr.bf16.mxu0 %v2419
        %3703 = vmatpush1.bf16.msra.mxu0 %v2418
        %3704 = vmatprep.subr.bf16.mxu0 %v2427
        %3705 = vmatpush1.bf16.msra.mxu0 %v2426
        %3706 = vmatprep.subr.bf16.mxu0 %v2435
        %3707 = vmatpush1.bf16.msra.mxu0 %v2434
        %3708 = vmatprep.subr.bf16.mxu0 %v2443
        %3709 = vmatpush1.bf16.msra.mxu0 %v2442
        %3710 = vmatprep.subr.bf16.mxu0 %v2451
        %3711 = vmatpush1.bf16.msra.mxu0 %v2450
        %3712 = vmatprep.subr.bf16.mxu0 %v2459
        %3713 = vmatpush1.bf16.msra.mxu0 %v2458
        %3714 = vmatprep.subr.bf16.mxu0 %v2467
        %3715 = vmatpush1.bf16.msra.mxu0 %v2466
        %3716 = vmatprep.mubr.bf16.mxu0 %v545
        %3717 = vmatmul.mubr.bf16.gmra.mrb[0].mxu0 %v544
        %v3718 = vpop.f32.mrb[0].mxu0
        %v3719 = vadd.f32 %v3678, %v3718
        %v3720 = vpop.f32.mrb[0].mxu0
        %v3721 = vadd.f32 %v3680, %v3720
        %v3722 = vpop.f32.mrb[0].mxu0
        %v3723 = vpop.f32.mrb[0].mxu0
        %3724 = vdwg.mxu0
        %3725 = vmatprep.subr.bf16.mxu0 %v2475
        %3726 = vmatpush1.bf16.msra.mxu0 %v2474
        %3727 = vmatprep.subr.bf16.mxu0 %v2483
        %3728 = vmatpush1.bf16.msra.mxu0 %v2482
        %3729 = vmatprep.subr.bf16.mxu0 %v2491
        %3730 = vmatpush1.bf16.msra.mxu0 %v2490
        %3731 = vmatprep.subr.bf16.mxu0 %v2499
        %3732 = vmatpush1.bf16.msra.mxu0 %v2498
        %3733 = vmatprep.subr.bf16.mxu0 %v2507
        %3734 = vmatpush1.bf16.msra.mxu0 %v2506
        %3735 = vmatprep.subr.bf16.mxu0 %v2515
        %3736 = vmatpush1.bf16.msra.mxu0 %v2514
        %3737 = vmatprep.subr.bf16.mxu0 %v2523
        %3738 = vmatpush1.bf16.msra.mxu0 %v2522
        %3739 = vmatprep.subr.bf16.mxu0 %v2531
        %3740 = vmatpush1.bf16.msra.mxu0 %v2530
        %3741 = vmatprep.subr.bf16.mxu0 %v2539
        %3742 = vmatpush1.bf16.msra.mxu0 %v2538
        %3743 = vmatprep.subr.bf16.mxu0 %v2547
        %3744 = vmatpush1.bf16.msra.mxu0 %v2546
        %3745 = vmatprep.subr.bf16.mxu0 %v2555
        %3746 = vmatpush1.bf16.msra.mxu0 %v2554
        %3747 = vmatprep.subr.bf16.mxu0 %v2563
        %3748 = vmatpush1.bf16.msra.mxu0 %v2562
        %3749 = vmatprep.subr.bf16.mxu0 %v2571
        %3750 = vmatpush1.bf16.msra.mxu0 %v2570
        %3751 = vmatprep.subr.bf16.mxu0 %v2579
        %3752 = vmatpush1.bf16.msra.mxu0 %v2578
        %3753 = vmatprep.subr.bf16.mxu0 %v2587
        %3754 = vmatpush1.bf16.msra.mxu0 %v2586
        %3755 = vmatprep.subr.bf16.mxu0 %v2595
        %3756 = vmatpush1.bf16.msra.mxu0 %v2594
        %3757 = vmatprep.mubr.bf16.mxu0 %v547
        %3758 = vmatmul.mubr.bf16.gmra.mrb[0].mxu0 %v546
        %v3759 = vpop.f32.mrb[0].mxu0
        %v3760 = vadd.f32 %v3719, %v3759
        %v3761 = vpop.f32.mrb[0].mxu0
        %v3762 = vadd.f32 %v3721, %v3761
        %v3763 = vpop.f32.mrb[0].mxu0
        %v3764 = vpop.f32.mrb[0].mxu0
        %3765 = vdwg.mxu0
        %3766 = vmatprep.subr.bf16.mxu0 %v2603
        %3767 = vmatpush1.bf16.msra.mxu0 %v2602
        %3768 = vmatprep.subr.bf16.mxu0 %v2611
        %3769 = vmatpush1.bf16.msra.mxu0 %v2610
        %3770 = vmatprep.subr.bf16.mxu0 %v2619
        %3771 = vmatpush1.bf16.msra.mxu0 %v2618
        %3772 = vmatprep.subr.bf16.mxu0 %v2627
        %3773 = vmatpush1.bf16.msra.mxu0 %v2626
        %3774 = vmatprep.subr.bf16.mxu0 %v2635
        %3775 = vmatpush1.bf16.msra.mxu0 %v2634
        %3776 = vmatprep.subr.bf16.mxu0 %v2643
        %3777 = vmatpush1.bf16.msra.mxu0 %v2642
        %3778 = vmatprep.subr.bf16.mxu0 %v2651
        %3779 = vmatpush1.bf16.msra.mxu0 %v2650
        %3780 = vmatprep.subr.bf16.mxu0 %v2659
        %3781 = vmatpush1.bf16.msra.mxu0 %v2658
        %3782 = vmatprep.subr.bf16.mxu0 %v2667
        %3783 = vmatpush1.bf16.msra.mxu0 %v2666
        %3784 = vmatprep.subr.bf16.mxu0 %v2675
        %3785 = vmatpush1.bf16.msra.mxu0 %v2674
        %3786 = vmatprep.subr.bf16.mxu0 %v2683
        %3787 = vmatpush1.bf16.msra.mxu0 %v2682
        %3788 = vmatprep.subr.bf16.mxu0 %v2691
        %3789 = vmatpush1.bf16.msra.mxu0 %v2690
        %3790 = vmatprep.subr.bf16.mxu0 %v2699
        %3791 = vmatpush1.bf16.msra.mxu0 %v2698
        %3792 = vmatprep.subr.bf16.mxu0 %v2707
        %3793 = vmatpush1.bf16.msra.mxu0 %v2706
        %3794 = vmatprep.subr.bf16.mxu0 %v2715
        %3795 = vmatpush1.bf16.msra.mxu0 %v2714
        %3796 = vmatprep.subr.bf16.mxu0 %v2723
        %3797 = vmatpush1.bf16.msra.mxu0 %v2722
        %3798 = vmatprep.mubr.bf16.mxu0 %v549
        %3799 = vmatmul.mubr.bf16.gmra.mrb[0].mxu0 %v548
        %v3800 = vpop.f32.mrb[0].mxu0
        %v3801 = vadd.f32 %v3760, %v3800
        %v3802 = vpop.f32.mrb[0].mxu0
        %v3803 = vadd.f32 %v3762, %v3802
        %v3804 = vpop.f32.mrb[0].mxu0
        %v3805 = vpop.f32.mrb[0].mxu0
        %3806 = vdwg.mxu0
        %3807 = vmatprep.subr.bf16.mxu0 %v2731
        %3808 = vmatpush1.bf16.msra.mxu0 %v2730
        %3809 = vmatprep.subr.bf16.mxu0 %v2739
        %3810 = vmatpush1.bf16.msra.mxu0 %v2738
        %3811 = vmatprep.subr.bf16.mxu0 %v2747
        %3812 = vmatpush1.bf16.msra.mxu0 %v2746
        %3813 = vmatprep.subr.bf16.mxu0 %v2755
        %3814 = vmatpush1.bf16.msra.mxu0 %v2754
        %3815 = vmatprep.subr.bf16.mxu0 %v2763
        %3816 = vmatpush1.bf16.msra.mxu0 %v2762
        %3817 = vmatprep.subr.bf16.mxu0 %v2771
        %3818 = vmatpush1.bf16.msra.mxu0 %v2770
        %3819 = vmatprep.subr.bf16.mxu0 %v2779
        %3820 = vmatpush1.bf16.msra.mxu0 %v2778
        %3821 = vmatprep.subr.bf16.mxu0 %v2787
        %3822 = vmatpush1.bf16.msra.mxu0 %v2786
        %3823 = vmatprep.subr.bf16.mxu0 %v2795
        %3824 = vmatpush1.bf16.msra.mxu0 %v2794
        %3825 = vmatprep.subr.bf16.mxu0 %v2803
        %3826 = vmatpush1.bf16.msra.mxu0 %v2802
        %3827 = vmatprep.subr.bf16.mxu0 %v2811
        %3828 = vmatpush1.bf16.msra.mxu0 %v2810
        %3829 = vmatprep.subr.bf16.mxu0 %v2819
        %3830 = vmatpush1.bf16.msra.mxu0 %v2818
        %3831 = vmatprep.subr.bf16.mxu0 %v2827
        %3832 = vmatpush1.bf16.msra.mxu0 %v2826
        %3833 = vmatprep.subr.bf16.mxu0 %v2835
        %3834 = vmatpush1.bf16.msra.mxu0 %v2834
        %3835 = vmatprep.subr.bf16.mxu0 %v2843
        %3836 = vmatpush1.bf16.msra.mxu0 %v2842
        %3837 = vmatprep.subr.bf16.mxu0 %v2851
        %3838 = vmatpush1.bf16.msra.mxu0 %v2850
        %3839 = vmatprep.mubr.bf16.mxu0 %v551
        %3840 = vmatmul.mubr.bf16.gmra.mrb[0].mxu0 %v550
        %v3841 = vpop.f32.mrb[0].mxu0
        %v3842 = vadd.f32 %v3801, %v3841
        %v3843 = vpop.f32.mrb[0].mxu0
        %v3844 = vadd.f32 %v3803, %v3843
        %v3845 = vpop.f32.mrb[0].mxu0
        %v3846 = vpop.f32.mrb[0].mxu0
        %3847 = vdwg.mxu0
        %3848 = vmatprep.subr.bf16.mxu0 %v1325
        %3849 = vmatpush1.bf16.msra.mxu0 %v1324
        %3850 = vmatprep.subr.bf16.mxu0 %v1333
        %3851 = vmatpush1.bf16.msra.mxu0 %v1332
        %3852 = vmatprep.subr.bf16.mxu0 %v1341
        %3853 = vmatpush1.bf16.msra.mxu0 %v1340
        %3854 = vmatprep.subr.bf16.mxu0 %v1349
        %3855 = vmatpush1.bf16.msra.mxu0 %v1348
        %3856 = vmatprep.subr.bf16.mxu0 %v1357
        %3857 = vmatpush1.bf16.msra.mxu0 %v1356
        %3858 = vmatprep.subr.bf16.mxu0 %v1365
        %3859 = vmatpush1.bf16.msra.mxu0 %v1364
        %3860 = vmatprep.subr.bf16.mxu0 %v1373
        %3861 = vmatpush1.bf16.msra.mxu0 %v1372
        %3862 = vmatprep.subr.bf16.mxu0 %v1381
        %3863 = vmatpush1.bf16.msra.mxu0 %v1380
        %3864 = vmatprep.subr.bf16.mxu0 %v1389
        %3865 = vmatpush1.bf16.msra.mxu0 %v1388
        %3866 = vmatprep.subr.bf16.mxu0 %v1397
        %3867 = vmatpush1.bf16.msra.mxu0 %v1396
        %3868 = vmatprep.subr.bf16.mxu0 %v1405
        %3869 = vmatpush1.bf16.msra.mxu0 %v1404
        %3870 = vmatprep.subr.bf16.mxu0 %v1413
        %3871 = vmatpush1.bf16.msra.mxu0 %v1412
        %3872 = vmatprep.subr.bf16.mxu0 %v1421
        %3873 = vmatpush1.bf16.msra.mxu0 %v1420
        %3874 = vmatprep.subr.bf16.mxu0 %v1429
        %3875 = vmatpush1.bf16.msra.mxu0 %v1428
        %3876 = vmatprep.subr.bf16.mxu0 %v1437
        %3877 = vmatpush1.bf16.msra.mxu0 %v1436
        %3878 = vmatprep.subr.bf16.mxu0 %v1445
        %3879 = vmatpush1.bf16.msra.mxu0 %v1444
        %3880 = vmatprep.mubr.bf16.mxu0 %v529
        %3881 = vmatmul.mubr.bf16.gmra.mrb[0].mxu0 %v528
        %v3882 = vpop.f32.mrb[0].mxu0
        %v3883 = vadd.f32 0.0, %v3882
        %v3884 = vpop.f32.mrb[0].mxu0
        %v3885 = vadd.f32 0.0, %v3884
        %v3886 = vpop.f32.mrb[0].mxu0
        %v3887 = vpop.f32.mrb[0].mxu0
        %3888 = vdwg.mxu0
        %3889 = vmatprep.subr.bf16.mxu0 %v1453
        %3890 = vmatpush1.bf16.msra.mxu0 %v1452
        %3891 = vmatprep.subr.bf16.mxu0 %v1461
        %3892 = vmatpush1.bf16.msra.mxu0 %v1460
        %3893 = vmatprep.subr.bf16.mxu0 %v1469
        %3894 = vmatpush1.bf16.msra.mxu0 %v1468
        %3895 = vmatprep.subr.bf16.mxu0 %v1477
        %3896 = vmatpush1.bf16.msra.mxu0 %v1476
        %3897 = vmatprep.subr.bf16.mxu0 %v1485
        %3898 = vmatpush1.bf16.msra.mxu0 %v1484
        %3899 = vmatprep.subr.bf16.mxu0 %v1493
        %3900 = vmatpush1.bf16.msra.mxu0 %v1492
        %3901 = vmatprep.subr.bf16.mxu0 %v1501
        %3902 = vmatpush1.bf16.msra.mxu0 %v1500
        %3903 = vmatprep.subr.bf16.mxu0 %v1509
        %3904 = vmatpush1.bf16.msra.mxu0 %v1508
        %3905 = vmatprep.subr.bf16.mxu0 %v1517
        %3906 = vmatpush1.bf16.msra.mxu0 %v1516
        %3907 = vmatprep.subr.bf16.mxu0 %v1525
        %3908 = vmatpush1.bf16.msra.mxu0 %v1524
        %3909 = vmatprep.subr.bf16.mxu0 %v1533
        %3910 = vmatpush1.bf16.msra.mxu0 %v1532
        %3911 = vmatprep.subr.bf16.mxu0 %v1541
        %3912 = vmatpush1.bf16.msra.mxu0 %v1540
        %3913 = vmatprep.subr.bf16.mxu0 %v1549
        %3914 = vmatpush1.bf16.msra.mxu0 %v1548
        %3915 = vmatprep.subr.bf16.mxu0 %v1557
        %3916 = vmatpush1.bf16.msra.mxu0 %v1556
        %3917 = vmatprep.subr.bf16.mxu0 %v1565
        %3918 = vmatpush1.bf16.msra.mxu0 %v1564
        %3919 = vmatprep.subr.bf16.mxu0 %v1573
        %3920 = vmatpush1.bf16.msra.mxu0 %v1572
        %3921 = vmatprep.mubr.bf16.mxu0 %v531
        %3922 = vmatmul.mubr.bf16.gmra.mrb[0].mxu0 %v530
        %v3923 = vpop.f32.mrb[0].mxu0
        %v3924 = vadd.f32 %v3883, %v3923
        %v3925 = vpop.f32.mrb[0].mxu0
        %v3926 = vadd.f32 %v3885, %v3925
        %v3927 = vpop.f32.mrb[0].mxu0
        %v3928 = vpop.f32.mrb[0].mxu0
        %3929 = vdwg.mxu0
        %3930 = vmatprep.subr.bf16.mxu0 %v1581
        %3931 = vmatpush1.bf16.msra.mxu0 %v1580
        %3932 = vmatprep.subr.bf16.mxu0 %v1589
        %3933 = vmatpush1.bf16.msra.mxu0 %v1588
        %3934 = vmatprep.subr.bf16.mxu0 %v1597
        %3935 = vmatpush1.bf16.msra.mxu0 %v1596
        %3936 = vmatprep.subr.bf16.mxu0 %v1605
        %3937 = vmatpush1.bf16.msra.mxu0 %v1604
        %3938 = vmatprep.subr.bf16.mxu0 %v1613
        %3939 = vmatpush1.bf16.msra.mxu0 %v1612
        %3940 = vmatprep.subr.bf16.mxu0 %v1621
        %3941 = vmatpush1.bf16.msra.mxu0 %v1620
        %3942 = vmatprep.subr.bf16.mxu0 %v1629
        %3943 = vmatpush1.bf16.msra.mxu0 %v1628
        %3944 = vmatprep.subr.bf16.mxu0 %v1637
        %3945 = vmatpush1.bf16.msra.mxu0 %v1636
        %3946 = vmatprep.subr.bf16.mxu0 %v1645
        %3947 = vmatpush1.bf16.msra.mxu0 %v1644
        %3948 = vmatprep.subr.bf16.mxu0 %v1653
        %3949 = vmatpush1.bf16.msra.mxu0 %v1652
        %3950 = vmatprep.subr.bf16.mxu0 %v1661
        %3951 = vmatpush1.bf16.msra.mxu0 %v1660
        %3952 = vmatprep.subr.bf16.mxu0 %v1669
        %3953 = vmatpush1.bf16.msra.mxu0 %v1668
        %3954 = vmatprep.subr.bf16.mxu0 %v1677
        %3955 = vmatpush1.bf16.msra.mxu0 %v1676
        %3956 = vmatprep.subr.bf16.mxu0 %v1685
        %3957 = vmatpush1.bf16.msra.mxu0 %v1684
        %3958 = vmatprep.subr.bf16.mxu0 %v1693
        %3959 = vmatpush1.bf16.msra.mxu0 %v1692
        %3960 = vmatprep.subr.bf16.mxu0 %v1701
        %3961 = vmatpush1.bf16.msra.mxu0 %v1700
        %3962 = vmatprep.mubr.bf16.mxu0 %v533
        %3963 = vmatmul.mubr.bf16.gmra.mrb[0].mxu0 %v532
        %v3964 = vpop.f32.mrb[0].mxu0
        %v3965 = vadd.f32 %v3924, %v3964
        %v3966 = vpop.f32.mrb[0].mxu0
        %v3967 = vadd.f32 %v3926, %v3966
        %v3968 = vpop.f32.mrb[0].mxu0
        %v3969 = vpop.f32.mrb[0].mxu0
        %3970 = vdwg.mxu0
        %3971 = vmatprep.subr.bf16.mxu0 %v1709
        %3972 = vmatpush1.bf16.msra.mxu0 %v1708
        %3973 = vmatprep.subr.bf16.mxu0 %v1717
        %3974 = vmatpush1.bf16.msra.mxu0 %v1716
        %3975 = vmatprep.subr.bf16.mxu0 %v1725
        %3976 = vmatpush1.bf16.msra.mxu0 %v1724
        %3977 = vmatprep.subr.bf16.mxu0 %v1733
        %3978 = vmatpush1.bf16.msra.mxu0 %v1732
        %3979 = vmatprep.subr.bf16.mxu0 %v1741
        %3980 = vmatpush1.bf16.msra.mxu0 %v1740
        %3981 = vmatprep.subr.bf16.mxu0 %v1749
        %3982 = vmatpush1.bf16.msra.mxu0 %v1748
        %3983 = vmatprep.subr.bf16.mxu0 %v1757
        %3984 = vmatpush1.bf16.msra.mxu0 %v1756
        %3985 = vmatprep.subr.bf16.mxu0 %v1765
        %3986 = vmatpush1.bf16.msra.mxu0 %v1764
        %3987 = vmatprep.subr.bf16.mxu0 %v1773
        %3988 = vmatpush1.bf16.msra.mxu0 %v1772
        %3989 = vmatprep.subr.bf16.mxu0 %v1781
        %3990 = vmatpush1.bf16.msra.mxu0 %v1780
        %3991 = vmatprep.subr.bf16.mxu0 %v1789
        %3992 = vmatpush1.bf16.msra.mxu0 %v1788
        %3993 = vmatprep.subr.bf16.mxu0 %v1797
        %3994 = vmatpush1.bf16.msra.mxu0 %v1796
        %3995 = vmatprep.subr.bf16.mxu0 %v1805
        %3996 = vmatpush1.bf16.msra.mxu0 %v1804
        %3997 = vmatprep.subr.bf16.mxu0 %v1813
        %3998 = vmatpush1.bf16.msra.mxu0 %v1812
        %3999 = vmatprep.subr.bf16.mxu0 %v1821
        %4000 = vmatpush1.bf16.msra.mxu0 %v1820
        %4001 = vmatprep.subr.bf16.mxu0 %v1829
        %4002 = vmatpush1.bf16.msra.mxu0 %v1828
        %4003 = vmatprep.mubr.bf16.mxu0 %v535
        %4004 = vmatmul.mubr.bf16.gmra.mrb[0].mxu0 %v534
        %v4005 = vpop.f32.mrb[0].mxu0
        %v4006 = vadd.f32 %v3965, %v4005
        %v4007 = vpop.f32.mrb[0].mxu0
        %v4008 = vadd.f32 %v3967, %v4007
        %v4009 = vpop.f32.mrb[0].mxu0
        %v4010 = vpop.f32.mrb[0].mxu0
        %4011 = vdwg.mxu0
        %4012 = vmatprep.subr.bf16.mxu0 %v1837
        %4013 = vmatpush1.bf16.msra.mxu0 %v1836
        %4014 = vmatprep.subr.bf16.mxu0 %v1845
        %4015 = vmatpush1.bf16.msra.mxu0 %v1844
        %4016 = vmatprep.subr.bf16.mxu0 %v1853
        %4017 = vmatpush1.bf16.msra.mxu0 %v1852
        %4018 = vmatprep.subr.bf16.mxu0 %v1861
        %4019 = vmatpush1.bf16.msra.mxu0 %v1860
        %4020 = vmatprep.subr.bf16.mxu0 %v1869
        %4021 = vmatpush1.bf16.msra.mxu0 %v1868
        %4022 = vmatprep.subr.bf16.mxu0 %v1877
        %4023 = vmatpush1.bf16.msra.mxu0 %v1876
        %4024 = vmatprep.subr.bf16.mxu0 %v1885
        %4025 = vmatpush1.bf16.msra.mxu0 %v1884
        %4026 = vmatprep.subr.bf16.mxu0 %v1893
        %4027 = vmatpush1.bf16.msra.mxu0 %v1892
        %4028 = vmatprep.subr.bf16.mxu0 %v1901
        %4029 = vmatpush1.bf16.msra.mxu0 %v1900
        %4030 = vmatprep.subr.bf16.mxu0 %v1909
        %4031 = vmatpush1.bf16.msra.mxu0 %v1908
        %4032 = vmatprep.subr.bf16.mxu0 %v1917
        %4033 = vmatpush1.bf16.msra.mxu0 %v1916
        %4034 = vmatprep.subr.bf16.mxu0 %v1925
        %4035 = vmatpush1.bf16.msra.mxu0 %v1924
        %4036 = vmatprep.subr.bf16.mxu0 %v1933
        %4037 = vmatpush1.bf16.msra.mxu0 %v1932
        %4038 = vmatprep.subr.bf16.mxu0 %v1941
        %4039 = vmatpush1.bf16.msra.mxu0 %v1940
        %4040 = vmatprep.subr.bf16.mxu0 %v1949
        %4041 = vmatpush1.bf16.msra.mxu0 %v1948
        %4042 = vmatprep.subr.bf16.mxu0 %v1957
        %4043 = vmatpush1.bf16.msra.mxu0 %v1956
        %4044 = vmatprep.mubr.bf16.mxu0 %v537
        %4045 = vmatmul.mubr.bf16.gmra.mrb[0].mxu0 %v536
        %v4046 = vpop.f32.mrb[0].mxu0
        %v4047 = vadd.f32 %v4006, %v4046
        %v4048 = vpop.f32.mrb[0].mxu0
        %v4049 = vadd.f32 %v4008, %v4048
        %v4050 = vpop.f32.mrb[0].mxu0
        %v4051 = vpop.f32.mrb[0].mxu0
        %4052 = vdwg.mxu0
        %4053 = vmatprep.subr.bf16.mxu0 %v1965
        %4054 = vmatpush1.bf16.msra.mxu0 %v1964
        %4055 = vmatprep.subr.bf16.mxu0 %v1973
        %4056 = vmatpush1.bf16.msra.mxu0 %v1972
        %4057 = vmatprep.subr.bf16.mxu0 %v1981
        %4058 = vmatpush1.bf16.msra.mxu0 %v1980
        %4059 = vmatprep.subr.bf16.mxu0 %v1989
        %4060 = vmatpush1.bf16.msra.mxu0 %v1988
        %4061 = vmatprep.subr.bf16.mxu0 %v1997
        %4062 = vmatpush1.bf16.msra.mxu0 %v1996
        %4063 = vmatprep.subr.bf16.mxu0 %v2005
        %4064 = vmatpush1.bf16.msra.mxu0 %v2004
        %4065 = vmatprep.subr.bf16.mxu0 %v2013
        %4066 = vmatpush1.bf16.msra.mxu0 %v2012
        %4067 = vmatprep.subr.bf16.mxu0 %v2021
        %4068 = vmatpush1.bf16.msra.mxu0 %v2020
        %4069 = vmatprep.subr.bf16.mxu0 %v2029
        %4070 = vmatpush1.bf16.msra.mxu0 %v2028
        %4071 = vmatprep.subr.bf16.mxu0 %v2037
        %4072 = vmatpush1.bf16.msra.mxu0 %v2036
        %4073 = vmatprep.subr.bf16.mxu0 %v2045
        %4074 = vmatpush1.bf16.msra.mxu0 %v2044
        %4075 = vmatprep.subr.bf16.mxu0 %v2053
        %4076 = vmatpush1.bf16.msra.mxu0 %v2052
        %4077 = vmatprep.subr.bf16.mxu0 %v2061
        %4078 = vmatpush1.bf16.msra.mxu0 %v2060
        %4079 = vmatprep.subr.bf16.mxu0 %v2069
        %4080 = vmatpush1.bf16.msra.mxu0 %v2068
        %4081 = vmatprep.subr.bf16.mxu0 %v2077
        %4082 = vmatpush1.bf16.msra.mxu0 %v2076
        %4083 = vmatprep.subr.bf16.mxu0 %v2085
        %4084 = vmatpush1.bf16.msra.mxu0 %v2084
        %4085 = vmatprep.mubr.bf16.mxu0 %v539
        %4086 = vmatmul.mubr.bf16.gmra.mrb[0].mxu0 %v538
        %v4087 = vpop.f32.mrb[0].mxu0
        %v4088 = vadd.f32 %v4047, %v4087
        %v4089 = vpop.f32.mrb[0].mxu0
        %v4090 = vadd.f32 %v4049, %v4089
        %v4091 = vpop.f32.mrb[0].mxu0
        %v4092 = vpop.f32.mrb[0].mxu0
        %4093 = vdwg.mxu0
        %4094 = vmatprep.subr.bf16.mxu0 %v2093
        %4095 = vmatpush1.bf16.msra.mxu0 %v2092
        %4096 = vmatprep.subr.bf16.mxu0 %v2101
        %4097 = vmatpush1.bf16.msra.mxu0 %v2100
        %4098 = vmatprep.subr.bf16.mxu0 %v2109
        %4099 = vmatpush1.bf16.msra.mxu0 %v2108
        %4100 = vmatprep.subr.bf16.mxu0 %v2117
        %4101 = vmatpush1.bf16.msra.mxu0 %v2116
        %4102 = vmatprep.subr.bf16.mxu0 %v2125
        %4103 = vmatpush1.bf16.msra.mxu0 %v2124
        %4104 = vmatprep.subr.bf16.mxu0 %v2133
        %4105 = vmatpush1.bf16.msra.mxu0 %v2132
        %4106 = vmatprep.subr.bf16.mxu0 %v2141
        %4107 = vmatpush1.bf16.msra.mxu0 %v2140
        %4108 = vmatprep.subr.bf16.mxu0 %v2149
        %4109 = vmatpush1.bf16.msra.mxu0 %v2148
        %4110 = vmatprep.subr.bf16.mxu0 %v2157
        %4111 = vmatpush1.bf16.msra.mxu0 %v2156
        %4112 = vmatprep.subr.bf16.mxu0 %v2165
        %4113 = vmatpush1.bf16.msra.mxu0 %v2164
        %4114 = vmatprep.subr.bf16.mxu0 %v2173
        %4115 = vmatpush1.bf16.msra.mxu0 %v2172
        %4116 = vmatprep.subr.bf16.mxu0 %v2181
        %4117 = vmatpush1.bf16.msra.mxu0 %v2180
        %4118 = vmatprep.subr.bf16.mxu0 %v2189
        %4119 = vmatpush1.bf16.msra.mxu0 %v2188
        %4120 = vmatprep.subr.bf16.mxu0 %v2197
        %4121 = vmatpush1.bf16.msra.mxu0 %v2196
        %4122 = vmatprep.subr.bf16.mxu0 %v2205
        %4123 = vmatpush1.bf16.msra.mxu0 %v2204
        %4124 = vmatprep.subr.bf16.mxu0 %v2213
        %4125 = vmatpush1.bf16.msra.mxu0 %v2212
        %4126 = vmatprep.mubr.bf16.mxu0 %v541
        %4127 = vmatmul.mubr.bf16.gmra.mrb[0].mxu0 %v540
        %v4128 = vpop.f32.mrb[0].mxu0
        %v4129 = vadd.f32 %v4088, %v4128
        %v4130 = vpop.f32.mrb[0].mxu0
        %v4131 = vadd.f32 %v4090, %v4130
        %v4132 = vpop.f32.mrb[0].mxu0
        %v4133 = vpop.f32.mrb[0].mxu0
        %4134 = vdwg.mxu0
        %4135 = vmatprep.subr.bf16.mxu0 %v2221
        %4136 = vmatpush1.bf16.msra.mxu0 %v2220
        %4137 = vmatprep.subr.bf16.mxu0 %v2229
        %4138 = vmatpush1.bf16.msra.mxu0 %v2228
        %4139 = vmatprep.subr.bf16.mxu0 %v2237
        %4140 = vmatpush1.bf16.msra.mxu0 %v2236
        %4141 = vmatprep.subr.bf16.mxu0 %v2245
        %4142 = vmatpush1.bf16.msra.mxu0 %v2244
        %4143 = vmatprep.subr.bf16.mxu0 %v2253
        %4144 = vmatpush1.bf16.msra.mxu0 %v2252
        %4145 = vmatprep.subr.bf16.mxu0 %v2261
        %4146 = vmatpush1.bf16.msra.mxu0 %v2260
        %4147 = vmatprep.subr.bf16.mxu0 %v2269
        %4148 = vmatpush1.bf16.msra.mxu0 %v2268
        %4149 = vmatprep.subr.bf16.mxu0 %v2277
        %4150 = vmatpush1.bf16.msra.mxu0 %v2276
        %4151 = vmatprep.subr.bf16.mxu0 %v2285
        %4152 = vmatpush1.bf16.msra.mxu0 %v2284
        %4153 = vmatprep.subr.bf16.mxu0 %v2293
        %4154 = vmatpush1.bf16.msra.mxu0 %v2292
        %4155 = vmatprep.subr.bf16.mxu0 %v2301
        %4156 = vmatpush1.bf16.msra.mxu0 %v2300
        %4157 = vmatprep.subr.bf16.mxu0 %v2309
        %4158 = vmatpush1.bf16.msra.mxu0 %v2308
        %4159 = vmatprep.subr.bf16.mxu0 %v2317
        %4160 = vmatpush1.bf16.msra.mxu0 %v2316
        %4161 = vmatprep.subr.bf16.mxu0 %v2325
        %4162 = vmatpush1.bf16.msra.mxu0 %v2324
        %4163 = vmatprep.subr.bf16.mxu0 %v2333
        %4164 = vmatpush1.bf16.msra.mxu0 %v2332
        %4165 = vmatprep.subr.bf16.mxu0 %v2341
        %4166 = vmatpush1.bf16.msra.mxu0 %v2340
        %4167 = vmatprep.mubr.bf16.mxu0 %v543
        %4168 = vmatmul.mubr.bf16.gmra.mrb[0].mxu0 %v542
        %v4169 = vpop.f32.mrb[0].mxu0
        %v4170 = vadd.f32 %v4129, %v4169
        %v4171 = vpop.f32.mrb[0].mxu0
        %v4172 = vadd.f32 %v4131, %v4171
        %v4173 = vpop.f32.mrb[0].mxu0
        %v4174 = vpop.f32.mrb[0].mxu0
        %4175 = vdwg.mxu0
        %4176 = vmatprep.subr.bf16.mxu0 %v2349
        %4177 = vmatpush1.bf16.msra.mxu0 %v2348
        %4178 = vmatprep.subr.bf16.mxu0 %v2357
        %4179 = vmatpush1.bf16.msra.mxu0 %v2356
        %4180 = vmatprep.subr.bf16.mxu0 %v2365
        %4181 = vmatpush1.bf16.msra.mxu0 %v2364
        %4182 = vmatprep.subr.bf16.mxu0 %v2373
        %4183 = vmatpush1.bf16.msra.mxu0 %v2372
        %4184 = vmatprep.subr.bf16.mxu0 %v2381
        %4185 = vmatpush1.bf16.msra.mxu0 %v2380
        %4186 = vmatprep.subr.bf16.mxu0 %v2389
        %4187 = vmatpush1.bf16.msra.mxu0 %v2388
        %4188 = vmatprep.subr.bf16.mxu0 %v2397
        %4189 = vmatpush1.bf16.msra.mxu0 %v2396
        %4190 = vmatprep.subr.bf16.mxu0 %v2405
        %4191 = vmatpush1.bf16.msra.mxu0 %v2404
        %4192 = vmatprep.subr.bf16.mxu0 %v2413
        %4193 = vmatpush1.bf16.msra.mxu0 %v2412
        %4194 = vmatprep.subr.bf16.mxu0 %v2421
        %4195 = vmatpush1.bf16.msra.mxu0 %v2420
        %4196 = vmatprep.subr.bf16.mxu0 %v2429
        %4197 = vmatpush1.bf16.msra.mxu0 %v2428
        %4198 = vmatprep.subr.bf16.mxu0 %v2437
        %4199 = vmatpush1.bf16.msra.mxu0 %v2436
        %4200 = vmatprep.subr.bf16.mxu0 %v2445
        %4201 = vmatpush1.bf16.msra.mxu0 %v2444
        %4202 = vmatprep.subr.bf16.mxu0 %v2453
        %4203 = vmatpush1.bf16.msra.mxu0 %v2452
        %4204 = vmatprep.subr.bf16.mxu0 %v2461
        %4205 = vmatpush1.bf16.msra.mxu0 %v2460
        %4206 = vmatprep.subr.bf16.mxu0 %v2469
        %4207 = vmatpush1.bf16.msra.mxu0 %v2468
        %4208 = vmatprep.mubr.bf16.mxu0 %v545
        %4209 = vmatmul.mubr.bf16.gmra.mrb[0].mxu0 %v544
        %v4210 = vpop.f32.mrb[0].mxu0
        %v4211 = vadd.f32 %v4170, %v4210
        %v4212 = vpop.f32.mrb[0].mxu0
        %v4213 = vadd.f32 %v4172, %v4212
        %v4214 = vpop.f32.mrb[0].mxu0
        %v4215 = vpop.f32.mrb[0].mxu0
        %4216 = vdwg.mxu0
        %4217 = vmatprep.subr.bf16.mxu0 %v2477
        %4218 = vmatpush1.bf16.msra.mxu0 %v2476
        %4219 = vmatprep.subr.bf16.mxu0 %v2485
        %4220 = vmatpush1.bf16.msra.mxu0 %v2484
        %4221 = vmatprep.subr.bf16.mxu0 %v2493
        %4222 = vmatpush1.bf16.msra.mxu0 %v2492
        %4223 = vmatprep.subr.bf16.mxu0 %v2501
        %4224 = vmatpush1.bf16.msra.mxu0 %v2500
        %4225 = vmatprep.subr.bf16.mxu0 %v2509
        %4226 = vmatpush1.bf16.msra.mxu0 %v2508
        %4227 = vmatprep.subr.bf16.mxu0 %v2517
        %4228 = vmatpush1.bf16.msra.mxu0 %v2516
        %4229 = vmatprep.subr.bf16.mxu0 %v2525
        %4230 = vmatpush1.bf16.msra.mxu0 %v2524
        %4231 = vmatprep.subr.bf16.mxu0 %v2533
        %4232 = vmatpush1.bf16.msra.mxu0 %v2532
        %4233 = vmatprep.subr.bf16.mxu0 %v2541
        %4234 = vmatpush1.bf16.msra.mxu0 %v2540
        %4235 = vmatprep.subr.bf16.mxu0 %v2549
        %4236 = vmatpush1.bf16.msra.mxu0 %v2548
        %4237 = vmatprep.subr.bf16.mxu0 %v2557
        %4238 = vmatpush1.bf16.msra.mxu0 %v2556
        %4239 = vmatprep.subr.bf16.mxu0 %v2565
        %4240 = vmatpush1.bf16.msra.mxu0 %v2564
        %4241 = vmatprep.subr.bf16.mxu0 %v2573
        %4242 = vmatpush1.bf16.msra.mxu0 %v2572
        %4243 = vmatprep.subr.bf16.mxu0 %v2581
        %4244 = vmatpush1.bf16.msra.mxu0 %v2580
        %4245 = vmatprep.subr.bf16.mxu0 %v2589
        %4246 = vmatpush1.bf16.msra.mxu0 %v2588
        %4247 = vmatprep.subr.bf16.mxu0 %v2597
        %4248 = vmatpush1.bf16.msra.mxu0 %v2596
        %4249 = vmatprep.mubr.bf16.mxu0 %v547
        %4250 = vmatmul.mubr.bf16.gmra.mrb[0].mxu0 %v546
        %v4251 = vpop.f32.mrb[0].mxu0
        %v4252 = vadd.f32 %v4211, %v4251
        %v4253 = vpop.f32.mrb[0].mxu0
        %v4254 = vadd.f32 %v4213, %v4253
        %v4255 = vpop.f32.mrb[0].mxu0
        %v4256 = vpop.f32.mrb[0].mxu0
        %4257 = vdwg.mxu0
        %4258 = vmatprep.subr.bf16.mxu0 %v2605
        %4259 = vmatpush1.bf16.msra.mxu0 %v2604
        %4260 = vmatprep.subr.bf16.mxu0 %v2613
        %4261 = vmatpush1.bf16.msra.mxu0 %v2612
        %4262 = vmatprep.subr.bf16.mxu0 %v2621
        %4263 = vmatpush1.bf16.msra.mxu0 %v2620
        %4264 = vmatprep.subr.bf16.mxu0 %v2629
        %4265 = vmatpush1.bf16.msra.mxu0 %v2628
        %4266 = vmatprep.subr.bf16.mxu0 %v2637
        %4267 = vmatpush1.bf16.msra.mxu0 %v2636
        %4268 = vmatprep.subr.bf16.mxu0 %v2645
        %4269 = vmatpush1.bf16.msra.mxu0 %v2644
        %4270 = vmatprep.subr.bf16.mxu0 %v2653
        %4271 = vmatpush1.bf16.msra.mxu0 %v2652
        %4272 = vmatprep.subr.bf16.mxu0 %v2661
        %4273 = vmatpush1.bf16.msra.mxu0 %v2660
        %4274 = vmatprep.subr.bf16.mxu0 %v2669
        %4275 = vmatpush1.bf16.msra.mxu0 %v2668
        %4276 = vmatprep.subr.bf16.mxu0 %v2677
        %4277 = vmatpush1.bf16.msra.mxu0 %v2676
        %4278 = vmatprep.subr.bf16.mxu0 %v2685
        %4279 = vmatpush1.bf16.msra.mxu0 %v2684
        %4280 = vmatprep.subr.bf16.mxu0 %v2693
        %4281 = vmatpush1.bf16.msra.mxu0 %v2692
        %4282 = vmatprep.subr.bf16.mxu0 %v2701
        %4283 = vmatpush1.bf16.msra.mxu0 %v2700
        %4284 = vmatprep.subr.bf16.mxu0 %v2709
        %4285 = vmatpush1.bf16.msra.mxu0 %v2708
        %4286 = vmatprep.subr.bf16.mxu0 %v2717
        %4287 = vmatpush1.bf16.msra.mxu0 %v2716
        %4288 = vmatprep.subr.bf16.mxu0 %v2725
        %4289 = vmatpush1.bf16.msra.mxu0 %v2724
        %4290 = vmatprep.mubr.bf16.mxu0 %v549
        %4291 = vmatmul.mubr.bf16.gmra.mrb[0].mxu0 %v548
        %v4292 = vpop.f32.mrb[0].mxu0
        %v4293 = vadd.f32 %v4252, %v4292
        %v4294 = vpop.f32.mrb[0].mxu0
        %v4295 = vadd.f32 %v4254, %v4294
        %v4296 = vpop.f32.mrb[0].mxu0
        %v4297 = vpop.f32.mrb[0].mxu0
        %4298 = vdwg.mxu0
        %4299 = vmatprep.subr.bf16.mxu0 %v2733
        %4300 = vmatpush1.bf16.msra.mxu0 %v2732
        %4301 = vmatprep.subr.bf16.mxu0 %v2741
        %4302 = vmatpush1.bf16.msra.mxu0 %v2740
        %4303 = vmatprep.subr.bf16.mxu0 %v2749
        %4304 = vmatpush1.bf16.msra.mxu0 %v2748
        %4305 = vmatprep.subr.bf16.mxu0 %v2757
        %4306 = vmatpush1.bf16.msra.mxu0 %v2756
        %4307 = vmatprep.subr.bf16.mxu0 %v2765
        %4308 = vmatpush1.bf16.msra.mxu0 %v2764
        %4309 = vmatprep.subr.bf16.mxu0 %v2773
        %4310 = vmatpush1.bf16.msra.mxu0 %v2772
        %4311 = vmatprep.subr.bf16.mxu0 %v2781
        %4312 = vmatpush1.bf16.msra.mxu0 %v2780
        %4313 = vmatprep.subr.bf16.mxu0 %v2789
        %4314 = vmatpush1.bf16.msra.mxu0 %v2788
        %4315 = vmatprep.subr.bf16.mxu0 %v2797
        %4316 = vmatpush1.bf16.msra.mxu0 %v2796
        %4317 = vmatprep.subr.bf16.mxu0 %v2805
        %4318 = vmatpush1.bf16.msra.mxu0 %v2804
        %4319 = vmatprep.subr.bf16.mxu0 %v2813
        %4320 = vmatpush1.bf16.msra.mxu0 %v2812
        %4321 = vmatprep.subr.bf16.mxu0 %v2821
        %4322 = vmatpush1.bf16.msra.mxu0 %v2820
        %4323 = vmatprep.subr.bf16.mxu0 %v2829
        %4324 = vmatpush1.bf16.msra.mxu0 %v2828
        %4325 = vmatprep.subr.bf16.mxu0 %v2837
        %4326 = vmatpush1.bf16.msra.mxu0 %v2836
        %4327 = vmatprep.subr.bf16.mxu0 %v2845
        %4328 = vmatpush1.bf16.msra.mxu0 %v2844
        %4329 = vmatprep.subr.bf16.mxu0 %v2853
        %4330 = vmatpush1.bf16.msra.mxu0 %v2852
        %4331 = vmatprep.mubr.bf16.mxu0 %v551
        %4332 = vmatmul.mubr.bf16.gmra.mrb[0].mxu0 %v550
        %v4333 = vpop.f32.mrb[0].mxu0
        %v4334 = vadd.f32 %v4293, %v4333
        %v4335 = vpop.f32.mrb[0].mxu0
        %v4336 = vadd.f32 %v4295, %v4335
        %v4337 = vpop.f32.mrb[0].mxu0
        %v4338 = vpop.f32.mrb[0].mxu0
        %4339 = vdwg.mxu0
        %4340 = vmatprep.subr.bf16.mxu0 %v1327
        %4341 = vmatpush1.bf16.msra.mxu0 %v1326
        %4342 = vmatprep.subr.bf16.mxu0 %v1335
        %4343 = vmatpush1.bf16.msra.mxu0 %v1334
        %4344 = vmatprep.subr.bf16.mxu0 %v1343
        %4345 = vmatpush1.bf16.msra.mxu0 %v1342
        %4346 = vmatprep.subr.bf16.mxu0 %v1351
        %4347 = vmatpush1.bf16.msra.mxu0 %v1350
        %4348 = vmatprep.subr.bf16.mxu0 %v1359
        %4349 = vmatpush1.bf16.msra.mxu0 %v1358
        %4350 = vmatprep.subr.bf16.mxu0 %v1367
        %4351 = vmatpush1.bf16.msra.mxu0 %v1366
        %4352 = vmatprep.subr.bf16.mxu0 %v1375
        %4353 = vmatpush1.bf16.msra.mxu0 %v1374
        %4354 = vmatprep.subr.bf16.mxu0 %v1383
        %4355 = vmatpush1.bf16.msra.mxu0 %v1382
        %4356 = vmatprep.subr.bf16.mxu0 %v1391
        %4357 = vmatpush1.bf16.msra.mxu0 %v1390
        %4358 = vmatprep.subr.bf16.mxu0 %v1399
        %4359 = vmatpush1.bf16.msra.mxu0 %v1398
        %4360 = vmatprep.subr.bf16.mxu0 %v1407
        %4361 = vmatpush1.bf16.msra.mxu0 %v1406
        %4362 = vmatprep.subr.bf16.mxu0 %v1415
        %4363 = vmatpush1.bf16.msra.mxu0 %v1414
        %4364 = vmatprep.subr.bf16.mxu0 %v1423
        %4365 = vmatpush1.bf16.msra.mxu0 %v1422
        %4366 = vmatprep.subr.bf16.mxu0 %v1431
        %4367 = vmatpush1.bf16.msra.mxu0 %v1430
        %4368 = vmatprep.subr.bf16.mxu0 %v1439
        %4369 = vmatpush1.bf16.msra.mxu0 %v1438
        %4370 = vmatprep.subr.bf16.mxu0 %v1447
        %4371 = vmatpush1.bf16.msra.mxu0 %v1446
        %4372 = vmatprep.mubr.bf16.mxu0 %v529
        %4373 = vmatmul.mubr.bf16.gmra.mrb[0].mxu0 %v528
        %v4374 = vpop.f32.mrb[0].mxu0
        %v4375 = vadd.f32 0.0, %v4374
        %v4376 = vpop.f32.mrb[0].mxu0
        %v4377 = vadd.f32 0.0, %v4376
        %v4378 = vpop.f32.mrb[0].mxu0
        %v4379 = vpop.f32.mrb[0].mxu0
        %4380 = vdwg.mxu0
        %4381 = vmatprep.subr.bf16.mxu0 %v1455
        %4382 = vmatpush1.bf16.msra.mxu0 %v1454
        %4383 = vmatprep.subr.bf16.mxu0 %v1463
        %4384 = vmatpush1.bf16.msra.mxu0 %v1462
        %4385 = vmatprep.subr.bf16.mxu0 %v1471
        %4386 = vmatpush1.bf16.msra.mxu0 %v1470
        %4387 = vmatprep.subr.bf16.mxu0 %v1479
        %4388 = vmatpush1.bf16.msra.mxu0 %v1478
        %4389 = vmatprep.subr.bf16.mxu0 %v1487
        %4390 = vmatpush1.bf16.msra.mxu0 %v1486
        %4391 = vmatprep.subr.bf16.mxu0 %v1495
        %4392 = vmatpush1.bf16.msra.mxu0 %v1494
        %4393 = vmatprep.subr.bf16.mxu0 %v1503
        %4394 = vmatpush1.bf16.msra.mxu0 %v1502
        %4395 = vmatprep.subr.bf16.mxu0 %v1511
        %4396 = vmatpush1.bf16.msra.mxu0 %v1510
        %4397 = vmatprep.subr.bf16.mxu0 %v1519
        %4398 = vmatpush1.bf16.msra.mxu0 %v1518
        %4399 = vmatprep.subr.bf16.mxu0 %v1527
        %4400 = vmatpush1.bf16.msra.mxu0 %v1526
        %4401 = vmatprep.subr.bf16.mxu0 %v1535
        %4402 = vmatpush1.bf16.msra.mxu0 %v1534
        %4403 = vmatprep.subr.bf16.mxu0 %v1543
        %4404 = vmatpush1.bf16.msra.mxu0 %v1542
        %4405 = vmatprep.subr.bf16.mxu0 %v1551
        %4406 = vmatpush1.bf16.msra.mxu0 %v1550
        %4407 = vmatprep.subr.bf16.mxu0 %v1559
        %4408 = vmatpush1.bf16.msra.mxu0 %v1558
        %4409 = vmatprep.subr.bf16.mxu0 %v1567
        %4410 = vmatpush1.bf16.msra.mxu0 %v1566
        %4411 = vmatprep.subr.bf16.mxu0 %v1575
        %4412 = vmatpush1.bf16.msra.mxu0 %v1574
        %4413 = vmatprep.mubr.bf16.mxu0 %v531
        %4414 = vmatmul.mubr.bf16.gmra.mrb[0].mxu0 %v530
        %v4415 = vpop.f32.mrb[0].mxu0
        %v4416 = vadd.f32 %v4375, %v4415
        %v4417 = vpop.f32.mrb[0].mxu0
        %v4418 = vadd.f32 %v4377, %v4417
        %v4419 = vpop.f32.mrb[0].mxu0
        %v4420 = vpop.f32.mrb[0].mxu0
        %4421 = vdwg.mxu0
        %4422 = vmatprep.subr.bf16.mxu0 %v1583
        %4423 = vmatpush1.bf16.msra.mxu0 %v1582
        %4424 = vmatprep.subr.bf16.mxu0 %v1591
        %4425 = vmatpush1.bf16.msra.mxu0 %v1590
        %4426 = vmatprep.subr.bf16.mxu0 %v1599
        %4427 = vmatpush1.bf16.msra.mxu0 %v1598
        %4428 = vmatprep.subr.bf16.mxu0 %v1607
        %4429 = vmatpush1.bf16.msra.mxu0 %v1606
        %4430 = vmatprep.subr.bf16.mxu0 %v1615
        %4431 = vmatpush1.bf16.msra.mxu0 %v1614
        %4432 = vmatprep.subr.bf16.mxu0 %v1623
        %4433 = vmatpush1.bf16.msra.mxu0 %v1622
        %4434 = vmatprep.subr.bf16.mxu0 %v1631
        %4435 = vmatpush1.bf16.msra.mxu0 %v1630
        %4436 = vmatprep.subr.bf16.mxu0 %v1639
        %4437 = vmatpush1.bf16.msra.mxu0 %v1638
        %4438 = vmatprep.subr.bf16.mxu0 %v1647
        %4439 = vmatpush1.bf16.msra.mxu0 %v1646
        %4440 = vmatprep.subr.bf16.mxu0 %v1655
        %4441 = vmatpush1.bf16.msra.mxu0 %v1654
        %4442 = vmatprep.subr.bf16.mxu0 %v1663
        %4443 = vmatpush1.bf16.msra.mxu0 %v1662
        %4444 = vmatprep.subr.bf16.mxu0 %v1671
        %4445 = vmatpush1.bf16.msra.mxu0 %v1670
        %4446 = vmatprep.subr.bf16.mxu0 %v1679
        %4447 = vmatpush1.bf16.msra.mxu0 %v1678
        %4448 = vmatprep.subr.bf16.mxu0 %v1687
        %4449 = vmatpush1.bf16.msra.mxu0 %v1686
        %4450 = vmatprep.subr.bf16.mxu0 %v1695
        %4451 = vmatpush1.bf16.msra.mxu0 %v1694
        %4452 = vmatprep.subr.bf16.mxu0 %v1703
        %4453 = vmatpush1.bf16.msra.mxu0 %v1702
        %4454 = vmatprep.mubr.bf16.mxu0 %v533
        %4455 = vmatmul.mubr.bf16.gmra.mrb[0].mxu0 %v532
        %v4456 = vpop.f32.mrb[0].mxu0
        %v4457 = vadd.f32 %v4416, %v4456
        %v4458 = vpop.f32.mrb[0].mxu0
        %v4459 = vadd.f32 %v4418, %v4458
        %v4460 = vpop.f32.mrb[0].mxu0
        %v4461 = vpop.f32.mrb[0].mxu0
        %4462 = vdwg.mxu0
        %4463 = vmatprep.subr.bf16.mxu0 %v1711
        %4464 = vmatpush1.bf16.msra.mxu0 %v1710
        %4465 = vmatprep.subr.bf16.mxu0 %v1719
        %4466 = vmatpush1.bf16.msra.mxu0 %v1718
        %4467 = vmatprep.subr.bf16.mxu0 %v1727
        %4468 = vmatpush1.bf16.msra.mxu0 %v1726
        %4469 = vmatprep.subr.bf16.mxu0 %v1735
        %4470 = vmatpush1.bf16.msra.mxu0 %v1734
        %4471 = vmatprep.subr.bf16.mxu0 %v1743
        %4472 = vmatpush1.bf16.msra.mxu0 %v1742
        %4473 = vmatprep.subr.bf16.mxu0 %v1751
        %4474 = vmatpush1.bf16.msra.mxu0 %v1750
        %4475 = vmatprep.subr.bf16.mxu0 %v1759
        %4476 = vmatpush1.bf16.msra.mxu0 %v1758
        %4477 = vmatprep.subr.bf16.mxu0 %v1767
        %4478 = vmatpush1.bf16.msra.mxu0 %v1766
        %4479 = vmatprep.subr.bf16.mxu0 %v1775
        %4480 = vmatpush1.bf16.msra.mxu0 %v1774
        %4481 = vmatprep.subr.bf16.mxu0 %v1783
        %4482 = vmatpush1.bf16.msra.mxu0 %v1782
        %4483 = vmatprep.subr.bf16.mxu0 %v1791
        %4484 = vmatpush1.bf16.msra.mxu0 %v1790
        %4485 = vmatprep.subr.bf16.mxu0 %v1799
        %4486 = vmatpush1.bf16.msra.mxu0 %v1798
        %4487 = vmatprep.subr.bf16.mxu0 %v1807
        %4488 = vmatpush1.bf16.msra.mxu0 %v1806
        %4489 = vmatprep.subr.bf16.mxu0 %v1815
        %4490 = vmatpush1.bf16.msra.mxu0 %v1814
        %4491 = vmatprep.subr.bf16.mxu0 %v1823
        %4492 = vmatpush1.bf16.msra.mxu0 %v1822
        %4493 = vmatprep.subr.bf16.mxu0 %v1831
        %4494 = vmatpush1.bf16.msra.mxu0 %v1830
        %4495 = vmatprep.mubr.bf16.mxu0 %v535
        %4496 = vmatmul.mubr.bf16.gmra.mrb[0].mxu0 %v534
        %v4497 = vpop.f32.mrb[0].mxu0
        %v4498 = vadd.f32 %v4457, %v4497
        %v4499 = vpop.f32.mrb[0].mxu0
        %v4500 = vadd.f32 %v4459, %v4499
        %v4501 = vpop.f32.mrb[0].mxu0
        %v4502 = vpop.f32.mrb[0].mxu0
        %4503 = vdwg.mxu0
        %4504 = vmatprep.subr.bf16.mxu0 %v1839
        %4505 = vmatpush1.bf16.msra.mxu0 %v1838
        %4506 = vmatprep.subr.bf16.mxu0 %v1847
        %4507 = vmatpush1.bf16.msra.mxu0 %v1846
        %4508 = vmatprep.subr.bf16.mxu0 %v1855
        %4509 = vmatpush1.bf16.msra.mxu0 %v1854
        %4510 = vmatprep.subr.bf16.mxu0 %v1863
        %4511 = vmatpush1.bf16.msra.mxu0 %v1862
        %4512 = vmatprep.subr.bf16.mxu0 %v1871
        %4513 = vmatpush1.bf16.msra.mxu0 %v1870
        %4514 = vmatprep.subr.bf16.mxu0 %v1879
        %4515 = vmatpush1.bf16.msra.mxu0 %v1878
        %4516 = vmatprep.subr.bf16.mxu0 %v1887
        %4517 = vmatpush1.bf16.msra.mxu0 %v1886
        %4518 = vmatprep.subr.bf16.mxu0 %v1895
        %4519 = vmatpush1.bf16.msra.mxu0 %v1894
        %4520 = vmatprep.subr.bf16.mxu0 %v1903
        %4521 = vmatpush1.bf16.msra.mxu0 %v1902
        %4522 = vmatprep.subr.bf16.mxu0 %v1911
        %4523 = vmatpush1.bf16.msra.mxu0 %v1910
        %4524 = vmatprep.subr.bf16.mxu0 %v1919
        %4525 = vmatpush1.bf16.msra.mxu0 %v1918
        %4526 = vmatprep.subr.bf16.mxu0 %v1927
        %4527 = vmatpush1.bf16.msra.mxu0 %v1926
        %4528 = vmatprep.subr.bf16.mxu0 %v1935
        %4529 = vmatpush1.bf16.msra.mxu0 %v1934
        %4530 = vmatprep.subr.bf16.mxu0 %v1943
        %4531 = vmatpush1.bf16.msra.mxu0 %v1942
        %4532 = vmatprep.subr.bf16.mxu0 %v1951
        %4533 = vmatpush1.bf16.msra.mxu0 %v1950
        %4534 = vmatprep.subr.bf16.mxu0 %v1959
        %4535 = vmatpush1.bf16.msra.mxu0 %v1958
        %4536 = vmatprep.mubr.bf16.mxu0 %v537
        %4537 = vmatmul.mubr.bf16.gmra.mrb[0].mxu0 %v536
        %v4538 = vpop.f32.mrb[0].mxu0
        %v4539 = vadd.f32 %v4498, %v4538
        %v4540 = vpop.f32.mrb[0].mxu0
        %v4541 = vadd.f32 %v4500, %v4540
        %v4542 = vpop.f32.mrb[0].mxu0
        %v4543 = vpop.f32.mrb[0].mxu0
        %4544 = vdwg.mxu0
        %4545 = vmatprep.subr.bf16.mxu0 %v1967
        %4546 = vmatpush1.bf16.msra.mxu0 %v1966
        %4547 = vmatprep.subr.bf16.mxu0 %v1975
        %4548 = vmatpush1.bf16.msra.mxu0 %v1974
        %4549 = vmatprep.subr.bf16.mxu0 %v1983
        %4550 = vmatpush1.bf16.msra.mxu0 %v1982
        %4551 = vmatprep.subr.bf16.mxu0 %v1991
        %4552 = vmatpush1.bf16.msra.mxu0 %v1990
        %4553 = vmatprep.subr.bf16.mxu0 %v1999
        %4554 = vmatpush1.bf16.msra.mxu0 %v1998
        %4555 = vmatprep.subr.bf16.mxu0 %v2007
        %4556 = vmatpush1.bf16.msra.mxu0 %v2006
        %4557 = vmatprep.subr.bf16.mxu0 %v2015
        %4558 = vmatpush1.bf16.msra.mxu0 %v2014
        %4559 = vmatprep.subr.bf16.mxu0 %v2023
        %4560 = vmatpush1.bf16.msra.mxu0 %v2022
        %4561 = vmatprep.subr.bf16.mxu0 %v2031
        %4562 = vmatpush1.bf16.msra.mxu0 %v2030
        %4563 = vmatprep.subr.bf16.mxu0 %v2039
        %4564 = vmatpush1.bf16.msra.mxu0 %v2038
        %4565 = vmatprep.subr.bf16.mxu0 %v2047
        %4566 = vmatpush1.bf16.msra.mxu0 %v2046
        %4567 = vmatprep.subr.bf16.mxu0 %v2055
        %4568 = vmatpush1.bf16.msra.mxu0 %v2054
        %4569 = vmatprep.subr.bf16.mxu0 %v2063
        %4570 = vmatpush1.bf16.msra.mxu0 %v2062
        %4571 = vmatprep.subr.bf16.mxu0 %v2071
        %4572 = vmatpush1.bf16.msra.mxu0 %v2070
        %4573 = vmatprep.subr.bf16.mxu0 %v2079
        %4574 = vmatpush1.bf16.msra.mxu0 %v2078
        %4575 = vmatprep.subr.bf16.mxu0 %v2087
        %4576 = vmatpush1.bf16.msra.mxu0 %v2086
        %4577 = vmatprep.mubr.bf16.mxu0 %v539
        %4578 = vmatmul.mubr.bf16.gmra.mrb[0].mxu0 %v538
        %v4579 = vpop.f32.mrb[0].mxu0
        %v4580 = vadd.f32 %v4539, %v4579
        %v4581 = vpop.f32.mrb[0].mxu0
        %v4582 = vadd.f32 %v4541, %v4581
        %v4583 = vpop.f32.mrb[0].mxu0
        %v4584 = vpop.f32.mrb[0].mxu0
        %4585 = vdwg.mxu0
        %4586 = vmatprep.subr.bf16.mxu0 %v2095
        %4587 = vmatpush1.bf16.msra.mxu0 %v2094
        %4588 = vmatprep.subr.bf16.mxu0 %v2103
        %4589 = vmatpush1.bf16.msra.mxu0 %v2102
        %4590 = vmatprep.subr.bf16.mxu0 %v2111
        %4591 = vmatpush1.bf16.msra.mxu0 %v2110
        %4592 = vmatprep.subr.bf16.mxu0 %v2119
        %4593 = vmatpush1.bf16.msra.mxu0 %v2118
        %4594 = vmatprep.subr.bf16.mxu0 %v2127
        %4595 = vmatpush1.bf16.msra.mxu0 %v2126
        %4596 = vmatprep.subr.bf16.mxu0 %v2135
        %4597 = vmatpush1.bf16.msra.mxu0 %v2134
        %4598 = vmatprep.subr.bf16.mxu0 %v2143
        %4599 = vmatpush1.bf16.msra.mxu0 %v2142
        %4600 = vmatprep.subr.bf16.mxu0 %v2151
        %4601 = vmatpush1.bf16.msra.mxu0 %v2150
        %4602 = vmatprep.subr.bf16.mxu0 %v2159
        %4603 = vmatpush1.bf16.msra.mxu0 %v2158
        %4604 = vmatprep.subr.bf16.mxu0 %v2167
        %4605 = vmatpush1.bf16.msra.mxu0 %v2166
        %4606 = vmatprep.subr.bf16.mxu0 %v2175
        %4607 = vmatpush1.bf16.msra.mxu0 %v2174
        %4608 = vmatprep.subr.bf16.mxu0 %v2183
        %4609 = vmatpush1.bf16.msra.mxu0 %v2182
        %4610 = vmatprep.subr.bf16.mxu0 %v2191
        %4611 = vmatpush1.bf16.msra.mxu0 %v2190
        %4612 = vmatprep.subr.bf16.mxu0 %v2199
        %4613 = vmatpush1.bf16.msra.mxu0 %v2198
        %4614 = vmatprep.subr.bf16.mxu0 %v2207
        %4615 = vmatpush1.bf16.msra.mxu0 %v2206
        %4616 = vmatprep.subr.bf16.mxu0 %v2215
        %4617 = vmatpush1.bf16.msra.mxu0 %v2214
        %4618 = vmatprep.mubr.bf16.mxu0 %v541
        %4619 = vmatmul.mubr.bf16.gmra.mrb[0].mxu0 %v540
        %v4620 = vpop.f32.mrb[0].mxu0
        %v4621 = vadd.f32 %v4580, %v4620
        %v4622 = vpop.f32.mrb[0].mxu0
        %v4623 = vadd.f32 %v4582, %v4622
        %v4624 = vpop.f32.mrb[0].mxu0
        %v4625 = vpop.f32.mrb[0].mxu0
        %4626 = vdwg.mxu0
        %4627 = vmatprep.subr.bf16.mxu0 %v2223
        %4628 = vmatpush1.bf16.msra.mxu0 %v2222
        %4629 = vmatprep.subr.bf16.mxu0 %v2231
        %4630 = vmatpush1.bf16.msra.mxu0 %v2230
        %4631 = vmatprep.subr.bf16.mxu0 %v2239
        %4632 = vmatpush1.bf16.msra.mxu0 %v2238
        %4633 = vmatprep.subr.bf16.mxu0 %v2247
        %4634 = vmatpush1.bf16.msra.mxu0 %v2246
        %4635 = vmatprep.subr.bf16.mxu0 %v2255
        %4636 = vmatpush1.bf16.msra.mxu0 %v2254
        %4637 = vmatprep.subr.bf16.mxu0 %v2263
        %4638 = vmatpush1.bf16.msra.mxu0 %v2262
        %4639 = vmatprep.subr.bf16.mxu0 %v2271
        %4640 = vmatpush1.bf16.msra.mxu0 %v2270
        %4641 = vmatprep.subr.bf16.mxu0 %v2279
        %4642 = vmatpush1.bf16.msra.mxu0 %v2278
        %4643 = vmatprep.subr.bf16.mxu0 %v2287
        %4644 = vmatpush1.bf16.msra.mxu0 %v2286
        %4645 = vmatprep.subr.bf16.mxu0 %v2295
        %4646 = vmatpush1.bf16.msra.mxu0 %v2294
        %4647 = vmatprep.subr.bf16.mxu0 %v2303
        %4648 = vmatpush1.bf16.msra.mxu0 %v2302
        %4649 = vmatprep.subr.bf16.mxu0 %v2311
        %4650 = vmatpush1.bf16.msra.mxu0 %v2310
        %4651 = vmatprep.subr.bf16.mxu0 %v2319
        %4652 = vmatpush1.bf16.msra.mxu0 %v2318
        %4653 = vmatprep.subr.bf16.mxu0 %v2327
        %4654 = vmatpush1.bf16.msra.mxu0 %v2326
        %4655 = vmatprep.subr.bf16.mxu0 %v2335
        %4656 = vmatpush1.bf16.msra.mxu0 %v2334
        %4657 = vmatprep.subr.bf16.mxu0 %v2343
        %4658 = vmatpush1.bf16.msra.mxu0 %v2342
        %4659 = vmatprep.mubr.bf16.mxu0 %v543
        %4660 = vmatmul.mubr.bf16.gmra.mrb[0].mxu0 %v542
        %v4661 = vpop.f32.mrb[0].mxu0
        %v4662 = vadd.f32 %v4621, %v4661
        %v4663 = vpop.f32.mrb[0].mxu0
        %v4664 = vadd.f32 %v4623, %v4663
        %v4665 = vpop.f32.mrb[0].mxu0
        %v4666 = vpop.f32.mrb[0].mxu0
        %4667 = vdwg.mxu0
        %4668 = vmatprep.subr.bf16.mxu0 %v2351
        %4669 = vmatpush1.bf16.msra.mxu0 %v2350
        %4670 = vmatprep.subr.bf16.mxu0 %v2359
        %4671 = vmatpush1.bf16.msra.mxu0 %v2358
        %4672 = vmatprep.subr.bf16.mxu0 %v2367
        %4673 = vmatpush1.bf16.msra.mxu0 %v2366
        %4674 = vmatprep.subr.bf16.mxu0 %v2375
        %4675 = vmatpush1.bf16.msra.mxu0 %v2374
        %4676 = vmatprep.subr.bf16.mxu0 %v2383
        %4677 = vmatpush1.bf16.msra.mxu0 %v2382
        %4678 = vmatprep.subr.bf16.mxu0 %v2391
        %4679 = vmatpush1.bf16.msra.mxu0 %v2390
        %4680 = vmatprep.subr.bf16.mxu0 %v2399
        %4681 = vmatpush1.bf16.msra.mxu0 %v2398
        %4682 = vmatprep.subr.bf16.mxu0 %v2407
        %4683 = vmatpush1.bf16.msra.mxu0 %v2406
        %4684 = vmatprep.subr.bf16.mxu0 %v2415
        %4685 = vmatpush1.bf16.msra.mxu0 %v2414
        %4686 = vmatprep.subr.bf16.mxu0 %v2423
        %4687 = vmatpush1.bf16.msra.mxu0 %v2422
        %4688 = vmatprep.subr.bf16.mxu0 %v2431
        %4689 = vmatpush1.bf16.msra.mxu0 %v2430
        %4690 = vmatprep.subr.bf16.mxu0 %v2439
        %4691 = vmatpush1.bf16.msra.mxu0 %v2438
        %4692 = vmatprep.subr.bf16.mxu0 %v2447
        %4693 = vmatpush1.bf16.msra.mxu0 %v2446
        %4694 = vmatprep.subr.bf16.mxu0 %v2455
        %4695 = vmatpush1.bf16.msra.mxu0 %v2454
        %4696 = vmatprep.subr.bf16.mxu0 %v2463
        %4697 = vmatpush1.bf16.msra.mxu0 %v2462
        %4698 = vmatprep.subr.bf16.mxu0 %v2471
        %4699 = vmatpush1.bf16.msra.mxu0 %v2470
        %4700 = vmatprep.mubr.bf16.mxu0 %v545
        %4701 = vmatmul.mubr.bf16.gmra.mrb[0].mxu0 %v544
        %v4702 = vpop.f32.mrb[0].mxu0
        %v4703 = vadd.f32 %v4662, %v4702
        %v4704 = vpop.f32.mrb[0].mxu0
        %v4705 = vadd.f32 %v4664, %v4704
        %v4706 = vpop.f32.mrb[0].mxu0
        %v4707 = vpop.f32.mrb[0].mxu0
        %4708 = vdwg.mxu0
        %4709 = vmatprep.subr.bf16.mxu0 %v2479
        %4710 = vmatpush1.bf16.msra.mxu0 %v2478
        %4711 = vmatprep.subr.bf16.mxu0 %v2487
        %4712 = vmatpush1.bf16.msra.mxu0 %v2486
        %4713 = vmatprep.subr.bf16.mxu0 %v2495
        %4714 = vmatpush1.bf16.msra.mxu0 %v2494
        %4715 = vmatprep.subr.bf16.mxu0 %v2503
        %4716 = vmatpush1.bf16.msra.mxu0 %v2502
        %4717 = vmatprep.subr.bf16.mxu0 %v2511
        %4718 = vmatpush1.bf16.msra.mxu0 %v2510
        %4719 = vmatprep.subr.bf16.mxu0 %v2519
        %4720 = vmatpush1.bf16.msra.mxu0 %v2518
        %4721 = vmatprep.subr.bf16.mxu0 %v2527
        %4722 = vmatpush1.bf16.msra.mxu0 %v2526
        %4723 = vmatprep.subr.bf16.mxu0 %v2535
        %4724 = vmatpush1.bf16.msra.mxu0 %v2534
        %4725 = vmatprep.subr.bf16.mxu0 %v2543
        %4726 = vmatpush1.bf16.msra.mxu0 %v2542
        %4727 = vmatprep.subr.bf16.mxu0 %v2551
        %4728 = vmatpush1.bf16.msra.mxu0 %v2550
        %4729 = vmatprep.subr.bf16.mxu0 %v2559
        %4730 = vmatpush1.bf16.msra.mxu0 %v2558
        %4731 = vmatprep.subr.bf16.mxu0 %v2567
        %4732 = vmatpush1.bf16.msra.mxu0 %v2566
        %4733 = vmatprep.subr.bf16.mxu0 %v2575
        %4734 = vmatpush1.bf16.msra.mxu0 %v2574
        %4735 = vmatprep.subr.bf16.mxu0 %v2583
        %4736 = vmatpush1.bf16.msra.mxu0 %v2582
        %4737 = vmatprep.subr.bf16.mxu0 %v2591
        %4738 = vmatpush1.bf16.msra.mxu0 %v2590
        %4739 = vmatprep.subr.bf16.mxu0 %v2599
        %4740 = vmatpush1.bf16.msra.mxu0 %v2598
        %4741 = vmatprep.mubr.bf16.mxu0 %v547
        %4742 = vmatmul.mubr.bf16.gmra.mrb[0].mxu0 %v546
        %v4743 = vpop.f32.mrb[0].mxu0
        %v4744 = vadd.f32 %v4703, %v4743
        %v4745 = vpop.f32.mrb[0].mxu0
        %v4746 = vadd.f32 %v4705, %v4745
        %v4747 = vpop.f32.mrb[0].mxu0
        %v4748 = vpop.f32.mrb[0].mxu0
        %4749 = vdwg.mxu0
        %4750 = vmatprep.subr.bf16.mxu0 %v2607
        %4751 = vmatpush1.bf16.msra.mxu0 %v2606
        %4752 = vmatprep.subr.bf16.mxu0 %v2615
        %4753 = vmatpush1.bf16.msra.mxu0 %v2614
        %4754 = vmatprep.subr.bf16.mxu0 %v2623
        %4755 = vmatpush1.bf16.msra.mxu0 %v2622
        %4756 = vmatprep.subr.bf16.mxu0 %v2631
        %4757 = vmatpush1.bf16.msra.mxu0 %v2630
        %4758 = vmatprep.subr.bf16.mxu0 %v2639
        %4759 = vmatpush1.bf16.msra.mxu0 %v2638
        %4760 = vmatprep.subr.bf16.mxu0 %v2647
        %4761 = vmatpush1.bf16.msra.mxu0 %v2646
        %4762 = vmatprep.subr.bf16.mxu0 %v2655
        %4763 = vmatpush1.bf16.msra.mxu0 %v2654
        %4764 = vmatprep.subr.bf16.mxu0 %v2663
        %4765 = vmatpush1.bf16.msra.mxu0 %v2662
        %4766 = vmatprep.subr.bf16.mxu0 %v2671
        %4767 = vmatpush1.bf16.msra.mxu0 %v2670
        %4768 = vmatprep.subr.bf16.mxu0 %v2679
        %4769 = vmatpush1.bf16.msra.mxu0 %v2678
        %4770 = vmatprep.subr.bf16.mxu0 %v2687
        %4771 = vmatpush1.bf16.msra.mxu0 %v2686
        %4772 = vmatprep.subr.bf16.mxu0 %v2695
        %4773 = vmatpush1.bf16.msra.mxu0 %v2694
        %4774 = vmatprep.subr.bf16.mxu0 %v2703
        %4775 = vmatpush1.bf16.msra.mxu0 %v2702
        %4776 = vmatprep.subr.bf16.mxu0 %v2711
        %4777 = vmatpush1.bf16.msra.mxu0 %v2710
        %4778 = vmatprep.subr.bf16.mxu0 %v2719
        %4779 = vmatpush1.bf16.msra.mxu0 %v2718
        %4780 = vmatprep.subr.bf16.mxu0 %v2727
        %4781 = vmatpush1.bf16.msra.mxu0 %v2726
        %4782 = vmatprep.mubr.bf16.mxu0 %v549
        %4783 = vmatmul.mubr.bf16.gmra.mrb[0].mxu0 %v548
        %v4784 = vpop.f32.mrb[0].mxu0
        %v4785 = vadd.f32 %v4744, %v4784
        %v4786 = vpop.f32.mrb[0].mxu0
        %v4787 = vadd.f32 %v4746, %v4786
        %v4788 = vpop.f32.mrb[0].mxu0
        %v4789 = vpop.f32.mrb[0].mxu0
        %4790 = vdwg.mxu0
        %4791 = vmatprep.subr.bf16.mxu0 %v2735
        %4792 = vmatpush1.bf16.msra.mxu0 %v2734
        %4793 = vmatprep.subr.bf16.mxu0 %v2743
        %4794 = vmatpush1.bf16.msra.mxu0 %v2742
        %4795 = vmatprep.subr.bf16.mxu0 %v2751
        %4796 = vmatpush1.bf16.msra.mxu0 %v2750
        %4797 = vmatprep.subr.bf16.mxu0 %v2759
        %4798 = vmatpush1.bf16.msra.mxu0 %v2758
        %4799 = vmatprep.subr.bf16.mxu0 %v2767
        %4800 = vmatpush1.bf16.msra.mxu0 %v2766
        %4801 = vmatprep.subr.bf16.mxu0 %v2775
        %4802 = vmatpush1.bf16.msra.mxu0 %v2774
        %4803 = vmatprep.subr.bf16.mxu0 %v2783
        %4804 = vmatpush1.bf16.msra.mxu0 %v2782
        %4805 = vmatprep.subr.bf16.mxu0 %v2791
        %4806 = vmatpush1.bf16.msra.mxu0 %v2790
        %4807 = vmatprep.subr.bf16.mxu0 %v2799
        %4808 = vmatpush1.bf16.msra.mxu0 %v2798
        %4809 = vmatprep.subr.bf16.mxu0 %v2807
        %4810 = vmatpush1.bf16.msra.mxu0 %v2806
        %4811 = vmatprep.subr.bf16.mxu0 %v2815
        %4812 = vmatpush1.bf16.msra.mxu0 %v2814
        %4813 = vmatprep.subr.bf16.mxu0 %v2823
        %4814 = vmatpush1.bf16.msra.mxu0 %v2822
        %4815 = vmatprep.subr.bf16.mxu0 %v2831
        %4816 = vmatpush1.bf16.msra.mxu0 %v2830
        %4817 = vmatprep.subr.bf16.mxu0 %v2839
        %4818 = vmatpush1.bf16.msra.mxu0 %v2838
        %4819 = vmatprep.subr.bf16.mxu0 %v2847
        %4820 = vmatpush1.bf16.msra.mxu0 %v2846
        %4821 = vmatprep.subr.bf16.mxu0 %v2855
        %4822 = vmatpush1.bf16.msra.mxu0 %v2854
        %4823 = vmatprep.mubr.bf16.mxu0 %v551
        %4824 = vmatmul.mubr.bf16.gmra.mrb[0].mxu0 %v550
        %v4825 = vpop.f32.mrb[0].mxu0
        %v4826 = vadd.f32 %v4785, %v4825
        %v4827 = vpop.f32.mrb[0].mxu0
        %v4828 = vadd.f32 %v4787, %v4827
        %v4829 = vpop.f32.mrb[0].mxu0
        %v4830 = vpop.f32.mrb[0].mxu0
        %4831 = vdwg.mxu0
        %v4832 = vadd.f32 %v2856, %v3350
        %v4833 = vadd.f32 %v2857, %v3352
        %v4834 = vadd.f32 %v2858, %v3842
        %v4835 = vadd.f32 %v2859, %v3844
        %v4836 = vadd.f32 %v2860, %v4334
        %v4837 = vadd.f32 %v2861, %v4336
        %v4838 = vadd.f32 %v2862, %v4826
        %v4839 = vadd.f32 %v2863, %v4828
        %4840 = vst [vmem:[#allocation2] sm:$0xff] %v4832
        %4841 = vst [vmem:[#allocation2 + $0x8] sm:$0xff] %v4833
        %4842 = vst [vmem:[#allocation2 + $0x10] sm:$0xff] %v4834
        %4843 = vst [vmem:[#allocation2 + $0x18] sm:$0xff] %v4835
        %4844 = vst [vmem:[#allocation2 + $0x20] sm:$0xff] %v4836
        %4845 = vst [vmem:[#allocation2 + $0x28] sm:$0xff] %v4837
        %4846 = vst [vmem:[#allocation2 + $0x30] sm:$0xff] %v4838
        %4847 = vst [vmem:[#allocation2 + $0x38] sm:$0xff] %v4839
        %p4848 = scmp.eq.s32.totalorder %s29, 1
        // Predicated region
        $region105: #{net_forward.1} parent=59 // pred_check
          %p4849 = pneg %p4848
        $region106: #{net_forward.1} parent=59 // pred_check_branch
          %4851 = sbr.rel (%p4849) target = $region108
        $region107: #{net_forward.1} parent=59 // pred_region
          %v4852 = vld [vmem:[#allocation2] sm:$0xff]
          %v4853 = vld [vmem:[#allocation2 + $0x8] sm:$0xff]
          %v4854 = vld [vmem:[#allocation2 + $0x10] sm:$0xff]
          %v4855 = vld [vmem:[#allocation2 + $0x18] sm:$0xff]
          %v4856 = vld [vmem:[#allocation2 + $0x20] sm:$0xff]
          %v4857 = vld [vmem:[#allocation2 + $0x28] sm:$0xff]
          %v4858 = vld [vmem:[#allocation2 + $0x30] sm:$0xff]
          %v4859 = vld [vmem:[#allocation2 + $0x38] sm:$0xff]
          %v4860 = vld [vmem:[#allocation7] sm:$0xff]
          %v4862 = vlaneseq
          %v4863 = vshrl.u32 %v4862, 7
          %v4864 = vsub.s32 0, %v4863
          %v4865 = vrot.slane %v4860, %v4864
          %v4866 = vlaneseq
          %v4867 = vshrl.u32 %v4866, 7
          %v4868 = vsub.s32 1, %v4867
          %v4869 = vrot.slane %v4860, %v4868
          %v4870 = vlaneseq
          %v4871 = vshrl.u32 %v4870, 7
          %v4872 = vsub.s32 2, %v4871
          %v4873 = vrot.slane %v4860, %v4872
          %v4874 = vlaneseq
          %v4875 = vshrl.u32 %v4874, 7
          %v4876 = vsub.s32 3, %v4875
          %v4877 = vrot.slane %v4860, %v4876
          %v4878 = vlaneseq
          %v4879 = vshrl.u32 %v4878, 7
          %v4880 = vsub.s32 4, %v4879
          %v4881 = vrot.slane %v4860, %v4880
          %v4882 = vlaneseq
          %v4883 = vshrl.u32 %v4882, 7
          %v4884 = vsub.s32 5, %v4883
          %v4885 = vrot.slane %v4860, %v4884
          %v4886 = vlaneseq
          %v4887 = vshrl.u32 %v4886, 7
          %v4888 = vsub.s32 6, %v4887
          %v4889 = vrot.slane %v4860, %v4888
          %v4890 = vlaneseq
          %v4891 = vshrl.u32 %v4890, 7
          %v4892 = vsub.s32 7, %v4891
          %v4893 = vrot.slane %v4860, %v4892
          %v4902 = vmul.f32 %v4852, %v4865
          %v4903 = vmul.f32 %v4853, %v4869
          %v4904 = vmul.f32 %v4854, %v4873
          %v4905 = vmul.f32 %v4855, %v4877
          %v4906 = vmul.f32 %v4856, %v4881
          %v4907 = vmul.f32 %v4857, %v4885
          %v4908 = vmul.f32 %v4858, %v4889
          %v4909 = vmul.f32 %v4859, %v4893
          %v4910 = vld [vmem:[#allocation8] sm:$0xff]
          %v4912 = vlaneseq
          %v4913 = vshrl.u32 %v4912, 7
          %v4914 = vsub.s32 0, %v4913
          %v4915 = vrot.slane %v4910, %v4914
          %v4916 = vlaneseq
          %v4917 = vshrl.u32 %v4916, 7
          %v4918 = vsub.s32 1, %v4917
          %v4919 = vrot.slane %v4910, %v4918
          %v4920 = vlaneseq
          %v4921 = vshrl.u32 %v4920, 7
          %v4922 = vsub.s32 2, %v4921
          %v4923 = vrot.slane %v4910, %v4922
          %v4924 = vlaneseq
          %v4925 = vshrl.u32 %v4924, 7
          %v4926 = vsub.s32 3, %v4925
          %v4927 = vrot.slane %v4910, %v4926
          %v4928 = vlaneseq
          %v4929 = vshrl.u32 %v4928, 7
          %v4930 = vsub.s32 4, %v4929
          %v4931 = vrot.slane %v4910, %v4930
          %v4932 = vlaneseq
          %v4933 = vshrl.u32 %v4932, 7
          %v4934 = vsub.s32 5, %v4933
          %v4935 = vrot.slane %v4910, %v4934
          %v4936 = vlaneseq
          %v4937 = vshrl.u32 %v4936, 7
          %v4938 = vsub.s32 6, %v4937
          %v4939 = vrot.slane %v4910, %v4938
          %v4940 = vlaneseq
          %v4941 = vshrl.u32 %v4940, 7
          %v4942 = vsub.s32 7, %v4941
          %v4943 = vrot.slane %v4910, %v4942
          %v4952 = vadd.f32 %v4902, %v4915
          %v4953 = vadd.f32 %v4903, %v4919
          %v4954 = vadd.f32 %v4904, %v4923
          %v4955 = vadd.f32 %v4905, %v4927
          %v4956 = vadd.f32 %v4906, %v4931
          %v4957 = vadd.f32 %v4907, %v4935
          %v4958 = vadd.f32 %v4908, %v4939
          %v4959 = vadd.f32 %v4909, %v4943
          %v4960 = vmax.f32 %v4952, 0.0
          %v4961 = vmax.f32 %v4953, 0.0
          %v4962 = vmax.f32 %v4954, 0.0
          %v4963 = vmax.f32 %v4955, 0.0
          %v4964 = vmax.f32 %v4956, 0.0
          %v4965 = vmax.f32 %v4957, 0.0
          %v4966 = vmax.f32 %v4958, 0.0
          %v4967 = vmax.f32 %v4959, 0.0
          %v4968 = vpack.c.bf16 %v4960, %v4960
          %v4969 = vpack.c.bf16 %v4961, %v4961
          %v4970 = vpack.c.bf16 %v4962, %v4962
          %v4971 = vpack.c.bf16 %v4963, %v4963
          %v4972 = vpack.c.bf16 %v4964, %v4964
          %v4973 = vpack.c.bf16 %v4965, %v4965
          %v4974 = vpack.c.bf16 %v4966, %v4966
          %v4975 = vpack.c.bf16 %v4967, %v4967
          %v4976 = vld [vmem:[#allocation10] sm:$0xff]
          %v4977 = vld [vmem:[#allocation10 + $0x8] sm:$0xff]
          %v4978 = vld [vmem:[#allocation10 + $0x10] sm:$0xff]
          %v4979 = vld [vmem:[#allocation10 + $0x18] sm:$0xff]
          %v4980 = vld [vmem:[#allocation10 + $0x20] sm:$0xff]
          %v4981 = vld [vmem:[#allocation10 + $0x28] sm:$0xff]
          %v4982 = vld [vmem:[#allocation10 + $0x30] sm:$0xff]
          %v4983 = vld [vmem:[#allocation10 + $0x38] sm:$0xff]
          %v4984 = vld [vmem:[#allocation10 + $0x40] sm:$0xff]
          %v4985 = vld [vmem:[#allocation10 + $0x48] sm:$0xff]
          %v4986 = vld [vmem:[#allocation10 + $0x50] sm:$0xff]
          %v4987 = vld [vmem:[#allocation10 + $0x58] sm:$0xff]
          %v4988 = vld [vmem:[#allocation10 + $0x60] sm:$0xff]
          %v4989 = vld [vmem:[#allocation10 + $0x68] sm:$0xff]
          %v4990 = vld [vmem:[#allocation10 + $0x70] sm:$0xff]
          %v4991 = vld [vmem:[#allocation10 + $0x78] sm:$0xff]
          %v4992 = vld [vmem:[#allocation10 + $0x80] sm:$0xff]
          %v4993 = vld [vmem:[#allocation10 + $0x88] sm:$0xff]
          %v4994 = vld [vmem:[#allocation10 + $0x90] sm:$0xff]
          %v4995 = vld [vmem:[#allocation10 + $0x98] sm:$0xff]
          %v4996 = vld [vmem:[#allocation10 + $0xa0] sm:$0xff]
          %v4997 = vld [vmem:[#allocation10 + $0xa8] sm:$0xff]
          %v4998 = vld [vmem:[#allocation10 + $0xb0] sm:$0xff]
          %v4999 = vld [vmem:[#allocation10 + $0xb8] sm:$0xff]
          %v5000 = vld [vmem:[#allocation10 + $0xc0] sm:$0xff]
          %v5001 = vld [vmem:[#allocation10 + $0xc8] sm:$0xff]
          %v5002 = vld [vmem:[#allocation10 + $0xd0] sm:$0xff]
          %v5003 = vld [vmem:[#allocation10 + $0xd8] sm:$0xff]
          %v5004 = vld [vmem:[#allocation10 + $0xe0] sm:$0xff]
          %v5005 = vld [vmem:[#allocation10 + $0xe8] sm:$0xff]
          %v5006 = vld [vmem:[#allocation10 + $0xf0] sm:$0xff]
          %v5007 = vld [vmem:[#allocation10 + $0xf8] sm:$0xff]
          %v5008 = vld [vmem:[#allocation10 + $0x100] sm:$0xff]
          %v5009 = vld [vmem:[#allocation10 + $0x108] sm:$0xff]
          %v5010 = vld [vmem:[#allocation10 + $0x110] sm:$0xff]
          %v5011 = vld [vmem:[#allocation10 + $0x118] sm:$0xff]
          %v5012 = vld [vmem:[#allocation10 + $0x120] sm:$0xff]
          %v5013 = vld [vmem:[#allocation10 + $0x128] sm:$0xff]
          %v5014 = vld [vmem:[#allocation10 + $0x130] sm:$0xff]
          %v5015 = vld [vmem:[#allocation10 + $0x138] sm:$0xff]
          %v5016 = vld [vmem:[#allocation10 + $0x140] sm:$0xff]
          %v5017 = vld [vmem:[#allocation10 + $0x148] sm:$0xff]
          %v5018 = vld [vmem:[#allocation10 + $0x150] sm:$0xff]
          %v5019 = vld [vmem:[#allocation10 + $0x158] sm:$0xff]
          %v5020 = vld [vmem:[#allocation10 + $0x160] sm:$0xff]
          %v5021 = vld [vmem:[#allocation10 + $0x168] sm:$0xff]
          %v5022 = vld [vmem:[#allocation10 + $0x170] sm:$0xff]
          %v5023 = vld [vmem:[#allocation10 + $0x178] sm:$0xff]
          %v5024 = vld [vmem:[#allocation10 + $0x180] sm:$0xff]
          %v5025 = vld [vmem:[#allocation10 + $0x188] sm:$0xff]
          %v5026 = vld [vmem:[#allocation10 + $0x190] sm:$0xff]
          %v5027 = vld [vmem:[#allocation10 + $0x198] sm:$0xff]
          %v5028 = vld [vmem:[#allocation10 + $0x1a0] sm:$0xff]
          %v5029 = vld [vmem:[#allocation10 + $0x1a8] sm:$0xff]
          %v5030 = vld [vmem:[#allocation10 + $0x1b0] sm:$0xff]
          %v5031 = vld [vmem:[#allocation10 + $0x1b8] sm:$0xff]
          %v5032 = vld [vmem:[#allocation10 + $0x1c0] sm:$0xff]
          %v5033 = vld [vmem:[#allocation10 + $0x1c8] sm:$0xff]
          %v5034 = vld [vmem:[#allocation10 + $0x1d0] sm:$0xff]
          %v5035 = vld [vmem:[#allocation10 + $0x1d8] sm:$0xff]
          %v5036 = vld [vmem:[#allocation10 + $0x1e0] sm:$0xff]
          %v5037 = vld [vmem:[#allocation10 + $0x1e8] sm:$0xff]
          %v5038 = vld [vmem:[#allocation10 + $0x1f0] sm:$0xff]
          %v5039 = vld [vmem:[#allocation10 + $0x1f8] sm:$0xff]
          %v5040 = vld [vmem:[#allocation10 + $0x200] sm:$0xff]
          %v5041 = vld [vmem:[#allocation10 + $0x208] sm:$0xff]
          %v5042 = vld [vmem:[#allocation10 + $0x210] sm:$0xff]
          %v5043 = vld [vmem:[#allocation10 + $0x218] sm:$0xff]
          %v5044 = vld [vmem:[#allocation10 + $0x220] sm:$0xff]
          %v5045 = vld [vmem:[#allocation10 + $0x228] sm:$0xff]
          %v5046 = vld [vmem:[#allocation10 + $0x230] sm:$0xff]
          %v5047 = vld [vmem:[#allocation10 + $0x238] sm:$0xff]
          %v5048 = vld [vmem:[#allocation10 + $0x240] sm:$0xff]
          %v5049 = vld [vmem:[#allocation10 + $0x248] sm:$0xff]
          %v5050 = vld [vmem:[#allocation10 + $0x250] sm:$0xff]
          %v5051 = vld [vmem:[#allocation10 + $0x258] sm:$0xff]
          %v5052 = vld [vmem:[#allocation10 + $0x260] sm:$0xff]
          %v5053 = vld [vmem:[#allocation10 + $0x268] sm:$0xff]
          %v5054 = vld [vmem:[#allocation10 + $0x270] sm:$0xff]
          %v5055 = vld [vmem:[#allocation10 + $0x278] sm:$0xff]
          %v5056 = vld [vmem:[#allocation10 + $0x280] sm:$0xff]
          %v5057 = vld [vmem:[#allocation10 + $0x288] sm:$0xff]
          %v5058 = vld [vmem:[#allocation10 + $0x290] sm:$0xff]
          %v5059 = vld [vmem:[#allocation10 + $0x298] sm:$0xff]
          %v5060 = vld [vmem:[#allocation10 + $0x2a0] sm:$0xff]
          %v5061 = vld [vmem:[#allocation10 + $0x2a8] sm:$0xff]
          %v5062 = vld [vmem:[#allocation10 + $0x2b0] sm:$0xff]
          %v5063 = vld [vmem:[#allocation10 + $0x2b8] sm:$0xff]
          %v5064 = vld [vmem:[#allocation10 + $0x2c0] sm:$0xff]
          %v5065 = vld [vmem:[#allocation10 + $0x2c8] sm:$0xff]
          %v5066 = vld [vmem:[#allocation10 + $0x2d0] sm:$0xff]
          %v5067 = vld [vmem:[#allocation10 + $0x2d8] sm:$0xff]
          %v5068 = vld [vmem:[#allocation10 + $0x2e0] sm:$0xff]
          %v5069 = vld [vmem:[#allocation10 + $0x2e8] sm:$0xff]
          %v5070 = vld [vmem:[#allocation10 + $0x2f0] sm:$0xff]
          %v5071 = vld [vmem:[#allocation10 + $0x2f8] sm:$0xff]
          %v5072 = vld [vmem:[#allocation10 + $0x300] sm:$0xff]
          %v5073 = vld [vmem:[#allocation10 + $0x308] sm:$0xff]
          %v5074 = vld [vmem:[#allocation10 + $0x310] sm:$0xff]
          %v5075 = vld [vmem:[#allocation10 + $0x318] sm:$0xff]
          %v5076 = vld [vmem:[#allocation10 + $0x320] sm:$0xff]
          %v5077 = vld [vmem:[#allocation10 + $0x328] sm:$0xff]
          %v5078 = vld [vmem:[#allocation10 + $0x330] sm:$0xff]
          %v5079 = vld [vmem:[#allocation10 + $0x338] sm:$0xff]
          %v5080 = vld [vmem:[#allocation10 + $0x340] sm:$0xff]
          %v5081 = vld [vmem:[#allocation10 + $0x348] sm:$0xff]
          %v5082 = vld [vmem:[#allocation10 + $0x350] sm:$0xff]
          %v5083 = vld [vmem:[#allocation10 + $0x358] sm:$0xff]
          %v5084 = vld [vmem:[#allocation10 + $0x360] sm:$0xff]
          %v5085 = vld [vmem:[#allocation10 + $0x368] sm:$0xff]
          %v5086 = vld [vmem:[#allocation10 + $0x370] sm:$0xff]
          %v5087 = vld [vmem:[#allocation10 + $0x378] sm:$0xff]
          %v5088 = vld [vmem:[#allocation10 + $0x380] sm:$0xff]
          %v5089 = vld [vmem:[#allocation10 + $0x388] sm:$0xff]
          %v5090 = vld [vmem:[#allocation10 + $0x390] sm:$0xff]
          %v5091 = vld [vmem:[#allocation10 + $0x398] sm:$0xff]
          %v5092 = vld [vmem:[#allocation10 + $0x3a0] sm:$0xff]
          %v5093 = vld [vmem:[#allocation10 + $0x3a8] sm:$0xff]
          %v5094 = vld [vmem:[#allocation10 + $0x3b0] sm:$0xff]
          %v5095 = vld [vmem:[#allocation10 + $0x3b8] sm:$0xff]
          %v5096 = vld [vmem:[#allocation10 + $0x3c0] sm:$0xff]
          %v5097 = vld [vmem:[#allocation10 + $0x3c8] sm:$0xff]
          %v5098 = vld [vmem:[#allocation10 + $0x3d0] sm:$0xff]
          %v5099 = vld [vmem:[#allocation10 + $0x3d8] sm:$0xff]
          %v5100 = vld [vmem:[#allocation10 + $0x3e0] sm:$0xff]
          %v5101 = vld [vmem:[#allocation10 + $0x3e8] sm:$0xff]
          %v5102 = vld [vmem:[#allocation10 + $0x3f0] sm:$0xff]
          %v5103 = vld [vmem:[#allocation10 + $0x3f8] sm:$0xff]
          %v5104 = vld [vmem:[#allocation10 + $0x400] sm:$0xff]
          %v5105 = vld [vmem:[#allocation10 + $0x408] sm:$0xff]
          %v5106 = vld [vmem:[#allocation10 + $0x410] sm:$0xff]
          %v5107 = vld [vmem:[#allocation10 + $0x418] sm:$0xff]
          %v5108 = vld [vmem:[#allocation10 + $0x420] sm:$0xff]
          %v5109 = vld [vmem:[#allocation10 + $0x428] sm:$0xff]
          %v5110 = vld [vmem:[#allocation10 + $0x430] sm:$0xff]
          %v5111 = vld [vmem:[#allocation10 + $0x438] sm:$0xff]
          %v5112 = vld [vmem:[#allocation10 + $0x440] sm:$0xff]
          %v5113 = vld [vmem:[#allocation10 + $0x448] sm:$0xff]
          %v5114 = vld [vmem:[#allocation10 + $0x450] sm:$0xff]
          %v5115 = vld [vmem:[#allocation10 + $0x458] sm:$0xff]
          %v5116 = vld [vmem:[#allocation10 + $0x460] sm:$0xff]
          %v5117 = vld [vmem:[#allocation10 + $0x468] sm:$0xff]
          %v5118 = vld [vmem:[#allocation10 + $0x470] sm:$0xff]
          %v5119 = vld [vmem:[#allocation10 + $0x478] sm:$0xff]
          %v5120 = vld [vmem:[#allocation10 + $0x480] sm:$0xff]
          %v5121 = vld [vmem:[#allocation10 + $0x488] sm:$0xff]
          %v5122 = vld [vmem:[#allocation10 + $0x490] sm:$0xff]
          %v5123 = vld [vmem:[#allocation10 + $0x498] sm:$0xff]
          %v5124 = vld [vmem:[#allocation10 + $0x4a0] sm:$0xff]
          %v5125 = vld [vmem:[#allocation10 + $0x4a8] sm:$0xff]
          %v5126 = vld [vmem:[#allocation10 + $0x4b0] sm:$0xff]
          %v5127 = vld [vmem:[#allocation10 + $0x4b8] sm:$0xff]
          %v5128 = vld [vmem:[#allocation10 + $0x4c0] sm:$0xff]
          %v5129 = vld [vmem:[#allocation10 + $0x4c8] sm:$0xff]
          %v5130 = vld [vmem:[#allocation10 + $0x4d0] sm:$0xff]
          %v5131 = vld [vmem:[#allocation10 + $0x4d8] sm:$0xff]
          %v5132 = vld [vmem:[#allocation10 + $0x4e0] sm:$0xff]
          %v5133 = vld [vmem:[#allocation10 + $0x4e8] sm:$0xff]
          %v5134 = vld [vmem:[#allocation10 + $0x4f0] sm:$0xff]
          %v5135 = vld [vmem:[#allocation10 + $0x4f8] sm:$0xff]
          %v5136 = vld [vmem:[#allocation10 + $0x500] sm:$0xff]
          %v5137 = vld [vmem:[#allocation10 + $0x508] sm:$0xff]
          %v5138 = vld [vmem:[#allocation10 + $0x510] sm:$0xff]
          %v5139 = vld [vmem:[#allocation10 + $0x518] sm:$0xff]
          %v5140 = vld [vmem:[#allocation10 + $0x520] sm:$0xff]
          %v5141 = vld [vmem:[#allocation10 + $0x528] sm:$0xff]
          %v5142 = vld [vmem:[#allocation10 + $0x530] sm:$0xff]
          %v5143 = vld [vmem:[#allocation10 + $0x538] sm:$0xff]
          %v5144 = vld [vmem:[#allocation10 + $0x540] sm:$0xff]
          %v5145 = vld [vmem:[#allocation10 + $0x548] sm:$0xff]
          %v5146 = vld [vmem:[#allocation10 + $0x550] sm:$0xff]
          %v5147 = vld [vmem:[#allocation10 + $0x558] sm:$0xff]
          %v5148 = vld [vmem:[#allocation10 + $0x560] sm:$0xff]
          %v5149 = vld [vmem:[#allocation10 + $0x568] sm:$0xff]
          %v5150 = vld [vmem:[#allocation10 + $0x570] sm:$0xff]
          %v5151 = vld [vmem:[#allocation10 + $0x578] sm:$0xff]
          %v5152 = vld [vmem:[#allocation10 + $0x580] sm:$0xff]
          %v5153 = vld [vmem:[#allocation10 + $0x588] sm:$0xff]
          %v5154 = vld [vmem:[#allocation10 + $0x590] sm:$0xff]
          %v5155 = vld [vmem:[#allocation10 + $0x598] sm:$0xff]
          %v5156 = vld [vmem:[#allocation10 + $0x5a0] sm:$0xff]
          %v5157 = vld [vmem:[#allocation10 + $0x5a8] sm:$0xff]
          %v5158 = vld [vmem:[#allocation10 + $0x5b0] sm:$0xff]
          %v5159 = vld [vmem:[#allocation10 + $0x5b8] sm:$0xff]
          %v5160 = vld [vmem:[#allocation10 + $0x5c0] sm:$0xff]
          %v5161 = vld [vmem:[#allocation10 + $0x5c8] sm:$0xff]
          %v5162 = vld [vmem:[#allocation10 + $0x5d0] sm:$0xff]
          %v5163 = vld [vmem:[#allocation10 + $0x5d8] sm:$0xff]
          %v5164 = vld [vmem:[#allocation10 + $0x5e0] sm:$0xff]
          %v5165 = vld [vmem:[#allocation10 + $0x5e8] sm:$0xff]
          %v5166 = vld [vmem:[#allocation10 + $0x5f0] sm:$0xff]
          %v5167 = vld [vmem:[#allocation10 + $0x5f8] sm:$0xff]
          %v5168 = vld [vmem:[#allocation10 + $0x600] sm:$0xff]
          %v5169 = vld [vmem:[#allocation10 + $0x608] sm:$0xff]
          %v5170 = vld [vmem:[#allocation10 + $0x610] sm:$0xff]
          %v5171 = vld [vmem:[#allocation10 + $0x618] sm:$0xff]
          %v5172 = vld [vmem:[#allocation10 + $0x620] sm:$0xff]
          %v5173 = vld [vmem:[#allocation10 + $0x628] sm:$0xff]
          %v5174 = vld [vmem:[#allocation10 + $0x630] sm:$0xff]
          %v5175 = vld [vmem:[#allocation10 + $0x638] sm:$0xff]
          %v5176 = vld [vmem:[#allocation10 + $0x640] sm:$0xff]
          %v5177 = vld [vmem:[#allocation10 + $0x648] sm:$0xff]
          %v5178 = vld [vmem:[#allocation10 + $0x650] sm:$0xff]
          %v5179 = vld [vmem:[#allocation10 + $0x658] sm:$0xff]
          %v5180 = vld [vmem:[#allocation10 + $0x660] sm:$0xff]
          %v5181 = vld [vmem:[#allocation10 + $0x668] sm:$0xff]
          %v5182 = vld [vmem:[#allocation10 + $0x670] sm:$0xff]
          %v5183 = vld [vmem:[#allocation10 + $0x678] sm:$0xff]
          %v5184 = vld [vmem:[#allocation10 + $0x680] sm:$0xff]
          %v5185 = vld [vmem:[#allocation10 + $0x688] sm:$0xff]
          %v5186 = vld [vmem:[#allocation10 + $0x690] sm:$0xff]
          %v5187 = vld [vmem:[#allocation10 + $0x698] sm:$0xff]
          %v5188 = vld [vmem:[#allocation10 + $0x6a0] sm:$0xff]
          %v5189 = vld [vmem:[#allocation10 + $0x6a8] sm:$0xff]
          %v5190 = vld [vmem:[#allocation10 + $0x6b0] sm:$0xff]
          %v5191 = vld [vmem:[#allocation10 + $0x6b8] sm:$0xff]
          %v5192 = vld [vmem:[#allocation10 + $0x6c0] sm:$0xff]
          %v5193 = vld [vmem:[#allocation10 + $0x6c8] sm:$0xff]
          %v5194 = vld [vmem:[#allocation10 + $0x6d0] sm:$0xff]
          %v5195 = vld [vmem:[#allocation10 + $0x6d8] sm:$0xff]
          %v5196 = vld [vmem:[#allocation10 + $0x6e0] sm:$0xff]
          %v5197 = vld [vmem:[#allocation10 + $0x6e8] sm:$0xff]
          %v5198 = vld [vmem:[#allocation10 + $0x6f0] sm:$0xff]
          %v5199 = vld [vmem:[#allocation10 + $0x6f8] sm:$0xff]
          %v5200 = vld [vmem:[#allocation10 + $0x700] sm:$0xff]
          %v5201 = vld [vmem:[#allocation10 + $0x708] sm:$0xff]
          %v5202 = vld [vmem:[#allocation10 + $0x710] sm:$0xff]
          %v5203 = vld [vmem:[#allocation10 + $0x718] sm:$0xff]
          %v5204 = vld [vmem:[#allocation10 + $0x720] sm:$0xff]
          %v5205 = vld [vmem:[#allocation10 + $0x728] sm:$0xff]
          %v5206 = vld [vmem:[#allocation10 + $0x730] sm:$0xff]
          %v5207 = vld [vmem:[#allocation10 + $0x738] sm:$0xff]
          %v5208 = vld [vmem:[#allocation10 + $0x740] sm:$0xff]
          %v5209 = vld [vmem:[#allocation10 + $0x748] sm:$0xff]
          %v5210 = vld [vmem:[#allocation10 + $0x750] sm:$0xff]
          %v5211 = vld [vmem:[#allocation10 + $0x758] sm:$0xff]
          %v5212 = vld [vmem:[#allocation10 + $0x760] sm:$0xff]
          %v5213 = vld [vmem:[#allocation10 + $0x768] sm:$0xff]
          %v5214 = vld [vmem:[#allocation10 + $0x770] sm:$0xff]
          %v5215 = vld [vmem:[#allocation10 + $0x778] sm:$0xff]
          %v5216 = vld [vmem:[#allocation10 + $0x780] sm:$0xff]
          %v5217 = vld [vmem:[#allocation10 + $0x788] sm:$0xff]
          %v5218 = vld [vmem:[#allocation10 + $0x790] sm:$0xff]
          %v5219 = vld [vmem:[#allocation10 + $0x798] sm:$0xff]
          %v5220 = vld [vmem:[#allocation10 + $0x7a0] sm:$0xff]
          %v5221 = vld [vmem:[#allocation10 + $0x7a8] sm:$0xff]
          %v5222 = vld [vmem:[#allocation10 + $0x7b0] sm:$0xff]
          %v5223 = vld [vmem:[#allocation10 + $0x7b8] sm:$0xff]
          %v5224 = vld [vmem:[#allocation10 + $0x7c0] sm:$0xff]
          %v5225 = vld [vmem:[#allocation10 + $0x7c8] sm:$0xff]
          %v5226 = vld [vmem:[#allocation10 + $0x7d0] sm:$0xff]
          %v5227 = vld [vmem:[#allocation10 + $0x7d8] sm:$0xff]
          %v5228 = vld [vmem:[#allocation10 + $0x7e0] sm:$0xff]
          %v5229 = vld [vmem:[#allocation10 + $0x7e8] sm:$0xff]
          %v5230 = vld [vmem:[#allocation10 + $0x7f0] sm:$0xff]
          %v5231 = vld [vmem:[#allocation10 + $0x7f8] sm:$0xff]
          %v5232 = vld [vmem:[#allocation11] sm:$0xf]
          %v5234 = vlaneseq
          %v5235 = vshrl.u32 %v5234, 7
          %v5236 = vsub.s32 0, %v5235
          %v5237 = vrot.slane %v5232, %v5236
          %v5238 = vlaneseq
          %v5239 = vshrl.u32 %v5238, 7
          %v5240 = vsub.s32 1, %v5239
          %v5241 = vrot.slane %v5232, %v5240
          %v5242 = vlaneseq
          %v5243 = vshrl.u32 %v5242, 7
          %v5244 = vsub.s32 2, %v5243
          %v5245 = vrot.slane %v5232, %v5244
          %v5246 = vlaneseq
          %v5247 = vshrl.u32 %v5246, 7
          %v5248 = vsub.s32 3, %v5247
          %v5249 = vrot.slane %v5232, %v5248
          %v5510 = vunpack.c.l.b16 %v4976
          %v5511 = vunpack.c.h.b16 %v4976
          %v5512 = vunpack.c.l.b16 %v4977
          %v5513 = vunpack.c.h.b16 %v4977
          %v5514 = vunpack.c.l.b16 %v4978
          %v5515 = vunpack.c.h.b16 %v4978
          %v5516 = vunpack.c.l.b16 %v4979
          %v5517 = vunpack.c.h.b16 %v4979
          %v5518 = vunpack.c.l.b16 %v4980
          %v5519 = vunpack.c.h.b16 %v4980
          %v5520 = vunpack.c.l.b16 %v4981
          %v5521 = vunpack.c.h.b16 %v4981
          %v5522 = vunpack.c.l.b16 %v4982
          %v5523 = vunpack.c.h.b16 %v4982
          %v5524 = vunpack.c.l.b16 %v4983
          %v5525 = vunpack.c.h.b16 %v4983
          %v5526 = vunpack.c.l.b16 %v4984
          %v5527 = vunpack.c.h.b16 %v4984
          %v5528 = vunpack.c.l.b16 %v4985
          %v5529 = vunpack.c.h.b16 %v4985
          %v5530 = vunpack.c.l.b16 %v4986
          %v5531 = vunpack.c.h.b16 %v4986
          %v5532 = vunpack.c.l.b16 %v4987
          %v5533 = vunpack.c.h.b16 %v4987
          %v5534 = vunpack.c.l.b16 %v4988
          %v5535 = vunpack.c.h.b16 %v4988
          %v5536 = vunpack.c.l.b16 %v4989
          %v5537 = vunpack.c.h.b16 %v4989
          %v5538 = vunpack.c.l.b16 %v4990
          %v5539 = vunpack.c.h.b16 %v4990
          %v5540 = vunpack.c.l.b16 %v4991
          %v5541 = vunpack.c.h.b16 %v4991
          %v5542 = vunpack.c.l.b16 %v4992
          %v5543 = vunpack.c.h.b16 %v4992
          %v5544 = vunpack.c.l.b16 %v4993
          %v5545 = vunpack.c.h.b16 %v4993
          %v5546 = vunpack.c.l.b16 %v4994
          %v5547 = vunpack.c.h.b16 %v4994
          %v5548 = vunpack.c.l.b16 %v4995
          %v5549 = vunpack.c.h.b16 %v4995
          %v5550 = vunpack.c.l.b16 %v4996
          %v5551 = vunpack.c.h.b16 %v4996
          %v5552 = vunpack.c.l.b16 %v4997
          %v5553 = vunpack.c.h.b16 %v4997
          %v5554 = vunpack.c.l.b16 %v4998
          %v5555 = vunpack.c.h.b16 %v4998
          %v5556 = vunpack.c.l.b16 %v4999
          %v5557 = vunpack.c.h.b16 %v4999
          %v5558 = vunpack.c.l.b16 %v5000
          %v5559 = vunpack.c.h.b16 %v5000
          %v5560 = vunpack.c.l.b16 %v5001
          %v5561 = vunpack.c.h.b16 %v5001
          %v5562 = vunpack.c.l.b16 %v5002
          %v5563 = vunpack.c.h.b16 %v5002
          %v5564 = vunpack.c.l.b16 %v5003
          %v5565 = vunpack.c.h.b16 %v5003
          %v5566 = vunpack.c.l.b16 %v5004
          %v5567 = vunpack.c.h.b16 %v5004
          %v5568 = vunpack.c.l.b16 %v5005
          %v5569 = vunpack.c.h.b16 %v5005
          %v5570 = vunpack.c.l.b16 %v5006
          %v5571 = vunpack.c.h.b16 %v5006
          %v5572 = vunpack.c.l.b16 %v5007
          %v5573 = vunpack.c.h.b16 %v5007
          %v5574 = vunpack.c.l.b16 %v5008
          %v5575 = vunpack.c.h.b16 %v5008
          %v5576 = vunpack.c.l.b16 %v5009
          %v5577 = vunpack.c.h.b16 %v5009
          %v5578 = vunpack.c.l.b16 %v5010
          %v5579 = vunpack.c.h.b16 %v5010
          %v5580 = vunpack.c.l.b16 %v5011
          %v5581 = vunpack.c.h.b16 %v5011
          %v5582 = vunpack.c.l.b16 %v5012
          %v5583 = vunpack.c.h.b16 %v5012
          %v5584 = vunpack.c.l.b16 %v5013
          %v5585 = vunpack.c.h.b16 %v5013
          %v5586 = vunpack.c.l.b16 %v5014
          %v5587 = vunpack.c.h.b16 %v5014
          %v5588 = vunpack.c.l.b16 %v5015
          %v5589 = vunpack.c.h.b16 %v5015
          %v5590 = vunpack.c.l.b16 %v5016
          %v5591 = vunpack.c.h.b16 %v5016
          %v5592 = vunpack.c.l.b16 %v5017
          %v5593 = vunpack.c.h.b16 %v5017
          %v5594 = vunpack.c.l.b16 %v5018
          %v5595 = vunpack.c.h.b16 %v5018
          %v5596 = vunpack.c.l.b16 %v5019
          %v5597 = vunpack.c.h.b16 %v5019
          %v5598 = vunpack.c.l.b16 %v5020
          %v5599 = vunpack.c.h.b16 %v5020
          %v5600 = vunpack.c.l.b16 %v5021
          %v5601 = vunpack.c.h.b16 %v5021
          %v5602 = vunpack.c.l.b16 %v5022
          %v5603 = vunpack.c.h.b16 %v5022
          %v5604 = vunpack.c.l.b16 %v5023
          %v5605 = vunpack.c.h.b16 %v5023
          %v5606 = vunpack.c.l.b16 %v5024
          %v5607 = vunpack.c.h.b16 %v5024
          %v5608 = vunpack.c.l.b16 %v5025
          %v5609 = vunpack.c.h.b16 %v5025
          %v5610 = vunpack.c.l.b16 %v5026
          %v5611 = vunpack.c.h.b16 %v5026
          %v5612 = vunpack.c.l.b16 %v5027
          %v5613 = vunpack.c.h.b16 %v5027
          %v5614 = vunpack.c.l.b16 %v5028
          %v5615 = vunpack.c.h.b16 %v5028
          %v5616 = vunpack.c.l.b16 %v5029
          %v5617 = vunpack.c.h.b16 %v5029
          %v5618 = vunpack.c.l.b16 %v5030
          %v5619 = vunpack.c.h.b16 %v5030
          %v5620 = vunpack.c.l.b16 %v5031
          %v5621 = vunpack.c.h.b16 %v5031
          %v5622 = vunpack.c.l.b16 %v5032
          %v5623 = vunpack.c.h.b16 %v5032
          %v5624 = vunpack.c.l.b16 %v5033
          %v5625 = vunpack.c.h.b16 %v5033
          %v5626 = vunpack.c.l.b16 %v5034
          %v5627 = vunpack.c.h.b16 %v5034
          %v5628 = vunpack.c.l.b16 %v5035
          %v5629 = vunpack.c.h.b16 %v5035
          %v5630 = vunpack.c.l.b16 %v5036
          %v5631 = vunpack.c.h.b16 %v5036
          %v5632 = vunpack.c.l.b16 %v5037
          %v5633 = vunpack.c.h.b16 %v5037
          %v5634 = vunpack.c.l.b16 %v5038
          %v5635 = vunpack.c.h.b16 %v5038
          %v5636 = vunpack.c.l.b16 %v5039
          %v5637 = vunpack.c.h.b16 %v5039
          %v5638 = vunpack.c.l.b16 %v5040
          %v5639 = vunpack.c.h.b16 %v5040
          %v5640 = vunpack.c.l.b16 %v5041
          %v5641 = vunpack.c.h.b16 %v5041
          %v5642 = vunpack.c.l.b16 %v5042
          %v5643 = vunpack.c.h.b16 %v5042
          %v5644 = vunpack.c.l.b16 %v5043
          %v5645 = vunpack.c.h.b16 %v5043
          %v5646 = vunpack.c.l.b16 %v5044
          %v5647 = vunpack.c.h.b16 %v5044
          %v5648 = vunpack.c.l.b16 %v5045
          %v5649 = vunpack.c.h.b16 %v5045
          %v5650 = vunpack.c.l.b16 %v5046
          %v5651 = vunpack.c.h.b16 %v5046
          %v5652 = vunpack.c.l.b16 %v5047
          %v5653 = vunpack.c.h.b16 %v5047
          %v5654 = vunpack.c.l.b16 %v5048
          %v5655 = vunpack.c.h.b16 %v5048
          %v5656 = vunpack.c.l.b16 %v5049
          %v5657 = vunpack.c.h.b16 %v5049
          %v5658 = vunpack.c.l.b16 %v5050
          %v5659 = vunpack.c.h.b16 %v5050
          %v5660 = vunpack.c.l.b16 %v5051
          %v5661 = vunpack.c.h.b16 %v5051
          %v5662 = vunpack.c.l.b16 %v5052
          %v5663 = vunpack.c.h.b16 %v5052
          %v5664 = vunpack.c.l.b16 %v5053
          %v5665 = vunpack.c.h.b16 %v5053
          %v5666 = vunpack.c.l.b16 %v5054
          %v5667 = vunpack.c.h.b16 %v5054
          %v5668 = vunpack.c.l.b16 %v5055
          %v5669 = vunpack.c.h.b16 %v5055
          %v5670 = vunpack.c.l.b16 %v5056
          %v5671 = vunpack.c.h.b16 %v5056
          %v5672 = vunpack.c.l.b16 %v5057
          %v5673 = vunpack.c.h.b16 %v5057
          %v5674 = vunpack.c.l.b16 %v5058
          %v5675 = vunpack.c.h.b16 %v5058
          %v5676 = vunpack.c.l.b16 %v5059
          %v5677 = vunpack.c.h.b16 %v5059
          %v5678 = vunpack.c.l.b16 %v5060
          %v5679 = vunpack.c.h.b16 %v5060
          %v5680 = vunpack.c.l.b16 %v5061
          %v5681 = vunpack.c.h.b16 %v5061
          %v5682 = vunpack.c.l.b16 %v5062
          %v5683 = vunpack.c.h.b16 %v5062
          %v5684 = vunpack.c.l.b16 %v5063
          %v5685 = vunpack.c.h.b16 %v5063
          %v5686 = vunpack.c.l.b16 %v5064
          %v5687 = vunpack.c.h.b16 %v5064
          %v5688 = vunpack.c.l.b16 %v5065
          %v5689 = vunpack.c.h.b16 %v5065
          %v5690 = vunpack.c.l.b16 %v5066
          %v5691 = vunpack.c.h.b16 %v5066
          %v5692 = vunpack.c.l.b16 %v5067
          %v5693 = vunpack.c.h.b16 %v5067
          %v5694 = vunpack.c.l.b16 %v5068
          %v5695 = vunpack.c.h.b16 %v5068
          %v5696 = vunpack.c.l.b16 %v5069
          %v5697 = vunpack.c.h.b16 %v5069
          %v5698 = vunpack.c.l.b16 %v5070
          %v5699 = vunpack.c.h.b16 %v5070
          %v5700 = vunpack.c.l.b16 %v5071
          %v5701 = vunpack.c.h.b16 %v5071
          %v5702 = vunpack.c.l.b16 %v5072
          %v5703 = vunpack.c.h.b16 %v5072
          %v5704 = vunpack.c.l.b16 %v5073
          %v5705 = vunpack.c.h.b16 %v5073
          %v5706 = vunpack.c.l.b16 %v5074
          %v5707 = vunpack.c.h.b16 %v5074
          %v5708 = vunpack.c.l.b16 %v5075
          %v5709 = vunpack.c.h.b16 %v5075
          %v5710 = vunpack.c.l.b16 %v5076
          %v5711 = vunpack.c.h.b16 %v5076
          %v5712 = vunpack.c.l.b16 %v5077
          %v5713 = vunpack.c.h.b16 %v5077
          %v5714 = vunpack.c.l.b16 %v5078
          %v5715 = vunpack.c.h.b16 %v5078
          %v5716 = vunpack.c.l.b16 %v5079
          %v5717 = vunpack.c.h.b16 %v5079
          %v5718 = vunpack.c.l.b16 %v5080
          %v5719 = vunpack.c.h.b16 %v5080
          %v5720 = vunpack.c.l.b16 %v5081
          %v5721 = vunpack.c.h.b16 %v5081
          %v5722 = vunpack.c.l.b16 %v5082
          %v5723 = vunpack.c.h.b16 %v5082
          %v5724 = vunpack.c.l.b16 %v5083
          %v5725 = vunpack.c.h.b16 %v5083
          %v5726 = vunpack.c.l.b16 %v5084
          %v5727 = vunpack.c.h.b16 %v5084
          %v5728 = vunpack.c.l.b16 %v5085
          %v5729 = vunpack.c.h.b16 %v5085
          %v5730 = vunpack.c.l.b16 %v5086
          %v5731 = vunpack.c.h.b16 %v5086
          %v5732 = vunpack.c.l.b16 %v5087
          %v5733 = vunpack.c.h.b16 %v5087
          %v5734 = vunpack.c.l.b16 %v5088
          %v5735 = vunpack.c.h.b16 %v5088
          %v5736 = vunpack.c.l.b16 %v5089
          %v5737 = vunpack.c.h.b16 %v5089
          %v5738 = vunpack.c.l.b16 %v5090
          %v5739 = vunpack.c.h.b16 %v5090
          %v5740 = vunpack.c.l.b16 %v5091
          %v5741 = vunpack.c.h.b16 %v5091
          %v5742 = vunpack.c.l.b16 %v5092
          %v5743 = vunpack.c.h.b16 %v5092
          %v5744 = vunpack.c.l.b16 %v5093
          %v5745 = vunpack.c.h.b16 %v5093
          %v5746 = vunpack.c.l.b16 %v5094
          %v5747 = vunpack.c.h.b16 %v5094
          %v5748 = vunpack.c.l.b16 %v5095
          %v5749 = vunpack.c.h.b16 %v5095
          %v5750 = vunpack.c.l.b16 %v5096
          %v5751 = vunpack.c.h.b16 %v5096
          %v5752 = vunpack.c.l.b16 %v5097
          %v5753 = vunpack.c.h.b16 %v5097
          %v5754 = vunpack.c.l.b16 %v5098
          %v5755 = vunpack.c.h.b16 %v5098
          %v5756 = vunpack.c.l.b16 %v5099
          %v5757 = vunpack.c.h.b16 %v5099
          %v5758 = vunpack.c.l.b16 %v5100
          %v5759 = vunpack.c.h.b16 %v5100
          %v5760 = vunpack.c.l.b16 %v5101
          %v5761 = vunpack.c.h.b16 %v5101
          %v5762 = vunpack.c.l.b16 %v5102
          %v5763 = vunpack.c.h.b16 %v5102
          %v5764 = vunpack.c.l.b16 %v5103
          %v5765 = vunpack.c.h.b16 %v5103
          %v5766 = vunpack.c.l.b16 %v5104
          %v5767 = vunpack.c.h.b16 %v5104
          %v5768 = vunpack.c.l.b16 %v5105
          %v5769 = vunpack.c.h.b16 %v5105
          %v5770 = vunpack.c.l.b16 %v5106
          %v5771 = vunpack.c.h.b16 %v5106
          %v5772 = vunpack.c.l.b16 %v5107
          %v5773 = vunpack.c.h.b16 %v5107
          %v5774 = vunpack.c.l.b16 %v5108
          %v5775 = vunpack.c.h.b16 %v5108
          %v5776 = vunpack.c.l.b16 %v5109
          %v5777 = vunpack.c.h.b16 %v5109
          %v5778 = vunpack.c.l.b16 %v5110
          %v5779 = vunpack.c.h.b16 %v5110
          %v5780 = vunpack.c.l.b16 %v5111
          %v5781 = vunpack.c.h.b16 %v5111
          %v5782 = vunpack.c.l.b16 %v5112
          %v5783 = vunpack.c.h.b16 %v5112
          %v5784 = vunpack.c.l.b16 %v5113
          %v5785 = vunpack.c.h.b16 %v5113
          %v5786 = vunpack.c.l.b16 %v5114
          %v5787 = vunpack.c.h.b16 %v5114
          %v5788 = vunpack.c.l.b16 %v5115
          %v5789 = vunpack.c.h.b16 %v5115
          %v5790 = vunpack.c.l.b16 %v5116
          %v5791 = vunpack.c.h.b16 %v5116
          %v5792 = vunpack.c.l.b16 %v5117
          %v5793 = vunpack.c.h.b16 %v5117
          %v5794 = vunpack.c.l.b16 %v5118
          %v5795 = vunpack.c.h.b16 %v5118
          %v5796 = vunpack.c.l.b16 %v5119
          %v5797 = vunpack.c.h.b16 %v5119
          %v5798 = vunpack.c.l.b16 %v5120
          %v5799 = vunpack.c.h.b16 %v5120
          %v5800 = vunpack.c.l.b16 %v5121
          %v5801 = vunpack.c.h.b16 %v5121
          %v5802 = vunpack.c.l.b16 %v5122
          %v5803 = vunpack.c.h.b16 %v5122
          %v5804 = vunpack.c.l.b16 %v5123
          %v5805 = vunpack.c.h.b16 %v5123
          %v5806 = vunpack.c.l.b16 %v5124
          %v5807 = vunpack.c.h.b16 %v5124
          %v5808 = vunpack.c.l.b16 %v5125
          %v5809 = vunpack.c.h.b16 %v5125
          %v5810 = vunpack.c.l.b16 %v5126
          %v5811 = vunpack.c.h.b16 %v5126
          %v5812 = vunpack.c.l.b16 %v5127
          %v5813 = vunpack.c.h.b16 %v5127
          %v5814 = vunpack.c.l.b16 %v5128
          %v5815 = vunpack.c.h.b16 %v5128
          %v5816 = vunpack.c.l.b16 %v5129
          %v5817 = vunpack.c.h.b16 %v5129
          %v5818 = vunpack.c.l.b16 %v5130
          %v5819 = vunpack.c.h.b16 %v5130
          %v5820 = vunpack.c.l.b16 %v5131
          %v5821 = vunpack.c.h.b16 %v5131
          %v5822 = vunpack.c.l.b16 %v5132
          %v5823 = vunpack.c.h.b16 %v5132
          %v5824 = vunpack.c.l.b16 %v5133
          %v5825 = vunpack.c.h.b16 %v5133
          %v5826 = vunpack.c.l.b16 %v5134
          %v5827 = vunpack.c.h.b16 %v5134
          %v5828 = vunpack.c.l.b16 %v5135
          %v5829 = vunpack.c.h.b16 %v5135
          %v5830 = vunpack.c.l.b16 %v5136
          %v5831 = vunpack.c.h.b16 %v5136
          %v5832 = vunpack.c.l.b16 %v5137
          %v5833 = vunpack.c.h.b16 %v5137
          %v5834 = vunpack.c.l.b16 %v5138
          %v5835 = vunpack.c.h.b16 %v5138
          %v5836 = vunpack.c.l.b16 %v5139
          %v5837 = vunpack.c.h.b16 %v5139
          %v5838 = vunpack.c.l.b16 %v5140
          %v5839 = vunpack.c.h.b16 %v5140
          %v5840 = vunpack.c.l.b16 %v5141
          %v5841 = vunpack.c.h.b16 %v5141
          %v5842 = vunpack.c.l.b16 %v5142
          %v5843 = vunpack.c.h.b16 %v5142
          %v5844 = vunpack.c.l.b16 %v5143
          %v5845 = vunpack.c.h.b16 %v5143
          %v5846 = vunpack.c.l.b16 %v5144
          %v5847 = vunpack.c.h.b16 %v5144
          %v5848 = vunpack.c.l.b16 %v5145
          %v5849 = vunpack.c.h.b16 %v5145
          %v5850 = vunpack.c.l.b16 %v5146
          %v5851 = vunpack.c.h.b16 %v5146
          %v5852 = vunpack.c.l.b16 %v5147
          %v5853 = vunpack.c.h.b16 %v5147
          %v5854 = vunpack.c.l.b16 %v5148
          %v5855 = vunpack.c.h.b16 %v5148
          %v5856 = vunpack.c.l.b16 %v5149
          %v5857 = vunpack.c.h.b16 %v5149
          %v5858 = vunpack.c.l.b16 %v5150
          %v5859 = vunpack.c.h.b16 %v5150
          %v5860 = vunpack.c.l.b16 %v5151
          %v5861 = vunpack.c.h.b16 %v5151
          %v5862 = vunpack.c.l.b16 %v5152
          %v5863 = vunpack.c.h.b16 %v5152
          %v5864 = vunpack.c.l.b16 %v5153
          %v5865 = vunpack.c.h.b16 %v5153
          %v5866 = vunpack.c.l.b16 %v5154
          %v5867 = vunpack.c.h.b16 %v5154
          %v5868 = vunpack.c.l.b16 %v5155
          %v5869 = vunpack.c.h.b16 %v5155
          %v5870 = vunpack.c.l.b16 %v5156
          %v5871 = vunpack.c.h.b16 %v5156
          %v5872 = vunpack.c.l.b16 %v5157
          %v5873 = vunpack.c.h.b16 %v5157
          %v5874 = vunpack.c.l.b16 %v5158
          %v5875 = vunpack.c.h.b16 %v5158
          %v5876 = vunpack.c.l.b16 %v5159
          %v5877 = vunpack.c.h.b16 %v5159
          %v5878 = vunpack.c.l.b16 %v5160
          %v5879 = vunpack.c.h.b16 %v5160
          %v5880 = vunpack.c.l.b16 %v5161
          %v5881 = vunpack.c.h.b16 %v5161
          %v5882 = vunpack.c.l.b16 %v5162
          %v5883 = vunpack.c.h.b16 %v5162
          %v5884 = vunpack.c.l.b16 %v5163
          %v5885 = vunpack.c.h.b16 %v5163
          %v5886 = vunpack.c.l.b16 %v5164
          %v5887 = vunpack.c.h.b16 %v5164
          %v5888 = vunpack.c.l.b16 %v5165
          %v5889 = vunpack.c.h.b16 %v5165
          %v5890 = vunpack.c.l.b16 %v5166
          %v5891 = vunpack.c.h.b16 %v5166
          %v5892 = vunpack.c.l.b16 %v5167
          %v5893 = vunpack.c.h.b16 %v5167
          %v5894 = vunpack.c.l.b16 %v5168
          %v5895 = vunpack.c.h.b16 %v5168
          %v5896 = vunpack.c.l.b16 %v5169
          %v5897 = vunpack.c.h.b16 %v5169
          %v5898 = vunpack.c.l.b16 %v5170
          %v5899 = vunpack.c.h.b16 %v5170
          %v5900 = vunpack.c.l.b16 %v5171
          %v5901 = vunpack.c.h.b16 %v5171
          %v5902 = vunpack.c.l.b16 %v5172
          %v5903 = vunpack.c.h.b16 %v5172
          %v5904 = vunpack.c.l.b16 %v5173
          %v5905 = vunpack.c.h.b16 %v5173
          %v5906 = vunpack.c.l.b16 %v5174
          %v5907 = vunpack.c.h.b16 %v5174
          %v5908 = vunpack.c.l.b16 %v5175
          %v5909 = vunpack.c.h.b16 %v5175
          %v5910 = vunpack.c.l.b16 %v5176
          %v5911 = vunpack.c.h.b16 %v5176
          %v5912 = vunpack.c.l.b16 %v5177
          %v5913 = vunpack.c.h.b16 %v5177
          %v5914 = vunpack.c.l.b16 %v5178
          %v5915 = vunpack.c.h.b16 %v5178
          %v5916 = vunpack.c.l.b16 %v5179
          %v5917 = vunpack.c.h.b16 %v5179
          %v5918 = vunpack.c.l.b16 %v5180
          %v5919 = vunpack.c.h.b16 %v5180
          %v5920 = vunpack.c.l.b16 %v5181
          %v5921 = vunpack.c.h.b16 %v5181
          %v5922 = vunpack.c.l.b16 %v5182
          %v5923 = vunpack.c.h.b16 %v5182
          %v5924 = vunpack.c.l.b16 %v5183
          %v5925 = vunpack.c.h.b16 %v5183
          %v5926 = vunpack.c.l.b16 %v5184
          %v5927 = vunpack.c.h.b16 %v5184
          %v5928 = vunpack.c.l.b16 %v5185
          %v5929 = vunpack.c.h.b16 %v5185
          %v5930 = vunpack.c.l.b16 %v5186
          %v5931 = vunpack.c.h.b16 %v5186
          %v5932 = vunpack.c.l.b16 %v5187
          %v5933 = vunpack.c.h.b16 %v5187
          %v5934 = vunpack.c.l.b16 %v5188
          %v5935 = vunpack.c.h.b16 %v5188
          %v5936 = vunpack.c.l.b16 %v5189
          %v5937 = vunpack.c.h.b16 %v5189
          %v5938 = vunpack.c.l.b16 %v5190
          %v5939 = vunpack.c.h.b16 %v5190
          %v5940 = vunpack.c.l.b16 %v5191
          %v5941 = vunpack.c.h.b16 %v5191
          %v5942 = vunpack.c.l.b16 %v5192
          %v5943 = vunpack.c.h.b16 %v5192
          %v5944 = vunpack.c.l.b16 %v5193
          %v5945 = vunpack.c.h.b16 %v5193
          %v5946 = vunpack.c.l.b16 %v5194
          %v5947 = vunpack.c.h.b16 %v5194
          %v5948 = vunpack.c.l.b16 %v5195
          %v5949 = vunpack.c.h.b16 %v5195
          %v5950 = vunpack.c.l.b16 %v5196
          %v5951 = vunpack.c.h.b16 %v5196
          %v5952 = vunpack.c.l.b16 %v5197
          %v5953 = vunpack.c.h.b16 %v5197
          %v5954 = vunpack.c.l.b16 %v5198
          %v5955 = vunpack.c.h.b16 %v5198
          %v5956 = vunpack.c.l.b16 %v5199
          %v5957 = vunpack.c.h.b16 %v5199
          %v5958 = vunpack.c.l.b16 %v5200
          %v5959 = vunpack.c.h.b16 %v5200
          %v5960 = vunpack.c.l.b16 %v5201
          %v5961 = vunpack.c.h.b16 %v5201
          %v5962 = vunpack.c.l.b16 %v5202
          %v5963 = vunpack.c.h.b16 %v5202
          %v5964 = vunpack.c.l.b16 %v5203
          %v5965 = vunpack.c.h.b16 %v5203
          %v5966 = vunpack.c.l.b16 %v5204
          %v5967 = vunpack.c.h.b16 %v5204
          %v5968 = vunpack.c.l.b16 %v5205
          %v5969 = vunpack.c.h.b16 %v5205
          %v5970 = vunpack.c.l.b16 %v5206
          %v5971 = vunpack.c.h.b16 %v5206
          %v5972 = vunpack.c.l.b16 %v5207
          %v5973 = vunpack.c.h.b16 %v5207
          %v5974 = vunpack.c.l.b16 %v5208
          %v5975 = vunpack.c.h.b16 %v5208
          %v5976 = vunpack.c.l.b16 %v5209
          %v5977 = vunpack.c.h.b16 %v5209
          %v5978 = vunpack.c.l.b16 %v5210
          %v5979 = vunpack.c.h.b16 %v5210
          %v5980 = vunpack.c.l.b16 %v5211
          %v5981 = vunpack.c.h.b16 %v5211
          %v5982 = vunpack.c.l.b16 %v5212
          %v5983 = vunpack.c.h.b16 %v5212
          %v5984 = vunpack.c.l.b16 %v5213
          %v5985 = vunpack.c.h.b16 %v5213
          %v5986 = vunpack.c.l.b16 %v5214
          %v5987 = vunpack.c.h.b16 %v5214
          %v5988 = vunpack.c.l.b16 %v5215
          %v5989 = vunpack.c.h.b16 %v5215
          %v5990 = vunpack.c.l.b16 %v5216
          %v5991 = vunpack.c.h.b16 %v5216
          %v5992 = vunpack.c.l.b16 %v5217
          %v5993 = vunpack.c.h.b16 %v5217
          %v5994 = vunpack.c.l.b16 %v5218
          %v5995 = vunpack.c.h.b16 %v5218
          %v5996 = vunpack.c.l.b16 %v5219
          %v5997 = vunpack.c.h.b16 %v5219
          %v5998 = vunpack.c.l.b16 %v5220
          %v5999 = vunpack.c.h.b16 %v5220
          %v6000 = vunpack.c.l.b16 %v5221
          %v6001 = vunpack.c.h.b16 %v5221
          %v6002 = vunpack.c.l.b16 %v5222
          %v6003 = vunpack.c.h.b16 %v5222
          %v6004 = vunpack.c.l.b16 %v5223
          %v6005 = vunpack.c.h.b16 %v5223
          %v6006 = vunpack.c.l.b16 %v5224
          %v6007 = vunpack.c.h.b16 %v5224
          %v6008 = vunpack.c.l.b16 %v5225
          %v6009 = vunpack.c.h.b16 %v5225
          %v6010 = vunpack.c.l.b16 %v5226
          %v6011 = vunpack.c.h.b16 %v5226
          %v6012 = vunpack.c.l.b16 %v5227
          %v6013 = vunpack.c.h.b16 %v5227
          %v6014 = vunpack.c.l.b16 %v5228
          %v6015 = vunpack.c.h.b16 %v5228
          %v6016 = vunpack.c.l.b16 %v5229
          %v6017 = vunpack.c.h.b16 %v5229
          %v6018 = vunpack.c.l.b16 %v5230
          %v6019 = vunpack.c.h.b16 %v5230
          %v6020 = vunpack.c.l.b16 %v5231
          %v6021 = vunpack.c.h.b16 %v5231
          %v6022 = vpack.c.b16 %v5514, %v5510
          %v6023 = vpack.c.b16 %v5515, %v5511
          %v6024 = vpack.c.b16 %v5516, %v5512
          %v6025 = vpack.c.b16 %v5517, %v5513
          %v6026 = vpack.c.b16 %v5522, %v5518
          %v6027 = vpack.c.b16 %v5523, %v5519
          %v6028 = vpack.c.b16 %v5524, %v5520
          %v6029 = vpack.c.b16 %v5525, %v5521
          %v6030 = vpack.c.b16 %v5530, %v5526
          %v6031 = vpack.c.b16 %v5531, %v5527
          %v6032 = vpack.c.b16 %v5532, %v5528
          %v6033 = vpack.c.b16 %v5533, %v5529
          %v6034 = vpack.c.b16 %v5538, %v5534
          %v6035 = vpack.c.b16 %v5539, %v5535
          %v6036 = vpack.c.b16 %v5540, %v5536
          %v6037 = vpack.c.b16 %v5541, %v5537
          %v6038 = vpack.c.b16 %v5546, %v5542
          %v6039 = vpack.c.b16 %v5547, %v5543
          %v6040 = vpack.c.b16 %v5548, %v5544
          %v6041 = vpack.c.b16 %v5549, %v5545
          %v6042 = vpack.c.b16 %v5554, %v5550
          %v6043 = vpack.c.b16 %v5555, %v5551
          %v6044 = vpack.c.b16 %v5556, %v5552
          %v6045 = vpack.c.b16 %v5557, %v5553
          %v6046 = vpack.c.b16 %v5562, %v5558
          %v6047 = vpack.c.b16 %v5563, %v5559
          %v6048 = vpack.c.b16 %v5564, %v5560
          %v6049 = vpack.c.b16 %v5565, %v5561
          %v6050 = vpack.c.b16 %v5570, %v5566
          %v6051 = vpack.c.b16 %v5571, %v5567
          %v6052 = vpack.c.b16 %v5572, %v5568
          %v6053 = vpack.c.b16 %v5573, %v5569
          %v6054 = vpack.c.b16 %v5578, %v5574
          %v6055 = vpack.c.b16 %v5579, %v5575
          %v6056 = vpack.c.b16 %v5580, %v5576
          %v6057 = vpack.c.b16 %v5581, %v5577
          %v6058 = vpack.c.b16 %v5586, %v5582
          %v6059 = vpack.c.b16 %v5587, %v5583
          %v6060 = vpack.c.b16 %v5588, %v5584
          %v6061 = vpack.c.b16 %v5589, %v5585
          %v6062 = vpack.c.b16 %v5594, %v5590
          %v6063 = vpack.c.b16 %v5595, %v5591
          %v6064 = vpack.c.b16 %v5596, %v5592
          %v6065 = vpack.c.b16 %v5597, %v5593
          %v6066 = vpack.c.b16 %v5602, %v5598
          %v6067 = vpack.c.b16 %v5603, %v5599
          %v6068 = vpack.c.b16 %v5604, %v5600
          %v6069 = vpack.c.b16 %v5605, %v5601
          %v6070 = vpack.c.b16 %v5610, %v5606
          %v6071 = vpack.c.b16 %v5611, %v5607
          %v6072 = vpack.c.b16 %v5612, %v5608
          %v6073 = vpack.c.b16 %v5613, %v5609
          %v6074 = vpack.c.b16 %v5618, %v5614
          %v6075 = vpack.c.b16 %v5619, %v5615
          %v6076 = vpack.c.b16 %v5620, %v5616
          %v6077 = vpack.c.b16 %v5621, %v5617
          %v6078 = vpack.c.b16 %v5626, %v5622
          %v6079 = vpack.c.b16 %v5627, %v5623
          %v6080 = vpack.c.b16 %v5628, %v5624
          %v6081 = vpack.c.b16 %v5629, %v5625
          %v6082 = vpack.c.b16 %v5634, %v5630
          %v6083 = vpack.c.b16 %v5635, %v5631
          %v6084 = vpack.c.b16 %v5636, %v5632
          %v6085 = vpack.c.b16 %v5637, %v5633
          %v6086 = vpack.c.b16 %v5642, %v5638
          %v6087 = vpack.c.b16 %v5643, %v5639
          %v6088 = vpack.c.b16 %v5644, %v5640
          %v6089 = vpack.c.b16 %v5645, %v5641
          %v6090 = vpack.c.b16 %v5650, %v5646
          %v6091 = vpack.c.b16 %v5651, %v5647
          %v6092 = vpack.c.b16 %v5652, %v5648
          %v6093 = vpack.c.b16 %v5653, %v5649
          %v6094 = vpack.c.b16 %v5658, %v5654
          %v6095 = vpack.c.b16 %v5659, %v5655
          %v6096 = vpack.c.b16 %v5660, %v5656
          %v6097 = vpack.c.b16 %v5661, %v5657
          %v6098 = vpack.c.b16 %v5666, %v5662
          %v6099 = vpack.c.b16 %v5667, %v5663
          %v6100 = vpack.c.b16 %v5668, %v5664
          %v6101 = vpack.c.b16 %v5669, %v5665
          %v6102 = vpack.c.b16 %v5674, %v5670
          %v6103 = vpack.c.b16 %v5675, %v5671
          %v6104 = vpack.c.b16 %v5676, %v5672
          %v6105 = vpack.c.b16 %v5677, %v5673
          %v6106 = vpack.c.b16 %v5682, %v5678
          %v6107 = vpack.c.b16 %v5683, %v5679
          %v6108 = vpack.c.b16 %v5684, %v5680
          %v6109 = vpack.c.b16 %v5685, %v5681
          %v6110 = vpack.c.b16 %v5690, %v5686
          %v6111 = vpack.c.b16 %v5691, %v5687
          %v6112 = vpack.c.b16 %v5692, %v5688
          %v6113 = vpack.c.b16 %v5693, %v5689
          %v6114 = vpack.c.b16 %v5698, %v5694
          %v6115 = vpack.c.b16 %v5699, %v5695
          %v6116 = vpack.c.b16 %v5700, %v5696
          %v6117 = vpack.c.b16 %v5701, %v5697
          %v6118 = vpack.c.b16 %v5706, %v5702
          %v6119 = vpack.c.b16 %v5707, %v5703
          %v6120 = vpack.c.b16 %v5708, %v5704
          %v6121 = vpack.c.b16 %v5709, %v5705
          %v6122 = vpack.c.b16 %v5714, %v5710
          %v6123 = vpack.c.b16 %v5715, %v5711
          %v6124 = vpack.c.b16 %v5716, %v5712
          %v6125 = vpack.c.b16 %v5717, %v5713
          %v6126 = vpack.c.b16 %v5722, %v5718
          %v6127 = vpack.c.b16 %v5723, %v5719
          %v6128 = vpack.c.b16 %v5724, %v5720
          %v6129 = vpack.c.b16 %v5725, %v5721
          %v6130 = vpack.c.b16 %v5730, %v5726
          %v6131 = vpack.c.b16 %v5731, %v5727
          %v6132 = vpack.c.b16 %v5732, %v5728
          %v6133 = vpack.c.b16 %v5733, %v5729
          %v6134 = vpack.c.b16 %v5738, %v5734
          %v6135 = vpack.c.b16 %v5739, %v5735
          %v6136 = vpack.c.b16 %v5740, %v5736
          %v6137 = vpack.c.b16 %v5741, %v5737
          %v6138 = vpack.c.b16 %v5746, %v5742
          %v6139 = vpack.c.b16 %v5747, %v5743
          %v6140 = vpack.c.b16 %v5748, %v5744
          %v6141 = vpack.c.b16 %v5749, %v5745
          %v6142 = vpack.c.b16 %v5754, %v5750
          %v6143 = vpack.c.b16 %v5755, %v5751
          %v6144 = vpack.c.b16 %v5756, %v5752
          %v6145 = vpack.c.b16 %v5757, %v5753
          %v6146 = vpack.c.b16 %v5762, %v5758
          %v6147 = vpack.c.b16 %v5763, %v5759
          %v6148 = vpack.c.b16 %v5764, %v5760
          %v6149 = vpack.c.b16 %v5765, %v5761
          %v6150 = vpack.c.b16 %v5770, %v5766
          %v6151 = vpack.c.b16 %v5771, %v5767
          %v6152 = vpack.c.b16 %v5772, %v5768
          %v6153 = vpack.c.b16 %v5773, %v5769
          %v6154 = vpack.c.b16 %v5778, %v5774
          %v6155 = vpack.c.b16 %v5779, %v5775
          %v6156 = vpack.c.b16 %v5780, %v5776
          %v6157 = vpack.c.b16 %v5781, %v5777
          %v6158 = vpack.c.b16 %v5786, %v5782
          %v6159 = vpack.c.b16 %v5787, %v5783
          %v6160 = vpack.c.b16 %v5788, %v5784
          %v6161 = vpack.c.b16 %v5789, %v5785
          %v6162 = vpack.c.b16 %v5794, %v5790
          %v6163 = vpack.c.b16 %v5795, %v5791
          %v6164 = vpack.c.b16 %v5796, %v5792
          %v6165 = vpack.c.b16 %v5797, %v5793
          %v6166 = vpack.c.b16 %v5802, %v5798
          %v6167 = vpack.c.b16 %v5803, %v5799
          %v6168 = vpack.c.b16 %v5804, %v5800
          %v6169 = vpack.c.b16 %v5805, %v5801
          %v6170 = vpack.c.b16 %v5810, %v5806
          %v6171 = vpack.c.b16 %v5811, %v5807
          %v6172 = vpack.c.b16 %v5812, %v5808
          %v6173 = vpack.c.b16 %v5813, %v5809
          %v6174 = vpack.c.b16 %v5818, %v5814
          %v6175 = vpack.c.b16 %v5819, %v5815
          %v6176 = vpack.c.b16 %v5820, %v5816
          %v6177 = vpack.c.b16 %v5821, %v5817
          %v6178 = vpack.c.b16 %v5826, %v5822
          %v6179 = vpack.c.b16 %v5827, %v5823
          %v6180 = vpack.c.b16 %v5828, %v5824
          %v6181 = vpack.c.b16 %v5829, %v5825
          %v6182 = vpack.c.b16 %v5834, %v5830
          %v6183 = vpack.c.b16 %v5835, %v5831
          %v6184 = vpack.c.b16 %v5836, %v5832
          %v6185 = vpack.c.b16 %v5837, %v5833
          %v6186 = vpack.c.b16 %v5842, %v5838
          %v6187 = vpack.c.b16 %v5843, %v5839
          %v6188 = vpack.c.b16 %v5844, %v5840
          %v6189 = vpack.c.b16 %v5845, %v5841
          %v6190 = vpack.c.b16 %v5850, %v5846
          %v6191 = vpack.c.b16 %v5851, %v5847
          %v6192 = vpack.c.b16 %v5852, %v5848
          %v6193 = vpack.c.b16 %v5853, %v5849
          %v6194 = vpack.c.b16 %v5858, %v5854
          %v6195 = vpack.c.b16 %v5859, %v5855
          %v6196 = vpack.c.b16 %v5860, %v5856
          %v6197 = vpack.c.b16 %v5861, %v5857
          %v6198 = vpack.c.b16 %v5866, %v5862
          %v6199 = vpack.c.b16 %v5867, %v5863
          %v6200 = vpack.c.b16 %v5868, %v5864
          %v6201 = vpack.c.b16 %v5869, %v5865
          %v6202 = vpack.c.b16 %v5874, %v5870
          %v6203 = vpack.c.b16 %v5875, %v5871
          %v6204 = vpack.c.b16 %v5876, %v5872
          %v6205 = vpack.c.b16 %v5877, %v5873
          %v6206 = vpack.c.b16 %v5882, %v5878
          %v6207 = vpack.c.b16 %v5883, %v5879
          %v6208 = vpack.c.b16 %v5884, %v5880
          %v6209 = vpack.c.b16 %v5885, %v5881
          %v6210 = vpack.c.b16 %v5890, %v5886
          %v6211 = vpack.c.b16 %v5891, %v5887
          %v6212 = vpack.c.b16 %v5892, %v5888
          %v6213 = vpack.c.b16 %v5893, %v5889
          %v6214 = vpack.c.b16 %v5898, %v5894
          %v6215 = vpack.c.b16 %v5899, %v5895
          %v6216 = vpack.c.b16 %v5900, %v5896
          %v6217 = vpack.c.b16 %v5901, %v5897
          %v6218 = vpack.c.b16 %v5906, %v5902
          %v6219 = vpack.c.b16 %v5907, %v5903
          %v6220 = vpack.c.b16 %v5908, %v5904
          %v6221 = vpack.c.b16 %v5909, %v5905
          %v6222 = vpack.c.b16 %v5914, %v5910
          %v6223 = vpack.c.b16 %v5915, %v5911
          %v6224 = vpack.c.b16 %v5916, %v5912
          %v6225 = vpack.c.b16 %v5917, %v5913
          %v6226 = vpack.c.b16 %v5922, %v5918
          %v6227 = vpack.c.b16 %v5923, %v5919
          %v6228 = vpack.c.b16 %v5924, %v5920
          %v6229 = vpack.c.b16 %v5925, %v5921
          %v6230 = vpack.c.b16 %v5930, %v5926
          %v6231 = vpack.c.b16 %v5931, %v5927
          %v6232 = vpack.c.b16 %v5932, %v5928
          %v6233 = vpack.c.b16 %v5933, %v5929
          %v6234 = vpack.c.b16 %v5938, %v5934
          %v6235 = vpack.c.b16 %v5939, %v5935
          %v6236 = vpack.c.b16 %v5940, %v5936
          %v6237 = vpack.c.b16 %v5941, %v5937
          %v6238 = vpack.c.b16 %v5946, %v5942
          %v6239 = vpack.c.b16 %v5947, %v5943
          %v6240 = vpack.c.b16 %v5948, %v5944
          %v6241 = vpack.c.b16 %v5949, %v5945
          %v6242 = vpack.c.b16 %v5954, %v5950
          %v6243 = vpack.c.b16 %v5955, %v5951
          %v6244 = vpack.c.b16 %v5956, %v5952
          %v6245 = vpack.c.b16 %v5957, %v5953
          %v6246 = vpack.c.b16 %v5962, %v5958
          %v6247 = vpack.c.b16 %v5963, %v5959
          %v6248 = vpack.c.b16 %v5964, %v5960
          %v6249 = vpack.c.b16 %v5965, %v5961
          %v6250 = vpack.c.b16 %v5970, %v5966
          %v6251 = vpack.c.b16 %v5971, %v5967
          %v6252 = vpack.c.b16 %v5972, %v5968
          %v6253 = vpack.c.b16 %v5973, %v5969
          %v6254 = vpack.c.b16 %v5978, %v5974
          %v6255 = vpack.c.b16 %v5979, %v5975
          %v6256 = vpack.c.b16 %v5980, %v5976
          %v6257 = vpack.c.b16 %v5981, %v5977
          %v6258 = vpack.c.b16 %v5986, %v5982
          %v6259 = vpack.c.b16 %v5987, %v5983
          %v6260 = vpack.c.b16 %v5988, %v5984
          %v6261 = vpack.c.b16 %v5989, %v5985
          %v6262 = vpack.c.b16 %v5994, %v5990
          %v6263 = vpack.c.b16 %v5995, %v5991
          %v6264 = vpack.c.b16 %v5996, %v5992
          %v6265 = vpack.c.b16 %v5997, %v5993
          %v6266 = vpack.c.b16 %v6002, %v5998
          %v6267 = vpack.c.b16 %v6003, %v5999
          %v6268 = vpack.c.b16 %v6004, %v6000
          %v6269 = vpack.c.b16 %v6005, %v6001
          %v6270 = vpack.c.b16 %v6010, %v6006
          %v6271 = vpack.c.b16 %v6011, %v6007
          %v6272 = vpack.c.b16 %v6012, %v6008
          %v6273 = vpack.c.b16 %v6013, %v6009
          %v6274 = vpack.c.b16 %v6018, %v6014
          %v6275 = vpack.c.b16 %v6019, %v6015
          %v6276 = vpack.c.b16 %v6020, %v6016
          %v6277 = vpack.c.b16 %v6021, %v6017
          %6534 = vmatprep.subr.bf16.mxu0 %v6023
          %6535 = vmatpush1.bf16.msra.mxu0 %v6022
          %6536 = vmatprep.subr.bf16.mxu0 %v6027
          %6537 = vmatpush1.bf16.msra.mxu0 %v6026
          %6538 = vmatprep.subr.bf16.mxu0 %v6031
          %6539 = vmatpush1.bf16.msra.mxu0 %v6030
          %6540 = vmatprep.subr.bf16.mxu0 %v6035
          %6541 = vmatpush1.bf16.msra.mxu0 %v6034
          %6542 = vmatprep.subr.bf16.mxu0 %v6039
          %6543 = vmatpush1.bf16.msra.mxu0 %v6038
          %6544 = vmatprep.subr.bf16.mxu0 %v6043
          %6545 = vmatpush1.bf16.msra.mxu0 %v6042
          %6546 = vmatprep.subr.bf16.mxu0 %v6047
          %6547 = vmatpush1.bf16.msra.mxu0 %v6046
          %6548 = vmatprep.subr.bf16.mxu0 %v6051
          %6549 = vmatpush1.bf16.msra.mxu0 %v6050
          %6550 = vmatprep.subr.bf16.mxu0 %v6055
          %6551 = vmatpush1.bf16.msra.mxu0 %v6054
          %6552 = vmatprep.subr.bf16.mxu0 %v6059
          %6553 = vmatpush1.bf16.msra.mxu0 %v6058
          %6554 = vmatprep.subr.bf16.mxu0 %v6063
          %6555 = vmatpush1.bf16.msra.mxu0 %v6062
          %6556 = vmatprep.subr.bf16.mxu0 %v6067
          %6557 = vmatpush1.bf16.msra.mxu0 %v6066
          %6558 = vmatprep.subr.bf16.mxu0 %v6071
          %6559 = vmatpush1.bf16.msra.mxu0 %v6070
          %6560 = vmatprep.subr.bf16.mxu0 %v6075
          %6561 = vmatpush1.bf16.msra.mxu0 %v6074
          %6562 = vmatprep.subr.bf16.mxu0 %v6079
          %6563 = vmatpush1.bf16.msra.mxu0 %v6078
          %6564 = vmatprep.subr.bf16.mxu0 %v6083
          %6565 = vmatpush1.bf16.msra.mxu0 %v6082
          %6566 = vmatprep.mubr.bf16.mxu0 %v4969
          %6567 = vmatmul.mubr.bf16.gmra.mrb[0].mxu0 %v4968
          %v6568 = vpop.f32.mrb[0].mxu0
          %v6569 = vadd.f32 %v5237, %v6568
          %v6570 = vpop.f32.mrb[0].mxu0
          %v6571 = vadd.f32 %v5241, %v6570
          %v6572 = vpop.f32.mrb[0].mxu0
          %v6573 = vpop.f32.mrb[0].mxu0
          %6574 = vdwg.mxu0
          %6575 = vmatprep.subr.bf16.mxu0 %v6087
          %6576 = vmatpush1.bf16.msra.mxu0 %v6086
          %6577 = vmatprep.subr.bf16.mxu0 %v6091
          %6578 = vmatpush1.bf16.msra.mxu0 %v6090
          %6579 = vmatprep.subr.bf16.mxu0 %v6095
          %6580 = vmatpush1.bf16.msra.mxu0 %v6094
          %6581 = vmatprep.subr.bf16.mxu0 %v6099
          %6582 = vmatpush1.bf16.msra.mxu0 %v6098
          %6583 = vmatprep.subr.bf16.mxu0 %v6103
          %6584 = vmatpush1.bf16.msra.mxu0 %v6102
          %6585 = vmatprep.subr.bf16.mxu0 %v6107
          %6586 = vmatpush1.bf16.msra.mxu0 %v6106
          %6587 = vmatprep.subr.bf16.mxu0 %v6111
          %6588 = vmatpush1.bf16.msra.mxu0 %v6110
          %6589 = vmatprep.subr.bf16.mxu0 %v6115
          %6590 = vmatpush1.bf16.msra.mxu0 %v6114
          %6591 = vmatprep.subr.bf16.mxu0 %v6119
          %6592 = vmatpush1.bf16.msra.mxu0 %v6118
          %6593 = vmatprep.subr.bf16.mxu0 %v6123
          %6594 = vmatpush1.bf16.msra.mxu0 %v6122
          %6595 = vmatprep.subr.bf16.mxu0 %v6127
          %6596 = vmatpush1.bf16.msra.mxu0 %v6126
          %6597 = vmatprep.subr.bf16.mxu0 %v6131
          %6598 = vmatpush1.bf16.msra.mxu0 %v6130
          %6599 = vmatprep.subr.bf16.mxu0 %v6135
          %6600 = vmatpush1.bf16.msra.mxu0 %v6134
          %6601 = vmatprep.subr.bf16.mxu0 %v6139
          %6602 = vmatpush1.bf16.msra.mxu0 %v6138
          %6603 = vmatprep.subr.bf16.mxu0 %v6143
          %6604 = vmatpush1.bf16.msra.mxu0 %v6142
          %6605 = vmatprep.subr.bf16.mxu0 %v6147
          %6606 = vmatpush1.bf16.msra.mxu0 %v6146
          %6607 = vmatprep.mubr.bf16.mxu0 %v4971
          %6608 = vmatmul.mubr.bf16.gmra.mrb[0].mxu0 %v4970
          %v6609 = vpop.f32.mrb[0].mxu0
          %v6610 = vadd.f32 %v6569, %v6609
          %v6611 = vpop.f32.mrb[0].mxu0
          %v6612 = vadd.f32 %v6571, %v6611
          %v6613 = vpop.f32.mrb[0].mxu0
          %v6614 = vpop.f32.mrb[0].mxu0
          %6615 = vdwg.mxu0
          %6616 = vmatprep.subr.bf16.mxu0 %v6151
          %6617 = vmatpush1.bf16.msra.mxu0 %v6150
          %6618 = vmatprep.subr.bf16.mxu0 %v6155
          %6619 = vmatpush1.bf16.msra.mxu0 %v6154
          %6620 = vmatprep.subr.bf16.mxu0 %v6159
          %6621 = vmatpush1.bf16.msra.mxu0 %v6158
          %6622 = vmatprep.subr.bf16.mxu0 %v6163
          %6623 = vmatpush1.bf16.msra.mxu0 %v6162
          %6624 = vmatprep.subr.bf16.mxu0 %v6167
          %6625 = vmatpush1.bf16.msra.mxu0 %v6166
          %6626 = vmatprep.subr.bf16.mxu0 %v6171
          %6627 = vmatpush1.bf16.msra.mxu0 %v6170
          %6628 = vmatprep.subr.bf16.mxu0 %v6175
          %6629 = vmatpush1.bf16.msra.mxu0 %v6174
          %6630 = vmatprep.subr.bf16.mxu0 %v6179
          %6631 = vmatpush1.bf16.msra.mxu0 %v6178
          %6632 = vmatprep.subr.bf16.mxu0 %v6183
          %6633 = vmatpush1.bf16.msra.mxu0 %v6182
          %6634 = vmatprep.subr.bf16.mxu0 %v6187
          %6635 = vmatpush1.bf16.msra.mxu0 %v6186
          %6636 = vmatprep.subr.bf16.mxu0 %v6191
          %6637 = vmatpush1.bf16.msra.mxu0 %v6190
          %6638 = vmatprep.subr.bf16.mxu0 %v6195
          %6639 = vmatpush1.bf16.msra.mxu0 %v6194
          %6640 = vmatprep.subr.bf16.mxu0 %v6199
          %6641 = vmatpush1.bf16.msra.mxu0 %v6198
          %6642 = vmatprep.subr.bf16.mxu0 %v6203
          %6643 = vmatpush1.bf16.msra.mxu0 %v6202
          %6644 = vmatprep.subr.bf16.mxu0 %v6207
          %6645 = vmatpush1.bf16.msra.mxu0 %v6206
          %6646 = vmatprep.subr.bf16.mxu0 %v6211
          %6647 = vmatpush1.bf16.msra.mxu0 %v6210
          %6648 = vmatprep.mubr.bf16.mxu0 %v4973
          %6649 = vmatmul.mubr.bf16.gmra.mrb[0].mxu0 %v4972
          %v6650 = vpop.f32.mrb[0].mxu0
          %v6651 = vadd.f32 %v6610, %v6650
          %v6652 = vpop.f32.mrb[0].mxu0
          %v6653 = vadd.f32 %v6612, %v6652
          %v6654 = vpop.f32.mrb[0].mxu0
          %v6655 = vpop.f32.mrb[0].mxu0
          %6656 = vdwg.mxu0
          %6657 = vmatprep.subr.bf16.mxu0 %v6215
          %6658 = vmatpush1.bf16.msra.mxu0 %v6214
          %6659 = vmatprep.subr.bf16.mxu0 %v6219
          %6660 = vmatpush1.bf16.msra.mxu0 %v6218
          %6661 = vmatprep.subr.bf16.mxu0 %v6223
          %6662 = vmatpush1.bf16.msra.mxu0 %v6222
          %6663 = vmatprep.subr.bf16.mxu0 %v6227
          %6664 = vmatpush1.bf16.msra.mxu0 %v6226
          %6665 = vmatprep.subr.bf16.mxu0 %v6231
          %6666 = vmatpush1.bf16.msra.mxu0 %v6230
          %6667 = vmatprep.subr.bf16.mxu0 %v6235
          %6668 = vmatpush1.bf16.msra.mxu0 %v6234
          %6669 = vmatprep.subr.bf16.mxu0 %v6239
          %6670 = vmatpush1.bf16.msra.mxu0 %v6238
          %6671 = vmatprep.subr.bf16.mxu0 %v6243
          %6672 = vmatpush1.bf16.msra.mxu0 %v6242
          %6673 = vmatprep.subr.bf16.mxu0 %v6247
          %6674 = vmatpush1.bf16.msra.mxu0 %v6246
          %6675 = vmatprep.subr.bf16.mxu0 %v6251
          %6676 = vmatpush1.bf16.msra.mxu0 %v6250
          %6677 = vmatprep.subr.bf16.mxu0 %v6255
          %6678 = vmatpush1.bf16.msra.mxu0 %v6254
          %6679 = vmatprep.subr.bf16.mxu0 %v6259
          %6680 = vmatpush1.bf16.msra.mxu0 %v6258
          %6681 = vmatprep.subr.bf16.mxu0 %v6263
          %6682 = vmatpush1.bf16.msra.mxu0 %v6262
          %6683 = vmatprep.subr.bf16.mxu0 %v6267
          %6684 = vmatpush1.bf16.msra.mxu0 %v6266
          %6685 = vmatprep.subr.bf16.mxu0 %v6271
          %6686 = vmatpush1.bf16.msra.mxu0 %v6270
          %6687 = vmatprep.subr.bf16.mxu0 %v6275
          %6688 = vmatpush1.bf16.msra.mxu0 %v6274
          %6689 = vmatprep.mubr.bf16.mxu0 %v4975
          %6690 = vmatmul.mubr.bf16.gmra.mrb[0].mxu0 %v4974
          %v6691 = vpop.f32.mrb[0].mxu0
          %v6692 = vadd.f32 %v6651, %v6691
          %v6693 = vpop.f32.mrb[0].mxu0
          %v6694 = vadd.f32 %v6653, %v6693
          %v6695 = vpop.f32.mrb[0].mxu0
          %v6696 = vpop.f32.mrb[0].mxu0
          %6697 = vdwg.mxu0
          %6698 = vmatprep.subr.bf16.mxu0 %v6025
          %6699 = vmatpush1.bf16.msra.mxu0 %v6024
          %6700 = vmatprep.subr.bf16.mxu0 %v6029
          %6701 = vmatpush1.bf16.msra.mxu0 %v6028
          %6702 = vmatprep.subr.bf16.mxu0 %v6033
          %6703 = vmatpush1.bf16.msra.mxu0 %v6032
          %6704 = vmatprep.subr.bf16.mxu0 %v6037
          %6705 = vmatpush1.bf16.msra.mxu0 %v6036
          %6706 = vmatprep.subr.bf16.mxu0 %v6041
          %6707 = vmatpush1.bf16.msra.mxu0 %v6040
          %6708 = vmatprep.subr.bf16.mxu0 %v6045
          %6709 = vmatpush1.bf16.msra.mxu0 %v6044
          %6710 = vmatprep.subr.bf16.mxu0 %v6049
          %6711 = vmatpush1.bf16.msra.mxu0 %v6048
          %6712 = vmatprep.subr.bf16.mxu0 %v6053
          %6713 = vmatpush1.bf16.msra.mxu0 %v6052
          %6714 = vmatprep.subr.bf16.mxu0 %v6057
          %6715 = vmatpush1.bf16.msra.mxu0 %v6056
          %6716 = vmatprep.subr.bf16.mxu0 %v6061
          %6717 = vmatpush1.bf16.msra.mxu0 %v6060
          %6718 = vmatprep.subr.bf16.mxu0 %v6065
          %6719 = vmatpush1.bf16.msra.mxu0 %v6064
          %6720 = vmatprep.subr.bf16.mxu0 %v6069
          %6721 = vmatpush1.bf16.msra.mxu0 %v6068
          %6722 = vmatprep.subr.bf16.mxu0 %v6073
          %6723 = vmatpush1.bf16.msra.mxu0 %v6072
          %6724 = vmatprep.subr.bf16.mxu0 %v6077
          %6725 = vmatpush1.bf16.msra.mxu0 %v6076
          %6726 = vmatprep.subr.bf16.mxu0 %v6081
          %6727 = vmatpush1.bf16.msra.mxu0 %v6080
          %6728 = vmatprep.subr.bf16.mxu0 %v6085
          %6729 = vmatpush1.bf16.msra.mxu0 %v6084
          %6730 = vmatprep.mubr.bf16.mxu0 %v4969
          %6731 = vmatmul.mubr.bf16.gmra.mrb[0].mxu0 %v4968
          %v6732 = vpop.f32.mrb[0].mxu0
          %v6733 = vadd.f32 %v5245, %v6732
          %v6734 = vpop.f32.mrb[0].mxu0
          %v6735 = vadd.f32 %v5249, %v6734
          %v6736 = vpop.f32.mrb[0].mxu0
          %v6737 = vpop.f32.mrb[0].mxu0
          %6738 = vdwg.mxu0
          %6739 = vmatprep.subr.bf16.mxu0 %v6089
          %6740 = vmatpush1.bf16.msra.mxu0 %v6088
          %6741 = vmatprep.subr.bf16.mxu0 %v6093
          %6742 = vmatpush1.bf16.msra.mxu0 %v6092
          %6743 = vmatprep.subr.bf16.mxu0 %v6097
          %6744 = vmatpush1.bf16.msra.mxu0 %v6096
          %6745 = vmatprep.subr.bf16.mxu0 %v6101
          %6746 = vmatpush1.bf16.msra.mxu0 %v6100
          %6747 = vmatprep.subr.bf16.mxu0 %v6105
          %6748 = vmatpush1.bf16.msra.mxu0 %v6104
          %6749 = vmatprep.subr.bf16.mxu0 %v6109
          %6750 = vmatpush1.bf16.msra.mxu0 %v6108
          %6751 = vmatprep.subr.bf16.mxu0 %v6113
          %6752 = vmatpush1.bf16.msra.mxu0 %v6112
          %6753 = vmatprep.subr.bf16.mxu0 %v6117
          %6754 = vmatpush1.bf16.msra.mxu0 %v6116
          %6755 = vmatprep.subr.bf16.mxu0 %v6121
          %6756 = vmatpush1.bf16.msra.mxu0 %v6120
          %6757 = vmatprep.subr.bf16.mxu0 %v6125
          %6758 = vmatpush1.bf16.msra.mxu0 %v6124
          %6759 = vmatprep.subr.bf16.mxu0 %v6129
          %6760 = vmatpush1.bf16.msra.mxu0 %v6128
          %6761 = vmatprep.subr.bf16.mxu0 %v6133
          %6762 = vmatpush1.bf16.msra.mxu0 %v6132
          %6763 = vmatprep.subr.bf16.mxu0 %v6137
          %6764 = vmatpush1.bf16.msra.mxu0 %v6136
          %6765 = vmatprep.subr.bf16.mxu0 %v6141
          %6766 = vmatpush1.bf16.msra.mxu0 %v6140
          %6767 = vmatprep.subr.bf16.mxu0 %v6145
          %6768 = vmatpush1.bf16.msra.mxu0 %v6144
          %6769 = vmatprep.subr.bf16.mxu0 %v6149
          %6770 = vmatpush1.bf16.msra.mxu0 %v6148
          %6771 = vmatprep.mubr.bf16.mxu0 %v4971
          %6772 = vmatmul.mubr.bf16.gmra.mrb[0].mxu0 %v4970
          %v6773 = vpop.f32.mrb[0].mxu0
          %v6774 = vadd.f32 %v6733, %v6773
          %v6775 = vpop.f32.mrb[0].mxu0
          %v6776 = vadd.f32 %v6735, %v6775
          %v6777 = vpop.f32.mrb[0].mxu0
          %v6778 = vpop.f32.mrb[0].mxu0
          %6779 = vdwg.mxu0
          %6780 = vmatprep.subr.bf16.mxu0 %v6153
          %6781 = vmatpush1.bf16.msra.mxu0 %v6152
          %6782 = vmatprep.subr.bf16.mxu0 %v6157
          %6783 = vmatpush1.bf16.msra.mxu0 %v6156
          %6784 = vmatprep.subr.bf16.mxu0 %v6161
          %6785 = vmatpush1.bf16.msra.mxu0 %v6160
          %6786 = vmatprep.subr.bf16.mxu0 %v6165
          %6787 = vmatpush1.bf16.msra.mxu0 %v6164
          %6788 = vmatprep.subr.bf16.mxu0 %v6169
          %6789 = vmatpush1.bf16.msra.mxu0 %v6168
          %6790 = vmatprep.subr.bf16.mxu0 %v6173
          %6791 = vmatpush1.bf16.msra.mxu0 %v6172
          %6792 = vmatprep.subr.bf16.mxu0 %v6177
          %6793 = vmatpush1.bf16.msra.mxu0 %v6176
          %6794 = vmatprep.subr.bf16.mxu0 %v6181
          %6795 = vmatpush1.bf16.msra.mxu0 %v6180
          %6796 = vmatprep.subr.bf16.mxu0 %v6185
          %6797 = vmatpush1.bf16.msra.mxu0 %v6184
          %6798 = vmatprep.subr.bf16.mxu0 %v6189
          %6799 = vmatpush1.bf16.msra.mxu0 %v6188
          %6800 = vmatprep.subr.bf16.mxu0 %v6193
          %6801 = vmatpush1.bf16.msra.mxu0 %v6192
          %6802 = vmatprep.subr.bf16.mxu0 %v6197
          %6803 = vmatpush1.bf16.msra.mxu0 %v6196
          %6804 = vmatprep.subr.bf16.mxu0 %v6201
          %6805 = vmatpush1.bf16.msra.mxu0 %v6200
          %6806 = vmatprep.subr.bf16.mxu0 %v6205
          %6807 = vmatpush1.bf16.msra.mxu0 %v6204
          %6808 = vmatprep.subr.bf16.mxu0 %v6209
          %6809 = vmatpush1.bf16.msra.mxu0 %v6208
          %6810 = vmatprep.subr.bf16.mxu0 %v6213
          %6811 = vmatpush1.bf16.msra.mxu0 %v6212
          %6812 = vmatprep.mubr.bf16.mxu0 %v4973
          %6813 = vmatmul.mubr.bf16.gmra.mrb[0].mxu0 %v4972
          %v6814 = vpop.f32.mrb[0].mxu0
          %v6815 = vadd.f32 %v6774, %v6814
          %v6816 = vpop.f32.mrb[0].mxu0
          %v6817 = vadd.f32 %v6776, %v6816
          %v6818 = vpop.f32.mrb[0].mxu0
          %v6819 = vpop.f32.mrb[0].mxu0
          %6820 = vdwg.mxu0
          %6821 = vmatprep.subr.bf16.mxu0 %v6217
          %6822 = vmatpush1.bf16.msra.mxu0 %v6216
          %6823 = vmatprep.subr.bf16.mxu0 %v6221
          %6824 = vmatpush1.bf16.msra.mxu0 %v6220
          %6825 = vmatprep.subr.bf16.mxu0 %v6225
          %6826 = vmatpush1.bf16.msra.mxu0 %v6224
          %6827 = vmatprep.subr.bf16.mxu0 %v6229
          %6828 = vmatpush1.bf16.msra.mxu0 %v6228
          %6829 = vmatprep.subr.bf16.mxu0 %v6233
          %6830 = vmatpush1.bf16.msra.mxu0 %v6232
          %6831 = vmatprep.subr.bf16.mxu0 %v6237
          %6832 = vmatpush1.bf16.msra.mxu0 %v6236
          %6833 = vmatprep.subr.bf16.mxu0 %v6241
          %6834 = vmatpush1.bf16.msra.mxu0 %v6240
          %6835 = vmatprep.subr.bf16.mxu0 %v6245
          %6836 = vmatpush1.bf16.msra.mxu0 %v6244
          %6837 = vmatprep.subr.bf16.mxu0 %v6249
          %6838 = vmatpush1.bf16.msra.mxu0 %v6248
          %6839 = vmatprep.subr.bf16.mxu0 %v6253
          %6840 = vmatpush1.bf16.msra.mxu0 %v6252
          %6841 = vmatprep.subr.bf16.mxu0 %v6257
          %6842 = vmatpush1.bf16.msra.mxu0 %v6256
          %6843 = vmatprep.subr.bf16.mxu0 %v6261
          %6844 = vmatpush1.bf16.msra.mxu0 %v6260
          %6845 = vmatprep.subr.bf16.mxu0 %v6265
          %6846 = vmatpush1.bf16.msra.mxu0 %v6264
          %6847 = vmatprep.subr.bf16.mxu0 %v6269
          %6848 = vmatpush1.bf16.msra.mxu0 %v6268
          %6849 = vmatprep.subr.bf16.mxu0 %v6273
          %6850 = vmatpush1.bf16.msra.mxu0 %v6272
          %6851 = vmatprep.subr.bf16.mxu0 %v6277
          %6852 = vmatpush1.bf16.msra.mxu0 %v6276
          %6853 = vmatprep.mubr.bf16.mxu0 %v4975
          %6854 = vmatmul.mubr.bf16.gmra.mrb[0].mxu0 %v4974
          %v6855 = vpop.f32.mrb[0].mxu0
          %v6856 = vadd.f32 %v6815, %v6855
          %v6857 = vpop.f32.mrb[0].mxu0
          %v6858 = vadd.f32 %v6817, %v6857
          %v6859 = vpop.f32.mrb[0].mxu0
          %v6860 = vpop.f32.mrb[0].mxu0
          %6861 = vdwg.mxu0
          %v6862 = vmax.f32 %v6692, 0.0
          %v6863 = vmax.f32 %v6694, 0.0
          %v6864 = vmax.f32 %v6856, 0.0
          %v6865 = vmax.f32 %v6858, 0.0
          %v6866 = vpack.c.bf16 %v6862, %v6862
          %v6867 = vpack.c.bf16 %v6863, %v6863
          %v6868 = vpack.c.bf16 %v6864, %v6864
          %v6869 = vpack.c.bf16 %v6865, %v6865
          %v6870 = vld [vmem:[#allocation13] sm:$0xf]
          %v6871 = vld [vmem:[#allocation13 + $0x4] sm:$0xf]
          %v6872 = vld [vmem:[#allocation13 + $0x8] sm:$0xf]
          %v6873 = vld [vmem:[#allocation13 + $0xc] sm:$0xf]
          %v6874 = vld [vmem:[#allocation13 + $0x10] sm:$0xf]
          %v6875 = vld [vmem:[#allocation13 + $0x14] sm:$0xf]
          %v6876 = vld [vmem:[#allocation13 + $0x18] sm:$0xf]
          %v6877 = vld [vmem:[#allocation13 + $0x1c] sm:$0xf]
          %v6878 = vld [vmem:[#allocation13 + $0x20] sm:$0xf]
          %v6879 = vld [vmem:[#allocation13 + $0x24] sm:$0xf]
          %v6880 = vld [vmem:[#allocation13 + $0x28] sm:$0xf]
          %v6881 = vld [vmem:[#allocation13 + $0x2c] sm:$0xf]
          %v6882 = vld [vmem:[#allocation13 + $0x30] sm:$0xf]
          %v6883 = vld [vmem:[#allocation13 + $0x34] sm:$0xf]
          %v6884 = vld [vmem:[#allocation13 + $0x38] sm:$0xf]
          %v6885 = vld [vmem:[#allocation13 + $0x3c] sm:$0xf]
          %v6886 = vld [vmem:[#allocation13 + $0x40] sm:$0xf]
          %v6887 = vld [vmem:[#allocation13 + $0x44] sm:$0xf]
          %v6888 = vld [vmem:[#allocation13 + $0x48] sm:$0xf]
          %v6889 = vld [vmem:[#allocation13 + $0x4c] sm:$0xf]
          %v6890 = vld [vmem:[#allocation13 + $0x50] sm:$0xf]
          %v6891 = vld [vmem:[#allocation13 + $0x54] sm:$0xf]
          %v6892 = vld [vmem:[#allocation13 + $0x58] sm:$0xf]
          %v6893 = vld [vmem:[#allocation13 + $0x5c] sm:$0xf]
          %v6894 = vld [vmem:[#allocation13 + $0x60] sm:$0xf]
          %v6895 = vld [vmem:[#allocation13 + $0x64] sm:$0xf]
          %v6896 = vld [vmem:[#allocation13 + $0x68] sm:$0xf]
          %v6897 = vld [vmem:[#allocation13 + $0x6c] sm:$0xf]
          %v6898 = vld [vmem:[#allocation13 + $0x70] sm:$0xf]
          %v6899 = vld [vmem:[#allocation13 + $0x74] sm:$0xf]
          %v6900 = vld [vmem:[#allocation13 + $0x78] sm:$0xf]
          %v6901 = vld [vmem:[#allocation13 + $0x7c] sm:$0xf]
          %v6902 = vld [vmem:[#allocation13 + $0x80] sm:$0xf]
          %v6903 = vld [vmem:[#allocation13 + $0x84] sm:$0xf]
          %v6904 = vld [vmem:[#allocation13 + $0x88] sm:$0xf]
          %v6905 = vld [vmem:[#allocation13 + $0x8c] sm:$0xf]
          %v6906 = vld [vmem:[#allocation13 + $0x90] sm:$0xf]
          %v6907 = vld [vmem:[#allocation13 + $0x94] sm:$0xf]
          %v6908 = vld [vmem:[#allocation13 + $0x98] sm:$0xf]
          %v6909 = vld [vmem:[#allocation13 + $0x9c] sm:$0xf]
          %v6910 = vld [vmem:[#allocation13 + $0xa0] sm:$0xf]
          %v6911 = vld [vmem:[#allocation13 + $0xa4] sm:$0xf]
          %v6912 = vld [vmem:[#allocation13 + $0xa8] sm:$0xf]
          %v6913 = vld [vmem:[#allocation13 + $0xac] sm:$0xf]
          %v6914 = vld [vmem:[#allocation13 + $0xb0] sm:$0xf]
          %v6915 = vld [vmem:[#allocation13 + $0xb4] sm:$0xf]
          %v6916 = vld [vmem:[#allocation13 + $0xb8] sm:$0xf]
          %v6917 = vld [vmem:[#allocation13 + $0xbc] sm:$0xf]
          %v6918 = vld [vmem:[#allocation13 + $0xc0] sm:$0xf]
          %v6919 = vld [vmem:[#allocation13 + $0xc4] sm:$0xf]
          %v6920 = vld [vmem:[#allocation13 + $0xc8] sm:$0xf]
          %v6921 = vld [vmem:[#allocation13 + $0xcc] sm:$0xf]
          %v6922 = vld [vmem:[#allocation13 + $0xd0] sm:$0xf]
          %v6923 = vld [vmem:[#allocation13 + $0xd4] sm:$0xf]
          %v6924 = vld [vmem:[#allocation13 + $0xd8] sm:$0xf]
          %v6925 = vld [vmem:[#allocation13 + $0xdc] sm:$0xf]
          %v6926 = vld [vmem:[#allocation13 + $0xe0] sm:$0xf]
          %v6927 = vld [vmem:[#allocation13 + $0xe4] sm:$0xf]
          %v6928 = vld [vmem:[#allocation13 + $0xe8] sm:$0xf]
          %v6929 = vld [vmem:[#allocation13 + $0xec] sm:$0xf]
          %v6930 = vld [vmem:[#allocation13 + $0xf0] sm:$0xf]
          %v6931 = vld [vmem:[#allocation13 + $0xf4] sm:$0xf]
          %v6932 = vld [vmem:[#allocation13 + $0xf8] sm:$0xf]
          %v6933 = vld [vmem:[#allocation13 + $0xfc] sm:$0xf]
          %v6934 = vld [vmem:[#allocation14] sm:$0x1]
          %v6936 = vlaneseq
          %v6937 = vshrl.u32 %v6936, 7
          %v6938 = vsub.s32 0, %v6937
          %v6939 = vrot.slane %v6934, %v6938
          %v7005 = vunpack.c.l.b16 %v6870
          %v7006 = vunpack.c.l.b16 %v6871
          %v7007 = vunpack.c.l.b16 %v6872
          %v7008 = vunpack.c.l.b16 %v6873
          %v7009 = vunpack.c.l.b16 %v6874
          %v7010 = vunpack.c.l.b16 %v6875
          %v7011 = vunpack.c.l.b16 %v6876
          %v7012 = vunpack.c.l.b16 %v6877
          %v7013 = vunpack.c.l.b16 %v6878
          %v7014 = vunpack.c.l.b16 %v6879
          %v7015 = vunpack.c.l.b16 %v6880
          %v7016 = vunpack.c.l.b16 %v6881
          %v7017 = vunpack.c.l.b16 %v6882
          %v7018 = vunpack.c.l.b16 %v6883
          %v7019 = vunpack.c.l.b16 %v6884
          %v7020 = vunpack.c.l.b16 %v6885
          %v7021 = vunpack.c.l.b16 %v6886
          %v7022 = vunpack.c.l.b16 %v6887
          %v7023 = vunpack.c.l.b16 %v6888
          %v7024 = vunpack.c.l.b16 %v6889
          %v7025 = vunpack.c.l.b16 %v6890
          %v7026 = vunpack.c.l.b16 %v6891
          %v7027 = vunpack.c.l.b16 %v6892
          %v7028 = vunpack.c.l.b16 %v6893
          %v7029 = vunpack.c.l.b16 %v6894
          %v7030 = vunpack.c.l.b16 %v6895
          %v7031 = vunpack.c.l.b16 %v6896
          %v7032 = vunpack.c.l.b16 %v6897
          %v7033 = vunpack.c.l.b16 %v6898
          %v7034 = vunpack.c.l.b16 %v6899
          %v7035 = vunpack.c.l.b16 %v6900
          %v7036 = vunpack.c.l.b16 %v6901
          %v7037 = vunpack.c.l.b16 %v6902
          %v7038 = vunpack.c.l.b16 %v6903
          %v7039 = vunpack.c.l.b16 %v6904
          %v7040 = vunpack.c.l.b16 %v6905
          %v7041 = vunpack.c.l.b16 %v6906
          %v7042 = vunpack.c.l.b16 %v6907
          %v7043 = vunpack.c.l.b16 %v6908
          %v7044 = vunpack.c.l.b16 %v6909
          %v7045 = vunpack.c.l.b16 %v6910
          %v7046 = vunpack.c.l.b16 %v6911
          %v7047 = vunpack.c.l.b16 %v6912
          %v7048 = vunpack.c.l.b16 %v6913
          %v7049 = vunpack.c.l.b16 %v6914
          %v7050 = vunpack.c.l.b16 %v6915
          %v7051 = vunpack.c.l.b16 %v6916
          %v7052 = vunpack.c.l.b16 %v6917
          %v7053 = vunpack.c.l.b16 %v6918
          %v7054 = vunpack.c.l.b16 %v6919
          %v7055 = vunpack.c.l.b16 %v6920
          %v7056 = vunpack.c.l.b16 %v6921
          %v7057 = vunpack.c.l.b16 %v6922
          %v7058 = vunpack.c.l.b16 %v6923
          %v7059 = vunpack.c.l.b16 %v6924
          %v7060 = vunpack.c.l.b16 %v6925
          %v7061 = vunpack.c.l.b16 %v6926
          %v7062 = vunpack.c.l.b16 %v6927
          %v7063 = vunpack.c.l.b16 %v6928
          %v7064 = vunpack.c.l.b16 %v6929
          %v7065 = vunpack.c.l.b16 %v6930
          %v7066 = vunpack.c.l.b16 %v6931
          %v7067 = vunpack.c.l.b16 %v6932
          %v7068 = vunpack.c.l.b16 %v6933
          %v7069 = vpack.c.b16 %v7006, %v7005
          %v7070 = vpack.c.b16 %v7008, %v7007
          %v7071 = vpack.c.b16 %v7010, %v7009
          %v7072 = vpack.c.b16 %v7012, %v7011
          %v7073 = vpack.c.b16 %v7014, %v7013
          %v7074 = vpack.c.b16 %v7016, %v7015
          %v7075 = vpack.c.b16 %v7018, %v7017
          %v7076 = vpack.c.b16 %v7020, %v7019
          %v7077 = vpack.c.b16 %v7022, %v7021
          %v7078 = vpack.c.b16 %v7024, %v7023
          %v7079 = vpack.c.b16 %v7026, %v7025
          %v7080 = vpack.c.b16 %v7028, %v7027
          %v7081 = vpack.c.b16 %v7030, %v7029
          %v7082 = vpack.c.b16 %v7032, %v7031
          %v7083 = vpack.c.b16 %v7034, %v7033
          %v7084 = vpack.c.b16 %v7036, %v7035
          %v7085 = vpack.c.b16 %v7038, %v7037
          %v7086 = vpack.c.b16 %v7040, %v7039
          %v7087 = vpack.c.b16 %v7042, %v7041
          %v7088 = vpack.c.b16 %v7044, %v7043
          %v7089 = vpack.c.b16 %v7046, %v7045
          %v7090 = vpack.c.b16 %v7048, %v7047
          %v7091 = vpack.c.b16 %v7050, %v7049
          %v7092 = vpack.c.b16 %v7052, %v7051
          %v7093 = vpack.c.b16 %v7054, %v7053
          %v7094 = vpack.c.b16 %v7056, %v7055
          %v7095 = vpack.c.b16 %v7058, %v7057
          %v7096 = vpack.c.b16 %v7060, %v7059
          %v7097 = vpack.c.b16 %v7062, %v7061
          %v7098 = vpack.c.b16 %v7064, %v7063
          %v7099 = vpack.c.b16 %v7066, %v7065
          %v7100 = vpack.c.b16 %v7068, %v7067
          %7133 = vmatprep.subr.bf16.mxu0 0
          %7134 = vmatpush1.bf16.msra.mxu0 %v7069
          %7135 = vmatprep.subr.bf16.mxu0 0
          %7136 = vmatpush1.bf16.msra.mxu0 %v7070
          %7137 = vmatprep.subr.bf16.mxu0 0
          %7138 = vmatpush1.bf16.msra.mxu0 %v7071
          %7139 = vmatprep.subr.bf16.mxu0 0
          %7140 = vmatpush1.bf16.msra.mxu0 %v7072
          %7141 = vmatprep.subr.bf16.mxu0 0
          %7142 = vmatpush1.bf16.msra.mxu0 %v7073
          %7143 = vmatprep.subr.bf16.mxu0 0
          %7144 = vmatpush1.bf16.msra.mxu0 %v7074
          %7145 = vmatprep.subr.bf16.mxu0 0
          %7146 = vmatpush1.bf16.msra.mxu0 %v7075
          %7147 = vmatprep.subr.bf16.mxu0 0
          %7148 = vmatpush1.bf16.msra.mxu0 %v7076
          %7149 = vmatprep.subr.bf16.mxu0 0
          %7150 = vmatpush1.bf16.msra.mxu0 %v7077
          %7151 = vmatprep.subr.bf16.mxu0 0
          %7152 = vmatpush1.bf16.msra.mxu0 %v7078
          %7153 = vmatprep.subr.bf16.mxu0 0
          %7154 = vmatpush1.bf16.msra.mxu0 %v7079
          %7155 = vmatprep.subr.bf16.mxu0 0
          %7156 = vmatpush1.bf16.msra.mxu0 %v7080
          %7157 = vmatprep.subr.bf16.mxu0 0
          %7158 = vmatpush1.bf16.msra.mxu0 %v7081
          %7159 = vmatprep.subr.bf16.mxu0 0
          %7160 = vmatpush1.bf16.msra.mxu0 %v7082
          %7161 = vmatprep.subr.bf16.mxu0 0
          %7162 = vmatpush1.bf16.msra.mxu0 %v7083
          %7163 = vmatprep.subr.bf16.mxu0 0
          %7164 = vmatpush1.bf16.msra.mxu0 %v7084
          %7165 = vmatprep.mubr.bf16.mxu0 %v6867
          %7166 = vmatmul.mubr.bf16.gmra.mrb[0].mxu0 %v6866
          %v7167 = vpop.f32.mrb[0].mxu0
          %v7168 = vadd.f32 %v6939, %v7167
          %v7169 = vpop.f32.mrb[0].mxu0
          %v7170 = vpop.f32.mrb[0].mxu0
          %v7171 = vpop.f32.mrb[0].mxu0
          %7172 = vdwg.mxu0
          %7173 = vmatprep.subr.bf16.mxu0 0
          %7174 = vmatpush1.bf16.msra.mxu0 %v7085
          %7175 = vmatprep.subr.bf16.mxu0 0
          %7176 = vmatpush1.bf16.msra.mxu0 %v7086
          %7177 = vmatprep.subr.bf16.mxu0 0
          %7178 = vmatpush1.bf16.msra.mxu0 %v7087
          %7179 = vmatprep.subr.bf16.mxu0 0
          %7180 = vmatpush1.bf16.msra.mxu0 %v7088
          %7181 = vmatprep.subr.bf16.mxu0 0
          %7182 = vmatpush1.bf16.msra.mxu0 %v7089
          %7183 = vmatprep.subr.bf16.mxu0 0
          %7184 = vmatpush1.bf16.msra.mxu0 %v7090
          %7185 = vmatprep.subr.bf16.mxu0 0
          %7186 = vmatpush1.bf16.msra.mxu0 %v7091
          %7187 = vmatprep.subr.bf16.mxu0 0
          %7188 = vmatpush1.bf16.msra.mxu0 %v7092
          %7189 = vmatprep.subr.bf16.mxu0 0
          %7190 = vmatpush1.bf16.msra.mxu0 %v7093
          %7191 = vmatprep.subr.bf16.mxu0 0
          %7192 = vmatpush1.bf16.msra.mxu0 %v7094
          %7193 = vmatprep.subr.bf16.mxu0 0
          %7194 = vmatpush1.bf16.msra.mxu0 %v7095
          %7195 = vmatprep.subr.bf16.mxu0 0
          %7196 = vmatpush1.bf16.msra.mxu0 %v7096
          %7197 = vmatprep.subr.bf16.mxu0 0
          %7198 = vmatpush1.bf16.msra.mxu0 %v7097
          %7199 = vmatprep.subr.bf16.mxu0 0
          %7200 = vmatpush1.bf16.msra.mxu0 %v7098
          %7201 = vmatprep.subr.bf16.mxu0 0
          %7202 = vmatpush1.bf16.msra.mxu0 %v7099
          %7203 = vmatprep.subr.bf16.mxu0 0
          %7204 = vmatpush1.bf16.msra.mxu0 %v7100
          %7205 = vmatprep.mubr.bf16.mxu0 %v6869
          %7206 = vmatmul.mubr.bf16.gmra.mrb[0].mxu0 %v6868
          %v7207 = vpop.f32.mrb[0].mxu0
          %v7208 = vadd.f32 %v7168, %v7207
          %v7209 = vpop.f32.mrb[0].mxu0
          %v7210 = vpop.f32.mrb[0].mxu0
          %v7211 = vpop.f32.mrb[0].mxu0
          %7212 = vdwg.mxu0
          %v7213 = vmax.f32 %v7208, 0.0
          %v7214 = vpack.c.bf16 %v7213, %v7213
          %v7215 = vld [vmem:[#allocation16] sm:$0xf]
          %v7216 = vld [vmem:[#allocation16 + $0x4] sm:$0xf]
          %v7217 = vld [vmem:[#allocation16 + $0x8] sm:$0xf]
          %v7218 = vld [vmem:[#allocation16 + $0xc] sm:$0xf]
          %v7219 = vld [vmem:[#allocation16 + $0x10] sm:$0xf]
          %v7220 = vld [vmem:[#allocation16 + $0x14] sm:$0xf]
          %v7221 = vld [vmem:[#allocation16 + $0x18] sm:$0xf]
          %v7222 = vld [vmem:[#allocation16 + $0x1c] sm:$0xf]
          %v7223 = vld [vmem:[#allocation16 + $0x20] sm:$0xf]
          %v7224 = vld [vmem:[#allocation16 + $0x24] sm:$0xf]
          %v7225 = vld [vmem:[#allocation16 + $0x28] sm:$0xf]
          %v7226 = vld [vmem:[#allocation16 + $0x2c] sm:$0xf]
          %v7227 = vld [vmem:[#allocation16 + $0x30] sm:$0xf]
          %v7228 = vld [vmem:[#allocation16 + $0x34] sm:$0xf]
          %v7229 = vld [vmem:[#allocation16 + $0x38] sm:$0xf]
          %v7230 = vld [vmem:[#allocation16 + $0x3c] sm:$0xf]
          %v7231 = vld [vmem:[#allocation17] sm:$0x1]
          %v7233 = vlaneseq
          %v7234 = vshrl.u32 %v7233, 7
          %v7235 = vsub.s32 0, %v7234
          %v7236 = vrot.slane %v7231, %v7235
          %v7254 = vunpack.c.l.b16 %v7215
          %v7255 = vunpack.c.l.b16 %v7216
          %v7256 = vunpack.c.l.b16 %v7217
          %v7257 = vunpack.c.l.b16 %v7218
          %v7258 = vunpack.c.l.b16 %v7219
          %v7259 = vunpack.c.l.b16 %v7220
          %v7260 = vunpack.c.l.b16 %v7221
          %v7261 = vunpack.c.l.b16 %v7222
          %v7262 = vunpack.c.l.b16 %v7223
          %v7263 = vunpack.c.l.b16 %v7224
          %v7264 = vunpack.c.l.b16 %v7225
          %v7265 = vunpack.c.l.b16 %v7226
          %v7266 = vunpack.c.l.b16 %v7227
          %v7267 = vunpack.c.l.b16 %v7228
          %v7268 = vunpack.c.l.b16 %v7229
          %v7269 = vunpack.c.l.b16 %v7230
          %v7270 = vpack.c.b16 %v7255, %v7254
          %v7271 = vpack.c.b16 %v7257, %v7256
          %v7272 = vpack.c.b16 %v7259, %v7258
          %v7273 = vpack.c.b16 %v7261, %v7260
          %v7274 = vpack.c.b16 %v7263, %v7262
          %v7275 = vpack.c.b16 %v7265, %v7264
          %v7276 = vpack.c.b16 %v7267, %v7266
          %v7277 = vpack.c.b16 %v7269, %v7268
          %7286 = vmatprep.subr.bf16.mxu0 0
          %7287 = vmatpush1.bf16.msra.mxu0 %v7270
          %7288 = vmatprep.subr.bf16.mxu0 0
          %7289 = vmatpush1.bf16.msra.mxu0 %v7271
          %7290 = vmatprep.subr.bf16.mxu0 0
          %7291 = vmatpush1.bf16.msra.mxu0 %v7272
          %7292 = vmatprep.subr.bf16.mxu0 0
          %7293 = vmatpush1.bf16.msra.mxu0 %v7273
          %7294 = vmatprep.subr.bf16.mxu0 0
          %7295 = vmatpush1.bf16.msra.mxu0 %v7274
          %7296 = vmatprep.subr.bf16.mxu0 0
          %7297 = vmatpush1.bf16.msra.mxu0 %v7275
          %7298 = vmatprep.subr.bf16.mxu0 0
          %7299 = vmatpush1.bf16.msra.mxu0 %v7276
          %7300 = vmatprep.subr.bf16.mxu0 0
          %7301 = vmatpush1.bf16.msra.mxu0 %v7277
          %7302 = vmatprep.subr.bf16.mxu0 0
          %7303 = vmatpush1.bf16.msra.mxu0 0
          %7304 = vmatprep.subr.bf16.mxu0 0
          %7305 = vmatpush1.bf16.msra.mxu0 0
          %7306 = vmatprep.subr.bf16.mxu0 0
          %7307 = vmatpush1.bf16.msra.mxu0 0
          %7308 = vmatprep.subr.bf16.mxu0 0
          %7309 = vmatpush1.bf16.msra.mxu0 0
          %7310 = vmatprep.subr.bf16.mxu0 0
          %7311 = vmatpush1.bf16.msra.mxu0 0
          %7312 = vmatprep.subr.bf16.mxu0 0
          %7313 = vmatpush1.bf16.msra.mxu0 0
          %7314 = vmatprep.subr.bf16.mxu0 0
          %7315 = vmatpush1.bf16.msra.mxu0 0
          %7316 = vmatprep.subr.bf16.mxu0 0
          %7317 = vmatpush1.bf16.msra.mxu0 0
          %7318 = vmatprep.mubr.bf16.mxu0 0
          %7319 = vmatmul.mubr.bf16.gmra.mrb[0].mxu0 %v7214
          %v7320 = vpop.f32.mrb[0].mxu0
          %v7321 = vadd.f32 %v7236, %v7320
          %v7322 = vpop.f32.mrb[0].mxu0
          %v7323 = vpop.f32.mrb[0].mxu0
          %v7324 = vpop.f32.mrb[0].mxu0
          %7325 = vdwg.mxu0
          %v7326 = vxor.u32 %v7321, 2147483648
          %v7327 = vmul.f32 %v7326, 1.442695
          %v7328 = vpow.pop %v7327
          %v7329 = vadd.f32 %v7328, 1.0
          %v7330 = vrcp.pop %v7329
          %v7331 = vmul.f32 1.0, %v7330
          %7332 = vst [vmem:[%s10] sm:$0xff] %v7331
        $region108: #{net_forward.1} parent=59 // pred_fallthru
          _
        // Predicated region
        $region109: #{net_forward.1} parent=59 // pred_check
          %p7333 = pneg %p257
        $region110: #{net_forward.1} parent=59 // pred_check_branch
          %7335 = sbr.rel (%p7333) target = $region112
        $region111: #{net_forward.1} parent=59 // pred_region
          _
        $region112: #{net_forward.1} parent=59 // pred_fallthru
          _
        // Predicated region
        $region113: #{net_forward.1} parent=59 // pred_check
          %p7336 = pneg %p257
        $region114: #{net_forward.1} parent=59 // pred_check_branch
          %7338 = sbr.rel (%p7336) target = $region116
        $region115: #{net_forward.1} parent=59 // pred_region
          _
        $region116: #{net_forward.1} parent=59 // pred_fallthru
          _
      $region60: #{net_forward.1} parent=5 // pred_fallthru
        _
      %p7339 = scmp.le.s32.totalorder 2, %s24
      // Predicated region
      $region117: #{net_forward.1} parent=5 // pred_check
        %p7340 = pneg %p7339
      $region118: #{net_forward.1} parent=5 // pred_check_branch
        %7342 = sbr.rel (%p7340) target = $region120
      $region119: #{net_forward.1} parent=5 // pred_region
        %s7343 = ssub.s32 %s24, 2
      $region120: #{net_forward.1} parent=5 // pred_fallthru
        _
    $region6: #{net_forward.1} parent=1 // loop_footer
      %s28 = sadd.s32 1, %s24
    $region7: #{net_forward.1} parent=1 // loop_footer_branch
      %23 = sbr.rel target = $region3
    $region8: #{net_forward.1} parent=1 // loop_exit
      _
    %7344 = vsyncpa [#allocation4], 1
    %s7345 = scalar_lea.sflag [#allocation4], 1
    %7346 = vsyncpa %s7345, 1
    %7347 = vsyncpa [#allocation6], 1
    %s7348 = scalar_lea.sflag [#allocation6], 1
    %7349 = vsyncpa %s7348, 1
    %7350 = vsyncpa [#allocation9], 1
    %7351 = vsyncpa [#allocation12], 1
    %7352 = vsyncpa [#allocation15], 1
    %7353 = vsyncpa [#allocation18], 1

</llo_original>
